<compile_context>
chip_gen: v7x
topology: tpu7x:2x2x1
jax: 0.10.0
libtpu: 0.0.40
codegen_flags: <defaults>
</compile_context>

<pallas_src>
import jax
import jax.numpy as jnp
from jax.experimental import pallas as pl
from jax.experimental.pallas import tpu as pltpu

EPS = 1e-5   # PyTorch BatchNorm default eps
K = 5        # Conv3d kernel size in the module


# ------------------------------ Pallas kernel ------------------------------ #

def _make_kernel(C, H, W, TD, KC, KC_PAD, LIN, LPAD, M):
    """Fused BN-affine + ReLU + Conv3d(k=5) kernel for one (batch, depth-tile)."""
    HW = H * W
    PAD_ROWS = KC_PAD - KC
    aligned = (TD * HW) % 128 == 0

    def kernel(scale_ref, shift_ref, w_ref, x_ref, o_ref, y_ref, patch_ref):
        # scale_ref/shift_ref: (C,) f32 in SMEM
        # w_ref:   (COUT_PAD, KC_PAD) folded conv weights (+ bias column), resident
        # x_ref:   (1, C, D*H*W) raw input block for this batch element, resident
        # o_ref:   (1, COUT_PAD, M) output tile (lane-dense flattened spatial)
        # y_ref:   (C, LPAD) VMEM scratch: BN+ReLU'd halo'd slab (flattened d,h,w)
        # patch_ref: (KC_PAD, M) VMEM scratch: in-VMEM im2col patch
        t = pl.program_id(1)
        d0 = t * (TD * HW)
        if aligned:
            d0 = pl.multiple_of(d0, 128)

        # ---- fused BatchNorm affine + ReLU into the halo'd slab ------------ #
        for c in range(C):
            xc = x_ref[0, c, pl.ds(d0, LIN)]                       # (LIN,)
            y_ref[c, pl.ds(0, LIN)] = jnp.maximum(
                xc * scale_ref[c] + shift_ref[c], 0.0)
        # keep the tiny slab tail finite so "full-frame" garbage cols are finite
        y_ref[:, pl.ds(LIN, LPAD - LIN)] = jnp.zeros((C, LPAD - LIN), jnp.float32)

        # ---- in-VMEM im2col: one contiguous slice per (kd, kh, kw) tap ----- #
        kidx = 0
        for kd in range(K):
            for kh in range(K):
                for kw in range(K):
                    off = kd * HW + kh * W + kw                    # static offset
                    patch_ref[pl.ds(kidx * C, C), :] = y_ref[:, pl.ds(off, M)]
                    kidx += 1
        # padding rows: row KC = ones (feeds the folded bias column), rest zero
        patch_ref[pl.ds(KC, PAD_ROWS), :] = jnp.zeros((PAD_ROWS, M), jnp.float32)
        patch_ref[pl.ds(KC, 1), :] = jnp.ones((1, M), jnp.float32)

        # ---- single MXU matmul over the full padded contraction ------------ #
        out = jnp.dot(w_ref[...], patch_ref[...],
                      preferred_element_type=jnp.float32)          # (COUT_PAD, M)
        o_ref[0, :, :] = out

    return kernel


# ------------------------------ wrapper ------------------------------------ #

def _pick_depth_tile(Do, HW, max_patch_cols):
    """Largest TD that divides Do, keeps TD*H*W a multiple of 128 (lane-dense,
    legal non-full output block) and caps the in-VMEM patch width."""
    best = None
    for d in range(1, Do + 1):
        if Do % d == 0 and (d * HW) % 128 == 0 and d * HW <= max_patch_cols:
            best = d
    return best if best is not None else Do   # fall back to one full-depth tile


def output_transition_forward(x, gamma, beta, conv_w, conv_b, *,
                              max_patch_cols=4096):
    """x: (N, C, D, H, W) f32 -> (N, Cout, D-4, H-4, W-4) f32 (train-mode BN)."""
    N, C, D, H, W = x.shape
    Cout, Cin, Kd, Kh, Kw = conv_w.shape
    assert Cin == C and Kd == Kh == Kw == K
    assert D >= K and H >= K and W >= K
    Do, Ho, Wo = D - K + 1, H - K + 1, W - K + 1
    HW = H * W

    x = x.astype(jnp.float32)

    # --- BatchNorm3d batch statistics: one mem-bound reduction (plain JAX) --- #
    mean = jnp.mean(x, axis=(0, 2, 3, 4))
    var = jnp.var(x, axis=(0, 2, 3, 4))                 # biased, matches PyTorch
    scale = gamma.astype(jnp.float32) * jax.lax.rsqrt(var + EPS)
    shift = beta.astype(jnp.float32) - mean * scale

    # --- fold conv weight to (COUT_PAD, KC_PAD); bias in column KC ----------- #
    KC = C * K ** 3                                     # 500
    KC_PAD = ((KC + 1 + 127) // 128) * 128              # 512
    COUT_PAD = max(8, -(-Cout // 8) * 8)                # 8
    w2 = jnp.transpose(conv_w.astype(jnp.float32), (0, 2, 3, 4, 1)).reshape(Cout, KC)
    w2p = jnp.zeros((COUT_PAD, KC_PAD), jnp.float32)
    w2p = w2p.at[:Cout, :KC].set(w2)
    w2p = w2p.at[:Cout, KC].set(conv_b.astype(jnp.float32))

    # --- depth tiling --------------------------------------------------------- #
    TD = _pick_depth_tile(Do, HW, max_patch_cols)
    nT = Do // TD
    M = TD * HW                          # "full-frame" output columns per tile
    LIN = (TD + K - 1) * HW              # halo'd slab length (valid data)
    LPAD = LIN + (K - 1) * W + (K - 1)   # + tail touched only by garbage columns

    xf = x.reshape(N, C, D * HW)         # cheap: merges contiguous trailing dims

    # Explicit VMEM budget -> compiler hint (keeps double-buffering alive).
    vmem_bytes = (2 * C * D * HW * 4          # resident x block
                  + 2 * COUT_PAD * M * 4      # output tile
                  + 2 * COUT_PAD * KC_PAD * 4 # folded weights
                  + C * LPAD * 4              # normalized slab scratch
                  + KC_PAD * M * 4)           # patch scratch
    vmem_limit = min(int(1.5 * vmem_bytes) + (16 << 20), 96 << 20)

    kernel = _make_kernel(C, H, W, TD, KC, KC_PAD, LIN, LPAD, M)

    # TODO(synk): for volumes where a full (C, D, H, W) batch element no longer
    # fits VMEM (e.g. 128^3 on v7x), switch the x input to memory_space=pl.ANY
    # and DMA a halo'd (TD+4, H-tile+4) slab per grid step instead.
    out_flat = pl.pallas_call(
        kernel,
        out_shape=jax.ShapeDtypeStruct((N, COUT_PAD, Do * HW), jnp.float32),
        grid=(N, nT),
        in_specs=[
            pl.BlockSpec(memory_space=pltpu.MemorySpace.SMEM),          # scale (C,)
            pl.BlockSpec(memory_space=pltpu.MemorySpace.SMEM),          # shift (C,)
            pl.BlockSpec((COUT_PAD, KC_PAD), lambda n, t: (0, 0)),      # weights, resident
            pl.BlockSpec((1, C, D * HW), lambda n, t: (n, 0, 0)),       # x, resident per n
        ],
        out_specs=pl.BlockSpec((1, COUT_PAD, M), lambda n, t: (n, 0, t)),
        scratch_shapes=[
            pltpu.VMEM((C, LPAD), jnp.float32),       # BN+ReLU'd halo'd slab
            pltpu.VMEM((KC_PAD, M), jnp.float32),     # in-VMEM im2col patch
        ],
        compiler_params=pltpu.CompilerParams(
            dimension_semantics=("parallel", "parallel"),
            vmem_limit_bytes=vmem_limit,
        ),
    )(scale, shift, w2p, xf)

    # Drop padded output channels and the "full-frame" garbage columns.
    out = out_flat.reshape(N, COUT_PAD, Do, H, W)[:, :Cout, :, :Ho, :Wo]
    return out


# ------------------------------ pure-JAX ref -------------------------------- #

def ref_forward(x, gamma, beta, conv_w, conv_b):
    mean = jnp.mean(x, axis=(0, 2, 3, 4), keepdims=True)
    var = jnp.mean((x - mean) ** 2, axis=(0, 2, 3, 4), keepdims=True)
    y = (x - mean) * jax.lax.rsqrt(var + EPS)
    y = y * gamma.reshape(1, -1, 1, 1, 1) + beta.reshape(1, -1, 1, 1, 1)
    y = jnp.maximum(y, 0.0)
    out = jax.lax.conv_general_dilated(
        y, conv_w, window_strides=(1, 1, 1), padding="VALID",
        dimension_numbers=("NCDHW", "OIDHW", "NCDHW"))
    return out + conv_b.reshape(1, -1, 1, 1, 1)


# ---------------------------------- main ------------------------------------ #

if __name__ == "__main__":
    inChans, out_number = 4, 3
    N, D, H, W = 2, 16, 16, 16

    key = jax.random.PRNGKey(0)
    kx, kg, kb, kwt, kbi = jax.random.split(key, 5)

    x = jax.random.normal(kx, (N, inChans, D, H, W), dtype=jnp.float32)
    gamma = 1.0 + 0.1 * jax.random.normal(kg, (inChans,), dtype=jnp.float32)
    beta = 0.1 * jax.random.normal(kb, (inChans,), dtype=jnp.float32)
    conv_w = 0.05 * jax.random.normal(kwt, (out_number, inChans, K, K, K),
                                      dtype=jnp.float32)
    conv_b = 0.05 * jax.random.normal(kbi, (out_number,), dtype=jnp.float32)

    # small max_patch_cols so the demo exercises the multi-tile grid (grid=(2,3))
    out = output_transition_forward(x, gamma, beta, conv_w, conv_b,
                                    max_patch_cols=1024)
    out = jax.block_until_ready(out)

    ref = jax.block_until_ready(ref_forward(x, gamma, beta, conv_w, conv_b))
    assert out.shape == (N, out_number, D - K + 1, H - K + 1, W - K + 1)
    assert jnp.allclose(out, ref, atol=1e-4, rtol=1e-4), \
        float(jnp.max(jnp.abs(out - ref)))

    print("KERNEL_OK")
</pallas_src>

<mosaic_0001>
module attributes {stable_mosaic.version = 11 : i64} {
  func.func @kernel(%arg0: i32, %arg1: i32, %arg2: memref<4xf32, #tpu.memory_space<smem>>, %arg3: memref<4xf32, #tpu.memory_space<smem>>, %arg4: memref<8x512xf32, #tpu.memory_space<vmem>>, %arg5: memref<1x4x4096xf32, #tpu.memory_space<vmem>>, %arg6: memref<1x8x1024xf32, #tpu.memory_space<vmem>>, %arg7: memref<4x2116xf32, #tpu.memory_space<vmem>>, %arg8: memref<512x1024xf32, #tpu.memory_space<vmem>>) attributes {dimension_semantics = [#tpu.dimension_semantics<parallel>, #tpu.dimension_semantics<parallel>], iteration_bounds = array<i64: 2, 3>, scalar_prefetch = 0 : i64, scratch_operands = 2 : i64, tpu.core_type = #tpu.core_type<tc>, window_params = [{transform_indices = @transform_0, window_bounds = array<i64: 4>}, {transform_indices = @transform_1, window_bounds = array<i64: 4>}, {pipeline_mode = #tpu.pipeline_mode<synchronous>, transform_indices = @transform_2, window_bounds = array<i64: 8, 512>}, {transform_indices = @transform_3, window_bounds = array<i64: 1, 4, 4096>}, {transform_indices = @transform_4, window_bounds = array<i64: 1, 8, 1024>}]} {
    %c1024_i32 = arith.constant 1024 : i32
    %0 = arith.muli %arg1, %c1024_i32 : i32
    %1 = tpu.assume_multiple %0, 128 : i32
    %c0 = arith.constant 0 : index
    %c0_0 = arith.constant 0 : index
    %2 = arith.index_cast %1 : i32 to index
    %3 = vector.load %arg5[%c0, %c0_0, %2] : memref<1x4x4096xf32, #tpu.memory_space<vmem>>, vector<1x1x2048xf32>
    %4 = vector.shape_cast %3 : vector<1x1x2048xf32> to vector<2048xf32>
    %c0_1 = arith.constant 0 : index
    %5 = memref.load %arg2[%c0_1] : memref<4xf32, #tpu.memory_space<smem>>
    %6 = vector.broadcast %5 : f32 to vector<2048xf32>
    %7 = arith.mulf %4, %6 : vector<2048xf32>
    %c0_2 = arith.constant 0 : index
    %8 = memref.load %arg3[%c0_2] : memref<4xf32, #tpu.memory_space<smem>>
    %9 = vector.broadcast %8 : f32 to vector<2048xf32>
    %10 = arith.addf %7, %9 : vector<2048xf32>
    %cst = arith.constant 0.000000e+00 : f32
    %11 = vector.broadcast %cst : f32 to vector<2048xf32>
    %12 = arith.maximumf %10, %11 : vector<2048xf32>
    %c0_3 = arith.constant 0 : index
    %c0_4 = arith.constant 0 : index
    %13 = vector.load %arg7[%c0_3, %c0_4] : memref<4x2116xf32, #tpu.memory_space<vmem>>, vector<1x2048xf32>
    %14 = vector.shape_cast %13 : vector<1x2048xf32> to vector<2048xf32>
    %15 = vector.shape_cast %12 : vector<2048xf32> to vector<1x2048xf32>
    tpu.vector_store %arg7[%c0_3, %c0_4], %15 {strides = array<i32>} : memref<4x2116xf32, #tpu.memory_space<vmem>>, vector<1x2048xf32>,
    %c0_5 = arith.constant 0 : index
    %c1 = arith.constant 1 : index
    %16 = arith.index_cast %1 : i32 to index
    %17 = vector.load %arg5[%c0_5, %c1, %16] : memref<1x4x4096xf32, #tpu.memory_space<vmem>>, vector<1x1x2048xf32>
    %18 = vector.shape_cast %17 : vector<1x1x2048xf32> to vector<2048xf32>
    %c1_6 = arith.constant 1 : index
    %19 = memref.load %arg2[%c1_6] : memref<4xf32, #tpu.memory_space<smem>>
    %20 = vector.broadcast %19 : f32 to vector<2048xf32>
    %21 = arith.mulf %18, %20 : vector<2048xf32>
    %c1_7 = arith.constant 1 : index
    %22 = memref.load %arg3[%c1_7] : memref<4xf32, #tpu.memory_space<smem>>
    %23 = vector.broadcast %22 : f32 to vector<2048xf32>
    %24 = arith.addf %21, %23 : vector<2048xf32>
    %cst_8 = arith.constant 0.000000e+00 : f32
    %25 = vector.broadcast %cst_8 : f32 to vector<2048xf32>
    %26 = arith.maximumf %24, %25 : vector<2048xf32>
    %c1_9 = arith.constant 1 : index
    %c0_10 = arith.constant 0 : index
    %27 = vector.load %arg7[%c1_9, %c0_10] : memref<4x2116xf32, #tpu.memory_space<vmem>>, vector<1x2048xf32>
    %28 = vector.shape_cast %27 : vector<1x2048xf32> to vector<2048xf32>
    %29 = vector.shape_cast %26 : vector<2048xf32> to vector<1x2048xf32>
    tpu.vector_store %arg7[%c1_9, %c0_10], %29 {strides = array<i32>} : memref<4x2116xf32, #tpu.memory_space<vmem>>, vector<1x2048xf32>,
    %c0_11 = arith.constant 0 : index
    %c2 = arith.constant 2 : index
    %30 = arith.index_cast %1 : i32 to index
    %31 = vector.load %arg5[%c0_11, %c2, %30] : memref<1x4x4096xf32, #tpu.memory_space<vmem>>, vector<1x1x2048xf32>
    %32 = vector.shape_cast %31 : vector<1x1x2048xf32> to vector<2048xf32>
    %c2_12 = arith.constant 2 : index
    %33 = memref.load %arg2[%c2_12] : memref<4xf32, #tpu.memory_space<smem>>
    %34 = vector.broadcast %33 : f32 to vector<2048xf32>
    %35 = arith.mulf %32, %34 : vector<2048xf32>
    %c2_13 = arith.constant 2 : index
    %36 = memref.load %arg3[%c2_13] : memref<4xf32, #tpu.memory_space<smem>>
    %37 = vector.broadcast %36 : f32 to vector<2048xf32>
    %38 = arith.addf %35, %37 : vector<2048xf32>
    %cst_14 = arith.constant 0.000000e+00 : f32
    %39 = vector.broadcast %cst_14 : f32 to vector<2048xf32>
    %40 = arith.maximumf %38, %39 : vector<2048xf32>
    %c2_15 = arith.constant 2 : index
    %c0_16 = arith.constant 0 : index
    %41 = vector.load %arg7[%c2_15, %c0_16] : memref<4x2116xf32, #tpu.memory_space<vmem>>, vector<1x2048xf32>
    %42 = vector.shape_cast %41 : vector<1x2048xf32> to vector<2048xf32>
    %43 = vector.shape_cast %40 : vector<2048xf32> to vector<1x2048xf32>
    tpu.vector_store %arg7[%c2_15, %c0_16], %43 {strides = array<i32>} : memref<4x2116xf32, #tpu.memory_space<vmem>>, vector<1x2048xf32>,
    %c0_17 = arith.constant 0 : index
    %c3 = arith.constant 3 : index
    %44 = arith.index_cast %1 : i32 to index
    %45 = vector.load %arg5[%c0_17, %c3, %44] : memref<1x4x4096xf32, #tpu.memory_space<vmem>>, vector<1x1x2048xf32>
    %46 = vector.shape_cast %45 : vector<1x1x2048xf32> to vector<2048xf32>
    %c3_18 = arith.constant 3 : index
    %47 = memref.load %arg2[%c3_18] : memref<4xf32, #tpu.memory_space<smem>>
    %48 = vector.broadcast %47 : f32 to vector<2048xf32>
    %49 = arith.mulf %46, %48 : vector<2048xf32>
    %c3_19 = arith.constant 3 : index
    %50 = memref.load %arg3[%c3_19] : memref<4xf32, #tpu.memory_space<smem>>
    %51 = vector.broadcast %50 : f32 to vector<2048xf32>
    %52 = arith.addf %49, %51 : vector<2048xf32>
    %cst_20 = arith.constant 0.000000e+00 : f32
    %53 = vector.broadcast %cst_20 : f32 to vector<2048xf32>
    %54 = arith.maximumf %52, %53 : vector<2048xf32>
    %c3_21 = arith.constant 3 : index
    %c0_22 = arith.constant 0 : index
    %55 = vector.load %arg7[%c3_21, %c0_22] : memref<4x2116xf32, #tpu.memory_space<vmem>>, vector<1x2048xf32>
    %56 = vector.shape_cast %55 : vector<1x2048xf32> to vector<2048xf32>
    %57 = vector.shape_cast %54 : vector<2048xf32> to vector<1x2048xf32>
    tpu.vector_store %arg7[%c3_21, %c0_22], %57 {strides = array<i32>} : memref<4x2116xf32, #tpu.memory_space<vmem>>, vector<1x2048xf32>,
    %cst_23 = arith.constant 0.000000e+00 : f32
    %58 = vector.broadcast %cst_23 : f32 to vector<4x68xf32>
    %c0_24 = arith.constant 0 : index
    %c2048 = arith.constant 2048 : index
    %59 = vector.load %arg7[%c0_24, %c2048] : memref<4x2116xf32, #tpu.memory_space<vmem>>, vector<4x68xf32>
    tpu.vector_store %arg7[%c0_24, %c2048], %58 {strides = array<i32>} : memref<4x2116xf32, #tpu.memory_space<vmem>>, vector<4x68xf32>,
    %c0_25 = arith.constant 0 : index
    %c0_26 = arith.constant 0 : index
    %60 = vector.load %arg7[%c0_25, %c0_26] : memref<4x2116xf32, #tpu.memory_space<vmem>>, vector<4x1024xf32>
    %c0_27 = arith.constant 0 : index
    %c0_28 = arith.constant 0 : index
    %61 = vector.load %arg8[%c0_27, %c0_28] : memref<512x1024xf32, #tpu.memory_space<vmem>>, vector<4x1024xf32>
    tpu.vector_store %arg8[%c0_27, %c0_28], %60 {strides = array<i32>} : memref<512x1024xf32, #tpu.memory_space<vmem>>, vector<4x1024xf32>,
    %c0_29 = arith.constant 0 : index
    %c1_30 = arith.constant 1 : index
    %62 = vector.load %arg7[%c0_29, %c1_30] : memref<4x2116xf32, #tpu.memory_space<vmem>>, vector<4x1024xf32>
    %c4 = arith.constant 4 : index
    %c0_31 = arith.constant 0 : index
    %63 = vector.load %arg8[%c4, %c0_31] : memref<512x1024xf32, #tpu.memory_space<vmem>>, vector<4x1024xf32>
    tpu.vector_store %arg8[%c4, %c0_31], %62 {strides = array<i32>} : memref<512x1024xf32, #tpu.memory_space<vmem>>, vector<4x1024xf32>,
    %c0_32 = arith.constant 0 : index
    %c2_33 = arith.constant 2 : index
    %64 = vector.load %arg7[%c0_32, %c2_33] : memref<4x2116xf32, #tpu.memory_space<vmem>>, vector<4x1024xf32>
    %c8 = arith.constant 8 : index
    %c0_34 = arith.constant 0 : index
    %65 = vector.load %arg8[%c8, %c0_34] : memref<512x1024xf32, #tpu.memory_space<vmem>>, vector<4x1024xf32>
    tpu.vector_store %arg8[%c8, %c0_34], %64 {strides = array<i32>} : memref<512x1024xf32, #tpu.memory_space<vmem>>, vector<4x1024xf32>,
    %c0_35 = arith.constant 0 : index
    %c3_36 = arith.constant 3 : index
    %66 = vector.load %arg7[%c0_35, %c3_36] : memref<4x2116xf32, #tpu.memory_space<vmem>>, vector<4x1024xf32>
    %c12 = arith.constant 12 : index
    %c0_37 = arith.constant 0 : index
    %67 = vector.load %arg8[%c12, %c0_37] : memref<512x1024xf32, #tpu.memory_space<vmem>>, vector<4x1024xf32>
    tpu.vector_store %arg8[%c12, %c0_37], %66 {strides = array<i32>} : memref<512x1024xf32, #tpu.memory_space<vmem>>, vector<4x1024xf32>,
    %c0_38 = arith.constant 0 : index
    %c4_39 = arith.constant 4 : index
    %68 = vector.load %arg7[%c0_38, %c4_39] : memref<4x2116xf32, #tpu.memory_space<vmem>>, vector<4x1024xf32>
    %c16 = arith.constant 16 : index
    %c0_40 = arith.constant 0 : index
    %69 = vector.load %arg8[%c16, %c0_40] : memref<512x1024xf32, #tpu.memory_space<vmem>>, vector<4x1024xf32>
    tpu.vector_store %arg8[%c16, %c0_40], %68 {strides = array<i32>} : memref<512x1024xf32, #tpu.memory_space<vmem>>, vector<4x1024xf32>,
    %c0_41 = arith.constant 0 : index
    %c16_42 = arith.constant 16 : index
    %70 = vector.load %arg7[%c0_41, %c16_42] : memref<4x2116xf32, #tpu.memory_space<vmem>>, vector<4x1024xf32>
    %c20 = arith.constant 20 : index
    %c0_43 = arith.constant 0 : index
    %71 = vector.load %arg8[%c20, %c0_43] : memref<512x1024xf32, #tpu.memory_space<vmem>>, vector<4x1024xf32>
    tpu.vector_store %arg8[%c20, %c0_43], %70 {strides = array<i32>} : memref<512x1024xf32, #tpu.memory_space<vmem>>, vector<4x1024xf32>,
    %c0_44 = arith.constant 0 : index
    %c17 = arith.constant 17 : index
    %72 = vector.load %arg7[%c0_44, %c17] : memref<4x2116xf32, #tpu.memory_space<vmem>>, vector<4x1024xf32>
    %c24 = arith.constant 24 : index
    %c0_45 = arith.constant 0 : index
    %73 = vector.load %arg8[%c24, %c0_45] : memref<512x1024xf32, #tpu.memory_space<vmem>>, vector<4x1024xf32>
    tpu.vector_store %arg8[%c24, %c0_45], %72 {strides = array<i32>} : memref<512x1024xf32, #tpu.memory_space<vmem>>, vector<4x1024xf32>,
    %c0_46 = arith.constant 0 : index
    %c18 = arith.constant 18 : index
    %74 = vector.load %arg7[%c0_46, %c18] : memref<4x2116xf32, #tpu.memory_space<vmem>>, vector<4x1024xf32>
    %c28 = arith.constant 28 : index
    %c0_47 = arith.constant 0 : index
    %75 = vector.load %arg8[%c28, %c0_47] : memref<512x1024xf32, #tpu.memory_space<vmem>>, vector<4x1024xf32>
    tpu.vector_store %arg8[%c28, %c0_47], %74 {strides = array<i32>} : memref<512x1024xf32, #tpu.memory_space<vmem>>, vector<4x1024xf32>,
    %c0_48 = arith.constant 0 : index
    %c19 = arith.constant 19 : index
    %76 = vector.load %arg7[%c0_48, %c19] : memref<4x2116xf32, #tpu.memory_space<vmem>>, vector<4x1024xf32>
    %c32 = arith.constant 32 : index
    %c0_49 = arith.constant 0 : index
    %77 = vector.load %arg8[%c32, %c0_49] : memref<512x1024xf32, #tpu.memory_space<vmem>>, vector<4x1024xf32>
    tpu.vector_store %arg8[%c32, %c0_49], %76 {strides = array<i32>} : memref<512x1024xf32, #tpu.memory_space<vmem>>, vector<4x1024xf32>,
    %c0_50 = arith.constant 0 : index
    %c20_51 = arith.constant 20 : index
    %78 = vector.load %arg7[%c0_50, %c20_51] : memref<4x2116xf32, #tpu.memory_space<vmem>>, vector<4x1024xf32>
    %c36 = arith.constant 36 : index
    %c0_52 = arith.constant 0 : index
    %79 = vector.load %arg8[%c36, %c0_52] : memref<512x1024xf32, #tpu.memory_space<vmem>>, vector<4x1024xf32>
    tpu.vector_store %arg8[%c36, %c0_52], %78 {strides = array<i32>} : memref<512x1024xf32, #tpu.memory_space<vmem>>, vector<4x1024xf32>,
    %c0_53 = arith.constant 0 : index
    %c32_54 = arith.constant 32 : index
    %80 = vector.load %arg7[%c0_53, %c32_54] : memref<4x2116xf32, #tpu.memory_space<vmem>>, vector<4x1024xf32>
    %c40 = arith.constant 40 : index
    %c0_55 = arith.constant 0 : index
    %81 = vector.load %arg8[%c40, %c0_55] : memref<512x1024xf32, #tpu.memory_space<vmem>>, vector<4x1024xf32>
    tpu.vector_store %arg8[%c40, %c0_55], %80 {strides = array<i32>} : memref<512x1024xf32, #tpu.memory_space<vmem>>, vector<4x1024xf32>,
    %c0_56 = arith.constant 0 : index
    %c33 = arith.constant 33 : index
    %82 = vector.load %arg7[%c0_56, %c33] : memref<4x2116xf32, #tpu.memory_space<vmem>>, vector<4x1024xf32>
    %c44 = arith.constant 44 : index
    %c0_57 = arith.constant 0 : index
    %83 = vector.load %arg8[%c44, %c0_57] : memref<512x1024xf32, #tpu.memory_space<vmem>>, vector<4x1024xf32>
    tpu.vector_store %arg8[%c44, %c0_57], %82 {strides = array<i32>} : memref<512x1024xf32, #tpu.memory_space<vmem>>, vector<4x1024xf32>,
    %c0_58 = arith.constant 0 : index
    %c34 = arith.constant 34 : index
    %84 = vector.load %arg7[%c0_58, %c34] : memref<4x2116xf32, #tpu.memory_space<vmem>>, vector<4x1024xf32>
    %c48 = arith.constant 48 : index
    %c0_59 = arith.constant 0 : index
    %85 = vector.load %arg8[%c48, %c0_59] : memref<512x1024xf32, #tpu.memory_space<vmem>>, vector<4x1024xf32>
    tpu.vector_store %arg8[%c48, %c0_59], %84 {strides = array<i32>} : memref<512x1024xf32, #tpu.memory_space<vmem>>, vector<4x1024xf32>,
    %c0_60 = arith.constant 0 : index
    %c35 = arith.constant 35 : index
    %86 = vector.load %arg7[%c0_60, %c35] : memref<4x2116xf32, #tpu.memory_space<vmem>>, vector<4x1024xf32>
    %c52 = arith.constant 52 : index
    %c0_61 = arith.constant 0 : index
    %87 = vector.load %arg8[%c52, %c0_61] : memref<512x1024xf32, #tpu.memory_space<vmem>>, vector<4x1024xf32>
    tpu.vector_store %arg8[%c52, %c0_61], %86 {strides = array<i32>} : memref<512x1024xf32, #tpu.memory_space<vmem>>, vector<4x1024xf32>,
    %c0_62 = arith.constant 0 : index
    %c36_63 = arith.constant 36 : index
    %88 = vector.load %arg7[%c0_62, %c36_63] : memref<4x2116xf32, #tpu.memory_space<vmem>>, vector<4x1024xf32>
    %c56 = arith.constant 56 : index
    %c0_64 = arith.constant 0 : index
    %89 = vector.load %arg8[%c56, %c0_64] : memref<512x1024xf32, #tpu.memory_space<vmem>>, vector<4x1024xf32>
    tpu.vector_store %arg8[%c56, %c0_64], %88 {strides = array<i32>} : memref<512x1024xf32, #tpu.memory_space<vmem>>, vector<4x1024xf32>,
    %c0_65 = arith.constant 0 : index
    %c48_66 = arith.constant 48 : index
    %90 = vector.load %arg7[%c0_65, %c48_66] : memref<4x2116xf32, #tpu.memory_space<vmem>>, vector<4x1024xf32>
    %c60 = arith.constant 60 : index
    %c0_67 = arith.constant 0 : index
    %91 = vector.load %arg8[%c60, %c0_67] : memref<512x1024xf32, #tpu.memory_space<vmem>>, vector<4x1024xf32>
    tpu.vector_store %arg8[%c60, %c0_67], %90 {strides = array<i32>} : memref<512x1024xf32, #tpu.memory_space<vmem>>, vector<4x1024xf32>,
    %c0_68 = arith.constant 0 : index
    %c49 = arith.constant 49 : index
    %92 = vector.load %arg7[%c0_68, %c49] : memref<4x2116xf32, #tpu.memory_space<vmem>>, vector<4x1024xf32>
    %c64 = arith.constant 64 : index
    %c0_69 = arith.constant 0 : index
    %93 = vector.load %arg8[%c64, %c0_69] : memref<512x1024xf32, #tpu.memory_space<vmem>>, vector<4x1024xf32>
    tpu.vector_store %arg8[%c64, %c0_69], %92 {strides = array<i32>} : memref<512x1024xf32, #tpu.memory_space<vmem>>, vector<4x1024xf32>,
    %c0_70 = arith.constant 0 : index
    %c50 = arith.constant 50 : index
    %94 = vector.load %arg7[%c0_70, %c50] : memref<4x2116xf32, #tpu.memory_space<vmem>>, vector<4x1024xf32>
    %c68 = arith.constant 68 : index
    %c0_71 = arith.constant 0 : index
    %95 = vector.load %arg8[%c68, %c0_71] : memref<512x1024xf32, #tpu.memory_space<vmem>>, vector<4x1024xf32>
    tpu.vector_store %arg8[%c68, %c0_71], %94 {strides = array<i32>} : memref<512x1024xf32, #tpu.memory_space<vmem>>, vector<4x1024xf32>,
    %c0_72 = arith.constant 0 : index
    %c51 = arith.constant 51 : index
    %96 = vector.load %arg7[%c0_72, %c51] : memref<4x2116xf32, #tpu.memory_space<vmem>>, vector<4x1024xf32>
    %c72 = arith.constant 72 : index
    %c0_73 = arith.constant 0 : index
    %97 = vector.load %arg8[%c72, %c0_73] : memref<512x1024xf32, #tpu.memory_space<vmem>>, vector<4x1024xf32>
    tpu.vector_store %arg8[%c72, %c0_73], %96 {strides = array<i32>} : memref<512x1024xf32, #tpu.memory_space<vmem>>, vector<4x1024xf32>,
    %c0_74 = arith.constant 0 : index
    %c52_75 = arith.constant 52 : index
    %98 = vector.load %arg7[%c0_74, %c52_75] : memref<4x2116xf32, #tpu.memory_space<vmem>>, vector<4x1024xf32>
    %c76 = arith.constant 76 : index
    %c0_76 = arith.constant 0 : index
    %99 = vector.load %arg8[%c76, %c0_76] : memref<512x1024xf32, #tpu.memory_space<vmem>>, vector<4x1024xf32>
    tpu.vector_store %arg8[%c76, %c0_76], %98 {strides = array<i32>} : memref<512x1024xf32, #tpu.memory_space<vmem>>, vector<4x1024xf32>,
    %c0_77 = arith.constant 0 : index
    %c64_78 = arith.constant 64 : index
    %100 = vector.load %arg7[%c0_77, %c64_78] : memref<4x2116xf32, #tpu.memory_space<vmem>>, vector<4x1024xf32>
    %c80 = arith.constant 80 : index
    %c0_79 = arith.constant 0 : index
    %101 = vector.load %arg8[%c80, %c0_79] : memref<512x1024xf32, #tpu.memory_space<vmem>>, vector<4x1024xf32>
    tpu.vector_store %arg8[%c80, %c0_79], %100 {strides = array<i32>} : memref<512x1024xf32, #tpu.memory_space<vmem>>, vector<4x1024xf32>,
    %c0_80 = arith.constant 0 : index
    %c65 = arith.constant 65 : index
    %102 = vector.load %arg7[%c0_80, %c65] : memref<4x2116xf32, #tpu.memory_space<vmem>>, vector<4x1024xf32>
    %c84 = arith.constant 84 : index
    %c0_81 = arith.constant 0 : index
    %103 = vector.load %arg8[%c84, %c0_81] : memref<512x1024xf32, #tpu.memory_space<vmem>>, vector<4x1024xf32>
    tpu.vector_store %arg8[%c84, %c0_81], %102 {strides = array<i32>} : memref<512x1024xf32, #tpu.memory_space<vmem>>, vector<4x1024xf32>,
    %c0_82 = arith.constant 0 : index
    %c66 = arith.constant 66 : index
    %104 = vector.load %arg7[%c0_82, %c66] : memref<4x2116xf32, #tpu.memory_space<vmem>>, vector<4x1024xf32>
    %c88 = arith.constant 88 : index
    %c0_83 = arith.constant 0 : index
    %105 = vector.load %arg8[%c88, %c0_83] : memref<512x1024xf32, #tpu.memory_space<vmem>>, vector<4x1024xf32>
    tpu.vector_store %arg8[%c88, %c0_83], %104 {strides = array<i32>} : memref<512x1024xf32, #tpu.memory_space<vmem>>, vector<4x1024xf32>,
    %c0_84 = arith.constant 0 : index
    %c67 = arith.constant 67 : index
    %106 = vector.load %arg7[%c0_84, %c67] : memref<4x2116xf32, #tpu.memory_space<vmem>>, vector<4x1024xf32>
    %c92 = arith.constant 92 : index
    %c0_85 = arith.constant 0 : index
    %107 = vector.load %arg8[%c92, %c0_85] : memref<512x1024xf32, #tpu.memory_space<vmem>>, vector<4x1024xf32>
    tpu.vector_store %arg8[%c92, %c0_85], %106 {strides = array<i32>} : memref<512x1024xf32, #tpu.memory_space<vmem>>, vector<4x1024xf32>,
    %c0_86 = arith.constant 0 : index
    %c68_87 = arith.constant 68 : index
    %108 = vector.load %arg7[%c0_86, %c68_87] : memref<4x2116xf32, #tpu.memory_space<vmem>>, vector<4x1024xf32>
    %c96 = arith.constant 96 : index
    %c0_88 = arith.constant 0 : index
    %109 = vector.load %arg8[%c96, %c0_88] : memref<512x1024xf32, #tpu.memory_space<vmem>>, vector<4x1024xf32>
    tpu.vector_store %arg8[%c96, %c0_88], %108 {strides = array<i32>} : memref<512x1024xf32, #tpu.memory_space<vmem>>, vector<4x1024xf32>,
    %c0_89 = arith.constant 0 : index
    %c256 = arith.constant 256 : index
    %110 = vector.load %arg7[%c0_89, %c256] : memref<4x2116xf32, #tpu.memory_space<vmem>>, vector<4x1024xf32>
    %c100 = arith.constant 100 : index
    %c0_90 = arith.constant 0 : index
    %111 = vector.load %arg8[%c100, %c0_90] : memref<512x1024xf32, #tpu.memory_space<vmem>>, vector<4x1024xf32>
    tpu.vector_store %arg8[%c100, %c0_90], %110 {strides = array<i32>} : memref<512x1024xf32, #tpu.memory_space<vmem>>, vector<4x1024xf32>,
    %c0_91 = arith.constant 0 : index
    %c257 = arith.constant 257 : index
    %112 = vector.load %arg7[%c0_91, %c257] : memref<4x2116xf32, #tpu.memory_space<vmem>>, vector<4x1024xf32>
    %c104 = arith.constant 104 : index
    %c0_92 = arith.constant 0 : index
    %113 = vector.load %arg8[%c104, %c0_92] : memref<512x1024xf32, #tpu.memory_space<vmem>>, vector<4x1024xf32>
    tpu.vector_store %arg8[%c104, %c0_92], %112 {strides = array<i32>} : memref<512x1024xf32, #tpu.memory_space<vmem>>, vector<4x1024xf32>,
    %c0_93 = arith.constant 0 : index
    %c258 = arith.constant 258 : index
    %114 = vector.load %arg7[%c0_93, %c258] : memref<4x2116xf32, #tpu.memory_space<vmem>>, vector<4x1024xf32>
    %c108 = arith.constant 108 : index
    %c0_94 = arith.constant 0 : index
    %115 = vector.load %arg8[%c108, %c0_94] : memref<512x1024xf32, #tpu.memory_space<vmem>>, vector<4x1024xf32>
    tpu.vector_store %arg8[%c108, %c0_94], %114 {strides = array<i32>} : memref<512x1024xf32, #tpu.memory_space<vmem>>, vector<4x1024xf32>,
    %c0_95 = arith.constant 0 : index
    %c259 = arith.constant 259 : index
    %116 = vector.load %arg7[%c0_95, %c259] : memref<4x2116xf32, #tpu.memory_space<vmem>>, vector<4x1024xf32>
    %c112 = arith.constant 112 : index
    %c0_96 = arith.constant 0 : index
    %117 = vector.load %arg8[%c112, %c0_96] : memref<512x1024xf32, #tpu.memory_space<vmem>>, vector<4x1024xf32>
    tpu.vector_store %arg8[%c112, %c0_96], %116 {strides = array<i32>} : memref<512x1024xf32, #tpu.memory_space<vmem>>, vector<4x1024xf32>,
    %c0_97 = arith.constant 0 : index
    %c260 = arith.constant 260 : index
    %118 = vector.load %arg7[%c0_97, %c260] : memref<4x2116xf32, #tpu.memory_space<vmem>>, vector<4x1024xf32>
    %c116 = arith.constant 116 : index
    %c0_98 = arith.constant 0 : index
    %119 = vector.load %arg8[%c116, %c0_98] : memref<512x1024xf32, #tpu.memory_space<vmem>>, vector<4x1024xf32>
    tpu.vector_store %arg8[%c116, %c0_98], %118 {strides = array<i32>} : memref<512x1024xf32, #tpu.memory_space<vmem>>, vector<4x1024xf32>,
    %c0_99 = arith.constant 0 : index
    %c272 = arith.constant 272 : index
    %120 = vector.load %arg7[%c0_99, %c272] : memref<4x2116xf32, #tpu.memory_space<vmem>>, vector<4x1024xf32>
    %c120 = arith.constant 120 : index
    %c0_100 = arith.constant 0 : index
    %121 = vector.load %arg8[%c120, %c0_100] : memref<512x1024xf32, #tpu.memory_space<vmem>>, vector<4x1024xf32>
    tpu.vector_store %arg8[%c120, %c0_100], %120 {strides = array<i32>} : memref<512x1024xf32, #tpu.memory_space<vmem>>, vector<4x1024xf32>,
    %c0_101 = arith.constant 0 : index
    %c273 = arith.constant 273 : index
    %122 = vector.load %arg7[%c0_101, %c273] : memref<4x2116xf32, #tpu.memory_space<vmem>>, vector<4x1024xf32>
    %c124 = arith.constant 124 : index
    %c0_102 = arith.constant 0 : index
    %123 = vector.load %arg8[%c124, %c0_102] : memref<512x1024xf32, #tpu.memory_space<vmem>>, vector<4x1024xf32>
    tpu.vector_store %arg8[%c124, %c0_102], %122 {strides = array<i32>} : memref<512x1024xf32, #tpu.memory_space<vmem>>, vector<4x1024xf32>,
    %c0_103 = arith.constant 0 : index
    %c274 = arith.constant 274 : index
    %124 = vector.load %arg7[%c0_103, %c274] : memref<4x2116xf32, #tpu.memory_space<vmem>>, vector<4x1024xf32>
    %c128 = arith.constant 128 : index
    %c0_104 = arith.constant 0 : index
    %125 = vector.load %arg8[%c128, %c0_104] : memref<512x1024xf32, #tpu.memory_space<vmem>>, vector<4x1024xf32>
    tpu.vector_store %arg8[%c128, %c0_104], %124 {strides = array<i32>} : memref<512x1024xf32, #tpu.memory_space<vmem>>, vector<4x1024xf32>,
    %c0_105 = arith.constant 0 : index
    %c275 = arith.constant 275 : index
    %126 = vector.load %arg7[%c0_105, %c275] : memref<4x2116xf32, #tpu.memory_space<vmem>>, vector<4x1024xf32>
    %c132 = arith.constant 132 : index
    %c0_106 = arith.constant 0 : index
    %127 = vector.load %arg8[%c132, %c0_106] : memref<512x1024xf32, #tpu.memory_space<vmem>>, vector<4x1024xf32>
    tpu.vector_store %arg8[%c132, %c0_106], %126 {strides = array<i32>} : memref<512x1024xf32, #tpu.memory_space<vmem>>, vector<4x1024xf32>,
    %c0_107 = arith.constant 0 : index
    %c276 = arith.constant 276 : index
    %128 = vector.load %arg7[%c0_107, %c276] : memref<4x2116xf32, #tpu.memory_space<vmem>>, vector<4x1024xf32>
    %c136 = arith.constant 136 : index
    %c0_108 = arith.constant 0 : index
    %129 = vector.load %arg8[%c136, %c0_108] : memref<512x1024xf32, #tpu.memory_space<vmem>>, vector<4x1024xf32>
    tpu.vector_store %arg8[%c136, %c0_108], %128 {strides = array<i32>} : memref<512x1024xf32, #tpu.memory_space<vmem>>, vector<4x1024xf32>,
    %c0_109 = arith.constant 0 : index
    %c288 = arith.constant 288 : index
    %130 = vector.load %arg7[%c0_109, %c288] : memref<4x2116xf32, #tpu.memory_space<vmem>>, vector<4x1024xf32>
    %c140 = arith.constant 140 : index
    %c0_110 = arith.constant 0 : index
    %131 = vector.load %arg8[%c140, %c0_110] : memref<512x1024xf32, #tpu.memory_space<vmem>>, vector<4x1024xf32>
    tpu.vector_store %arg8[%c140, %c0_110], %130 {strides = array<i32>} : memref<512x1024xf32, #tpu.memory_space<vmem>>, vector<4x1024xf32>,
    %c0_111 = arith.constant 0 : index
    %c289 = arith.constant 289 : index
    %132 = vector.load %arg7[%c0_111, %c289] : memref<4x2116xf32, #tpu.memory_space<vmem>>, vector<4x1024xf32>
    %c144 = arith.constant 144 : index
    %c0_112 = arith.constant 0 : index
    %133 = vector.load %arg8[%c144, %c0_112] : memref<512x1024xf32, #tpu.memory_space<vmem>>, vector<4x1024xf32>
    tpu.vector_store %arg8[%c144, %c0_112], %132 {strides = array<i32>} : memref<512x1024xf32, #tpu.memory_space<vmem>>, vector<4x1024xf32>,
    %c0_113 = arith.constant 0 : index
    %c290 = arith.constant 290 : index
    %134 = vector.load %arg7[%c0_113, %c290] : memref<4x2116xf32, #tpu.memory_space<vmem>>, vector<4x1024xf32>
    %c148 = arith.constant 148 : index
    %c0_114 = arith.constant 0 : index
    %135 = vector.load %arg8[%c148, %c0_114] : memref<512x1024xf32, #tpu.memory_space<vmem>>, vector<4x1024xf32>
    tpu.vector_store %arg8[%c148, %c0_114], %134 {strides = array<i32>} : memref<512x1024xf32, #tpu.memory_space<vmem>>, vector<4x1024xf32>,
    %c0_115 = arith.constant 0 : index
    %c291 = arith.constant 291 : index
    %136 = vector.load %arg7[%c0_115, %c291] : memref<4x2116xf32, #tpu.memory_space<vmem>>, vector<4x1024xf32>
    %c152 = arith.constant 152 : index
    %c0_116 = arith.constant 0 : index
    %137 = vector.load %arg8[%c152, %c0_116] : memref<512x1024xf32, #tpu.memory_space<vmem>>, vector<4x1024xf32>
    tpu.vector_store %arg8[%c152, %c0_116], %136 {strides = array<i32>} : memref<512x1024xf32, #tpu.memory_space<vmem>>, vector<4x1024xf32>,
    %c0_117 = arith.constant 0 : index
    %c292 = arith.constant 292 : index
    %138 = vector.load %arg7[%c0_117, %c292] : memref<4x2116xf32, #tpu.memory_space<vmem>>, vector<4x1024xf32>
    %c156 = arith.constant 156 : index
    %c0_118 = arith.constant 0 : index
    %139 = vector.load %arg8[%c156, %c0_118] : memref<512x1024xf32, #tpu.memory_space<vmem>>, vector<4x1024xf32>
    tpu.vector_store %arg8[%c156, %c0_118], %138 {strides = array<i32>} : memref<512x1024xf32, #tpu.memory_space<vmem>>, vector<4x1024xf32>,
    %c0_119 = arith.constant 0 : index
    %c304 = arith.constant 304 : index
    %140 = vector.load %arg7[%c0_119, %c304] : memref<4x2116xf32, #tpu.memory_space<vmem>>, vector<4x1024xf32>
    %c160 = arith.constant 160 : index
    %c0_120 = arith.constant 0 : index
    %141 = vector.load %arg8[%c160, %c0_120] : memref<512x1024xf32, #tpu.memory_space<vmem>>, vector<4x1024xf32>
    tpu.vector_store %arg8[%c160, %c0_120], %140 {strides = array<i32>} : memref<512x1024xf32, #tpu.memory_space<vmem>>, vector<4x1024xf32>,
    %c0_121 = arith.constant 0 : index
    %c305 = arith.constant 305 : index
    %142 = vector.load %arg7[%c0_121, %c305] : memref<4x2116xf32, #tpu.memory_space<vmem>>, vector<4x1024xf32>
    %c164 = arith.constant 164 : index
    %c0_122 = arith.constant 0 : index
    %143 = vector.load %arg8[%c164, %c0_122] : memref<512x1024xf32, #tpu.memory_space<vmem>>, vector<4x1024xf32>
    tpu.vector_store %arg8[%c164, %c0_122], %142 {strides = array<i32>} : memref<512x1024xf32, #tpu.memory_space<vmem>>, vector<4x1024xf32>,
    %c0_123 = arith.constant 0 : index
    %c306 = arith.constant 306 : index
    %144 = vector.load %arg7[%c0_123, %c306] : memref<4x2116xf32, #tpu.memory_space<vmem>>, vector<4x1024xf32>
    %c168 = arith.constant 168 : index
    %c0_124 = arith.constant 0 : index
    %145 = vector.load %arg8[%c168, %c0_124] : memref<512x1024xf32, #tpu.memory_space<vmem>>, vector<4x1024xf32>
    tpu.vector_store %arg8[%c168, %c0_124], %144 {strides = array<i32>} : memref<512x1024xf32, #tpu.memory_space<vmem>>, vector<4x1024xf32>,
    %c0_125 = arith.constant 0 : index
    %c307 = arith.constant 307 : index
    %146 = vector.load %arg7[%c0_125, %c307] : memref<4x2116xf32, #tpu.memory_space<vmem>>, vector<4x1024xf32>
    %c172 = arith.constant 172 : index
    %c0_126 = arith.constant 0 : index
    %147 = vector.load %arg8[%c172, %c0_126] : memref<512x1024xf32, #tpu.memory_space<vmem>>, vector<4x1024xf32>
    tpu.vector_store %arg8[%c172, %c0_126], %146 {strides = array<i32>} : memref<512x1024xf32, #tpu.memory_space<vmem>>, vector<4x1024xf32>,
    %c0_127 = arith.constant 0 : index
    %c308 = arith.constant 308 : index
    %148 = vector.load %arg7[%c0_127, %c308] : memref<4x2116xf32, #tpu.memory_space<vmem>>, vector<4x1024xf32>
    %c176 = arith.constant 176 : index
    %c0_128 = arith.constant 0 : index
    %149 = vector.load %arg8[%c176, %c0_128] : memref<512x1024xf32, #tpu.memory_space<vmem>>, vector<4x1024xf32>
    tpu.vector_store %arg8[%c176, %c0_128], %148 {strides = array<i32>} : memref<512x1024xf32, #tpu.memory_space<vmem>>, vector<4x1024xf32>,
    %c0_129 = arith.constant 0 : index
    %c320 = arith.constant 320 : index
    %150 = vector.load %arg7[%c0_129, %c320] : memref<4x2116xf32, #tpu.memory_space<vmem>>, vector<4x1024xf32>
    %c180 = arith.constant 180 : index
    %c0_130 = arith.constant 0 : index
    %151 = vector.load %arg8[%c180, %c0_130] : memref<512x1024xf32, #tpu.memory_space<vmem>>, vector<4x1024xf32>
    tpu.vector_store %arg8[%c180, %c0_130], %150 {strides = array<i32>} : memref<512x1024xf32, #tpu.memory_space<vmem>>, vector<4x1024xf32>,
    %c0_131 = arith.constant 0 : index
    %c321 = arith.constant 321 : index
    %152 = vector.load %arg7[%c0_131, %c321] : memref<4x2116xf32, #tpu.memory_space<vmem>>, vector<4x1024xf32>
    %c184 = arith.constant 184 : index
    %c0_132 = arith.constant 0 : index
    %153 = vector.load %arg8[%c184, %c0_132] : memref<512x1024xf32, #tpu.memory_space<vmem>>, vector<4x1024xf32>
    tpu.vector_store %arg8[%c184, %c0_132], %152 {strides = array<i32>} : memref<512x1024xf32, #tpu.memory_space<vmem>>, vector<4x1024xf32>,
    %c0_133 = arith.constant 0 : index
    %c322 = arith.constant 322 : index
    %154 = vector.load %arg7[%c0_133, %c322] : memref<4x2116xf32, #tpu.memory_space<vmem>>, vector<4x1024xf32>
    %c188 = arith.constant 188 : index
    %c0_134 = arith.constant 0 : index
    %155 = vector.load %arg8[%c188, %c0_134] : memref<512x1024xf32, #tpu.memory_space<vmem>>, vector<4x1024xf32>
    tpu.vector_store %arg8[%c188, %c0_134], %154 {strides = array<i32>} : memref<512x1024xf32, #tpu.memory_space<vmem>>, vector<4x1024xf32>,
    %c0_135 = arith.constant 0 : index
    %c323 = arith.constant 323 : index
    %156 = vector.load %arg7[%c0_135, %c323] : memref<4x2116xf32, #tpu.memory_space<vmem>>, vector<4x1024xf32>
    %c192 = arith.constant 192 : index
    %c0_136 = arith.constant 0 : index
    %157 = vector.load %arg8[%c192, %c0_136] : memref<512x1024xf32, #tpu.memory_space<vmem>>, vector<4x1024xf32>
    tpu.vector_store %arg8[%c192, %c0_136], %156 {strides = array<i32>} : memref<512x1024xf32, #tpu.memory_space<vmem>>, vector<4x1024xf32>,
    %c0_137 = arith.constant 0 : index
    %c324 = arith.constant 324 : index
    %158 = vector.load %arg7[%c0_137, %c324] : memref<4x2116xf32, #tpu.memory_space<vmem>>, vector<4x1024xf32>
    %c196 = arith.constant 196 : index
    %c0_138 = arith.constant 0 : index
    %159 = vector.load %arg8[%c196, %c0_138] : memref<512x1024xf32, #tpu.memory_space<vmem>>, vector<4x1024xf32>
    tpu.vector_store %arg8[%c196, %c0_138], %158 {strides = array<i32>} : memref<512x1024xf32, #tpu.memory_space<vmem>>, vector<4x1024xf32>,
    %c0_139 = arith.constant 0 : index
    %c512 = arith.constant 512 : index
    %160 = vector.load %arg7[%c0_139, %c512] : memref<4x2116xf32, #tpu.memory_space<vmem>>, vector<4x1024xf32>
    %c200 = arith.constant 200 : index
    %c0_140 = arith.constant 0 : index
    %161 = vector.load %arg8[%c200, %c0_140] : memref<512x1024xf32, #tpu.memory_space<vmem>>, vector<4x1024xf32>
    tpu.vector_store %arg8[%c200, %c0_140], %160 {strides = array<i32>} : memref<512x1024xf32, #tpu.memory_space<vmem>>, vector<4x1024xf32>,
    %c0_141 = arith.constant 0 : index
    %c513 = arith.constant 513 : index
    %162 = vector.load %arg7[%c0_141, %c513] : memref<4x2116xf32, #tpu.memory_space<vmem>>, vector<4x1024xf32>
    %c204 = arith.constant 204 : index
    %c0_142 = arith.constant 0 : index
    %163 = vector.load %arg8[%c204, %c0_142] : memref<512x1024xf32, #tpu.memory_space<vmem>>, vector<4x1024xf32>
    tpu.vector_store %arg8[%c204, %c0_142], %162 {strides = array<i32>} : memref<512x1024xf32, #tpu.memory_space<vmem>>, vector<4x1024xf32>,
    %c0_143 = arith.constant 0 : index
    %c514 = arith.constant 514 : index
    %164 = vector.load %arg7[%c0_143, %c514] : memref<4x2116xf32, #tpu.memory_space<vmem>>, vector<4x1024xf32>
    %c208 = arith.constant 208 : index
    %c0_144 = arith.constant 0 : index
    %165 = vector.load %arg8[%c208, %c0_144] : memref<512x1024xf32, #tpu.memory_space<vmem>>, vector<4x1024xf32>
    tpu.vector_store %arg8[%c208, %c0_144], %164 {strides = array<i32>} : memref<512x1024xf32, #tpu.memory_space<vmem>>, vector<4x1024xf32>,
    %c0_145 = arith.constant 0 : index
    %c515 = arith.constant 515 : index
    %166 = vector.load %arg7[%c0_145, %c515] : memref<4x2116xf32, #tpu.memory_space<vmem>>, vector<4x1024xf32>
    %c212 = arith.constant 212 : index
    %c0_146 = arith.constant 0 : index
    %167 = vector.load %arg8[%c212, %c0_146] : memref<512x1024xf32, #tpu.memory_space<vmem>>, vector<4x1024xf32>
    tpu.vector_store %arg8[%c212, %c0_146], %166 {strides = array<i32>} : memref<512x1024xf32, #tpu.memory_space<vmem>>, vector<4x1024xf32>,
    %c0_147 = arith.constant 0 : index
    %c516 = arith.constant 516 : index
    %168 = vector.load %arg7[%c0_147, %c516] : memref<4x2116xf32, #tpu.memory_space<vmem>>, vector<4x1024xf32>
    %c216 = arith.constant 216 : index
    %c0_148 = arith.constant 0 : index
    %169 = vector.load %arg8[%c216, %c0_148] : memref<512x1024xf32, #tpu.memory_space<vmem>>, vector<4x1024xf32>
    tpu.vector_store %arg8[%c216, %c0_148], %168 {strides = array<i32>} : memref<512x1024xf32, #tpu.memory_space<vmem>>, vector<4x1024xf32>,
    %c0_149 = arith.constant 0 : index
    %c528 = arith.constant 528 : index
    %170 = vector.load %arg7[%c0_149, %c528] : memref<4x2116xf32, #tpu.memory_space<vmem>>, vector<4x1024xf32>
    %c220 = arith.constant 220 : index
    %c0_150 = arith.constant 0 : index
    %171 = vector.load %arg8[%c220, %c0_150] : memref<512x1024xf32, #tpu.memory_space<vmem>>, vector<4x1024xf32>
    tpu.vector_store %arg8[%c220, %c0_150], %170 {strides = array<i32>} : memref<512x1024xf32, #tpu.memory_space<vmem>>, vector<4x1024xf32>,
    %c0_151 = arith.constant 0 : index
    %c529 = arith.constant 529 : index
    %172 = vector.load %arg7[%c0_151, %c529] : memref<4x2116xf32, #tpu.memory_space<vmem>>, vector<4x1024xf32>
    %c224 = arith.constant 224 : index
    %c0_152 = arith.constant 0 : index
    %173 = vector.load %arg8[%c224, %c0_152] : memref<512x1024xf32, #tpu.memory_space<vmem>>, vector<4x1024xf32>
    tpu.vector_store %arg8[%c224, %c0_152], %172 {strides = array<i32>} : memref<512x1024xf32, #tpu.memory_space<vmem>>, vector<4x1024xf32>,
    %c0_153 = arith.constant 0 : index
    %c530 = arith.constant 530 : index
    %174 = vector.load %arg7[%c0_153, %c530] : memref<4x2116xf32, #tpu.memory_space<vmem>>, vector<4x1024xf32>
    %c228 = arith.constant 228 : index
    %c0_154 = arith.constant 0 : index
    %175 = vector.load %arg8[%c228, %c0_154] : memref<512x1024xf32, #tpu.memory_space<vmem>>, vector<4x1024xf32>
    tpu.vector_store %arg8[%c228, %c0_154], %174 {strides = array<i32>} : memref<512x1024xf32, #tpu.memory_space<vmem>>, vector<4x1024xf32>,
    %c0_155 = arith.constant 0 : index
    %c531 = arith.constant 531 : index
    %176 = vector.load %arg7[%c0_155, %c531] : memref<4x2116xf32, #tpu.memory_space<vmem>>, vector<4x1024xf32>
    %c232 = arith.constant 232 : index
    %c0_156 = arith.constant 0 : index
    %177 = vector.load %arg8[%c232, %c0_156] : memref<512x1024xf32, #tpu.memory_space<vmem>>, vector<4x1024xf32>
    tpu.vector_store %arg8[%c232, %c0_156], %176 {strides = array<i32>} : memref<512x1024xf32, #tpu.memory_space<vmem>>, vector<4x1024xf32>,
    %c0_157 = arith.constant 0 : index
    %c532 = arith.constant 532 : index
    %178 = vector.load %arg7[%c0_157, %c532] : memref<4x2116xf32, #tpu.memory_space<vmem>>, vector<4x1024xf32>
    %c236 = arith.constant 236 : index
    %c0_158 = arith.constant 0 : index
    %179 = vector.load %arg8[%c236, %c0_158] : memref<512x1024xf32, #tpu.memory_space<vmem>>, vector<4x1024xf32>
    tpu.vector_store %arg8[%c236, %c0_158], %178 {strides = array<i32>} : memref<512x1024xf32, #tpu.memory_space<vmem>>, vector<4x1024xf32>,
    %c0_159 = arith.constant 0 : index
    %c544 = arith.constant 544 : index
    %180 = vector.load %arg7[%c0_159, %c544] : memref<4x2116xf32, #tpu.memory_space<vmem>>, vector<4x1024xf32>
    %c240 = arith.constant 240 : index
    %c0_160 = arith.constant 0 : index
    %181 = vector.load %arg8[%c240, %c0_160] : memref<512x1024xf32, #tpu.memory_space<vmem>>, vector<4x1024xf32>
    tpu.vector_store %arg8[%c240, %c0_160], %180 {strides = array<i32>} : memref<512x1024xf32, #tpu.memory_space<vmem>>, vector<4x1024xf32>,
    %c0_161 = arith.constant 0 : index
    %c545 = arith.constant 545 : index
    %182 = vector.load %arg7[%c0_161, %c545] : memref<4x2116xf32, #tpu.memory_space<vmem>>, vector<4x1024xf32>
    %c244 = arith.constant 244 : index
    %c0_162 = arith.constant 0 : index
    %183 = vector.load %arg8[%c244, %c0_162] : memref<512x1024xf32, #tpu.memory_space<vmem>>, vector<4x1024xf32>
    tpu.vector_store %arg8[%c244, %c0_162], %182 {strides = array<i32>} : memref<512x1024xf32, #tpu.memory_space<vmem>>, vector<4x1024xf32>,
    %c0_163 = arith.constant 0 : index
    %c546 = arith.constant 546 : index
    %184 = vector.load %arg7[%c0_163, %c546] : memref<4x2116xf32, #tpu.memory_space<vmem>>, vector<4x1024xf32>
    %c248 = arith.constant 248 : index
    %c0_164 = arith.constant 0 : index
    %185 = vector.load %arg8[%c248, %c0_164] : memref<512x1024xf32, #tpu.memory_space<vmem>>, vector<4x1024xf32>
    tpu.vector_store %arg8[%c248, %c0_164], %184 {strides = array<i32>} : memref<512x1024xf32, #tpu.memory_space<vmem>>, vector<4x1024xf32>,
    %c0_165 = arith.constant 0 : index
    %c547 = arith.constant 547 : index
    %186 = vector.load %arg7[%c0_165, %c547] : memref<4x2116xf32, #tpu.memory_space<vmem>>, vector<4x1024xf32>
    %c252 = arith.constant 252 : index
    %c0_166 = arith.constant 0 : index
    %187 = vector.load %arg8[%c252, %c0_166] : memref<512x1024xf32, #tpu.memory_space<vmem>>, vector<4x1024xf32>
    tpu.vector_store %arg8[%c252, %c0_166], %186 {strides = array<i32>} : memref<512x1024xf32, #tpu.memory_space<vmem>>, vector<4x1024xf32>,
    %c0_167 = arith.constant 0 : index
    %c548 = arith.constant 548 : index
    %188 = vector.load %arg7[%c0_167, %c548] : memref<4x2116xf32, #tpu.memory_space<vmem>>, vector<4x1024xf32>
    %c256_168 = arith.constant 256 : index
    %c0_169 = arith.constant 0 : index
    %189 = vector.load %arg8[%c256_168, %c0_169] : memref<512x1024xf32, #tpu.memory_space<vmem>>, vector<4x1024xf32>
    tpu.vector_store %arg8[%c256_168, %c0_169], %188 {strides = array<i32>} : memref<512x1024xf32, #tpu.memory_space<vmem>>, vector<4x1024xf32>,
    %c0_170 = arith.constant 0 : index
    %c560 = arith.constant 560 : index
    %190 = vector.load %arg7[%c0_170, %c560] : memref<4x2116xf32, #tpu.memory_space<vmem>>, vector<4x1024xf32>
    %c260_171 = arith.constant 260 : index
    %c0_172 = arith.constant 0 : index
    %191 = vector.load %arg8[%c260_171, %c0_172] : memref<512x1024xf32, #tpu.memory_space<vmem>>, vector<4x1024xf32>
    tpu.vector_store %arg8[%c260_171, %c0_172], %190 {strides = array<i32>} : memref<512x1024xf32, #tpu.memory_space<vmem>>, vector<4x1024xf32>,
    %c0_173 = arith.constant 0 : index
    %c561 = arith.constant 561 : index
    %192 = vector.load %arg7[%c0_173, %c561] : memref<4x2116xf32, #tpu.memory_space<vmem>>, vector<4x1024xf32>
    %c264 = arith.constant 264 : index
    %c0_174 = arith.constant 0 : index
    %193 = vector.load %arg8[%c264, %c0_174] : memref<512x1024xf32, #tpu.memory_space<vmem>>, vector<4x1024xf32>
    tpu.vector_store %arg8[%c264, %c0_174], %192 {strides = array<i32>} : memref<512x1024xf32, #tpu.memory_space<vmem>>, vector<4x1024xf32>,
    %c0_175 = arith.constant 0 : index
    %c562 = arith.constant 562 : index
    %194 = vector.load %arg7[%c0_175, %c562] : memref<4x2116xf32, #tpu.memory_space<vmem>>, vector<4x1024xf32>
    %c268 = arith.constant 268 : index
    %c0_176 = arith.constant 0 : index
    %195 = vector.load %arg8[%c268, %c0_176] : memref<512x1024xf32, #tpu.memory_space<vmem>>, vector<4x1024xf32>
    tpu.vector_store %arg8[%c268, %c0_176], %194 {strides = array<i32>} : memref<512x1024xf32, #tpu.memory_space<vmem>>, vector<4x1024xf32>,
    %c0_177 = arith.constant 0 : index
    %c563 = arith.constant 563 : index
    %196 = vector.load %arg7[%c0_177, %c563] : memref<4x2116xf32, #tpu.memory_space<vmem>>, vector<4x1024xf32>
    %c272_178 = arith.constant 272 : index
    %c0_179 = arith.constant 0 : index
    %197 = vector.load %arg8[%c272_178, %c0_179] : memref<512x1024xf32, #tpu.memory_space<vmem>>, vector<4x1024xf32>
    tpu.vector_store %arg8[%c272_178, %c0_179], %196 {strides = array<i32>} : memref<512x1024xf32, #tpu.memory_space<vmem>>, vector<4x1024xf32>,
    %c0_180 = arith.constant 0 : index
    %c564 = arith.constant 564 : index
    %198 = vector.load %arg7[%c0_180, %c564] : memref<4x2116xf32, #tpu.memory_space<vmem>>, vector<4x1024xf32>
    %c276_181 = arith.constant 276 : index
    %c0_182 = arith.constant 0 : index
    %199 = vector.load %arg8[%c276_181, %c0_182] : memref<512x1024xf32, #tpu.memory_space<vmem>>, vector<4x1024xf32>
    tpu.vector_store %arg8[%c276_181, %c0_182], %198 {strides = array<i32>} : memref<512x1024xf32, #tpu.memory_space<vmem>>, vector<4x1024xf32>,
    %c0_183 = arith.constant 0 : index
    %c576 = arith.constant 576 : index
    %200 = vector.load %arg7[%c0_183, %c576] : memref<4x2116xf32, #tpu.memory_space<vmem>>, vector<4x1024xf32>
    %c280 = arith.constant 280 : index
    %c0_184 = arith.constant 0 : index
    %201 = vector.load %arg8[%c280, %c0_184] : memref<512x1024xf32, #tpu.memory_space<vmem>>, vector<4x1024xf32>
    tpu.vector_store %arg8[%c280, %c0_184], %200 {strides = array<i32>} : memref<512x1024xf32, #tpu.memory_space<vmem>>, vector<4x1024xf32>,
    %c0_185 = arith.constant 0 : index
    %c577 = arith.constant 577 : index
    %202 = vector.load %arg7[%c0_185, %c577] : memref<4x2116xf32, #tpu.memory_space<vmem>>, vector<4x1024xf32>
    %c284 = arith.constant 284 : index
    %c0_186 = arith.constant 0 : index
    %203 = vector.load %arg8[%c284, %c0_186] : memref<512x1024xf32, #tpu.memory_space<vmem>>, vector<4x1024xf32>
    tpu.vector_store %arg8[%c284, %c0_186], %202 {strides = array<i32>} : memref<512x1024xf32, #tpu.memory_space<vmem>>, vector<4x1024xf32>,
    %c0_187 = arith.constant 0 : index
    %c578 = arith.constant 578 : index
    %204 = vector.load %arg7[%c0_187, %c578] : memref<4x2116xf32, #tpu.memory_space<vmem>>, vector<4x1024xf32>
    %c288_188 = arith.constant 288 : index
    %c0_189 = arith.constant 0 : index
    %205 = vector.load %arg8[%c288_188, %c0_189] : memref<512x1024xf32, #tpu.memory_space<vmem>>, vector<4x1024xf32>
    tpu.vector_store %arg8[%c288_188, %c0_189], %204 {strides = array<i32>} : memref<512x1024xf32, #tpu.memory_space<vmem>>, vector<4x1024xf32>,
    %c0_190 = arith.constant 0 : index
    %c579 = arith.constant 579 : index
    %206 = vector.load %arg7[%c0_190, %c579] : memref<4x2116xf32, #tpu.memory_space<vmem>>, vector<4x1024xf32>
    %c292_191 = arith.constant 292 : index
    %c0_192 = arith.constant 0 : index
    %207 = vector.load %arg8[%c292_191, %c0_192] : memref<512x1024xf32, #tpu.memory_space<vmem>>, vector<4x1024xf32>
    tpu.vector_store %arg8[%c292_191, %c0_192], %206 {strides = array<i32>} : memref<512x1024xf32, #tpu.memory_space<vmem>>, vector<4x1024xf32>,
    %c0_193 = arith.constant 0 : index
    %c580 = arith.constant 580 : index
    %208 = vector.load %arg7[%c0_193, %c580] : memref<4x2116xf32, #tpu.memory_space<vmem>>, vector<4x1024xf32>
    %c296 = arith.constant 296 : index
    %c0_194 = arith.constant 0 : index
    %209 = vector.load %arg8[%c296, %c0_194] : memref<512x1024xf32, #tpu.memory_space<vmem>>, vector<4x1024xf32>
    tpu.vector_store %arg8[%c296, %c0_194], %208 {strides = array<i32>} : memref<512x1024xf32, #tpu.memory_space<vmem>>, vector<4x1024xf32>,
    %c0_195 = arith.constant 0 : index
    %c768 = arith.constant 768 : index
    %210 = vector.load %arg7[%c0_195, %c768] : memref<4x2116xf32, #tpu.memory_space<vmem>>, vector<4x1024xf32>
    %c300 = arith.constant 300 : index
    %c0_196 = arith.constant 0 : index
    %211 = vector.load %arg8[%c300, %c0_196] : memref<512x1024xf32, #tpu.memory_space<vmem>>, vector<4x1024xf32>
    tpu.vector_store %arg8[%c300, %c0_196], %210 {strides = array<i32>} : memref<512x1024xf32, #tpu.memory_space<vmem>>, vector<4x1024xf32>,
    %c0_197 = arith.constant 0 : index
    %c769 = arith.constant 769 : index
    %212 = vector.load %arg7[%c0_197, %c769] : memref<4x2116xf32, #tpu.memory_space<vmem>>, vector<4x1024xf32>
    %c304_198 = arith.constant 304 : index
    %c0_199 = arith.constant 0 : index
    %213 = vector.load %arg8[%c304_198, %c0_199] : memref<512x1024xf32, #tpu.memory_space<vmem>>, vector<4x1024xf32>
    tpu.vector_store %arg8[%c304_198, %c0_199], %212 {strides = array<i32>} : memref<512x1024xf32, #tpu.memory_space<vmem>>, vector<4x1024xf32>,
    %c0_200 = arith.constant 0 : index
    %c770 = arith.constant 770 : index
    %214 = vector.load %arg7[%c0_200, %c770] : memref<4x2116xf32, #tpu.memory_space<vmem>>, vector<4x1024xf32>
    %c308_201 = arith.constant 308 : index
    %c0_202 = arith.constant 0 : index
    %215 = vector.load %arg8[%c308_201, %c0_202] : memref<512x1024xf32, #tpu.memory_space<vmem>>, vector<4x1024xf32>
    tpu.vector_store %arg8[%c308_201, %c0_202], %214 {strides = array<i32>} : memref<512x1024xf32, #tpu.memory_space<vmem>>, vector<4x1024xf32>,
    %c0_203 = arith.constant 0 : index
    %c771 = arith.constant 771 : index
    %216 = vector.load %arg7[%c0_203, %c771] : memref<4x2116xf32, #tpu.memory_space<vmem>>, vector<4x1024xf32>
    %c312 = arith.constant 312 : index
    %c0_204 = arith.constant 0 : index
    %217 = vector.load %arg8[%c312, %c0_204] : memref<512x1024xf32, #tpu.memory_space<vmem>>, vector<4x1024xf32>
    tpu.vector_store %arg8[%c312, %c0_204], %216 {strides = array<i32>} : memref<512x1024xf32, #tpu.memory_space<vmem>>, vector<4x1024xf32>,
    %c0_205 = arith.constant 0 : index
    %c772 = arith.constant 772 : index
    %218 = vector.load %arg7[%c0_205, %c772] : memref<4x2116xf32, #tpu.memory_space<vmem>>, vector<4x1024xf32>
    %c316 = arith.constant 316 : index
    %c0_206 = arith.constant 0 : index
    %219 = vector.load %arg8[%c316, %c0_206] : memref<512x1024xf32, #tpu.memory_space<vmem>>, vector<4x1024xf32>
    tpu.vector_store %arg8[%c316, %c0_206], %218 {strides = array<i32>} : memref<512x1024xf32, #tpu.memory_space<vmem>>, vector<4x1024xf32>,
    %c0_207 = arith.constant 0 : index
    %c784 = arith.constant 784 : index
    %220 = vector.load %arg7[%c0_207, %c784] : memref<4x2116xf32, #tpu.memory_space<vmem>>, vector<4x1024xf32>
    %c320_208 = arith.constant 320 : index
    %c0_209 = arith.constant 0 : index
    %221 = vector.load %arg8[%c320_208, %c0_209] : memref<512x1024xf32, #tpu.memory_space<vmem>>, vector<4x1024xf32>
    tpu.vector_store %arg8[%c320_208, %c0_209], %220 {strides = array<i32>} : memref<512x1024xf32, #tpu.memory_space<vmem>>, vector<4x1024xf32>,
    %c0_210 = arith.constant 0 : index
    %c785 = arith.constant 785 : index
    %222 = vector.load %arg7[%c0_210, %c785] : memref<4x2116xf32, #tpu.memory_space<vmem>>, vector<4x1024xf32>
    %c324_211 = arith.constant 324 : index
    %c0_212 = arith.constant 0 : index
    %223 = vector.load %arg8[%c324_211, %c0_212] : memref<512x1024xf32, #tpu.memory_space<vmem>>, vector<4x1024xf32>
    tpu.vector_store %arg8[%c324_211, %c0_212], %222 {strides = array<i32>} : memref<512x1024xf32, #tpu.memory_space<vmem>>, vector<4x1024xf32>,
    %c0_213 = arith.constant 0 : index
    %c786 = arith.constant 786 : index
    %224 = vector.load %arg7[%c0_213, %c786] : memref<4x2116xf32, #tpu.memory_space<vmem>>, vector<4x1024xf32>
    %c328 = arith.constant 328 : index
    %c0_214 = arith.constant 0 : index
    %225 = vector.load %arg8[%c328, %c0_214] : memref<512x1024xf32, #tpu.memory_space<vmem>>, vector<4x1024xf32>
    tpu.vector_store %arg8[%c328, %c0_214], %224 {strides = array<i32>} : memref<512x1024xf32, #tpu.memory_space<vmem>>, vector<4x1024xf32>,
    %c0_215 = arith.constant 0 : index
    %c787 = arith.constant 787 : index
    %226 = vector.load %arg7[%c0_215, %c787] : memref<4x2116xf32, #tpu.memory_space<vmem>>, vector<4x1024xf32>
    %c332 = arith.constant 332 : index
    %c0_216 = arith.constant 0 : index
    %227 = vector.load %arg8[%c332, %c0_216] : memref<512x1024xf32, #tpu.memory_space<vmem>>, vector<4x1024xf32>
    tpu.vector_store %arg8[%c332, %c0_216], %226 {strides = array<i32>} : memref<512x1024xf32, #tpu.memory_space<vmem>>, vector<4x1024xf32>,
    %c0_217 = arith.constant 0 : index
    %c788 = arith.constant 788 : index
    %228 = vector.load %arg7[%c0_217, %c788] : memref<4x2116xf32, #tpu.memory_space<vmem>>, vector<4x1024xf32>
    %c336 = arith.constant 336 : index
    %c0_218 = arith.constant 0 : index
    %229 = vector.load %arg8[%c336, %c0_218] : memref<512x1024xf32, #tpu.memory_space<vmem>>, vector<4x1024xf32>
    tpu.vector_store %arg8[%c336, %c0_218], %228 {strides = array<i32>} : memref<512x1024xf32, #tpu.memory_space<vmem>>, vector<4x1024xf32>,
    %c0_219 = arith.constant 0 : index
    %c800 = arith.constant 800 : index
    %230 = vector.load %arg7[%c0_219, %c800] : memref<4x2116xf32, #tpu.memory_space<vmem>>, vector<4x1024xf32>
    %c340 = arith.constant 340 : index
    %c0_220 = arith.constant 0 : index
    %231 = vector.load %arg8[%c340, %c0_220] : memref<512x1024xf32, #tpu.memory_space<vmem>>, vector<4x1024xf32>
    tpu.vector_store %arg8[%c340, %c0_220], %230 {strides = array<i32>} : memref<512x1024xf32, #tpu.memory_space<vmem>>, vector<4x1024xf32>,
    %c0_221 = arith.constant 0 : index
    %c801 = arith.constant 801 : index
    %232 = vector.load %arg7[%c0_221, %c801] : memref<4x2116xf32, #tpu.memory_space<vmem>>, vector<4x1024xf32>
    %c344 = arith.constant 344 : index
    %c0_222 = arith.constant 0 : index
    %233 = vector.load %arg8[%c344, %c0_222] : memref<512x1024xf32, #tpu.memory_space<vmem>>, vector<4x1024xf32>
    tpu.vector_store %arg8[%c344, %c0_222], %232 {strides = array<i32>} : memref<512x1024xf32, #tpu.memory_space<vmem>>, vector<4x1024xf32>,
    %c0_223 = arith.constant 0 : index
    %c802 = arith.constant 802 : index
    %234 = vector.load %arg7[%c0_223, %c802] : memref<4x2116xf32, #tpu.memory_space<vmem>>, vector<4x1024xf32>
    %c348 = arith.constant 348 : index
    %c0_224 = arith.constant 0 : index
    %235 = vector.load %arg8[%c348, %c0_224] : memref<512x1024xf32, #tpu.memory_space<vmem>>, vector<4x1024xf32>
    tpu.vector_store %arg8[%c348, %c0_224], %234 {strides = array<i32>} : memref<512x1024xf32, #tpu.memory_space<vmem>>, vector<4x1024xf32>,
    %c0_225 = arith.constant 0 : index
    %c803 = arith.constant 803 : index
    %236 = vector.load %arg7[%c0_225, %c803] : memref<4x2116xf32, #tpu.memory_space<vmem>>, vector<4x1024xf32>
    %c352 = arith.constant 352 : index
    %c0_226 = arith.constant 0 : index
    %237 = vector.load %arg8[%c352, %c0_226] : memref<512x1024xf32, #tpu.memory_space<vmem>>, vector<4x1024xf32>
    tpu.vector_store %arg8[%c352, %c0_226], %236 {strides = array<i32>} : memref<512x1024xf32, #tpu.memory_space<vmem>>, vector<4x1024xf32>,
    %c0_227 = arith.constant 0 : index
    %c804 = arith.constant 804 : index
    %238 = vector.load %arg7[%c0_227, %c804] : memref<4x2116xf32, #tpu.memory_space<vmem>>, vector<4x1024xf32>
    %c356 = arith.constant 356 : index
    %c0_228 = arith.constant 0 : index
    %239 = vector.load %arg8[%c356, %c0_228] : memref<512x1024xf32, #tpu.memory_space<vmem>>, vector<4x1024xf32>
    tpu.vector_store %arg8[%c356, %c0_228], %238 {strides = array<i32>} : memref<512x1024xf32, #tpu.memory_space<vmem>>, vector<4x1024xf32>,
    %c0_229 = arith.constant 0 : index
    %c816 = arith.constant 816 : index
    %240 = vector.load %arg7[%c0_229, %c816] : memref<4x2116xf32, #tpu.memory_space<vmem>>, vector<4x1024xf32>
    %c360 = arith.constant 360 : index
    %c0_230 = arith.constant 0 : index
    %241 = vector.load %arg8[%c360, %c0_230] : memref<512x1024xf32, #tpu.memory_space<vmem>>, vector<4x1024xf32>
    tpu.vector_store %arg8[%c360, %c0_230], %240 {strides = array<i32>} : memref<512x1024xf32, #tpu.memory_space<vmem>>, vector<4x1024xf32>,
    %c0_231 = arith.constant 0 : index
    %c817 = arith.constant 817 : index
    %242 = vector.load %arg7[%c0_231, %c817] : memref<4x2116xf32, #tpu.memory_space<vmem>>, vector<4x1024xf32>
    %c364 = arith.constant 364 : index
    %c0_232 = arith.constant 0 : index
    %243 = vector.load %arg8[%c364, %c0_232] : memref<512x1024xf32, #tpu.memory_space<vmem>>, vector<4x1024xf32>
    tpu.vector_store %arg8[%c364, %c0_232], %242 {strides = array<i32>} : memref<512x1024xf32, #tpu.memory_space<vmem>>, vector<4x1024xf32>,
    %c0_233 = arith.constant 0 : index
    %c818 = arith.constant 818 : index
    %244 = vector.load %arg7[%c0_233, %c818] : memref<4x2116xf32, #tpu.memory_space<vmem>>, vector<4x1024xf32>
    %c368 = arith.constant 368 : index
    %c0_234 = arith.constant 0 : index
    %245 = vector.load %arg8[%c368, %c0_234] : memref<512x1024xf32, #tpu.memory_space<vmem>>, vector<4x1024xf32>
    tpu.vector_store %arg8[%c368, %c0_234], %244 {strides = array<i32>} : memref<512x1024xf32, #tpu.memory_space<vmem>>, vector<4x1024xf32>,
    %c0_235 = arith.constant 0 : index
    %c819 = arith.constant 819 : index
    %246 = vector.load %arg7[%c0_235, %c819] : memref<4x2116xf32, #tpu.memory_space<vmem>>, vector<4x1024xf32>
    %c372 = arith.constant 372 : index
    %c0_236 = arith.constant 0 : index
    %247 = vector.load %arg8[%c372, %c0_236] : memref<512x1024xf32, #tpu.memory_space<vmem>>, vector<4x1024xf32>
    tpu.vector_store %arg8[%c372, %c0_236], %246 {strides = array<i32>} : memref<512x1024xf32, #tpu.memory_space<vmem>>, vector<4x1024xf32>,
    %c0_237 = arith.constant 0 : index
    %c820 = arith.constant 820 : index
    %248 = vector.load %arg7[%c0_237, %c820] : memref<4x2116xf32, #tpu.memory_space<vmem>>, vector<4x1024xf32>
    %c376 = arith.constant 376 : index
    %c0_238 = arith.constant 0 : index
    %249 = vector.load %arg8[%c376, %c0_238] : memref<512x1024xf32, #tpu.memory_space<vmem>>, vector<4x1024xf32>
    tpu.vector_store %arg8[%c376, %c0_238], %248 {strides = array<i32>} : memref<512x1024xf32, #tpu.memory_space<vmem>>, vector<4x1024xf32>,
    %c0_239 = arith.constant 0 : index
    %c832 = arith.constant 832 : index
    %250 = vector.load %arg7[%c0_239, %c832] : memref<4x2116xf32, #tpu.memory_space<vmem>>, vector<4x1024xf32>
    %c380 = arith.constant 380 : index
    %c0_240 = arith.constant 0 : index
    %251 = vector.load %arg8[%c380, %c0_240] : memref<512x1024xf32, #tpu.memory_space<vmem>>, vector<4x1024xf32>
    tpu.vector_store %arg8[%c380, %c0_240], %250 {strides = array<i32>} : memref<512x1024xf32, #tpu.memory_space<vmem>>, vector<4x1024xf32>,
    %c0_241 = arith.constant 0 : index
    %c833 = arith.constant 833 : index
    %252 = vector.load %arg7[%c0_241, %c833] : memref<4x2116xf32, #tpu.memory_space<vmem>>, vector<4x1024xf32>
    %c384 = arith.constant 384 : index
    %c0_242 = arith.constant 0 : index
    %253 = vector.load %arg8[%c384, %c0_242] : memref<512x1024xf32, #tpu.memory_space<vmem>>, vector<4x1024xf32>
    tpu.vector_store %arg8[%c384, %c0_242], %252 {strides = array<i32>} : memref<512x1024xf32, #tpu.memory_space<vmem>>, vector<4x1024xf32>,
    %c0_243 = arith.constant 0 : index
    %c834 = arith.constant 834 : index
    %254 = vector.load %arg7[%c0_243, %c834] : memref<4x2116xf32, #tpu.memory_space<vmem>>, vector<4x1024xf32>
    %c388 = arith.constant 388 : index
    %c0_244 = arith.constant 0 : index
    %255 = vector.load %arg8[%c388, %c0_244] : memref<512x1024xf32, #tpu.memory_space<vmem>>, vector<4x1024xf32>
    tpu.vector_store %arg8[%c388, %c0_244], %254 {strides = array<i32>} : memref<512x1024xf32, #tpu.memory_space<vmem>>, vector<4x1024xf32>,
    %c0_245 = arith.constant 0 : index
    %c835 = arith.constant 835 : index
    %256 = vector.load %arg7[%c0_245, %c835] : memref<4x2116xf32, #tpu.memory_space<vmem>>, vector<4x1024xf32>
    %c392 = arith.constant 392 : index
    %c0_246 = arith.constant 0 : index
    %257 = vector.load %arg8[%c392, %c0_246] : memref<512x1024xf32, #tpu.memory_space<vmem>>, vector<4x1024xf32>
    tpu.vector_store %arg8[%c392, %c0_246], %256 {strides = array<i32>} : memref<512x1024xf32, #tpu.memory_space<vmem>>, vector<4x1024xf32>,
    %c0_247 = arith.constant 0 : index
    %c836 = arith.constant 836 : index
    %258 = vector.load %arg7[%c0_247, %c836] : memref<4x2116xf32, #tpu.memory_space<vmem>>, vector<4x1024xf32>
    %c396 = arith.constant 396 : index
    %c0_248 = arith.constant 0 : index
    %259 = vector.load %arg8[%c396, %c0_248] : memref<512x1024xf32, #tpu.memory_space<vmem>>, vector<4x1024xf32>
    tpu.vector_store %arg8[%c396, %c0_248], %258 {strides = array<i32>} : memref<512x1024xf32, #tpu.memory_space<vmem>>, vector<4x1024xf32>,
    %c0_249 = arith.constant 0 : index
    %c1024 = arith.constant 1024 : index
    %260 = vector.load %arg7[%c0_249, %c1024] : memref<4x2116xf32, #tpu.memory_space<vmem>>, vector<4x1024xf32>
    %c400 = arith.constant 400 : index
    %c0_250 = arith.constant 0 : index
    %261 = vector.load %arg8[%c400, %c0_250] : memref<512x1024xf32, #tpu.memory_space<vmem>>, vector<4x1024xf32>
    tpu.vector_store %arg8[%c400, %c0_250], %260 {strides = array<i32>} : memref<512x1024xf32, #tpu.memory_space<vmem>>, vector<4x1024xf32>,
    %c0_251 = arith.constant 0 : index
    %c1025 = arith.constant 1025 : index
    %262 = vector.load %arg7[%c0_251, %c1025] : memref<4x2116xf32, #tpu.memory_space<vmem>>, vector<4x1024xf32>
    %c404 = arith.constant 404 : index
    %c0_252 = arith.constant 0 : index
    %263 = vector.load %arg8[%c404, %c0_252] : memref<512x1024xf32, #tpu.memory_space<vmem>>, vector<4x1024xf32>
    tpu.vector_store %arg8[%c404, %c0_252], %262 {strides = array<i32>} : memref<512x1024xf32, #tpu.memory_space<vmem>>, vector<4x1024xf32>,
    %c0_253 = arith.constant 0 : index
    %c1026 = arith.constant 1026 : index
    %264 = vector.load %arg7[%c0_253, %c1026] : memref<4x2116xf32, #tpu.memory_space<vmem>>, vector<4x1024xf32>
    %c408 = arith.constant 408 : index
    %c0_254 = arith.constant 0 : index
    %265 = vector.load %arg8[%c408, %c0_254] : memref<512x1024xf32, #tpu.memory_space<vmem>>, vector<4x1024xf32>
    tpu.vector_store %arg8[%c408, %c0_254], %264 {strides = array<i32>} : memref<512x1024xf32, #tpu.memory_space<vmem>>, vector<4x1024xf32>,
    %c0_255 = arith.constant 0 : index
    %c1027 = arith.constant 1027 : index
    %266 = vector.load %arg7[%c0_255, %c1027] : memref<4x2116xf32, #tpu.memory_space<vmem>>, vector<4x1024xf32>
    %c412 = arith.constant 412 : index
    %c0_256 = arith.constant 0 : index
    %267 = vector.load %arg8[%c412, %c0_256] : memref<512x1024xf32, #tpu.memory_space<vmem>>, vector<4x1024xf32>
    tpu.vector_store %arg8[%c412, %c0_256], %266 {strides = array<i32>} : memref<512x1024xf32, #tpu.memory_space<vmem>>, vector<4x1024xf32>,
    %c0_257 = arith.constant 0 : index
    %c1028 = arith.constant 1028 : index
    %268 = vector.load %arg7[%c0_257, %c1028] : memref<4x2116xf32, #tpu.memory_space<vmem>>, vector<4x1024xf32>
    %c416 = arith.constant 416 : index
    %c0_258 = arith.constant 0 : index
    %269 = vector.load %arg8[%c416, %c0_258] : memref<512x1024xf32, #tpu.memory_space<vmem>>, vector<4x1024xf32>
    tpu.vector_store %arg8[%c416, %c0_258], %268 {strides = array<i32>} : memref<512x1024xf32, #tpu.memory_space<vmem>>, vector<4x1024xf32>,
    %c0_259 = arith.constant 0 : index
    %c1040 = arith.constant 1040 : index
    %270 = vector.load %arg7[%c0_259, %c1040] : memref<4x2116xf32, #tpu.memory_space<vmem>>, vector<4x1024xf32>
    %c420 = arith.constant 420 : index
    %c0_260 = arith.constant 0 : index
    %271 = vector.load %arg8[%c420, %c0_260] : memref<512x1024xf32, #tpu.memory_space<vmem>>, vector<4x1024xf32>
    tpu.vector_store %arg8[%c420, %c0_260], %270 {strides = array<i32>} : memref<512x1024xf32, #tpu.memory_space<vmem>>, vector<4x1024xf32>,
    %c0_261 = arith.constant 0 : index
    %c1041 = arith.constant 1041 : index
    %272 = vector.load %arg7[%c0_261, %c1041] : memref<4x2116xf32, #tpu.memory_space<vmem>>, vector<4x1024xf32>
    %c424 = arith.constant 424 : index
    %c0_262 = arith.constant 0 : index
    %273 = vector.load %arg8[%c424, %c0_262] : memref<512x1024xf32, #tpu.memory_space<vmem>>, vector<4x1024xf32>
    tpu.vector_store %arg8[%c424, %c0_262], %272 {strides = array<i32>} : memref<512x1024xf32, #tpu.memory_space<vmem>>, vector<4x1024xf32>,
    %c0_263 = arith.constant 0 : index
    %c1042 = arith.constant 1042 : index
    %274 = vector.load %arg7[%c0_263, %c1042] : memref<4x2116xf32, #tpu.memory_space<vmem>>, vector<4x1024xf32>
    %c428 = arith.constant 428 : index
    %c0_264 = arith.constant 0 : index
    %275 = vector.load %arg8[%c428, %c0_264] : memref<512x1024xf32, #tpu.memory_space<vmem>>, vector<4x1024xf32>
    tpu.vector_store %arg8[%c428, %c0_264], %274 {strides = array<i32>} : memref<512x1024xf32, #tpu.memory_space<vmem>>, vector<4x1024xf32>,
    %c0_265 = arith.constant 0 : index
    %c1043 = arith.constant 1043 : index
    %276 = vector.load %arg7[%c0_265, %c1043] : memref<4x2116xf32, #tpu.memory_space<vmem>>, vector<4x1024xf32>
    %c432 = arith.constant 432 : index
    %c0_266 = arith.constant 0 : index
    %277 = vector.load %arg8[%c432, %c0_266] : memref<512x1024xf32, #tpu.memory_space<vmem>>, vector<4x1024xf32>
    tpu.vector_store %arg8[%c432, %c0_266], %276 {strides = array<i32>} : memref<512x1024xf32, #tpu.memory_space<vmem>>, vector<4x1024xf32>,
    %c0_267 = arith.constant 0 : index
    %c1044 = arith.constant 1044 : index
    %278 = vector.load %arg7[%c0_267, %c1044] : memref<4x2116xf32, #tpu.memory_space<vmem>>, vector<4x1024xf32>
    %c436 = arith.constant 436 : index
    %c0_268 = arith.constant 0 : index
    %279 = vector.load %arg8[%c436, %c0_268] : memref<512x1024xf32, #tpu.memory_space<vmem>>, vector<4x1024xf32>
    tpu.vector_store %arg8[%c436, %c0_268], %278 {strides = array<i32>} : memref<512x1024xf32, #tpu.memory_space<vmem>>, vector<4x1024xf32>,
    %c0_269 = arith.constant 0 : index
    %c1056 = arith.constant 1056 : index
    %280 = vector.load %arg7[%c0_269, %c1056] : memref<4x2116xf32, #tpu.memory_space<vmem>>, vector<4x1024xf32>
    %c440 = arith.constant 440 : index
    %c0_270 = arith.constant 0 : index
    %281 = vector.load %arg8[%c440, %c0_270] : memref<512x1024xf32, #tpu.memory_space<vmem>>, vector<4x1024xf32>
    tpu.vector_store %arg8[%c440, %c0_270], %280 {strides = array<i32>} : memref<512x1024xf32, #tpu.memory_space<vmem>>, vector<4x1024xf32>,
    %c0_271 = arith.constant 0 : index
    %c1057 = arith.constant 1057 : index
    %282 = vector.load %arg7[%c0_271, %c1057] : memref<4x2116xf32, #tpu.memory_space<vmem>>, vector<4x1024xf32>
    %c444 = arith.constant 444 : index
    %c0_272 = arith.constant 0 : index
    %283 = vector.load %arg8[%c444, %c0_272] : memref<512x1024xf32, #tpu.memory_space<vmem>>, vector<4x1024xf32>
    tpu.vector_store %arg8[%c444, %c0_272], %282 {strides = array<i32>} : memref<512x1024xf32, #tpu.memory_space<vmem>>, vector<4x1024xf32>,
    %c0_273 = arith.constant 0 : index
    %c1058 = arith.constant 1058 : index
    %284 = vector.load %arg7[%c0_273, %c1058] : memref<4x2116xf32, #tpu.memory_space<vmem>>, vector<4x1024xf32>
    %c448 = arith.constant 448 : index
    %c0_274 = arith.constant 0 : index
    %285 = vector.load %arg8[%c448, %c0_274] : memref<512x1024xf32, #tpu.memory_space<vmem>>, vector<4x1024xf32>
    tpu.vector_store %arg8[%c448, %c0_274], %284 {strides = array<i32>} : memref<512x1024xf32, #tpu.memory_space<vmem>>, vector<4x1024xf32>,
    %c0_275 = arith.constant 0 : index
    %c1059 = arith.constant 1059 : index
    %286 = vector.load %arg7[%c0_275, %c1059] : memref<4x2116xf32, #tpu.memory_space<vmem>>, vector<4x1024xf32>
    %c452 = arith.constant 452 : index
    %c0_276 = arith.constant 0 : index
    %287 = vector.load %arg8[%c452, %c0_276] : memref<512x1024xf32, #tpu.memory_space<vmem>>, vector<4x1024xf32>
    tpu.vector_store %arg8[%c452, %c0_276], %286 {strides = array<i32>} : memref<512x1024xf32, #tpu.memory_space<vmem>>, vector<4x1024xf32>,
    %c0_277 = arith.constant 0 : index
    %c1060 = arith.constant 1060 : index
    %288 = vector.load %arg7[%c0_277, %c1060] : memref<4x2116xf32, #tpu.memory_space<vmem>>, vector<4x1024xf32>
    %c456 = arith.constant 456 : index
    %c0_278 = arith.constant 0 : index
    %289 = vector.load %arg8[%c456, %c0_278] : memref<512x1024xf32, #tpu.memory_space<vmem>>, vector<4x1024xf32>
    tpu.vector_store %arg8[%c456, %c0_278], %288 {strides = array<i32>} : memref<512x1024xf32, #tpu.memory_space<vmem>>, vector<4x1024xf32>,
    %c0_279 = arith.constant 0 : index
    %c1072 = arith.constant 1072 : index
    %290 = vector.load %arg7[%c0_279, %c1072] : memref<4x2116xf32, #tpu.memory_space<vmem>>, vector<4x1024xf32>
    %c460 = arith.constant 460 : index
    %c0_280 = arith.constant 0 : index
    %291 = vector.load %arg8[%c460, %c0_280] : memref<512x1024xf32, #tpu.memory_space<vmem>>, vector<4x1024xf32>
    tpu.vector_store %arg8[%c460, %c0_280], %290 {strides = array<i32>} : memref<512x1024xf32, #tpu.memory_space<vmem>>, vector<4x1024xf32>,
    %c0_281 = arith.constant 0 : index
    %c1073 = arith.constant 1073 : index
    %292 = vector.load %arg7[%c0_281, %c1073] : memref<4x2116xf32, #tpu.memory_space<vmem>>, vector<4x1024xf32>
    %c464 = arith.constant 464 : index
    %c0_282 = arith.constant 0 : index
    %293 = vector.load %arg8[%c464, %c0_282] : memref<512x1024xf32, #tpu.memory_space<vmem>>, vector<4x1024xf32>
    tpu.vector_store %arg8[%c464, %c0_282], %292 {strides = array<i32>} : memref<512x1024xf32, #tpu.memory_space<vmem>>, vector<4x1024xf32>,
    %c0_283 = arith.constant 0 : index
    %c1074 = arith.constant 1074 : index
    %294 = vector.load %arg7[%c0_283, %c1074] : memref<4x2116xf32, #tpu.memory_space<vmem>>, vector<4x1024xf32>
    %c468 = arith.constant 468 : index
    %c0_284 = arith.constant 0 : index
    %295 = vector.load %arg8[%c468, %c0_284] : memref<512x1024xf32, #tpu.memory_space<vmem>>, vector<4x1024xf32>
    tpu.vector_store %arg8[%c468, %c0_284], %294 {strides = array<i32>} : memref<512x1024xf32, #tpu.memory_space<vmem>>, vector<4x1024xf32>,
    %c0_285 = arith.constant 0 : index
    %c1075 = arith.constant 1075 : index
    %296 = vector.load %arg7[%c0_285, %c1075] : memref<4x2116xf32, #tpu.memory_space<vmem>>, vector<4x1024xf32>
    %c472 = arith.constant 472 : index
    %c0_286 = arith.constant 0 : index
    %297 = vector.load %arg8[%c472, %c0_286] : memref<512x1024xf32, #tpu.memory_space<vmem>>, vector<4x1024xf32>
    tpu.vector_store %arg8[%c472, %c0_286], %296 {strides = array<i32>} : memref<512x1024xf32, #tpu.memory_space<vmem>>, vector<4x1024xf32>,
    %c0_287 = arith.constant 0 : index
    %c1076 = arith.constant 1076 : index
    %298 = vector.load %arg7[%c0_287, %c1076] : memref<4x2116xf32, #tpu.memory_space<vmem>>, vector<4x1024xf32>
    %c476 = arith.constant 476 : index
    %c0_288 = arith.constant 0 : index
    %299 = vector.load %arg8[%c476, %c0_288] : memref<512x1024xf32, #tpu.memory_space<vmem>>, vector<4x1024xf32>
    tpu.vector_store %arg8[%c476, %c0_288], %298 {strides = array<i32>} : memref<512x1024xf32, #tpu.memory_space<vmem>>, vector<4x1024xf32>,
    %c0_289 = arith.constant 0 : index
    %c1088 = arith.constant 1088 : index
    %300 = vector.load %arg7[%c0_289, %c1088] : memref<4x2116xf32, #tpu.memory_space<vmem>>, vector<4x1024xf32>
    %c480 = arith.constant 480 : index
    %c0_290 = arith.constant 0 : index
    %301 = vector.load %arg8[%c480, %c0_290] : memref<512x1024xf32, #tpu.memory_space<vmem>>, vector<4x1024xf32>
    tpu.vector_store %arg8[%c480, %c0_290], %300 {strides = array<i32>} : memref<512x1024xf32, #tpu.memory_space<vmem>>, vector<4x1024xf32>,
    %c0_291 = arith.constant 0 : index
    %c1089 = arith.constant 1089 : index
    %302 = vector.load %arg7[%c0_291, %c1089] : memref<4x2116xf32, #tpu.memory_space<vmem>>, vector<4x1024xf32>
    %c484 = arith.constant 484 : index
    %c0_292 = arith.constant 0 : index
    %303 = vector.load %arg8[%c484, %c0_292] : memref<512x1024xf32, #tpu.memory_space<vmem>>, vector<4x1024xf32>
    tpu.vector_store %arg8[%c484, %c0_292], %302 {strides = array<i32>} : memref<512x1024xf32, #tpu.memory_space<vmem>>, vector<4x1024xf32>,
    %c0_293 = arith.constant 0 : index
    %c1090 = arith.constant 1090 : index
    %304 = vector.load %arg7[%c0_293, %c1090] : memref<4x2116xf32, #tpu.memory_space<vmem>>, vector<4x1024xf32>
    %c488 = arith.constant 488 : index
    %c0_294 = arith.constant 0 : index
    %305 = vector.load %arg8[%c488, %c0_294] : memref<512x1024xf32, #tpu.memory_space<vmem>>, vector<4x1024xf32>
    tpu.vector_store %arg8[%c488, %c0_294], %304 {strides = array<i32>} : memref<512x1024xf32, #tpu.memory_space<vmem>>, vector<4x1024xf32>,
    %c0_295 = arith.constant 0 : index
    %c1091 = arith.constant 1091 : index
    %306 = vector.load %arg7[%c0_295, %c1091] : memref<4x2116xf32, #tpu.memory_space<vmem>>, vector<4x1024xf32>
    %c492 = arith.constant 492 : index
    %c0_296 = arith.constant 0 : index
    %307 = vector.load %arg8[%c492, %c0_296] : memref<512x1024xf32, #tpu.memory_space<vmem>>, vector<4x1024xf32>
    tpu.vector_store %arg8[%c492, %c0_296], %306 {strides = array<i32>} : memref<512x1024xf32, #tpu.memory_space<vmem>>, vector<4x1024xf32>,
    %c0_297 = arith.constant 0 : index
    %c1092 = arith.constant 1092 : index
    %308 = vector.load %arg7[%c0_297, %c1092] : memref<4x2116xf32, #tpu.memory_space<vmem>>, vector<4x1024xf32>
    %c496 = arith.constant 496 : index
    %c0_298 = arith.constant 0 : index
    %309 = vector.load %arg8[%c496, %c0_298] : memref<512x1024xf32, #tpu.memory_space<vmem>>, vector<4x1024xf32>
    tpu.vector_store %arg8[%c496, %c0_298], %308 {strides = array<i32>} : memref<512x1024xf32, #tpu.memory_space<vmem>>, vector<4x1024xf32>,
    %cst_299 = arith.constant 0.000000e+00 : f32
    %310 = vector.broadcast %cst_299 : f32 to vector<12x1024xf32>
    %c500 = arith.constant 500 : index
    %c0_300 = arith.constant 0 : index
    %311 = vector.load %arg8[%c500, %c0_300] : memref<512x1024xf32, #tpu.memory_space<vmem>>, vector<12x1024xf32>
    tpu.vector_store %arg8[%c500, %c0_300], %310 {strides = array<i32>} : memref<512x1024xf32, #tpu.memory_space<vmem>>, vector<12x1024xf32>,
    %cst_301 = arith.constant 1.000000e+00 : f32
    %312 = vector.broadcast %cst_301 : f32 to vector<1x1024xf32>
    %c500_302 = arith.constant 500 : index
    %c0_303 = arith.constant 0 : index
    %313 = vector.load %arg8[%c500_302, %c0_303] : memref<512x1024xf32, #tpu.memory_space<vmem>>, vector<1x1024xf32>
    tpu.vector_store %arg8[%c500_302, %c0_303], %312 {strides = array<i32>} : memref<512x1024xf32, #tpu.memory_space<vmem>>, vector<1x1024xf32>,
    %c0_304 = arith.constant 0 : index
    %c0_305 = arith.constant 0 : index
    %314 = vector.load %arg4[%c0_304, %c0_305] : memref<8x512xf32, #tpu.memory_space<vmem>>, vector<8x512xf32>
    %c0_306 = arith.constant 0 : index
    %c0_307 = arith.constant 0 : index
    %315 = vector.load %arg8[%c0_306, %c0_307] : memref<512x1024xf32, #tpu.memory_space<vmem>>, vector<512x1024xf32>
    %cst_308 = arith.constant dense<0.000000e+00> : vector<8x1024xf32>
    %316 = tpu.matmul %314, %315, %cst_308 {dimension_numbers = #tpu.dot_dimension_numbers<[1], [0], [0], [1], [0, 0, 1, 1], [], []>} : vector<8x512xf32>, vector<512x1024xf32>, vector<8x1024xf32> -> vector<8x1024xf32>
    %c0_309 = arith.constant 0 : index
    %c0_310 = arith.constant 0 : index
    %c0_311 = arith.constant 0 : index
    %317 = vector.load %arg6[%c0_309, %c0_310, %c0_311] : memref<1x8x1024xf32, #tpu.memory_space<vmem>>, vector<1x8x1024xf32>
    %318 = vector.shape_cast %317 : vector<1x8x1024xf32> to vector<8x1024xf32>
    %319 = vector.shape_cast %316 : vector<8x1024xf32> to vector<1x8x1024xf32>
    tpu.vector_store %arg6[%c0_309, %c0_310, %c0_311], %319 {strides = array<i32>} : memref<1x8x1024xf32, #tpu.memory_space<vmem>>, vector<1x8x1024xf32>,
    return
  }
  func.func @transform_0(%arg0: i32, %arg1: i32) -> i32 {
    %c0_i32 = arith.constant 0 : i32
    %c0_i32_0 = arith.constant 0 : i32
    return %c0_i32 : i32
  }
  func.func @transform_1(%arg0: i32, %arg1: i32) -> i32 {
    %c0_i32 = arith.constant 0 : i32
    %c0_i32_0 = arith.constant 0 : i32
    return %c0_i32 : i32
  }
  func.func @transform_2(%arg0: i32, %arg1: i32) -> (i32, i32) {
    %c0_i32 = arith.constant 0 : i32
    %c0_i32_0 = arith.constant 0 : i32
    %c0_i32_1 = arith.constant 0 : i32
    return %c0_i32, %c0_i32_0 : i32, i32
  }
  func.func @transform_3(%arg0: i32, %arg1: i32) -> (i32, i32, i32) {
    %c0_i32 = arith.constant 0 : i32
    %c0_i32_0 = arith.constant 0 : i32
    %c0_i32_1 = arith.constant 0 : i32
    return %arg0, %c0_i32, %c0_i32_0 : i32, i32, i32
  }
  func.func @transform_4(%arg0: i32, %arg1: i32) -> (i32, i32, i32) {
    %c0_i32 = arith.constant 0 : i32
    %c0_i32_0 = arith.constant 0 : i32
    return %arg0, %c0_i32, %arg1 : i32, i32, i32
  }
}

</mosaic_0001>

<llo_original>
// kernel: tpu_custom_call.1
$region0: #{tpu_custom_call.1}
  #allocation0 [shape = 'u32[]', space=smem, size = 0x4, offset = 0x4, fixed_abs, tag = 'smem constant byte address 0x4 - core index']
  #allocation1 [shape = 'u32[144,128]{1,0:T(1,128)}', space=vmem, size = 0x12000, scoped, tag = 'internal scratch']
  #allocation2 [shape = 'f32[4,2116]{1,0:T(4,128)}', space=vmem, size = 0x8800, scoped, tag = 'scratch operand']
  #allocation3 [shape = 'f32[512,1024]{1,0:T(8,128)}', space=vmem, size = 0x200000, scoped, tag = 'scratch operand']
  %s0 = inlined_call_operand.hbm [shape: f32[4], index: 0, kind: input, shape index: {}]
  %s1 = inlined_call_operand.vmem [shape: f32[4], index: 1, kind: input, shape index: {}]
  %s2 = inlined_call_operand.hbm [shape: f32[8,512], index: 2, kind: input, shape index: {}]
  %s3 = inlined_call_operand.hbm [shape: f32[2,4,4096], index: 3, kind: input, shape index: {}]
  %s4 = inlined_call_operand.hbm [shape: f32[2,8,3072], index: 4, kind: output, shape index: {}]
  %s5 = sld [smem:[#allocation0]]
  $region65: #{tpu_custom_call.1} parent=0
    _
  %s7 = ssub.s32 1, %s5
  %s8 = scalar_select 0, %s7, %s5
  $region1: #{tpu_custom_call.1} parent=0
    #allocation4 [shape = 'u8[512]{0}', space=smem, size = 0x200, scoped, tag = 'input window, operand 0, single buffered']
    #allocation5 [shape = 's32[2]{0}', space=sflag, size = 0x8, scoped, tag = 'scoped memory for tpu_custom_call.1']
    #allocation6 [shape = 's32[2]{0}', space=sflag, size = 0x8, scoped, tag = 'scoped memory for tpu_custom_call.1']
    #allocation7 [shape = 's32[2]{0}', space=sflag, size = 0x8, scoped, tag = 'scoped memory for tpu_custom_call.1']
    #allocation8 [shape = 's32[2]{0}', space=sflag, size = 0x8, scoped, tag = 'scoped memory for tpu_custom_call.1']
    #allocation9 [shape = 'u8[512]{0}', space=smem, size = 0x200, scoped, tag = 'input window, operand 1, single buffered']
    #allocation10 [shape = 'u8[16384]{0}', space=vmem, size = 0x4000, scoped, tag = 'input window, operand 2, single buffered']
    #allocation11 [shape = 'u8[131072]{0}', space=vmem, size = 0x20000, scoped, tag = 'input window, operand 3']
    #allocation12 [shape = 's32[2]{0}', space=sflag, size = 0x8, scoped, tag = 'scoped memory for tpu_custom_call.1']
    #allocation13 [shape = 'u8[65536]{0}', space=vmem, size = 0x10000, scoped, tag = 'output window, operand 0']
    %9 = vsyncpa [#allocation7], 0
    %10 = vsyncpa [#allocation8], 0
    %11 = vsyncpa [#allocation5], 0
    %12 = vsyncpa [#allocation12], 0
    %s13 = scalar_lea.sflag [#allocation12], 1
    %14 = vsyncpa %s13, 0
    %15 = vsyncpa [#allocation6], 0
    %s16 = scalar_lea.sflag [#allocation6], 1
    %17 = vsyncpa %s16, 0
    loop: start=0, step=1, limit=8
    $region2: #{tpu_custom_call.1} parent=1 // loop_pre_header
      _
    $region3: #{tpu_custom_call.1} parent=1 // loop_header
      %s19 = sphi 0, %s23
      %p20 = scmp.ge.s32.totalorder %s19, 8
      %s26 = sphi 0, %s38
      %s27 = sphi 0, %s34
      %s28 = sphi 0, %s26
      %s29 = sphi 0, %s27
      %s30 = sphi 0, %s28
      %s31 = sphi 0, %s29
      %s39 = sphi 0, %s39
      %s41 = sphi 0, %s39
      %s42 = sphi 0, %s41
      %s56 = sphi 0, %s42
      %s60 = sphi 0, %s60
      %s62 = sphi 0, %s60
      %s63 = sphi 0, %s62
      %s77 = sphi 0, %s63
      %s81 = sphi 0, %s81
      %s83 = sphi 0, %s81
      %s84 = sphi 0, %s83
      %s98 = sphi 0, %s84
      %s104 = sphi 0, %s106
      %s107 = sphi 0, %s104
      %s108 = sphi 0, %s107
      %s124 = sphi 0, %s108
      %s132 = sphi 0, %s134
      %s135 = sphi 0, %s132
      %s136 = sphi 0, %s135
      %s152 = sphi 0, %s136
    $region4: #{tpu_custom_call.1} parent=1 // loop_header_branch
      %22 = sbr.rel (%p20) target = $region8
    $region5: #{tpu_custom_call.1} parent=1 // loop_body
      %s24 = ssub.s32 %s19, 1
      %s25 = ssub.s32 %s19, 2
      %s32 = sadd.s32 1, %s27
      %p33 = scmp.ge.s32.totalorder %s32, 3
      %s34 = scalar_select %p33, 0, %s32
      %s35 = sadd.s32 1, %s26
      %s36 = scalar_select %p33, %s35, %s26
      %p37 = scmp.ge.s32.totalorder %s36, 2
      %s38 = scalar_select %p37, 0, %s36
      %s40 = sadd.s32 %s39, 1
      %p43 = scmp.eq.s32.totalorder %s19, 5
      %p44 = scmp.ne.s32.totalorder %s39, %s41
      %p45 = scmp.eq.s32.totalorder %s19, 0
      %p46 = por %p44, %p45
      %p47 = scmp.ne.s32.totalorder %s39, %s41
      %p48 = scmp.eq.s32.totalorder %s24, 5
      %p49 = por %p47, %p48
      %p50 = scmp.ne.s32.totalorder %s41, %s42
      %p51 = scmp.eq.s32.totalorder %s24, 0
      %p52 = por %p50, %p51
      %p53 = scmp.ne.s32.totalorder %s41, %s42
      %p54 = scmp.eq.s32.totalorder %s25, 5
      %p55 = por %p53, %p54
      %p57 = scmp.ne.s32.totalorder %s42, %s56
      %p58 = scmp.eq.s32.totalorder %s25, 0
      %p59 = por %p57, %p58
      %s61 = sadd.s32 %s60, 1
      %p64 = scmp.eq.s32.totalorder %s19, 5
      %p65 = scmp.ne.s32.totalorder %s60, %s62
      %p66 = scmp.eq.s32.totalorder %s19, 0
      %p67 = por %p65, %p66
      %p68 = scmp.ne.s32.totalorder %s60, %s62
      %p69 = scmp.eq.s32.totalorder %s24, 5
      %p70 = por %p68, %p69
      %p71 = scmp.ne.s32.totalorder %s62, %s63
      %p72 = scmp.eq.s32.totalorder %s24, 0
      %p73 = por %p71, %p72
      %p74 = scmp.ne.s32.totalorder %s62, %s63
      %p75 = scmp.eq.s32.totalorder %s25, 5
      %p76 = por %p74, %p75
      %p78 = scmp.ne.s32.totalorder %s63, %s77
      %p79 = scmp.eq.s32.totalorder %s25, 0
      %p80 = por %p78, %p79
      %s82 = sadd.s32 %s81, 1
      %p85 = scmp.eq.s32.totalorder %s19, 5
      %p86 = scmp.ne.s32.totalorder %s81, %s83
      %p87 = scmp.eq.s32.totalorder %s19, 0
      %p88 = por %p86, %p87
      %p89 = scmp.ne.s32.totalorder %s81, %s83
      %p90 = scmp.eq.s32.totalorder %s24, 5
      %p91 = por %p89, %p90
      %p92 = scmp.ne.s32.totalorder %s83, %s84
      %p93 = scmp.eq.s32.totalorder %s24, 0
      %p94 = por %p92, %p93
      %p95 = scmp.ne.s32.totalorder %s83, %s84
      %p96 = scmp.eq.s32.totalorder %s25, 5
      %p97 = por %p95, %p96
      %p99 = scmp.ne.s32.totalorder %s84, %s98
      %p100 = scmp.eq.s32.totalorder %s25, 0
      %p101 = por %p99, %p100
      %s102 = ssub.s32 %s26, %s38
      %p103 = scmp.eq.s32.totalorder %s102, 0
      %s105 = sadd.s32 %s104, 1
      %s106 = scalar_select %p103, %s104, %s105
      %p109 = pneg %p103
      %p110 = scmp.eq.s32.totalorder %s19, 5
      %p111 = por %p109, %p110
      %p112 = scmp.ne.s32.totalorder %s104, %s107
      %p113 = scmp.eq.s32.totalorder %s19, 0
      %p114 = por %p112, %p113
      %p115 = scmp.ne.s32.totalorder %s104, %s107
      %p116 = scmp.eq.s32.totalorder %s24, 5
      %p117 = por %p115, %p116
      %p118 = scmp.ne.s32.totalorder %s107, %s108
      %p119 = scmp.eq.s32.totalorder %s24, 0
      %p120 = por %p118, %p119
      %p121 = scmp.ne.s32.totalorder %s107, %s108
      %p122 = scmp.eq.s32.totalorder %s25, 5
      %p123 = por %p121, %p122
      %p125 = scmp.ne.s32.totalorder %s108, %s124
      %p126 = scmp.eq.s32.totalorder %s25, 0
      %p127 = por %p125, %p126
      %s128 = ssub.s32 %s26, %s38
      %s129 = ssub.s32 %s27, %s34
      %s130 = sor.u32 %s128, %s129
      %p131 = scmp.eq.s32.totalorder %s130, 0
      %s133 = sadd.s32 %s132, 1
      %s134 = scalar_select %p131, %s132, %s133
      %p137 = pneg %p131
      %p138 = scmp.eq.s32.totalorder %s19, 5
      %p139 = por %p137, %p138
      %p140 = scmp.ne.s32.totalorder %s132, %s135
      %p141 = scmp.eq.s32.totalorder %s19, 0
      %p142 = por %p140, %p141
      %p143 = scmp.ne.s32.totalorder %s132, %s135
      %p144 = scmp.eq.s32.totalorder %s24, 5
      %p145 = por %p143, %p144
      %p146 = scmp.ne.s32.totalorder %s135, %s136
      %p147 = scmp.eq.s32.totalorder %s24, 0
      %p148 = por %p146, %p147
      %p149 = scmp.ne.s32.totalorder %s135, %s136
      %p150 = scmp.eq.s32.totalorder %s25, 5
      %p151 = por %p149, %p150
      %p153 = scmp.ne.s32.totalorder %s136, %s152
      %p154 = scmp.eq.s32.totalorder %s25, 0
      %p155 = por %p153, %p154
      %p156 = scmp.le.s32.totalorder 1, %s19
      %p157 = scmp.lt.s32.totalorder %s19, 7
      %p158 = pnand %p156, %p157
      %p159 = pneg %p158
      // Predicated region
      $region9: #{tpu_custom_call.1} parent=5 // pred_check
        _
      $region10: #{tpu_custom_call.1} parent=5 // pred_check_branch
        %161 = sbr.rel (%p158) target = $region12
      $region11: #{tpu_custom_call.1} parent=5 // pred_region
        %s162 = ssub.s32 %s19, 1
        // Predicated region
        $region13: #{tpu_custom_call.1} parent=11 // pred_check
          %p163 = pneg %p52
        $region14: #{tpu_custom_call.1} parent=11 // pred_check_branch
          %165 = sbr.rel (%p163) target = $region16
        $region15: #{tpu_custom_call.1} parent=11 // pred_region
          %s167 = ssub.s32 16, 16
          %168 = vsyncadd [#allocation7], %s167
          %171 = dma.hbm_to_smem %s0, 16, [#allocation4], [#allocation7]
        $region16: #{tpu_custom_call.1} parent=11 // pred_fallthru
          _
        // Predicated region
        $region17: #{tpu_custom_call.1} parent=11 // pred_check
          %p172 = pneg %p73
        $region18: #{tpu_custom_call.1} parent=11 // pred_check_branch
          %174 = sbr.rel (%p172) target = $region20
        $region19: #{tpu_custom_call.1} parent=11 // pred_region
          %s176 = ssub.s32 16, 16
          %177 = vsyncadd [#allocation8], %s176
          %s179 = sshll.u32 %s1, 4
          %s180 = int_to_ptr.vmem [resolvable:$true] %s179
          %182 = dma.vmem_to_smem %s180, 16, [#allocation9], [#allocation8]
        $region20: #{tpu_custom_call.1} parent=11 // pred_fallthru
          _
        // Predicated region
        $region21: #{tpu_custom_call.1} parent=11 // pred_check
          %p183 = pneg %p94
        $region22: #{tpu_custom_call.1} parent=11 // pred_check_branch
          %185 = sbr.rel (%p183) target = $region24
        $region23: #{tpu_custom_call.1} parent=11 // pred_region
          %s187 = ssub.s32 512, 512
          %188 = vsyncadd [#allocation5], %s187
          %s190 = sshll.u32 [#allocation10], 4
          %s191 = int_to_ptr.vmem [resolvable:$true] %s190
          %193 = dma.hbm_to_vmem [thread:$0]  %s2, 512, %s191, [#allocation5]
        $region24: #{tpu_custom_call.1} parent=11 // pred_fallthru
          _
      $region12: #{tpu_custom_call.1} parent=5 // pred_fallthru
        _
      %p194 = scmp.lt.s32.totalorder %s19, 6
      // Predicated region
      $region25: #{tpu_custom_call.1} parent=5 // pred_check
        %p195 = pneg %p194
      $region26: #{tpu_custom_call.1} parent=5 // pred_check_branch
        %197 = sbr.rel (%p195) target = $region28
      $region27: #{tpu_custom_call.1} parent=5 // pred_region
        // Predicated region
        $region29: #{tpu_custom_call.1} parent=27 // pred_check
          %p198 = pneg %p114
        $region30: #{tpu_custom_call.1} parent=27 // pred_check_branch
          %200 = sbr.rel (%p198) target = $region32
        $region31: #{tpu_custom_call.1} parent=27 // pred_region
          %s201 = sand.u32 %s104, 1
          %s202 = scalar_lea.sflag [#allocation12], %s201
          %s203 = sand.u32 %s104, 1
          %s204 = smul.addr %s203, 128
          %s205 = scalar_lea.vmem [#allocation11], %s204
          %s207 = ssub.s32 2048, 2048
          %208 = vsyncadd %s202, %s207
          %s209 = smul.addr %s26, 32
          %s210 = smul.addr %s209, 64
          %s211 = scalar_lea.hbm %s3, %s210
          %s213 = sshll.u32 %s205, 4
          %s214 = int_to_ptr.vmem [resolvable:$true] %s213
          %216 = dma.hbm_to_vmem [thread:$0]  %s211, 2048, %s214, %s202
        $region32: #{tpu_custom_call.1} parent=27 // pred_fallthru
          _
      $region28: #{tpu_custom_call.1} parent=5 // pred_fallthru
        _
      %p217 = scmp.le.s32.totalorder 1, %s19
      %p218 = scmp.lt.s32.totalorder %s19, 7
      %p219 = pnand %p217, %p218
      %p220 = pneg %p219
      // Predicated region
      $region33: #{tpu_custom_call.1} parent=5 // pred_check
        _
      $region34: #{tpu_custom_call.1} parent=5 // pred_check_branch
        %222 = sbr.rel (%p219) target = $region36
      $region35: #{tpu_custom_call.1} parent=5 // pred_region
        %s223 = ssub.s32 %s19, 1
        // Predicated region
        $region37: #{tpu_custom_call.1} parent=35 // pred_check
          %p224 = pneg %p52
        $region38: #{tpu_custom_call.1} parent=35 // pred_check_branch
          %226 = sbr.rel (%p224) target = $region40
        $region39: #{tpu_custom_call.1} parent=35 // pred_region
          %227 = dma.done [#allocation7], 16
        $region40: #{tpu_custom_call.1} parent=35 // pred_fallthru
          _
        // Predicated region
        $region41: #{tpu_custom_call.1} parent=35 // pred_check
          %p228 = pneg %p73
        $region42: #{tpu_custom_call.1} parent=35 // pred_check_branch
          %230 = sbr.rel (%p228) target = $region44
        $region43: #{tpu_custom_call.1} parent=35 // pred_region
          %231 = dma.done [#allocation8], 16
        $region44: #{tpu_custom_call.1} parent=35 // pred_fallthru
          _
        // Predicated region
        $region45: #{tpu_custom_call.1} parent=35 // pred_check
          %p232 = pneg %p94
        $region46: #{tpu_custom_call.1} parent=35 // pred_check_branch
          %234 = sbr.rel (%p232) target = $region48
        $region47: #{tpu_custom_call.1} parent=35 // pred_region
          %235 = dma.done [#allocation5], 512
        $region48: #{tpu_custom_call.1} parent=35 // pred_fallthru
          _
        %s236 = sand.u32 %s107, 1
        %s237 = scalar_lea.sflag [#allocation12], %s236
        %s238 = sand.u32 %s107, 1
        %s239 = smul.addr %s238, 128
        %s240 = scalar_lea.vmem [#allocation11], %s239
        // Predicated region
        $region49: #{tpu_custom_call.1} parent=35 // pred_check
          %p241 = pneg %p120
        $region50: #{tpu_custom_call.1} parent=35 // pred_check_branch
          %243 = sbr.rel (%p241) target = $region52
        $region51: #{tpu_custom_call.1} parent=35 // pred_region
          %244 = dma.done %s237, 2048
        $region52: #{tpu_custom_call.1} parent=35 // pred_fallthru
          _
        %245 = sfence
        %p246 = pneg %p52
        %p247 = pneg %p49
        %p248 = pneg %p73
        %p249 = pneg %p70
        %p250 = pneg %p94
        %p251 = pneg %p91
        %s252 = sand.u32 %s107, 1
        %s253 = scalar_lea.sflag [#allocation12], %s252
        %s254 = sand.u32 %s107, 1
        %s255 = smul.addr %s254, 128
        %s256 = scalar_lea.vmem [#allocation11], %s255
        %p257 = pneg %p120
        %p258 = pneg %p117
        %p259 = pneg %p148
        %p260 = pneg %p145
        %s261 = sand.u32 %s135, 1
        %s262 = scalar_lea.sflag [#allocation6], %s261
        %s263 = sand.u32 %s135, 1
        %s264 = smul.addr %s263, 64
        %s265 = scalar_lea.vmem [#allocation13], %s264
        %s266 = smul.u32 8, %s29
        %s267 = smul.u32 %s29, 1024
        %s268 = sshra.s32 %s267, 7
        %s269 = sand.u32 %s267, 127
        %s270 = smul.addr %s268, 4
        %s271 = scalar_lea.vmem %s240, %s270 [#allocation11]
        %v272 = vld [vmem:[%s271] ss:$4 sm:$0xff]
        %s273 = scalar_lea.vmem %s271, 32 [#allocation11]
        %v274 = vld [vmem:[%s273] ss:$4 sm:$0xff]
        %s275 = sld [smem:[#allocation4]]
        %v276 = vstv %s275
        %v277 = vmul.f32 %v272, %v276
        %v278 = vmul.f32 %v274, %v276
        %s279 = sld [smem:[#allocation9]]
        %v280 = vstv %s279
        %v281 = vadd.f32 %v277, %v280
        %v282 = vadd.f32 %v278, %v280
        %v283 = vmax.f32 %v281, 0.0
        %v284 = vmax.f32 %v282, 0.0
        %285 = vst [vmem:[#allocation2] ss:$4 sm:$0xff] %v283
        %s286 = scalar_lea.vmem [#allocation2], 32
        %287 = vst [vmem:[%s286] ss:$4 sm:$0xff] %v284
        %s288 = scalar_lea.vmem %s271, 1 [#allocation11]
        %v289 = vld [vmem:[%s288] ss:$4 sm:$0xff]
        %s290 = scalar_lea.vmem %s271, 33 [#allocation11]
        %v291 = vld [vmem:[%s290] ss:$4 sm:$0xff]
        %s292 = sld [smem:[#allocation4 + $0x1]]
        %v293 = vstv %s292
        %v294 = vmul.f32 %v289, %v293
        %v295 = vmul.f32 %v291, %v293
        %s296 = sld [smem:[#allocation9 + $0x1]]
        %v297 = vstv %s296
        %v298 = vadd.f32 %v294, %v297
        %v299 = vadd.f32 %v295, %v297
        %v300 = vmax.f32 %v298, 0.0
        %v301 = vmax.f32 %v299, 0.0
        %s302 = scalar_lea.vmem [#allocation2], 1
        %303 = vst [vmem:[%s302] ss:$4 sm:$0xff] %v300
        %s304 = scalar_lea.vmem [#allocation2], 33
        %305 = vst [vmem:[%s304] ss:$4 sm:$0xff] %v301
        %s306 = scalar_lea.vmem %s271, 2 [#allocation11]
        %v307 = vld [vmem:[%s306] ss:$4 sm:$0xff]
        %s308 = scalar_lea.vmem %s271, 34 [#allocation11]
        %v309 = vld [vmem:[%s308] ss:$4 sm:$0xff]
        %s310 = sld [smem:[#allocation4 + $0x2]]
        %v311 = vstv %s310
        %v312 = vmul.f32 %v307, %v311
        %v313 = vmul.f32 %v309, %v311
        %s314 = sld [smem:[#allocation9 + $0x2]]
        %v315 = vstv %s314
        %v316 = vadd.f32 %v312, %v315
        %v317 = vadd.f32 %v313, %v315
        %v318 = vmax.f32 %v316, 0.0
        %v319 = vmax.f32 %v317, 0.0
        %s320 = scalar_lea.vmem [#allocation2], 2
        %321 = vst [vmem:[%s320] ss:$4 sm:$0xff] %v318
        %s322 = scalar_lea.vmem [#allocation2], 34
        %323 = vst [vmem:[%s322] ss:$4 sm:$0xff] %v319
        %s324 = scalar_lea.vmem %s271, 3 [#allocation11]
        %v325 = vld [vmem:[%s324] ss:$4 sm:$0xff]
        %s326 = scalar_lea.vmem %s271, 35 [#allocation11]
        %v327 = vld [vmem:[%s326] ss:$4 sm:$0xff]
        %s328 = sld [smem:[#allocation4 + $0x3]]
        %v329 = vstv %s328
        %v330 = vmul.f32 %v325, %v329
        %v331 = vmul.f32 %v327, %v329
        %s332 = sld [smem:[#allocation9 + $0x3]]
        %v333 = vstv %s332
        %v334 = vadd.f32 %v330, %v333
        %v335 = vadd.f32 %v331, %v333
        %v336 = vmax.f32 %v334, 0.0
        %v337 = vmax.f32 %v335, 0.0
        %s338 = scalar_lea.vmem [#allocation2], 3
        %339 = vst [vmem:[%s338] ss:$4 sm:$0xff] %v336
        %s340 = scalar_lea.vmem [#allocation2], 35
        %341 = vst [vmem:[%s340] ss:$4 sm:$0xff] %v337
        %vm342 = vcmask 551936
        %343 = vst.msk [vmem:[#allocation2 + $0x40] sm:$0xf] %vm342, 0.0
        %v344 = vld [vmem:[#allocation2] sm:$0xff]
        %v345 = vld [vmem:[#allocation2 + $0x8] sm:$0xff]
        %v346 = vld [vmem:[#allocation2 + $0x10] sm:$0xff]
        %v347 = vld [vmem:[#allocation2 + $0x18] sm:$0xff]
        %v352 = vcombine.high %v344, %v344
        %v353 = vcombine.high %v345, %v345
        %v354 = vcombine.high %v346, %v346
        %v355 = vcombine.high %v347, %v347
        %360 = vst [vmem:[#allocation3] sm:$0xf] %v344
        %361 = vst [vmem:[#allocation3 + $0x8] sm:$0xf] %v352
        %362 = vst [vmem:[#allocation3 + $0x10] sm:$0xf] %v345
        %363 = vst [vmem:[#allocation3 + $0x18] sm:$0xf] %v353
        %364 = vst [vmem:[#allocation3 + $0x20] sm:$0xf] %v346
        %365 = vst [vmem:[#allocation3 + $0x28] sm:$0xf] %v354
        %366 = vst [vmem:[#allocation3 + $0x30] sm:$0xf] %v347
        %367 = vst [vmem:[#allocation3 + $0x38] sm:$0xf] %v355
        %v368 = vld [vmem:[#allocation2] sm:$0xff]
        %v369 = vld [vmem:[#allocation2 + $0x8] sm:$0xff]
        %v370 = vld [vmem:[#allocation2 + $0x10] sm:$0xff]
        %v371 = vld [vmem:[#allocation2 + $0x18] sm:$0xff]
        %v372 = vld [vmem:[#allocation2 + $0x20] sm:$0xf]
        %v378 = vcombine.low %v368, %v368
        %v379 = vcombine.low %v369, %v369
        %v380 = vcombine.low %v370, %v370
        %v381 = vcombine.low %v371, %v371
        %v382 = vcombine.low %v372, %v372
        %383 = vrot.lane.b32.xlu0 %v378, 127
        %v384 = vpop.permute.xlu0 %383
        %385 = vrot.lane.b32.xlu0 %v368, 127
        %v386 = vpop.permute.xlu0 %385
        %387 = vrot.lane.b32.xlu0 %v379, 127
        %v388 = vpop.permute.xlu0 %387
        %389 = vrot.lane.b32.xlu0 %v369, 127
        %v390 = vpop.permute.xlu0 %389
        %391 = vrot.lane.b32.xlu0 %v380, 127
        %v392 = vpop.permute.xlu0 %391
        %393 = vrot.lane.b32.xlu0 %v370, 127
        %v394 = vpop.permute.xlu0 %393
        %395 = vrot.lane.b32.xlu0 %v381, 127
        %v396 = vpop.permute.xlu0 %395
        %397 = vrot.lane.b32.xlu0 %v371, 127
        %v398 = vpop.permute.xlu0 %397
        %399 = vrot.lane.b32.xlu0 %v382, 127
        %v400 = vpop.permute.xlu0 %399
        %vm401 = vcmask 1039360
        %v402 = vsel %vm401, %v384, %v386
        %v403 = vsel %vm401, %v386, %v388
        %v404 = vsel %vm401, %v388, %v390
        %v405 = vsel %vm401, %v390, %v392
        %v406 = vsel %vm401, %v392, %v394
        %v407 = vsel %vm401, %v394, %v396
        %v408 = vsel %vm401, %v396, %v398
        %v409 = vsel %vm401, %v398, %v400
        %418 = vst [vmem:[#allocation3] sm:$0xf0] %v402
        %419 = vst [vmem:[#allocation3 + $0x8] sm:$0xf0] %v403
        %420 = vst [vmem:[#allocation3 + $0x10] sm:$0xf0] %v404
        %421 = vst [vmem:[#allocation3 + $0x18] sm:$0xf0] %v405
        %422 = vst [vmem:[#allocation3 + $0x20] sm:$0xf0] %v406
        %423 = vst [vmem:[#allocation3 + $0x28] sm:$0xf0] %v407
        %424 = vst [vmem:[#allocation3 + $0x30] sm:$0xf0] %v408
        %425 = vst [vmem:[#allocation3 + $0x38] sm:$0xf0] %v409
        %v426 = vld [vmem:[#allocation2] sm:$0xff]
        %v427 = vld [vmem:[#allocation2 + $0x8] sm:$0xff]
        %v428 = vld [vmem:[#allocation2 + $0x10] sm:$0xff]
        %v429 = vld [vmem:[#allocation2 + $0x18] sm:$0xff]
        %v430 = vld [vmem:[#allocation2 + $0x20] sm:$0xf]
        %v436 = vcombine.high %v426, %v426
        %v437 = vcombine.high %v427, %v427
        %v438 = vcombine.high %v428, %v428
        %v439 = vcombine.high %v429, %v429
        %440 = vrot.lane.b32.xlu0 %v426, 126
        %v441 = vpop.permute.xlu0 %440
        %442 = vrot.lane.b32.xlu0 %v436, 126
        %v443 = vpop.permute.xlu0 %442
        %444 = vrot.lane.b32.xlu0 %v427, 126
        %v445 = vpop.permute.xlu0 %444
        %446 = vrot.lane.b32.xlu0 %v437, 126
        %v447 = vpop.permute.xlu0 %446
        %448 = vrot.lane.b32.xlu0 %v428, 126
        %v449 = vpop.permute.xlu0 %448
        %450 = vrot.lane.b32.xlu0 %v438, 126
        %v451 = vpop.permute.xlu0 %450
        %452 = vrot.lane.b32.xlu0 %v429, 126
        %v453 = vpop.permute.xlu0 %452
        %454 = vrot.lane.b32.xlu0 %v439, 126
        %v455 = vpop.permute.xlu0 %454
        %456 = vrot.lane.b32.xlu0 %v430, 126
        %v457 = vpop.permute.xlu0 %456
        %vm458 = vcmask 1031168
        %v459 = vsel %vm458, %v441, %v443
        %v460 = vsel %vm458, %v443, %v445
        %v461 = vsel %vm458, %v445, %v447
        %v462 = vsel %vm458, %v447, %v449
        %v463 = vsel %vm458, %v449, %v451
        %v464 = vsel %vm458, %v451, %v453
        %v465 = vsel %vm458, %v453, %v455
        %v466 = vsel %vm458, %v455, %v457
        %475 = vst [vmem:[#allocation3 + $0x40] sm:$0xf] %v459
        %476 = vst [vmem:[#allocation3 + $0x48] sm:$0xf] %v460
        %477 = vst [vmem:[#allocation3 + $0x50] sm:$0xf] %v461
        %478 = vst [vmem:[#allocation3 + $0x58] sm:$0xf] %v462
        %479 = vst [vmem:[#allocation3 + $0x60] sm:$0xf] %v463
        %480 = vst [vmem:[#allocation3 + $0x68] sm:$0xf] %v464
        %481 = vst [vmem:[#allocation3 + $0x70] sm:$0xf] %v465
        %482 = vst [vmem:[#allocation3 + $0x78] sm:$0xf] %v466
        %v483 = vld [vmem:[#allocation2] sm:$0xff]
        %v484 = vld [vmem:[#allocation2 + $0x8] sm:$0xff]
        %v485 = vld [vmem:[#allocation2 + $0x10] sm:$0xff]
        %v486 = vld [vmem:[#allocation2 + $0x18] sm:$0xff]
        %v487 = vld [vmem:[#allocation2 + $0x20] sm:$0xf]
        %v493 = vcombine.low %v483, %v483
        %v494 = vcombine.low %v484, %v484
        %v495 = vcombine.low %v485, %v485
        %v496 = vcombine.low %v486, %v486
        %v497 = vcombine.low %v487, %v487
        %498 = vrot.lane.b32.xlu0 %v493, 125
        %v499 = vpop.permute.xlu0 %498
        %500 = vrot.lane.b32.xlu0 %v483, 125
        %v501 = vpop.permute.xlu0 %500
        %502 = vrot.lane.b32.xlu0 %v494, 125
        %v503 = vpop.permute.xlu0 %502
        %504 = vrot.lane.b32.xlu0 %v484, 125
        %v505 = vpop.permute.xlu0 %504
        %506 = vrot.lane.b32.xlu0 %v495, 125
        %v507 = vpop.permute.xlu0 %506
        %508 = vrot.lane.b32.xlu0 %v485, 125
        %v509 = vpop.permute.xlu0 %508
        %510 = vrot.lane.b32.xlu0 %v496, 125
        %v511 = vpop.permute.xlu0 %510
        %512 = vrot.lane.b32.xlu0 %v486, 125
        %v513 = vpop.permute.xlu0 %512
        %514 = vrot.lane.b32.xlu0 %v497, 125
        %v515 = vpop.permute.xlu0 %514
        %vm516 = vcmask 1022976
        %v517 = vsel %vm516, %v499, %v501
        %v518 = vsel %vm516, %v501, %v503
        %v519 = vsel %vm516, %v503, %v505
        %v520 = vsel %vm516, %v505, %v507
        %v521 = vsel %vm516, %v507, %v509
        %v522 = vsel %vm516, %v509, %v511
        %v523 = vsel %vm516, %v511, %v513
        %v524 = vsel %vm516, %v513, %v515
        %533 = vst [vmem:[#allocation3 + $0x40] sm:$0xf0] %v517
        %534 = vst [vmem:[#allocation3 + $0x48] sm:$0xf0] %v518
        %535 = vst [vmem:[#allocation3 + $0x50] sm:$0xf0] %v519
        %536 = vst [vmem:[#allocation3 + $0x58] sm:$0xf0] %v520
        %537 = vst [vmem:[#allocation3 + $0x60] sm:$0xf0] %v521
        %538 = vst [vmem:[#allocation3 + $0x68] sm:$0xf0] %v522
        %539 = vst [vmem:[#allocation3 + $0x70] sm:$0xf0] %v523
        %540 = vst [vmem:[#allocation3 + $0x78] sm:$0xf0] %v524
        %v541 = vld [vmem:[#allocation2] sm:$0xff]
        %v542 = vld [vmem:[#allocation2 + $0x8] sm:$0xff]
        %v543 = vld [vmem:[#allocation2 + $0x10] sm:$0xff]
        %v544 = vld [vmem:[#allocation2 + $0x18] sm:$0xff]
        %v545 = vld [vmem:[#allocation2 + $0x20] sm:$0xf]
        %v551 = vcombine.high %v541, %v541
        %v552 = vcombine.high %v542, %v542
        %v553 = vcombine.high %v543, %v543
        %v554 = vcombine.high %v544, %v544
        %555 = vrot.lane.b32.xlu0 %v541, 124
        %v556 = vpop.permute.xlu0 %555
        %557 = vrot.lane.b32.xlu0 %v551, 124
        %v558 = vpop.permute.xlu0 %557
        %559 = vrot.lane.b32.xlu0 %v542, 124
        %v560 = vpop.permute.xlu0 %559
        %561 = vrot.lane.b32.xlu0 %v552, 124
        %v562 = vpop.permute.xlu0 %561
        %563 = vrot.lane.b32.xlu0 %v543, 124
        %v564 = vpop.permute.xlu0 %563
        %565 = vrot.lane.b32.xlu0 %v553, 124
        %v566 = vpop.permute.xlu0 %565
        %567 = vrot.lane.b32.xlu0 %v544, 124
        %v568 = vpop.permute.xlu0 %567
        %569 = vrot.lane.b32.xlu0 %v554, 124
        %v570 = vpop.permute.xlu0 %569
        %571 = vrot.lane.b32.xlu0 %v545, 124
        %v572 = vpop.permute.xlu0 %571
        %vm573 = vcmask 1014784
        %v574 = vsel %vm573, %v556, %v558
        %v575 = vsel %vm573, %v558, %v560
        %v576 = vsel %vm573, %v560, %v562
        %v577 = vsel %vm573, %v562, %v564
        %v578 = vsel %vm573, %v564, %v566
        %v579 = vsel %vm573, %v566, %v568
        %v580 = vsel %vm573, %v568, %v570
        %v581 = vsel %vm573, %v570, %v572
        %590 = vst [vmem:[#allocation3 + $0x80] sm:$0xf] %v574
        %591 = vst [vmem:[#allocation3 + $0x88] sm:$0xf] %v575
        %592 = vst [vmem:[#allocation3 + $0x90] sm:$0xf] %v576
        %593 = vst [vmem:[#allocation3 + $0x98] sm:$0xf] %v577
        %594 = vst [vmem:[#allocation3 + $0xa0] sm:$0xf] %v578
        %595 = vst [vmem:[#allocation3 + $0xa8] sm:$0xf] %v579
        %596 = vst [vmem:[#allocation3 + $0xb0] sm:$0xf] %v580
        %597 = vst [vmem:[#allocation3 + $0xb8] sm:$0xf] %v581
        %v598 = vld [vmem:[#allocation2] sm:$0xff]
        %v599 = vld [vmem:[#allocation2 + $0x8] sm:$0xff]
        %v600 = vld [vmem:[#allocation2 + $0x10] sm:$0xff]
        %v601 = vld [vmem:[#allocation2 + $0x18] sm:$0xff]
        %v602 = vld [vmem:[#allocation2 + $0x20] sm:$0xf]
        %v608 = vcombine.low %v598, %v598
        %v609 = vcombine.low %v599, %v599
        %v610 = vcombine.low %v600, %v600
        %v611 = vcombine.low %v601, %v601
        %v612 = vcombine.low %v602, %v602
        %613 = vrot.lane.b32.xlu0 %v608, 112
        %v614 = vpop.permute.xlu0 %613
        %615 = vrot.lane.b32.xlu0 %v598, 112
        %v616 = vpop.permute.xlu0 %615
        %617 = vrot.lane.b32.xlu0 %v609, 112
        %v618 = vpop.permute.xlu0 %617
        %619 = vrot.lane.b32.xlu0 %v599, 112
        %v620 = vpop.permute.xlu0 %619
        %621 = vrot.lane.b32.xlu0 %v610, 112
        %v622 = vpop.permute.xlu0 %621
        %623 = vrot.lane.b32.xlu0 %v600, 112
        %v624 = vpop.permute.xlu0 %623
        %625 = vrot.lane.b32.xlu0 %v611, 112
        %v626 = vpop.permute.xlu0 %625
        %627 = vrot.lane.b32.xlu0 %v601, 112
        %v628 = vpop.permute.xlu0 %627
        %629 = vrot.lane.b32.xlu0 %v612, 112
        %v630 = vpop.permute.xlu0 %629
        %vm631 = vcmask 916480
        %v632 = vsel %vm631, %v614, %v616
        %v633 = vsel %vm631, %v616, %v618
        %v634 = vsel %vm631, %v618, %v620
        %v635 = vsel %vm631, %v620, %v622
        %v636 = vsel %vm631, %v622, %v624
        %v637 = vsel %vm631, %v624, %v626
        %v638 = vsel %vm631, %v626, %v628
        %v639 = vsel %vm631, %v628, %v630
        %648 = vst [vmem:[#allocation3 + $0x80] sm:$0xf0] %v632
        %649 = vst [vmem:[#allocation3 + $0x88] sm:$0xf0] %v633
        %650 = vst [vmem:[#allocation3 + $0x90] sm:$0xf0] %v634
        %651 = vst [vmem:[#allocation3 + $0x98] sm:$0xf0] %v635
        %652 = vst [vmem:[#allocation3 + $0xa0] sm:$0xf0] %v636
        %653 = vst [vmem:[#allocation3 + $0xa8] sm:$0xf0] %v637
        %654 = vst [vmem:[#allocation3 + $0xb0] sm:$0xf0] %v638
        %655 = vst [vmem:[#allocation3 + $0xb8] sm:$0xf0] %v639
        %v656 = vld [vmem:[#allocation2] sm:$0xff]
        %v657 = vld [vmem:[#allocation2 + $0x8] sm:$0xff]
        %v658 = vld [vmem:[#allocation2 + $0x10] sm:$0xff]
        %v659 = vld [vmem:[#allocation2 + $0x18] sm:$0xff]
        %v660 = vld [vmem:[#allocation2 + $0x20] sm:$0xf]
        %v666 = vcombine.high %v656, %v656
        %v667 = vcombine.high %v657, %v657
        %v668 = vcombine.high %v658, %v658
        %v669 = vcombine.high %v659, %v659
        %670 = vrot.lane.b32.xlu0 %v656, 111
        %v671 = vpop.permute.xlu0 %670
        %672 = vrot.lane.b32.xlu0 %v666, 111
        %v673 = vpop.permute.xlu0 %672
        %674 = vrot.lane.b32.xlu0 %v657, 111
        %v675 = vpop.permute.xlu0 %674
        %676 = vrot.lane.b32.xlu0 %v667, 111
        %v677 = vpop.permute.xlu0 %676
        %678 = vrot.lane.b32.xlu0 %v658, 111
        %v679 = vpop.permute.xlu0 %678
        %680 = vrot.lane.b32.xlu0 %v668, 111
        %v681 = vpop.permute.xlu0 %680
        %682 = vrot.lane.b32.xlu0 %v659, 111
        %v683 = vpop.permute.xlu0 %682
        %684 = vrot.lane.b32.xlu0 %v669, 111
        %v685 = vpop.permute.xlu0 %684
        %686 = vrot.lane.b32.xlu0 %v660, 111
        %v687 = vpop.permute.xlu0 %686
        %vm688 = vcmask 908288
        %v689 = vsel %vm688, %v671, %v673
        %v690 = vsel %vm688, %v673, %v675
        %v691 = vsel %vm688, %v675, %v677
        %v692 = vsel %vm688, %v677, %v679
        %v693 = vsel %vm688, %v679, %v681
        %v694 = vsel %vm688, %v681, %v683
        %v695 = vsel %vm688, %v683, %v685
        %v696 = vsel %vm688, %v685, %v687
        %705 = vst [vmem:[#allocation3 + $0xc0] sm:$0xf] %v689
        %706 = vst [vmem:[#allocation3 + $0xc8] sm:$0xf] %v690
        %707 = vst [vmem:[#allocation3 + $0xd0] sm:$0xf] %v691
        %708 = vst [vmem:[#allocation3 + $0xd8] sm:$0xf] %v692
        %709 = vst [vmem:[#allocation3 + $0xe0] sm:$0xf] %v693
        %710 = vst [vmem:[#allocation3 + $0xe8] sm:$0xf] %v694
        %711 = vst [vmem:[#allocation3 + $0xf0] sm:$0xf] %v695
        %712 = vst [vmem:[#allocation3 + $0xf8] sm:$0xf] %v696
        %v713 = vld [vmem:[#allocation2] sm:$0xff]
        %v714 = vld [vmem:[#allocation2 + $0x8] sm:$0xff]
        %v715 = vld [vmem:[#allocation2 + $0x10] sm:$0xff]
        %v716 = vld [vmem:[#allocation2 + $0x18] sm:$0xff]
        %v717 = vld [vmem:[#allocation2 + $0x20] sm:$0xf]
        %v723 = vcombine.low %v713, %v713
        %v724 = vcombine.low %v714, %v714
        %v725 = vcombine.low %v715, %v715
        %v726 = vcombine.low %v716, %v716
        %v727 = vcombine.low %v717, %v717
        %728 = vrot.lane.b32.xlu0 %v723, 110
        %v729 = vpop.permute.xlu0 %728
        %730 = vrot.lane.b32.xlu0 %v713, 110
        %v731 = vpop.permute.xlu0 %730
        %732 = vrot.lane.b32.xlu0 %v724, 110
        %v733 = vpop.permute.xlu0 %732
        %734 = vrot.lane.b32.xlu0 %v714, 110
        %v735 = vpop.permute.xlu0 %734
        %736 = vrot.lane.b32.xlu0 %v725, 110
        %v737 = vpop.permute.xlu0 %736
        %738 = vrot.lane.b32.xlu0 %v715, 110
        %v739 = vpop.permute.xlu0 %738
        %740 = vrot.lane.b32.xlu0 %v726, 110
        %v741 = vpop.permute.xlu0 %740
        %742 = vrot.lane.b32.xlu0 %v716, 110
        %v743 = vpop.permute.xlu0 %742
        %744 = vrot.lane.b32.xlu0 %v727, 110
        %v745 = vpop.permute.xlu0 %744
        %vm746 = vcmask 900096
        %v747 = vsel %vm746, %v729, %v731
        %v748 = vsel %vm746, %v731, %v733
        %v749 = vsel %vm746, %v733, %v735
        %v750 = vsel %vm746, %v735, %v737
        %v751 = vsel %vm746, %v737, %v739
        %v752 = vsel %vm746, %v739, %v741
        %v753 = vsel %vm746, %v741, %v743
        %v754 = vsel %vm746, %v743, %v745
        %763 = vst [vmem:[#allocation3 + $0xc0] sm:$0xf0] %v747
        %764 = vst [vmem:[#allocation3 + $0xc8] sm:$0xf0] %v748
        %765 = vst [vmem:[#allocation3 + $0xd0] sm:$0xf0] %v749
        %766 = vst [vmem:[#allocation3 + $0xd8] sm:$0xf0] %v750
        %767 = vst [vmem:[#allocation3 + $0xe0] sm:$0xf0] %v751
        %768 = vst [vmem:[#allocation3 + $0xe8] sm:$0xf0] %v752
        %769 = vst [vmem:[#allocation3 + $0xf0] sm:$0xf0] %v753
        %770 = vst [vmem:[#allocation3 + $0xf8] sm:$0xf0] %v754
        %v771 = vld [vmem:[#allocation2] sm:$0xff]
        %v772 = vld [vmem:[#allocation2 + $0x8] sm:$0xff]
        %v773 = vld [vmem:[#allocation2 + $0x10] sm:$0xff]
        %v774 = vld [vmem:[#allocation2 + $0x18] sm:$0xff]
        %v775 = vld [vmem:[#allocation2 + $0x20] sm:$0xf]
        %v781 = vcombine.high %v771, %v771
        %v782 = vcombine.high %v772, %v772
        %v783 = vcombine.high %v773, %v773
        %v784 = vcombine.high %v774, %v774
        %785 = vrot.lane.b32.xlu0 %v771, 109
        %v786 = vpop.permute.xlu0 %785
        %787 = vrot.lane.b32.xlu0 %v781, 109
        %v788 = vpop.permute.xlu0 %787
        %789 = vrot.lane.b32.xlu0 %v772, 109
        %v790 = vpop.permute.xlu0 %789
        %791 = vrot.lane.b32.xlu0 %v782, 109
        %v792 = vpop.permute.xlu0 %791
        %793 = vrot.lane.b32.xlu0 %v773, 109
        %v794 = vpop.permute.xlu0 %793
        %795 = vrot.lane.b32.xlu0 %v783, 109
        %v796 = vpop.permute.xlu0 %795
        %797 = vrot.lane.b32.xlu0 %v774, 109
        %v798 = vpop.permute.xlu0 %797
        %799 = vrot.lane.b32.xlu0 %v784, 109
        %v800 = vpop.permute.xlu0 %799
        %801 = vrot.lane.b32.xlu0 %v775, 109
        %v802 = vpop.permute.xlu0 %801
        %vm803 = vcmask 891904
        %v804 = vsel %vm803, %v786, %v788
        %v805 = vsel %vm803, %v788, %v790
        %v806 = vsel %vm803, %v790, %v792
        %v807 = vsel %vm803, %v792, %v794
        %v808 = vsel %vm803, %v794, %v796
        %v809 = vsel %vm803, %v796, %v798
        %v810 = vsel %vm803, %v798, %v800
        %v811 = vsel %vm803, %v800, %v802
        %820 = vst [vmem:[#allocation3 + $0x100] sm:$0xf] %v804
        %821 = vst [vmem:[#allocation3 + $0x108] sm:$0xf] %v805
        %822 = vst [vmem:[#allocation3 + $0x110] sm:$0xf] %v806
        %823 = vst [vmem:[#allocation3 + $0x118] sm:$0xf] %v807
        %824 = vst [vmem:[#allocation3 + $0x120] sm:$0xf] %v808
        %825 = vst [vmem:[#allocation3 + $0x128] sm:$0xf] %v809
        %826 = vst [vmem:[#allocation3 + $0x130] sm:$0xf] %v810
        %827 = vst [vmem:[#allocation3 + $0x138] sm:$0xf] %v811
        %v828 = vld [vmem:[#allocation2] sm:$0xff]
        %v829 = vld [vmem:[#allocation2 + $0x8] sm:$0xff]
        %v830 = vld [vmem:[#allocation2 + $0x10] sm:$0xff]
        %v831 = vld [vmem:[#allocation2 + $0x18] sm:$0xff]
        %v832 = vld [vmem:[#allocation2 + $0x20] sm:$0xf]
        %v838 = vcombine.low %v828, %v828
        %v839 = vcombine.low %v829, %v829
        %v840 = vcombine.low %v830, %v830
        %v841 = vcombine.low %v831, %v831
        %v842 = vcombine.low %v832, %v832
        %843 = vrot.lane.b32.xlu0 %v838, 108
        %v844 = vpop.permute.xlu0 %843
        %845 = vrot.lane.b32.xlu0 %v828, 108
        %v846 = vpop.permute.xlu0 %845
        %847 = vrot.lane.b32.xlu0 %v839, 108
        %v848 = vpop.permute.xlu0 %847
        %849 = vrot.lane.b32.xlu0 %v829, 108
        %v850 = vpop.permute.xlu0 %849
        %851 = vrot.lane.b32.xlu0 %v840, 108
        %v852 = vpop.permute.xlu0 %851
        %853 = vrot.lane.b32.xlu0 %v830, 108
        %v854 = vpop.permute.xlu0 %853
        %855 = vrot.lane.b32.xlu0 %v841, 108
        %v856 = vpop.permute.xlu0 %855
        %857 = vrot.lane.b32.xlu0 %v831, 108
        %v858 = vpop.permute.xlu0 %857
        %859 = vrot.lane.b32.xlu0 %v842, 108
        %v860 = vpop.permute.xlu0 %859
        %vm861 = vcmask 883712
        %v862 = vsel %vm861, %v844, %v846
        %v863 = vsel %vm861, %v846, %v848
        %v864 = vsel %vm861, %v848, %v850
        %v865 = vsel %vm861, %v850, %v852
        %v866 = vsel %vm861, %v852, %v854
        %v867 = vsel %vm861, %v854, %v856
        %v868 = vsel %vm861, %v856, %v858
        %v869 = vsel %vm861, %v858, %v860
        %878 = vst [vmem:[#allocation3 + $0x100] sm:$0xf0] %v862
        %879 = vst [vmem:[#allocation3 + $0x108] sm:$0xf0] %v863
        %880 = vst [vmem:[#allocation3 + $0x110] sm:$0xf0] %v864
        %881 = vst [vmem:[#allocation3 + $0x118] sm:$0xf0] %v865
        %882 = vst [vmem:[#allocation3 + $0x120] sm:$0xf0] %v866
        %883 = vst [vmem:[#allocation3 + $0x128] sm:$0xf0] %v867
        %884 = vst [vmem:[#allocation3 + $0x130] sm:$0xf0] %v868
        %885 = vst [vmem:[#allocation3 + $0x138] sm:$0xf0] %v869
        %v886 = vld [vmem:[#allocation2] sm:$0xff]
        %v887 = vld [vmem:[#allocation2 + $0x8] sm:$0xff]
        %v888 = vld [vmem:[#allocation2 + $0x10] sm:$0xff]
        %v889 = vld [vmem:[#allocation2 + $0x18] sm:$0xff]
        %v890 = vld [vmem:[#allocation2 + $0x20] sm:$0xf]
        %v896 = vcombine.high %v886, %v886
        %v897 = vcombine.high %v887, %v887
        %v898 = vcombine.high %v888, %v888
        %v899 = vcombine.high %v889, %v889
        %900 = vrot.lane.b32.xlu0 %v886, 96
        %v901 = vpop.permute.xlu0 %900
        %902 = vrot.lane.b32.xlu0 %v896, 96
        %v903 = vpop.permute.xlu0 %902
        %904 = vrot.lane.b32.xlu0 %v887, 96
        %v905 = vpop.permute.xlu0 %904
        %906 = vrot.lane.b32.xlu0 %v897, 96
        %v907 = vpop.permute.xlu0 %906
        %908 = vrot.lane.b32.xlu0 %v888, 96
        %v909 = vpop.permute.xlu0 %908
        %910 = vrot.lane.b32.xlu0 %v898, 96
        %v911 = vpop.permute.xlu0 %910
        %912 = vrot.lane.b32.xlu0 %v889, 96
        %v913 = vpop.permute.xlu0 %912
        %914 = vrot.lane.b32.xlu0 %v899, 96
        %v915 = vpop.permute.xlu0 %914
        %916 = vrot.lane.b32.xlu0 %v890, 96
        %v917 = vpop.permute.xlu0 %916
        %vm918 = vcmask 785408
        %v919 = vsel %vm918, %v901, %v903
        %v920 = vsel %vm918, %v903, %v905
        %v921 = vsel %vm918, %v905, %v907
        %v922 = vsel %vm918, %v907, %v909
        %v923 = vsel %vm918, %v909, %v911
        %v924 = vsel %vm918, %v911, %v913
        %v925 = vsel %vm918, %v913, %v915
        %v926 = vsel %vm918, %v915, %v917
        %935 = vst [vmem:[#allocation3 + $0x140] sm:$0xf] %v919
        %936 = vst [vmem:[#allocation3 + $0x148] sm:$0xf] %v920
        %937 = vst [vmem:[#allocation3 + $0x150] sm:$0xf] %v921
        %938 = vst [vmem:[#allocation3 + $0x158] sm:$0xf] %v922
        %939 = vst [vmem:[#allocation3 + $0x160] sm:$0xf] %v923
        %940 = vst [vmem:[#allocation3 + $0x168] sm:$0xf] %v924
        %941 = vst [vmem:[#allocation3 + $0x170] sm:$0xf] %v925
        %942 = vst [vmem:[#allocation3 + $0x178] sm:$0xf] %v926
        %v943 = vld [vmem:[#allocation2] sm:$0xff]
        %v944 = vld [vmem:[#allocation2 + $0x8] sm:$0xff]
        %v945 = vld [vmem:[#allocation2 + $0x10] sm:$0xff]
        %v946 = vld [vmem:[#allocation2 + $0x18] sm:$0xff]
        %v947 = vld [vmem:[#allocation2 + $0x20] sm:$0xf]
        %v953 = vcombine.low %v943, %v943
        %v954 = vcombine.low %v944, %v944
        %v955 = vcombine.low %v945, %v945
        %v956 = vcombine.low %v946, %v946
        %v957 = vcombine.low %v947, %v947
        %958 = vrot.lane.b32.xlu0 %v953, 95
        %v959 = vpop.permute.xlu0 %958
        %960 = vrot.lane.b32.xlu0 %v943, 95
        %v961 = vpop.permute.xlu0 %960
        %962 = vrot.lane.b32.xlu0 %v954, 95
        %v963 = vpop.permute.xlu0 %962
        %964 = vrot.lane.b32.xlu0 %v944, 95
        %v965 = vpop.permute.xlu0 %964
        %966 = vrot.lane.b32.xlu0 %v955, 95
        %v967 = vpop.permute.xlu0 %966
        %968 = vrot.lane.b32.xlu0 %v945, 95
        %v969 = vpop.permute.xlu0 %968
        %970 = vrot.lane.b32.xlu0 %v956, 95
        %v971 = vpop.permute.xlu0 %970
        %972 = vrot.lane.b32.xlu0 %v946, 95
        %v973 = vpop.permute.xlu0 %972
        %974 = vrot.lane.b32.xlu0 %v957, 95
        %v975 = vpop.permute.xlu0 %974
        %vm976 = vcmask 777216
        %v977 = vsel %vm976, %v959, %v961
        %v978 = vsel %vm976, %v961, %v963
        %v979 = vsel %vm976, %v963, %v965
        %v980 = vsel %vm976, %v965, %v967
        %v981 = vsel %vm976, %v967, %v969
        %v982 = vsel %vm976, %v969, %v971
        %v983 = vsel %vm976, %v971, %v973
        %v984 = vsel %vm976, %v973, %v975
        %993 = vst [vmem:[#allocation3 + $0x140] sm:$0xf0] %v977
        %994 = vst [vmem:[#allocation3 + $0x148] sm:$0xf0] %v978
        %995 = vst [vmem:[#allocation3 + $0x150] sm:$0xf0] %v979
        %996 = vst [vmem:[#allocation3 + $0x158] sm:$0xf0] %v980
        %997 = vst [vmem:[#allocation3 + $0x160] sm:$0xf0] %v981
        %998 = vst [vmem:[#allocation3 + $0x168] sm:$0xf0] %v982
        %999 = vst [vmem:[#allocation3 + $0x170] sm:$0xf0] %v983
        %1000 = vst [vmem:[#allocation3 + $0x178] sm:$0xf0] %v984
        %v1001 = vld [vmem:[#allocation2] sm:$0xff]
        %v1002 = vld [vmem:[#allocation2 + $0x8] sm:$0xff]
        %v1003 = vld [vmem:[#allocation2 + $0x10] sm:$0xff]
        %v1004 = vld [vmem:[#allocation2 + $0x18] sm:$0xff]
        %v1005 = vld [vmem:[#allocation2 + $0x20] sm:$0xf]
        %v1011 = vcombine.high %v1001, %v1001
        %v1012 = vcombine.high %v1002, %v1002
        %v1013 = vcombine.high %v1003, %v1003
        %v1014 = vcombine.high %v1004, %v1004
        %1015 = vrot.lane.b32.xlu0 %v1001, 94
        %v1016 = vpop.permute.xlu0 %1015
        %1017 = vrot.lane.b32.xlu0 %v1011, 94
        %v1018 = vpop.permute.xlu0 %1017
        %1019 = vrot.lane.b32.xlu0 %v1002, 94
        %v1020 = vpop.permute.xlu0 %1019
        %1021 = vrot.lane.b32.xlu0 %v1012, 94
        %v1022 = vpop.permute.xlu0 %1021
        %1023 = vrot.lane.b32.xlu0 %v1003, 94
        %v1024 = vpop.permute.xlu0 %1023
        %1025 = vrot.lane.b32.xlu0 %v1013, 94
        %v1026 = vpop.permute.xlu0 %1025
        %1027 = vrot.lane.b32.xlu0 %v1004, 94
        %v1028 = vpop.permute.xlu0 %1027
        %1029 = vrot.lane.b32.xlu0 %v1014, 94
        %v1030 = vpop.permute.xlu0 %1029
        %1031 = vrot.lane.b32.xlu0 %v1005, 94
        %v1032 = vpop.permute.xlu0 %1031
        %vm1033 = vcmask 769024
        %v1034 = vsel %vm1033, %v1016, %v1018
        %v1035 = vsel %vm1033, %v1018, %v1020
        %v1036 = vsel %vm1033, %v1020, %v1022
        %v1037 = vsel %vm1033, %v1022, %v1024
        %v1038 = vsel %vm1033, %v1024, %v1026
        %v1039 = vsel %vm1033, %v1026, %v1028
        %v1040 = vsel %vm1033, %v1028, %v1030
        %v1041 = vsel %vm1033, %v1030, %v1032
        %1050 = vst [vmem:[#allocation3 + $0x180] sm:$0xf] %v1034
        %1051 = vst [vmem:[#allocation3 + $0x188] sm:$0xf] %v1035
        %1052 = vst [vmem:[#allocation3 + $0x190] sm:$0xf] %v1036
        %1053 = vst [vmem:[#allocation3 + $0x198] sm:$0xf] %v1037
        %1054 = vst [vmem:[#allocation3 + $0x1a0] sm:$0xf] %v1038
        %1055 = vst [vmem:[#allocation3 + $0x1a8] sm:$0xf] %v1039
        %1056 = vst [vmem:[#allocation3 + $0x1b0] sm:$0xf] %v1040
        %1057 = vst [vmem:[#allocation3 + $0x1b8] sm:$0xf] %v1041
        %v1058 = vld [vmem:[#allocation2] sm:$0xff]
        %v1059 = vld [vmem:[#allocation2 + $0x8] sm:$0xff]
        %v1060 = vld [vmem:[#allocation2 + $0x10] sm:$0xff]
        %v1061 = vld [vmem:[#allocation2 + $0x18] sm:$0xff]
        %v1062 = vld [vmem:[#allocation2 + $0x20] sm:$0xf]
        %v1068 = vcombine.low %v1058, %v1058
        %v1069 = vcombine.low %v1059, %v1059
        %v1070 = vcombine.low %v1060, %v1060
        %v1071 = vcombine.low %v1061, %v1061
        %v1072 = vcombine.low %v1062, %v1062
        %1073 = vrot.lane.b32.xlu0 %v1068, 93
        %v1074 = vpop.permute.xlu0 %1073
        %1075 = vrot.lane.b32.xlu0 %v1058, 93
        %v1076 = vpop.permute.xlu0 %1075
        %1077 = vrot.lane.b32.xlu0 %v1069, 93
        %v1078 = vpop.permute.xlu0 %1077
        %1079 = vrot.lane.b32.xlu0 %v1059, 93
        %v1080 = vpop.permute.xlu0 %1079
        %1081 = vrot.lane.b32.xlu0 %v1070, 93
        %v1082 = vpop.permute.xlu0 %1081
        %1083 = vrot.lane.b32.xlu0 %v1060, 93
        %v1084 = vpop.permute.xlu0 %1083
        %1085 = vrot.lane.b32.xlu0 %v1071, 93
        %v1086 = vpop.permute.xlu0 %1085
        %1087 = vrot.lane.b32.xlu0 %v1061, 93
        %v1088 = vpop.permute.xlu0 %1087
        %1089 = vrot.lane.b32.xlu0 %v1072, 93
        %v1090 = vpop.permute.xlu0 %1089
        %vm1091 = vcmask 760832
        %v1092 = vsel %vm1091, %v1074, %v1076
        %v1093 = vsel %vm1091, %v1076, %v1078
        %v1094 = vsel %vm1091, %v1078, %v1080
        %v1095 = vsel %vm1091, %v1080, %v1082
        %v1096 = vsel %vm1091, %v1082, %v1084
        %v1097 = vsel %vm1091, %v1084, %v1086
        %v1098 = vsel %vm1091, %v1086, %v1088
        %v1099 = vsel %vm1091, %v1088, %v1090
        %1108 = vst [vmem:[#allocation3 + $0x180] sm:$0xf0] %v1092
        %1109 = vst [vmem:[#allocation3 + $0x188] sm:$0xf0] %v1093
        %1110 = vst [vmem:[#allocation3 + $0x190] sm:$0xf0] %v1094
        %1111 = vst [vmem:[#allocation3 + $0x198] sm:$0xf0] %v1095
        %1112 = vst [vmem:[#allocation3 + $0x1a0] sm:$0xf0] %v1096
        %1113 = vst [vmem:[#allocation3 + $0x1a8] sm:$0xf0] %v1097
        %1114 = vst [vmem:[#allocation3 + $0x1b0] sm:$0xf0] %v1098
        %1115 = vst [vmem:[#allocation3 + $0x1b8] sm:$0xf0] %v1099
        %v1116 = vld [vmem:[#allocation2] sm:$0xff]
        %v1117 = vld [vmem:[#allocation2 + $0x8] sm:$0xff]
        %v1118 = vld [vmem:[#allocation2 + $0x10] sm:$0xff]
        %v1119 = vld [vmem:[#allocation2 + $0x18] sm:$0xff]
        %v1120 = vld [vmem:[#allocation2 + $0x20] sm:$0xf]
        %v1126 = vcombine.high %v1116, %v1116
        %v1127 = vcombine.high %v1117, %v1117
        %v1128 = vcombine.high %v1118, %v1118
        %v1129 = vcombine.high %v1119, %v1119
        %1130 = vrot.lane.b32.xlu0 %v1116, 92
        %v1131 = vpop.permute.xlu0 %1130
        %1132 = vrot.lane.b32.xlu0 %v1126, 92
        %v1133 = vpop.permute.xlu0 %1132
        %1134 = vrot.lane.b32.xlu0 %v1117, 92
        %v1135 = vpop.permute.xlu0 %1134
        %1136 = vrot.lane.b32.xlu0 %v1127, 92
        %v1137 = vpop.permute.xlu0 %1136
        %1138 = vrot.lane.b32.xlu0 %v1118, 92
        %v1139 = vpop.permute.xlu0 %1138
        %1140 = vrot.lane.b32.xlu0 %v1128, 92
        %v1141 = vpop.permute.xlu0 %1140
        %1142 = vrot.lane.b32.xlu0 %v1119, 92
        %v1143 = vpop.permute.xlu0 %1142
        %1144 = vrot.lane.b32.xlu0 %v1129, 92
        %v1145 = vpop.permute.xlu0 %1144
        %1146 = vrot.lane.b32.xlu0 %v1120, 92
        %v1147 = vpop.permute.xlu0 %1146
        %vm1148 = vcmask 752640
        %v1149 = vsel %vm1148, %v1131, %v1133
        %v1150 = vsel %vm1148, %v1133, %v1135
        %v1151 = vsel %vm1148, %v1135, %v1137
        %v1152 = vsel %vm1148, %v1137, %v1139
        %v1153 = vsel %vm1148, %v1139, %v1141
        %v1154 = vsel %vm1148, %v1141, %v1143
        %v1155 = vsel %vm1148, %v1143, %v1145
        %v1156 = vsel %vm1148, %v1145, %v1147
        %1165 = vst [vmem:[#allocation3 + $0x1c0] sm:$0xf] %v1149
        %1166 = vst [vmem:[#allocation3 + $0x1c8] sm:$0xf] %v1150
        %1167 = vst [vmem:[#allocation3 + $0x1d0] sm:$0xf] %v1151
        %1168 = vst [vmem:[#allocation3 + $0x1d8] sm:$0xf] %v1152
        %1169 = vst [vmem:[#allocation3 + $0x1e0] sm:$0xf] %v1153
        %1170 = vst [vmem:[#allocation3 + $0x1e8] sm:$0xf] %v1154
        %1171 = vst [vmem:[#allocation3 + $0x1f0] sm:$0xf] %v1155
        %1172 = vst [vmem:[#allocation3 + $0x1f8] sm:$0xf] %v1156
        %v1173 = vld [vmem:[#allocation2] sm:$0xff]
        %v1174 = vld [vmem:[#allocation2 + $0x8] sm:$0xff]
        %v1175 = vld [vmem:[#allocation2 + $0x10] sm:$0xff]
        %v1176 = vld [vmem:[#allocation2 + $0x18] sm:$0xff]
        %v1177 = vld [vmem:[#allocation2 + $0x20] sm:$0xf]
        %v1183 = vcombine.low %v1173, %v1173
        %v1184 = vcombine.low %v1174, %v1174
        %v1185 = vcombine.low %v1175, %v1175
        %v1186 = vcombine.low %v1176, %v1176
        %v1187 = vcombine.low %v1177, %v1177
        %1188 = vrot.lane.b32.xlu0 %v1183, 80
        %v1189 = vpop.permute.xlu0 %1188
        %1190 = vrot.lane.b32.xlu0 %v1173, 80
        %v1191 = vpop.permute.xlu0 %1190
        %1192 = vrot.lane.b32.xlu0 %v1184, 80
        %v1193 = vpop.permute.xlu0 %1192
        %1194 = vrot.lane.b32.xlu0 %v1174, 80
        %v1195 = vpop.permute.xlu0 %1194
        %1196 = vrot.lane.b32.xlu0 %v1185, 80
        %v1197 = vpop.permute.xlu0 %1196
        %1198 = vrot.lane.b32.xlu0 %v1175, 80
        %v1199 = vpop.permute.xlu0 %1198
        %1200 = vrot.lane.b32.xlu0 %v1186, 80
        %v1201 = vpop.permute.xlu0 %1200
        %1202 = vrot.lane.b32.xlu0 %v1176, 80
        %v1203 = vpop.permute.xlu0 %1202
        %1204 = vrot.lane.b32.xlu0 %v1187, 80
        %v1205 = vpop.permute.xlu0 %1204
        %vm1206 = vcmask 654336
        %v1207 = vsel %vm1206, %v1189, %v1191
        %v1208 = vsel %vm1206, %v1191, %v1193
        %v1209 = vsel %vm1206, %v1193, %v1195
        %v1210 = vsel %vm1206, %v1195, %v1197
        %v1211 = vsel %vm1206, %v1197, %v1199
        %v1212 = vsel %vm1206, %v1199, %v1201
        %v1213 = vsel %vm1206, %v1201, %v1203
        %v1214 = vsel %vm1206, %v1203, %v1205
        %1223 = vst [vmem:[#allocation3 + $0x1c0] sm:$0xf0] %v1207
        %1224 = vst [vmem:[#allocation3 + $0x1c8] sm:$0xf0] %v1208
        %1225 = vst [vmem:[#allocation3 + $0x1d0] sm:$0xf0] %v1209
        %1226 = vst [vmem:[#allocation3 + $0x1d8] sm:$0xf0] %v1210
        %1227 = vst [vmem:[#allocation3 + $0x1e0] sm:$0xf0] %v1211
        %1228 = vst [vmem:[#allocation3 + $0x1e8] sm:$0xf0] %v1212
        %1229 = vst [vmem:[#allocation3 + $0x1f0] sm:$0xf0] %v1213
        %1230 = vst [vmem:[#allocation3 + $0x1f8] sm:$0xf0] %v1214
        %v1231 = vld [vmem:[#allocation2] sm:$0xff]
        %v1232 = vld [vmem:[#allocation2 + $0x8] sm:$0xff]
        %v1233 = vld [vmem:[#allocation2 + $0x10] sm:$0xff]
        %v1234 = vld [vmem:[#allocation2 + $0x18] sm:$0xff]
        %v1235 = vld [vmem:[#allocation2 + $0x20] sm:$0xf]
        %v1241 = vcombine.high %v1231, %v1231
        %v1242 = vcombine.high %v1232, %v1232
        %v1243 = vcombine.high %v1233, %v1233
        %v1244 = vcombine.high %v1234, %v1234
        %1245 = vrot.lane.b32.xlu0 %v1231, 79
        %v1246 = vpop.permute.xlu0 %1245
        %1247 = vrot.lane.b32.xlu0 %v1241, 79
        %v1248 = vpop.permute.xlu0 %1247
        %1249 = vrot.lane.b32.xlu0 %v1232, 79
        %v1250 = vpop.permute.xlu0 %1249
        %1251 = vrot.lane.b32.xlu0 %v1242, 79
        %v1252 = vpop.permute.xlu0 %1251
        %1253 = vrot.lane.b32.xlu0 %v1233, 79
        %v1254 = vpop.permute.xlu0 %1253
        %1255 = vrot.lane.b32.xlu0 %v1243, 79
        %v1256 = vpop.permute.xlu0 %1255
        %1257 = vrot.lane.b32.xlu0 %v1234, 79
        %v1258 = vpop.permute.xlu0 %1257
        %1259 = vrot.lane.b32.xlu0 %v1244, 79
        %v1260 = vpop.permute.xlu0 %1259
        %1261 = vrot.lane.b32.xlu0 %v1235, 79
        %v1262 = vpop.permute.xlu0 %1261
        %vm1263 = vcmask 646144
        %v1264 = vsel %vm1263, %v1246, %v1248
        %v1265 = vsel %vm1263, %v1248, %v1250
        %v1266 = vsel %vm1263, %v1250, %v1252
        %v1267 = vsel %vm1263, %v1252, %v1254
        %v1268 = vsel %vm1263, %v1254, %v1256
        %v1269 = vsel %vm1263, %v1256, %v1258
        %v1270 = vsel %vm1263, %v1258, %v1260
        %v1271 = vsel %vm1263, %v1260, %v1262
        %1280 = vst [vmem:[#allocation3 + $0x200] sm:$0xf] %v1264
        %1281 = vst [vmem:[#allocation3 + $0x208] sm:$0xf] %v1265
        %1282 = vst [vmem:[#allocation3 + $0x210] sm:$0xf] %v1266
        %1283 = vst [vmem:[#allocation3 + $0x218] sm:$0xf] %v1267
        %1284 = vst [vmem:[#allocation3 + $0x220] sm:$0xf] %v1268
        %1285 = vst [vmem:[#allocation3 + $0x228] sm:$0xf] %v1269
        %1286 = vst [vmem:[#allocation3 + $0x230] sm:$0xf] %v1270
        %1287 = vst [vmem:[#allocation3 + $0x238] sm:$0xf] %v1271
        %v1288 = vld [vmem:[#allocation2] sm:$0xff]
        %v1289 = vld [vmem:[#allocation2 + $0x8] sm:$0xff]
        %v1290 = vld [vmem:[#allocation2 + $0x10] sm:$0xff]
        %v1291 = vld [vmem:[#allocation2 + $0x18] sm:$0xff]
        %v1292 = vld [vmem:[#allocation2 + $0x20] sm:$0xf]
        %v1298 = vcombine.low %v1288, %v1288
        %v1299 = vcombine.low %v1289, %v1289
        %v1300 = vcombine.low %v1290, %v1290
        %v1301 = vcombine.low %v1291, %v1291
        %v1302 = vcombine.low %v1292, %v1292
        %1303 = vrot.lane.b32.xlu0 %v1298, 78
        %v1304 = vpop.permute.xlu0 %1303
        %1305 = vrot.lane.b32.xlu0 %v1288, 78
        %v1306 = vpop.permute.xlu0 %1305
        %1307 = vrot.lane.b32.xlu0 %v1299, 78
        %v1308 = vpop.permute.xlu0 %1307
        %1309 = vrot.lane.b32.xlu0 %v1289, 78
        %v1310 = vpop.permute.xlu0 %1309
        %1311 = vrot.lane.b32.xlu0 %v1300, 78
        %v1312 = vpop.permute.xlu0 %1311
        %1313 = vrot.lane.b32.xlu0 %v1290, 78
        %v1314 = vpop.permute.xlu0 %1313
        %1315 = vrot.lane.b32.xlu0 %v1301, 78
        %v1316 = vpop.permute.xlu0 %1315
        %1317 = vrot.lane.b32.xlu0 %v1291, 78
        %v1318 = vpop.permute.xlu0 %1317
        %1319 = vrot.lane.b32.xlu0 %v1302, 78
        %v1320 = vpop.permute.xlu0 %1319
        %vm1321 = vcmask 637952
        %v1322 = vsel %vm1321, %v1304, %v1306
        %v1323 = vsel %vm1321, %v1306, %v1308
        %v1324 = vsel %vm1321, %v1308, %v1310
        %v1325 = vsel %vm1321, %v1310, %v1312
        %v1326 = vsel %vm1321, %v1312, %v1314
        %v1327 = vsel %vm1321, %v1314, %v1316
        %v1328 = vsel %vm1321, %v1316, %v1318
        %v1329 = vsel %vm1321, %v1318, %v1320
        %1338 = vst [vmem:[#allocation3 + $0x200] sm:$0xf0] %v1322
        %1339 = vst [vmem:[#allocation3 + $0x208] sm:$0xf0] %v1323
        %1340 = vst [vmem:[#allocation3 + $0x210] sm:$0xf0] %v1324
        %1341 = vst [vmem:[#allocation3 + $0x218] sm:$0xf0] %v1325
        %1342 = vst [vmem:[#allocation3 + $0x220] sm:$0xf0] %v1326
        %1343 = vst [vmem:[#allocation3 + $0x228] sm:$0xf0] %v1327
        %1344 = vst [vmem:[#allocation3 + $0x230] sm:$0xf0] %v1328
        %1345 = vst [vmem:[#allocation3 + $0x238] sm:$0xf0] %v1329
        %v1346 = vld [vmem:[#allocation2] sm:$0xff]
        %v1347 = vld [vmem:[#allocation2 + $0x8] sm:$0xff]
        %v1348 = vld [vmem:[#allocation2 + $0x10] sm:$0xff]
        %v1349 = vld [vmem:[#allocation2 + $0x18] sm:$0xff]
        %v1350 = vld [vmem:[#allocation2 + $0x20] sm:$0xf]
        %v1356 = vcombine.high %v1346, %v1346
        %v1357 = vcombine.high %v1347, %v1347
        %v1358 = vcombine.high %v1348, %v1348
        %v1359 = vcombine.high %v1349, %v1349
        %1360 = vrot.lane.b32.xlu0 %v1346, 77
        %v1361 = vpop.permute.xlu0 %1360
        %1362 = vrot.lane.b32.xlu0 %v1356, 77
        %v1363 = vpop.permute.xlu0 %1362
        %1364 = vrot.lane.b32.xlu0 %v1347, 77
        %v1365 = vpop.permute.xlu0 %1364
        %1366 = vrot.lane.b32.xlu0 %v1357, 77
        %v1367 = vpop.permute.xlu0 %1366
        %1368 = vrot.lane.b32.xlu0 %v1348, 77
        %v1369 = vpop.permute.xlu0 %1368
        %1370 = vrot.lane.b32.xlu0 %v1358, 77
        %v1371 = vpop.permute.xlu0 %1370
        %1372 = vrot.lane.b32.xlu0 %v1349, 77
        %v1373 = vpop.permute.xlu0 %1372
        %1374 = vrot.lane.b32.xlu0 %v1359, 77
        %v1375 = vpop.permute.xlu0 %1374
        %1376 = vrot.lane.b32.xlu0 %v1350, 77
        %v1377 = vpop.permute.xlu0 %1376
        %vm1378 = vcmask 629760
        %v1379 = vsel %vm1378, %v1361, %v1363
        %v1380 = vsel %vm1378, %v1363, %v1365
        %v1381 = vsel %vm1378, %v1365, %v1367
        %v1382 = vsel %vm1378, %v1367, %v1369
        %v1383 = vsel %vm1378, %v1369, %v1371
        %v1384 = vsel %vm1378, %v1371, %v1373
        %v1385 = vsel %vm1378, %v1373, %v1375
        %v1386 = vsel %vm1378, %v1375, %v1377
        %1395 = vst [vmem:[#allocation3 + $0x240] sm:$0xf] %v1379
        %1396 = vst [vmem:[#allocation3 + $0x248] sm:$0xf] %v1380
        %1397 = vst [vmem:[#allocation3 + $0x250] sm:$0xf] %v1381
        %1398 = vst [vmem:[#allocation3 + $0x258] sm:$0xf] %v1382
        %1399 = vst [vmem:[#allocation3 + $0x260] sm:$0xf] %v1383
        %1400 = vst [vmem:[#allocation3 + $0x268] sm:$0xf] %v1384
        %1401 = vst [vmem:[#allocation3 + $0x270] sm:$0xf] %v1385
        %1402 = vst [vmem:[#allocation3 + $0x278] sm:$0xf] %v1386
        %v1403 = vld [vmem:[#allocation2] sm:$0xff]
        %v1404 = vld [vmem:[#allocation2 + $0x8] sm:$0xff]
        %v1405 = vld [vmem:[#allocation2 + $0x10] sm:$0xff]
        %v1406 = vld [vmem:[#allocation2 + $0x18] sm:$0xff]
        %v1407 = vld [vmem:[#allocation2 + $0x20] sm:$0xf]
        %v1413 = vcombine.low %v1403, %v1403
        %v1414 = vcombine.low %v1404, %v1404
        %v1415 = vcombine.low %v1405, %v1405
        %v1416 = vcombine.low %v1406, %v1406
        %v1417 = vcombine.low %v1407, %v1407
        %1418 = vrot.lane.b32.xlu0 %v1413, 76
        %v1419 = vpop.permute.xlu0 %1418
        %1420 = vrot.lane.b32.xlu0 %v1403, 76
        %v1421 = vpop.permute.xlu0 %1420
        %1422 = vrot.lane.b32.xlu0 %v1414, 76
        %v1423 = vpop.permute.xlu0 %1422
        %1424 = vrot.lane.b32.xlu0 %v1404, 76
        %v1425 = vpop.permute.xlu0 %1424
        %1426 = vrot.lane.b32.xlu0 %v1415, 76
        %v1427 = vpop.permute.xlu0 %1426
        %1428 = vrot.lane.b32.xlu0 %v1405, 76
        %v1429 = vpop.permute.xlu0 %1428
        %1430 = vrot.lane.b32.xlu0 %v1416, 76
        %v1431 = vpop.permute.xlu0 %1430
        %1432 = vrot.lane.b32.xlu0 %v1406, 76
        %v1433 = vpop.permute.xlu0 %1432
        %1434 = vrot.lane.b32.xlu0 %v1417, 76
        %v1435 = vpop.permute.xlu0 %1434
        %vm1436 = vcmask 621568
        %v1437 = vsel %vm1436, %v1419, %v1421
        %v1438 = vsel %vm1436, %v1421, %v1423
        %v1439 = vsel %vm1436, %v1423, %v1425
        %v1440 = vsel %vm1436, %v1425, %v1427
        %v1441 = vsel %vm1436, %v1427, %v1429
        %v1442 = vsel %vm1436, %v1429, %v1431
        %v1443 = vsel %vm1436, %v1431, %v1433
        %v1444 = vsel %vm1436, %v1433, %v1435
        %1453 = vst [vmem:[#allocation3 + $0x240] sm:$0xf0] %v1437
        %1454 = vst [vmem:[#allocation3 + $0x248] sm:$0xf0] %v1438
        %1455 = vst [vmem:[#allocation3 + $0x250] sm:$0xf0] %v1439
        %1456 = vst [vmem:[#allocation3 + $0x258] sm:$0xf0] %v1440
        %1457 = vst [vmem:[#allocation3 + $0x260] sm:$0xf0] %v1441
        %1458 = vst [vmem:[#allocation3 + $0x268] sm:$0xf0] %v1442
        %1459 = vst [vmem:[#allocation3 + $0x270] sm:$0xf0] %v1443
        %1460 = vst [vmem:[#allocation3 + $0x278] sm:$0xf0] %v1444
        %v1461 = vld [vmem:[#allocation2] sm:$0xff]
        %v1462 = vld [vmem:[#allocation2 + $0x8] sm:$0xff]
        %v1463 = vld [vmem:[#allocation2 + $0x10] sm:$0xff]
        %v1464 = vld [vmem:[#allocation2 + $0x18] sm:$0xff]
        %v1465 = vld [vmem:[#allocation2 + $0x20] sm:$0xf]
        %v1471 = vcombine.high %v1461, %v1461
        %v1472 = vcombine.high %v1462, %v1462
        %v1473 = vcombine.high %v1463, %v1463
        %v1474 = vcombine.high %v1464, %v1464
        %1475 = vrot.lane.b32.xlu0 %v1461, 64
        %v1476 = vpop.permute.xlu0 %1475
        %1477 = vrot.lane.b32.xlu0 %v1471, 64
        %v1478 = vpop.permute.xlu0 %1477
        %1479 = vrot.lane.b32.xlu0 %v1462, 64
        %v1480 = vpop.permute.xlu0 %1479
        %1481 = vrot.lane.b32.xlu0 %v1472, 64
        %v1482 = vpop.permute.xlu0 %1481
        %1483 = vrot.lane.b32.xlu0 %v1463, 64
        %v1484 = vpop.permute.xlu0 %1483
        %1485 = vrot.lane.b32.xlu0 %v1473, 64
        %v1486 = vpop.permute.xlu0 %1485
        %1487 = vrot.lane.b32.xlu0 %v1464, 64
        %v1488 = vpop.permute.xlu0 %1487
        %1489 = vrot.lane.b32.xlu0 %v1474, 64
        %v1490 = vpop.permute.xlu0 %1489
        %1491 = vrot.lane.b32.xlu0 %v1465, 64
        %v1492 = vpop.permute.xlu0 %1491
        %vm1493 = vcmask 523264
        %v1494 = vsel %vm1493, %v1476, %v1478
        %v1495 = vsel %vm1493, %v1478, %v1480
        %v1496 = vsel %vm1493, %v1480, %v1482
        %v1497 = vsel %vm1493, %v1482, %v1484
        %v1498 = vsel %vm1493, %v1484, %v1486
        %v1499 = vsel %vm1493, %v1486, %v1488
        %v1500 = vsel %vm1493, %v1488, %v1490
        %v1501 = vsel %vm1493, %v1490, %v1492
        %1510 = vst [vmem:[#allocation3 + $0x280] sm:$0xf] %v1494
        %1511 = vst [vmem:[#allocation3 + $0x288] sm:$0xf] %v1495
        %1512 = vst [vmem:[#allocation3 + $0x290] sm:$0xf] %v1496
        %1513 = vst [vmem:[#allocation3 + $0x298] sm:$0xf] %v1497
        %1514 = vst [vmem:[#allocation3 + $0x2a0] sm:$0xf] %v1498
        %1515 = vst [vmem:[#allocation3 + $0x2a8] sm:$0xf] %v1499
        %1516 = vst [vmem:[#allocation3 + $0x2b0] sm:$0xf] %v1500
        %1517 = vst [vmem:[#allocation3 + $0x2b8] sm:$0xf] %v1501
        %v1518 = vld [vmem:[#allocation2] sm:$0xff]
        %v1519 = vld [vmem:[#allocation2 + $0x8] sm:$0xff]
        %v1520 = vld [vmem:[#allocation2 + $0x10] sm:$0xff]
        %v1521 = vld [vmem:[#allocation2 + $0x18] sm:$0xff]
        %v1522 = vld [vmem:[#allocation2 + $0x20] sm:$0xf]
        %v1528 = vcombine.low %v1518, %v1518
        %v1529 = vcombine.low %v1519, %v1519
        %v1530 = vcombine.low %v1520, %v1520
        %v1531 = vcombine.low %v1521, %v1521
        %v1532 = vcombine.low %v1522, %v1522
        %1533 = vrot.lane.b32.xlu0 %v1528, 63
        %v1534 = vpop.permute.xlu0 %1533
        %1535 = vrot.lane.b32.xlu0 %v1518, 63
        %v1536 = vpop.permute.xlu0 %1535
        %1537 = vrot.lane.b32.xlu0 %v1529, 63
        %v1538 = vpop.permute.xlu0 %1537
        %1539 = vrot.lane.b32.xlu0 %v1519, 63
        %v1540 = vpop.permute.xlu0 %1539
        %1541 = vrot.lane.b32.xlu0 %v1530, 63
        %v1542 = vpop.permute.xlu0 %1541
        %1543 = vrot.lane.b32.xlu0 %v1520, 63
        %v1544 = vpop.permute.xlu0 %1543
        %1545 = vrot.lane.b32.xlu0 %v1531, 63
        %v1546 = vpop.permute.xlu0 %1545
        %1547 = vrot.lane.b32.xlu0 %v1521, 63
        %v1548 = vpop.permute.xlu0 %1547
        %1549 = vrot.lane.b32.xlu0 %v1532, 63
        %v1550 = vpop.permute.xlu0 %1549
        %vm1551 = vcmask 515072
        %v1552 = vsel %vm1551, %v1534, %v1536
        %v1553 = vsel %vm1551, %v1536, %v1538
        %v1554 = vsel %vm1551, %v1538, %v1540
        %v1555 = vsel %vm1551, %v1540, %v1542
        %v1556 = vsel %vm1551, %v1542, %v1544
        %v1557 = vsel %vm1551, %v1544, %v1546
        %v1558 = vsel %vm1551, %v1546, %v1548
        %v1559 = vsel %vm1551, %v1548, %v1550
        %1568 = vst [vmem:[#allocation3 + $0x280] sm:$0xf0] %v1552
        %1569 = vst [vmem:[#allocation3 + $0x288] sm:$0xf0] %v1553
        %1570 = vst [vmem:[#allocation3 + $0x290] sm:$0xf0] %v1554
        %1571 = vst [vmem:[#allocation3 + $0x298] sm:$0xf0] %v1555
        %1572 = vst [vmem:[#allocation3 + $0x2a0] sm:$0xf0] %v1556
        %1573 = vst [vmem:[#allocation3 + $0x2a8] sm:$0xf0] %v1557
        %1574 = vst [vmem:[#allocation3 + $0x2b0] sm:$0xf0] %v1558
        %1575 = vst [vmem:[#allocation3 + $0x2b8] sm:$0xf0] %v1559
        %v1576 = vld [vmem:[#allocation2] sm:$0xff]
        %v1577 = vld [vmem:[#allocation2 + $0x8] sm:$0xff]
        %v1578 = vld [vmem:[#allocation2 + $0x10] sm:$0xff]
        %v1579 = vld [vmem:[#allocation2 + $0x18] sm:$0xff]
        %v1580 = vld [vmem:[#allocation2 + $0x20] sm:$0xf]
        %v1586 = vcombine.high %v1576, %v1576
        %v1587 = vcombine.high %v1577, %v1577
        %v1588 = vcombine.high %v1578, %v1578
        %v1589 = vcombine.high %v1579, %v1579
        %1590 = vrot.lane.b32.xlu0 %v1576, 62
        %v1591 = vpop.permute.xlu0 %1590
        %1592 = vrot.lane.b32.xlu0 %v1586, 62
        %v1593 = vpop.permute.xlu0 %1592
        %1594 = vrot.lane.b32.xlu0 %v1577, 62
        %v1595 = vpop.permute.xlu0 %1594
        %1596 = vrot.lane.b32.xlu0 %v1587, 62
        %v1597 = vpop.permute.xlu0 %1596
        %1598 = vrot.lane.b32.xlu0 %v1578, 62
        %v1599 = vpop.permute.xlu0 %1598
        %1600 = vrot.lane.b32.xlu0 %v1588, 62
        %v1601 = vpop.permute.xlu0 %1600
        %1602 = vrot.lane.b32.xlu0 %v1579, 62
        %v1603 = vpop.permute.xlu0 %1602
        %1604 = vrot.lane.b32.xlu0 %v1589, 62
        %v1605 = vpop.permute.xlu0 %1604
        %1606 = vrot.lane.b32.xlu0 %v1580, 62
        %v1607 = vpop.permute.xlu0 %1606
        %vm1608 = vcmask 506880
        %v1609 = vsel %vm1608, %v1591, %v1593
        %v1610 = vsel %vm1608, %v1593, %v1595
        %v1611 = vsel %vm1608, %v1595, %v1597
        %v1612 = vsel %vm1608, %v1597, %v1599
        %v1613 = vsel %vm1608, %v1599, %v1601
        %v1614 = vsel %vm1608, %v1601, %v1603
        %v1615 = vsel %vm1608, %v1603, %v1605
        %v1616 = vsel %vm1608, %v1605, %v1607
        %1625 = vst [vmem:[#allocation3 + $0x2c0] sm:$0xf] %v1609
        %1626 = vst [vmem:[#allocation3 + $0x2c8] sm:$0xf] %v1610
        %1627 = vst [vmem:[#allocation3 + $0x2d0] sm:$0xf] %v1611
        %1628 = vst [vmem:[#allocation3 + $0x2d8] sm:$0xf] %v1612
        %1629 = vst [vmem:[#allocation3 + $0x2e0] sm:$0xf] %v1613
        %1630 = vst [vmem:[#allocation3 + $0x2e8] sm:$0xf] %v1614
        %1631 = vst [vmem:[#allocation3 + $0x2f0] sm:$0xf] %v1615
        %1632 = vst [vmem:[#allocation3 + $0x2f8] sm:$0xf] %v1616
        %v1633 = vld [vmem:[#allocation2] sm:$0xff]
        %v1634 = vld [vmem:[#allocation2 + $0x8] sm:$0xff]
        %v1635 = vld [vmem:[#allocation2 + $0x10] sm:$0xff]
        %v1636 = vld [vmem:[#allocation2 + $0x18] sm:$0xff]
        %v1637 = vld [vmem:[#allocation2 + $0x20] sm:$0xf]
        %v1643 = vcombine.low %v1633, %v1633
        %v1644 = vcombine.low %v1634, %v1634
        %v1645 = vcombine.low %v1635, %v1635
        %v1646 = vcombine.low %v1636, %v1636
        %v1647 = vcombine.low %v1637, %v1637
        %1648 = vrot.lane.b32.xlu0 %v1643, 61
        %v1649 = vpop.permute.xlu0 %1648
        %1650 = vrot.lane.b32.xlu0 %v1633, 61
        %v1651 = vpop.permute.xlu0 %1650
        %1652 = vrot.lane.b32.xlu0 %v1644, 61
        %v1653 = vpop.permute.xlu0 %1652
        %1654 = vrot.lane.b32.xlu0 %v1634, 61
        %v1655 = vpop.permute.xlu0 %1654
        %1656 = vrot.lane.b32.xlu0 %v1645, 61
        %v1657 = vpop.permute.xlu0 %1656
        %1658 = vrot.lane.b32.xlu0 %v1635, 61
        %v1659 = vpop.permute.xlu0 %1658
        %1660 = vrot.lane.b32.xlu0 %v1646, 61
        %v1661 = vpop.permute.xlu0 %1660
        %1662 = vrot.lane.b32.xlu0 %v1636, 61
        %v1663 = vpop.permute.xlu0 %1662
        %1664 = vrot.lane.b32.xlu0 %v1647, 61
        %v1665 = vpop.permute.xlu0 %1664
        %vm1666 = vcmask 498688
        %v1667 = vsel %vm1666, %v1649, %v1651
        %v1668 = vsel %vm1666, %v1651, %v1653
        %v1669 = vsel %vm1666, %v1653, %v1655
        %v1670 = vsel %vm1666, %v1655, %v1657
        %v1671 = vsel %vm1666, %v1657, %v1659
        %v1672 = vsel %vm1666, %v1659, %v1661
        %v1673 = vsel %vm1666, %v1661, %v1663
        %v1674 = vsel %vm1666, %v1663, %v1665
        %1683 = vst [vmem:[#allocation3 + $0x2c0] sm:$0xf0] %v1667
        %1684 = vst [vmem:[#allocation3 + $0x2c8] sm:$0xf0] %v1668
        %1685 = vst [vmem:[#allocation3 + $0x2d0] sm:$0xf0] %v1669
        %1686 = vst [vmem:[#allocation3 + $0x2d8] sm:$0xf0] %v1670
        %1687 = vst [vmem:[#allocation3 + $0x2e0] sm:$0xf0] %v1671
        %1688 = vst [vmem:[#allocation3 + $0x2e8] sm:$0xf0] %v1672
        %1689 = vst [vmem:[#allocation3 + $0x2f0] sm:$0xf0] %v1673
        %1690 = vst [vmem:[#allocation3 + $0x2f8] sm:$0xf0] %v1674
        %v1691 = vld [vmem:[#allocation2] sm:$0xff]
        %v1692 = vld [vmem:[#allocation2 + $0x8] sm:$0xff]
        %v1693 = vld [vmem:[#allocation2 + $0x10] sm:$0xff]
        %v1694 = vld [vmem:[#allocation2 + $0x18] sm:$0xff]
        %v1695 = vld [vmem:[#allocation2 + $0x20] sm:$0xf]
        %v1701 = vcombine.high %v1691, %v1691
        %v1702 = vcombine.high %v1692, %v1692
        %v1703 = vcombine.high %v1693, %v1693
        %v1704 = vcombine.high %v1694, %v1694
        %1705 = vrot.lane.b32.xlu0 %v1691, 60
        %v1706 = vpop.permute.xlu0 %1705
        %1707 = vrot.lane.b32.xlu0 %v1701, 60
        %v1708 = vpop.permute.xlu0 %1707
        %1709 = vrot.lane.b32.xlu0 %v1692, 60
        %v1710 = vpop.permute.xlu0 %1709
        %1711 = vrot.lane.b32.xlu0 %v1702, 60
        %v1712 = vpop.permute.xlu0 %1711
        %1713 = vrot.lane.b32.xlu0 %v1693, 60
        %v1714 = vpop.permute.xlu0 %1713
        %1715 = vrot.lane.b32.xlu0 %v1703, 60
        %v1716 = vpop.permute.xlu0 %1715
        %1717 = vrot.lane.b32.xlu0 %v1694, 60
        %v1718 = vpop.permute.xlu0 %1717
        %1719 = vrot.lane.b32.xlu0 %v1704, 60
        %v1720 = vpop.permute.xlu0 %1719
        %1721 = vrot.lane.b32.xlu0 %v1695, 60
        %v1722 = vpop.permute.xlu0 %1721
        %vm1723 = vcmask 490496
        %v1724 = vsel %vm1723, %v1706, %v1708
        %v1725 = vsel %vm1723, %v1708, %v1710
        %v1726 = vsel %vm1723, %v1710, %v1712
        %v1727 = vsel %vm1723, %v1712, %v1714
        %v1728 = vsel %vm1723, %v1714, %v1716
        %v1729 = vsel %vm1723, %v1716, %v1718
        %v1730 = vsel %vm1723, %v1718, %v1720
        %v1731 = vsel %vm1723, %v1720, %v1722
        %1740 = vst [vmem:[#allocation3 + $0x300] sm:$0xf] %v1724
        %1741 = vst [vmem:[#allocation3 + $0x308] sm:$0xf] %v1725
        %1742 = vst [vmem:[#allocation3 + $0x310] sm:$0xf] %v1726
        %1743 = vst [vmem:[#allocation3 + $0x318] sm:$0xf] %v1727
        %1744 = vst [vmem:[#allocation3 + $0x320] sm:$0xf] %v1728
        %1745 = vst [vmem:[#allocation3 + $0x328] sm:$0xf] %v1729
        %1746 = vst [vmem:[#allocation3 + $0x330] sm:$0xf] %v1730
        %1747 = vst [vmem:[#allocation3 + $0x338] sm:$0xf] %v1731
        %v1748 = vld [vmem:[#allocation2 + $0x8] sm:$0xff]
        %v1749 = vld [vmem:[#allocation2 + $0x10] sm:$0xff]
        %v1750 = vld [vmem:[#allocation2 + $0x18] sm:$0xff]
        %v1751 = vld [vmem:[#allocation2 + $0x20] sm:$0xff]
        %v1756 = vcombine.low %v1748, %v1748
        %v1757 = vcombine.low %v1749, %v1749
        %v1758 = vcombine.low %v1750, %v1750
        %v1759 = vcombine.low %v1751, %v1751
        %1764 = vst [vmem:[#allocation3 + $0x300] sm:$0xf0] %v1756
        %1765 = vst [vmem:[#allocation3 + $0x308] sm:$0xf0] %v1748
        %1766 = vst [vmem:[#allocation3 + $0x310] sm:$0xf0] %v1757
        %1767 = vst [vmem:[#allocation3 + $0x318] sm:$0xf0] %v1749
        %1768 = vst [vmem:[#allocation3 + $0x320] sm:$0xf0] %v1758
        %1769 = vst [vmem:[#allocation3 + $0x328] sm:$0xf0] %v1750
        %1770 = vst [vmem:[#allocation3 + $0x330] sm:$0xf0] %v1759
        %1771 = vst [vmem:[#allocation3 + $0x338] sm:$0xf0] %v1751
        %v1772 = vld [vmem:[#allocation2 + $0x8] sm:$0xff]
        %v1773 = vld [vmem:[#allocation2 + $0x10] sm:$0xff]
        %v1774 = vld [vmem:[#allocation2 + $0x18] sm:$0xff]
        %v1775 = vld [vmem:[#allocation2 + $0x20] sm:$0xff]
        %v1776 = vld [vmem:[#allocation2 + $0x28] sm:$0xf]
        %v1782 = vcombine.high %v1772, %v1772
        %v1783 = vcombine.high %v1773, %v1773
        %v1784 = vcombine.high %v1774, %v1774
        %v1785 = vcombine.high %v1775, %v1775
        %1786 = vrot.lane.b32.xlu0 %v1772, 127
        %v1787 = vpop.permute.xlu0 %1786
        %1788 = vrot.lane.b32.xlu0 %v1782, 127
        %v1789 = vpop.permute.xlu0 %1788
        %1790 = vrot.lane.b32.xlu0 %v1773, 127
        %v1791 = vpop.permute.xlu0 %1790
        %1792 = vrot.lane.b32.xlu0 %v1783, 127
        %v1793 = vpop.permute.xlu0 %1792
        %1794 = vrot.lane.b32.xlu0 %v1774, 127
        %v1795 = vpop.permute.xlu0 %1794
        %1796 = vrot.lane.b32.xlu0 %v1784, 127
        %v1797 = vpop.permute.xlu0 %1796
        %1798 = vrot.lane.b32.xlu0 %v1775, 127
        %v1799 = vpop.permute.xlu0 %1798
        %1800 = vrot.lane.b32.xlu0 %v1785, 127
        %v1801 = vpop.permute.xlu0 %1800
        %1802 = vrot.lane.b32.xlu0 %v1776, 127
        %v1803 = vpop.permute.xlu0 %1802
        %v1804 = vsel %vm401, %v1787, %v1789
        %v1805 = vsel %vm401, %v1789, %v1791
        %v1806 = vsel %vm401, %v1791, %v1793
        %v1807 = vsel %vm401, %v1793, %v1795
        %v1808 = vsel %vm401, %v1795, %v1797
        %v1809 = vsel %vm401, %v1797, %v1799
        %v1810 = vsel %vm401, %v1799, %v1801
        %v1811 = vsel %vm401, %v1801, %v1803
        %1820 = vst [vmem:[#allocation3 + $0x340] sm:$0xf] %v1804
        %1821 = vst [vmem:[#allocation3 + $0x348] sm:$0xf] %v1805
        %1822 = vst [vmem:[#allocation3 + $0x350] sm:$0xf] %v1806
        %1823 = vst [vmem:[#allocation3 + $0x358] sm:$0xf] %v1807
        %1824 = vst [vmem:[#allocation3 + $0x360] sm:$0xf] %v1808
        %1825 = vst [vmem:[#allocation3 + $0x368] sm:$0xf] %v1809
        %1826 = vst [vmem:[#allocation3 + $0x370] sm:$0xf] %v1810
        %1827 = vst [vmem:[#allocation3 + $0x378] sm:$0xf] %v1811
        %v1828 = vld [vmem:[#allocation2 + $0x8] sm:$0xff]
        %v1829 = vld [vmem:[#allocation2 + $0x10] sm:$0xff]
        %v1830 = vld [vmem:[#allocation2 + $0x18] sm:$0xff]
        %v1831 = vld [vmem:[#allocation2 + $0x20] sm:$0xff]
        %v1832 = vld [vmem:[#allocation2 + $0x28] sm:$0xf]
        %v1838 = vcombine.low %v1828, %v1828
        %v1839 = vcombine.low %v1829, %v1829
        %v1840 = vcombine.low %v1830, %v1830
        %v1841 = vcombine.low %v1831, %v1831
        %v1842 = vcombine.low %v1832, %v1832
        %1843 = vrot.lane.b32.xlu0 %v1838, 126
        %v1844 = vpop.permute.xlu0 %1843
        %1845 = vrot.lane.b32.xlu0 %v1828, 126
        %v1846 = vpop.permute.xlu0 %1845
        %1847 = vrot.lane.b32.xlu0 %v1839, 126
        %v1848 = vpop.permute.xlu0 %1847
        %1849 = vrot.lane.b32.xlu0 %v1829, 126
        %v1850 = vpop.permute.xlu0 %1849
        %1851 = vrot.lane.b32.xlu0 %v1840, 126
        %v1852 = vpop.permute.xlu0 %1851
        %1853 = vrot.lane.b32.xlu0 %v1830, 126
        %v1854 = vpop.permute.xlu0 %1853
        %1855 = vrot.lane.b32.xlu0 %v1841, 126
        %v1856 = vpop.permute.xlu0 %1855
        %1857 = vrot.lane.b32.xlu0 %v1831, 126
        %v1858 = vpop.permute.xlu0 %1857
        %1859 = vrot.lane.b32.xlu0 %v1842, 126
        %v1860 = vpop.permute.xlu0 %1859
        %v1861 = vsel %vm458, %v1844, %v1846
        %v1862 = vsel %vm458, %v1846, %v1848
        %v1863 = vsel %vm458, %v1848, %v1850
        %v1864 = vsel %vm458, %v1850, %v1852
        %v1865 = vsel %vm458, %v1852, %v1854
        %v1866 = vsel %vm458, %v1854, %v1856
        %v1867 = vsel %vm458, %v1856, %v1858
        %v1868 = vsel %vm458, %v1858, %v1860
        %1877 = vst [vmem:[#allocation3 + $0x340] sm:$0xf0] %v1861
        %1878 = vst [vmem:[#allocation3 + $0x348] sm:$0xf0] %v1862
        %1879 = vst [vmem:[#allocation3 + $0x350] sm:$0xf0] %v1863
        %1880 = vst [vmem:[#allocation3 + $0x358] sm:$0xf0] %v1864
        %1881 = vst [vmem:[#allocation3 + $0x360] sm:$0xf0] %v1865
        %1882 = vst [vmem:[#allocation3 + $0x368] sm:$0xf0] %v1866
        %1883 = vst [vmem:[#allocation3 + $0x370] sm:$0xf0] %v1867
        %1884 = vst [vmem:[#allocation3 + $0x378] sm:$0xf0] %v1868
        %v1885 = vld [vmem:[#allocation2 + $0x8] sm:$0xff]
        %v1886 = vld [vmem:[#allocation2 + $0x10] sm:$0xff]
        %v1887 = vld [vmem:[#allocation2 + $0x18] sm:$0xff]
        %v1888 = vld [vmem:[#allocation2 + $0x20] sm:$0xff]
        %v1889 = vld [vmem:[#allocation2 + $0x28] sm:$0xf]
        %v1895 = vcombine.high %v1885, %v1885
        %v1896 = vcombine.high %v1886, %v1886
        %v1897 = vcombine.high %v1887, %v1887
        %v1898 = vcombine.high %v1888, %v1888
        %1899 = vrot.lane.b32.xlu0 %v1885, 125
        %v1900 = vpop.permute.xlu0 %1899
        %1901 = vrot.lane.b32.xlu0 %v1895, 125
        %v1902 = vpop.permute.xlu0 %1901
        %1903 = vrot.lane.b32.xlu0 %v1886, 125
        %v1904 = vpop.permute.xlu0 %1903
        %1905 = vrot.lane.b32.xlu0 %v1896, 125
        %v1906 = vpop.permute.xlu0 %1905
        %1907 = vrot.lane.b32.xlu0 %v1887, 125
        %v1908 = vpop.permute.xlu0 %1907
        %1909 = vrot.lane.b32.xlu0 %v1897, 125
        %v1910 = vpop.permute.xlu0 %1909
        %1911 = vrot.lane.b32.xlu0 %v1888, 125
        %v1912 = vpop.permute.xlu0 %1911
        %1913 = vrot.lane.b32.xlu0 %v1898, 125
        %v1914 = vpop.permute.xlu0 %1913
        %1915 = vrot.lane.b32.xlu0 %v1889, 125
        %v1916 = vpop.permute.xlu0 %1915
        %v1917 = vsel %vm516, %v1900, %v1902
        %v1918 = vsel %vm516, %v1902, %v1904
        %v1919 = vsel %vm516, %v1904, %v1906
        %v1920 = vsel %vm516, %v1906, %v1908
        %v1921 = vsel %vm516, %v1908, %v1910
        %v1922 = vsel %vm516, %v1910, %v1912
        %v1923 = vsel %vm516, %v1912, %v1914
        %v1924 = vsel %vm516, %v1914, %v1916
        %1933 = vst [vmem:[#allocation3 + $0x380] sm:$0xf] %v1917
        %1934 = vst [vmem:[#allocation3 + $0x388] sm:$0xf] %v1918
        %1935 = vst [vmem:[#allocation3 + $0x390] sm:$0xf] %v1919
        %1936 = vst [vmem:[#allocation3 + $0x398] sm:$0xf] %v1920
        %1937 = vst [vmem:[#allocation3 + $0x3a0] sm:$0xf] %v1921
        %1938 = vst [vmem:[#allocation3 + $0x3a8] sm:$0xf] %v1922
        %1939 = vst [vmem:[#allocation3 + $0x3b0] sm:$0xf] %v1923
        %1940 = vst [vmem:[#allocation3 + $0x3b8] sm:$0xf] %v1924
        %v1941 = vld [vmem:[#allocation2 + $0x8] sm:$0xff]
        %v1942 = vld [vmem:[#allocation2 + $0x10] sm:$0xff]
        %v1943 = vld [vmem:[#allocation2 + $0x18] sm:$0xff]
        %v1944 = vld [vmem:[#allocation2 + $0x20] sm:$0xff]
        %v1945 = vld [vmem:[#allocation2 + $0x28] sm:$0xf]
        %v1951 = vcombine.low %v1941, %v1941
        %v1952 = vcombine.low %v1942, %v1942
        %v1953 = vcombine.low %v1943, %v1943
        %v1954 = vcombine.low %v1944, %v1944
        %v1955 = vcombine.low %v1945, %v1945
        %1956 = vrot.lane.b32.xlu0 %v1951, 124
        %v1957 = vpop.permute.xlu0 %1956
        %1958 = vrot.lane.b32.xlu0 %v1941, 124
        %v1959 = vpop.permute.xlu0 %1958
        %1960 = vrot.lane.b32.xlu0 %v1952, 124
        %v1961 = vpop.permute.xlu0 %1960
        %1962 = vrot.lane.b32.xlu0 %v1942, 124
        %v1963 = vpop.permute.xlu0 %1962
        %1964 = vrot.lane.b32.xlu0 %v1953, 124
        %v1965 = vpop.permute.xlu0 %1964
        %1966 = vrot.lane.b32.xlu0 %v1943, 124
        %v1967 = vpop.permute.xlu0 %1966
        %1968 = vrot.lane.b32.xlu0 %v1954, 124
        %v1969 = vpop.permute.xlu0 %1968
        %1970 = vrot.lane.b32.xlu0 %v1944, 124
        %v1971 = vpop.permute.xlu0 %1970
        %1972 = vrot.lane.b32.xlu0 %v1955, 124
        %v1973 = vpop.permute.xlu0 %1972
        %v1974 = vsel %vm573, %v1957, %v1959
        %v1975 = vsel %vm573, %v1959, %v1961
        %v1976 = vsel %vm573, %v1961, %v1963
        %v1977 = vsel %vm573, %v1963, %v1965
        %v1978 = vsel %vm573, %v1965, %v1967
        %v1979 = vsel %vm573, %v1967, %v1969
        %v1980 = vsel %vm573, %v1969, %v1971
        %v1981 = vsel %vm573, %v1971, %v1973
        %1990 = vst [vmem:[#allocation3 + $0x380] sm:$0xf0] %v1974
        %1991 = vst [vmem:[#allocation3 + $0x388] sm:$0xf0] %v1975
        %1992 = vst [vmem:[#allocation3 + $0x390] sm:$0xf0] %v1976
        %1993 = vst [vmem:[#allocation3 + $0x398] sm:$0xf0] %v1977
        %1994 = vst [vmem:[#allocation3 + $0x3a0] sm:$0xf0] %v1978
        %1995 = vst [vmem:[#allocation3 + $0x3a8] sm:$0xf0] %v1979
        %1996 = vst [vmem:[#allocation3 + $0x3b0] sm:$0xf0] %v1980
        %1997 = vst [vmem:[#allocation3 + $0x3b8] sm:$0xf0] %v1981
        %v1998 = vld [vmem:[#allocation2 + $0x8] sm:$0xff]
        %v1999 = vld [vmem:[#allocation2 + $0x10] sm:$0xff]
        %v2000 = vld [vmem:[#allocation2 + $0x18] sm:$0xff]
        %v2001 = vld [vmem:[#allocation2 + $0x20] sm:$0xff]
        %v2002 = vld [vmem:[#allocation2 + $0x28] sm:$0xf]
        %v2008 = vcombine.high %v1998, %v1998
        %v2009 = vcombine.high %v1999, %v1999
        %v2010 = vcombine.high %v2000, %v2000
        %v2011 = vcombine.high %v2001, %v2001
        %2012 = vrot.lane.b32.xlu0 %v1998, 112
        %v2013 = vpop.permute.xlu0 %2012
        %2014 = vrot.lane.b32.xlu0 %v2008, 112
        %v2015 = vpop.permute.xlu0 %2014
        %2016 = vrot.lane.b32.xlu0 %v1999, 112
        %v2017 = vpop.permute.xlu0 %2016
        %2018 = vrot.lane.b32.xlu0 %v2009, 112
        %v2019 = vpop.permute.xlu0 %2018
        %2020 = vrot.lane.b32.xlu0 %v2000, 112
        %v2021 = vpop.permute.xlu0 %2020
        %2022 = vrot.lane.b32.xlu0 %v2010, 112
        %v2023 = vpop.permute.xlu0 %2022
        %2024 = vrot.lane.b32.xlu0 %v2001, 112
        %v2025 = vpop.permute.xlu0 %2024
        %2026 = vrot.lane.b32.xlu0 %v2011, 112
        %v2027 = vpop.permute.xlu0 %2026
        %2028 = vrot.lane.b32.xlu0 %v2002, 112
        %v2029 = vpop.permute.xlu0 %2028
        %v2030 = vsel %vm631, %v2013, %v2015
        %v2031 = vsel %vm631, %v2015, %v2017
        %v2032 = vsel %vm631, %v2017, %v2019
        %v2033 = vsel %vm631, %v2019, %v2021
        %v2034 = vsel %vm631, %v2021, %v2023
        %v2035 = vsel %vm631, %v2023, %v2025
        %v2036 = vsel %vm631, %v2025, %v2027
        %v2037 = vsel %vm631, %v2027, %v2029
        %2046 = vst [vmem:[#allocation3 + $0x3c0] sm:$0xf] %v2030
        %2047 = vst [vmem:[#allocation3 + $0x3c8] sm:$0xf] %v2031
        %2048 = vst [vmem:[#allocation3 + $0x3d0] sm:$0xf] %v2032
        %2049 = vst [vmem:[#allocation3 + $0x3d8] sm:$0xf] %v2033
        %2050 = vst [vmem:[#allocation3 + $0x3e0] sm:$0xf] %v2034
        %2051 = vst [vmem:[#allocation3 + $0x3e8] sm:$0xf] %v2035
        %2052 = vst [vmem:[#allocation3 + $0x3f0] sm:$0xf] %v2036
        %2053 = vst [vmem:[#allocation3 + $0x3f8] sm:$0xf] %v2037
        %v2054 = vld [vmem:[#allocation2 + $0x8] sm:$0xff]
        %v2055 = vld [vmem:[#allocation2 + $0x10] sm:$0xff]
        %v2056 = vld [vmem:[#allocation2 + $0x18] sm:$0xff]
        %v2057 = vld [vmem:[#allocation2 + $0x20] sm:$0xff]
        %v2058 = vld [vmem:[#allocation2 + $0x28] sm:$0xf]
        %v2064 = vcombine.low %v2054, %v2054
        %v2065 = vcombine.low %v2055, %v2055
        %v2066 = vcombine.low %v2056, %v2056
        %v2067 = vcombine.low %v2057, %v2057
        %v2068 = vcombine.low %v2058, %v2058
        %2069 = vrot.lane.b32.xlu0 %v2064, 111
        %v2070 = vpop.permute.xlu0 %2069
        %2071 = vrot.lane.b32.xlu0 %v2054, 111
        %v2072 = vpop.permute.xlu0 %2071
        %2073 = vrot.lane.b32.xlu0 %v2065, 111
        %v2074 = vpop.permute.xlu0 %2073
        %2075 = vrot.lane.b32.xlu0 %v2055, 111
        %v2076 = vpop.permute.xlu0 %2075
        %2077 = vrot.lane.b32.xlu0 %v2066, 111
        %v2078 = vpop.permute.xlu0 %2077
        %2079 = vrot.lane.b32.xlu0 %v2056, 111
        %v2080 = vpop.permute.xlu0 %2079
        %2081 = vrot.lane.b32.xlu0 %v2067, 111
        %v2082 = vpop.permute.xlu0 %2081
        %2083 = vrot.lane.b32.xlu0 %v2057, 111
        %v2084 = vpop.permute.xlu0 %2083
        %2085 = vrot.lane.b32.xlu0 %v2068, 111
        %v2086 = vpop.permute.xlu0 %2085
        %v2087 = vsel %vm688, %v2070, %v2072
        %v2088 = vsel %vm688, %v2072, %v2074
        %v2089 = vsel %vm688, %v2074, %v2076
        %v2090 = vsel %vm688, %v2076, %v2078
        %v2091 = vsel %vm688, %v2078, %v2080
        %v2092 = vsel %vm688, %v2080, %v2082
        %v2093 = vsel %vm688, %v2082, %v2084
        %v2094 = vsel %vm688, %v2084, %v2086
        %2103 = vst [vmem:[#allocation3 + $0x3c0] sm:$0xf0] %v2087
        %2104 = vst [vmem:[#allocation3 + $0x3c8] sm:$0xf0] %v2088
        %2105 = vst [vmem:[#allocation3 + $0x3d0] sm:$0xf0] %v2089
        %2106 = vst [vmem:[#allocation3 + $0x3d8] sm:$0xf0] %v2090
        %2107 = vst [vmem:[#allocation3 + $0x3e0] sm:$0xf0] %v2091
        %2108 = vst [vmem:[#allocation3 + $0x3e8] sm:$0xf0] %v2092
        %2109 = vst [vmem:[#allocation3 + $0x3f0] sm:$0xf0] %v2093
        %2110 = vst [vmem:[#allocation3 + $0x3f8] sm:$0xf0] %v2094
        %v2111 = vld [vmem:[#allocation2 + $0x8] sm:$0xff]
        %v2112 = vld [vmem:[#allocation2 + $0x10] sm:$0xff]
        %v2113 = vld [vmem:[#allocation2 + $0x18] sm:$0xff]
        %v2114 = vld [vmem:[#allocation2 + $0x20] sm:$0xff]
        %v2115 = vld [vmem:[#allocation2 + $0x28] sm:$0xf]
        %v2121 = vcombine.high %v2111, %v2111
        %v2122 = vcombine.high %v2112, %v2112
        %v2123 = vcombine.high %v2113, %v2113
        %v2124 = vcombine.high %v2114, %v2114
        %2125 = vrot.lane.b32.xlu0 %v2111, 110
        %v2126 = vpop.permute.xlu0 %2125
        %2127 = vrot.lane.b32.xlu0 %v2121, 110
        %v2128 = vpop.permute.xlu0 %2127
        %2129 = vrot.lane.b32.xlu0 %v2112, 110
        %v2130 = vpop.permute.xlu0 %2129
        %2131 = vrot.lane.b32.xlu0 %v2122, 110
        %v2132 = vpop.permute.xlu0 %2131
        %2133 = vrot.lane.b32.xlu0 %v2113, 110
        %v2134 = vpop.permute.xlu0 %2133
        %2135 = vrot.lane.b32.xlu0 %v2123, 110
        %v2136 = vpop.permute.xlu0 %2135
        %2137 = vrot.lane.b32.xlu0 %v2114, 110
        %v2138 = vpop.permute.xlu0 %2137
        %2139 = vrot.lane.b32.xlu0 %v2124, 110
        %v2140 = vpop.permute.xlu0 %2139
        %2141 = vrot.lane.b32.xlu0 %v2115, 110
        %v2142 = vpop.permute.xlu0 %2141
        %v2143 = vsel %vm746, %v2126, %v2128
        %v2144 = vsel %vm746, %v2128, %v2130
        %v2145 = vsel %vm746, %v2130, %v2132
        %v2146 = vsel %vm746, %v2132, %v2134
        %v2147 = vsel %vm746, %v2134, %v2136
        %v2148 = vsel %vm746, %v2136, %v2138
        %v2149 = vsel %vm746, %v2138, %v2140
        %v2150 = vsel %vm746, %v2140, %v2142
        %2159 = vst [vmem:[#allocation3 + $0x400] sm:$0xf] %v2143
        %2160 = vst [vmem:[#allocation3 + $0x408] sm:$0xf] %v2144
        %2161 = vst [vmem:[#allocation3 + $0x410] sm:$0xf] %v2145
        %2162 = vst [vmem:[#allocation3 + $0x418] sm:$0xf] %v2146
        %2163 = vst [vmem:[#allocation3 + $0x420] sm:$0xf] %v2147
        %2164 = vst [vmem:[#allocation3 + $0x428] sm:$0xf] %v2148
        %2165 = vst [vmem:[#allocation3 + $0x430] sm:$0xf] %v2149
        %2166 = vst [vmem:[#allocation3 + $0x438] sm:$0xf] %v2150
        %v2167 = vld [vmem:[#allocation2 + $0x8] sm:$0xff]
        %v2168 = vld [vmem:[#allocation2 + $0x10] sm:$0xff]
        %v2169 = vld [vmem:[#allocation2 + $0x18] sm:$0xff]
        %v2170 = vld [vmem:[#allocation2 + $0x20] sm:$0xff]
        %v2171 = vld [vmem:[#allocation2 + $0x28] sm:$0xf]
        %v2177 = vcombine.low %v2167, %v2167
        %v2178 = vcombine.low %v2168, %v2168
        %v2179 = vcombine.low %v2169, %v2169
        %v2180 = vcombine.low %v2170, %v2170
        %v2181 = vcombine.low %v2171, %v2171
        %2182 = vrot.lane.b32.xlu0 %v2177, 109
        %v2183 = vpop.permute.xlu0 %2182
        %2184 = vrot.lane.b32.xlu0 %v2167, 109
        %v2185 = vpop.permute.xlu0 %2184
        %2186 = vrot.lane.b32.xlu0 %v2178, 109
        %v2187 = vpop.permute.xlu0 %2186
        %2188 = vrot.lane.b32.xlu0 %v2168, 109
        %v2189 = vpop.permute.xlu0 %2188
        %2190 = vrot.lane.b32.xlu0 %v2179, 109
        %v2191 = vpop.permute.xlu0 %2190
        %2192 = vrot.lane.b32.xlu0 %v2169, 109
        %v2193 = vpop.permute.xlu0 %2192
        %2194 = vrot.lane.b32.xlu0 %v2180, 109
        %v2195 = vpop.permute.xlu0 %2194
        %2196 = vrot.lane.b32.xlu0 %v2170, 109
        %v2197 = vpop.permute.xlu0 %2196
        %2198 = vrot.lane.b32.xlu0 %v2181, 109
        %v2199 = vpop.permute.xlu0 %2198
        %v2200 = vsel %vm803, %v2183, %v2185
        %v2201 = vsel %vm803, %v2185, %v2187
        %v2202 = vsel %vm803, %v2187, %v2189
        %v2203 = vsel %vm803, %v2189, %v2191
        %v2204 = vsel %vm803, %v2191, %v2193
        %v2205 = vsel %vm803, %v2193, %v2195
        %v2206 = vsel %vm803, %v2195, %v2197
        %v2207 = vsel %vm803, %v2197, %v2199
        %2216 = vst [vmem:[#allocation3 + $0x400] sm:$0xf0] %v2200
        %2217 = vst [vmem:[#allocation3 + $0x408] sm:$0xf0] %v2201
        %2218 = vst [vmem:[#allocation3 + $0x410] sm:$0xf0] %v2202
        %2219 = vst [vmem:[#allocation3 + $0x418] sm:$0xf0] %v2203
        %2220 = vst [vmem:[#allocation3 + $0x420] sm:$0xf0] %v2204
        %2221 = vst [vmem:[#allocation3 + $0x428] sm:$0xf0] %v2205
        %2222 = vst [vmem:[#allocation3 + $0x430] sm:$0xf0] %v2206
        %2223 = vst [vmem:[#allocation3 + $0x438] sm:$0xf0] %v2207
        %v2224 = vld [vmem:[#allocation2 + $0x8] sm:$0xff]
        %v2225 = vld [vmem:[#allocation2 + $0x10] sm:$0xff]
        %v2226 = vld [vmem:[#allocation2 + $0x18] sm:$0xff]
        %v2227 = vld [vmem:[#allocation2 + $0x20] sm:$0xff]
        %v2228 = vld [vmem:[#allocation2 + $0x28] sm:$0xf]
        %v2234 = vcombine.high %v2224, %v2224
        %v2235 = vcombine.high %v2225, %v2225
        %v2236 = vcombine.high %v2226, %v2226
        %v2237 = vcombine.high %v2227, %v2227
        %2238 = vrot.lane.b32.xlu0 %v2224, 108
        %v2239 = vpop.permute.xlu0 %2238
        %2240 = vrot.lane.b32.xlu0 %v2234, 108
        %v2241 = vpop.permute.xlu0 %2240
        %2242 = vrot.lane.b32.xlu0 %v2225, 108
        %v2243 = vpop.permute.xlu0 %2242
        %2244 = vrot.lane.b32.xlu0 %v2235, 108
        %v2245 = vpop.permute.xlu0 %2244
        %2246 = vrot.lane.b32.xlu0 %v2226, 108
        %v2247 = vpop.permute.xlu0 %2246
        %2248 = vrot.lane.b32.xlu0 %v2236, 108
        %v2249 = vpop.permute.xlu0 %2248
        %2250 = vrot.lane.b32.xlu0 %v2227, 108
        %v2251 = vpop.permute.xlu0 %2250
        %2252 = vrot.lane.b32.xlu0 %v2237, 108
        %v2253 = vpop.permute.xlu0 %2252
        %2254 = vrot.lane.b32.xlu0 %v2228, 108
        %v2255 = vpop.permute.xlu0 %2254
        %v2256 = vsel %vm861, %v2239, %v2241
        %v2257 = vsel %vm861, %v2241, %v2243
        %v2258 = vsel %vm861, %v2243, %v2245
        %v2259 = vsel %vm861, %v2245, %v2247
        %v2260 = vsel %vm861, %v2247, %v2249
        %v2261 = vsel %vm861, %v2249, %v2251
        %v2262 = vsel %vm861, %v2251, %v2253
        %v2263 = vsel %vm861, %v2253, %v2255
        %2272 = vst [vmem:[#allocation3 + $0x440] sm:$0xf] %v2256
        %2273 = vst [vmem:[#allocation3 + $0x448] sm:$0xf] %v2257
        %2274 = vst [vmem:[#allocation3 + $0x450] sm:$0xf] %v2258
        %2275 = vst [vmem:[#allocation3 + $0x458] sm:$0xf] %v2259
        %2276 = vst [vmem:[#allocation3 + $0x460] sm:$0xf] %v2260
        %2277 = vst [vmem:[#allocation3 + $0x468] sm:$0xf] %v2261
        %2278 = vst [vmem:[#allocation3 + $0x470] sm:$0xf] %v2262
        %2279 = vst [vmem:[#allocation3 + $0x478] sm:$0xf] %v2263
        %v2280 = vld [vmem:[#allocation2 + $0x8] sm:$0xff]
        %v2281 = vld [vmem:[#allocation2 + $0x10] sm:$0xff]
        %v2282 = vld [vmem:[#allocation2 + $0x18] sm:$0xff]
        %v2283 = vld [vmem:[#allocation2 + $0x20] sm:$0xff]
        %v2284 = vld [vmem:[#allocation2 + $0x28] sm:$0xf]
        %v2290 = vcombine.low %v2280, %v2280
        %v2291 = vcombine.low %v2281, %v2281
        %v2292 = vcombine.low %v2282, %v2282
        %v2293 = vcombine.low %v2283, %v2283
        %v2294 = vcombine.low %v2284, %v2284
        %2295 = vrot.lane.b32.xlu0 %v2290, 96
        %v2296 = vpop.permute.xlu0 %2295
        %2297 = vrot.lane.b32.xlu0 %v2280, 96
        %v2298 = vpop.permute.xlu0 %2297
        %2299 = vrot.lane.b32.xlu0 %v2291, 96
        %v2300 = vpop.permute.xlu0 %2299
        %2301 = vrot.lane.b32.xlu0 %v2281, 96
        %v2302 = vpop.permute.xlu0 %2301
        %2303 = vrot.lane.b32.xlu0 %v2292, 96
        %v2304 = vpop.permute.xlu0 %2303
        %2305 = vrot.lane.b32.xlu0 %v2282, 96
        %v2306 = vpop.permute.xlu0 %2305
        %2307 = vrot.lane.b32.xlu0 %v2293, 96
        %v2308 = vpop.permute.xlu0 %2307
        %2309 = vrot.lane.b32.xlu0 %v2283, 96
        %v2310 = vpop.permute.xlu0 %2309
        %2311 = vrot.lane.b32.xlu0 %v2294, 96
        %v2312 = vpop.permute.xlu0 %2311
        %v2313 = vsel %vm918, %v2296, %v2298
        %v2314 = vsel %vm918, %v2298, %v2300
        %v2315 = vsel %vm918, %v2300, %v2302
        %v2316 = vsel %vm918, %v2302, %v2304
        %v2317 = vsel %vm918, %v2304, %v2306
        %v2318 = vsel %vm918, %v2306, %v2308
        %v2319 = vsel %vm918, %v2308, %v2310
        %v2320 = vsel %vm918, %v2310, %v2312
        %2329 = vst [vmem:[#allocation3 + $0x440] sm:$0xf0] %v2313
        %2330 = vst [vmem:[#allocation3 + $0x448] sm:$0xf0] %v2314
        %2331 = vst [vmem:[#allocation3 + $0x450] sm:$0xf0] %v2315
        %2332 = vst [vmem:[#allocation3 + $0x458] sm:$0xf0] %v2316
        %2333 = vst [vmem:[#allocation3 + $0x460] sm:$0xf0] %v2317
        %2334 = vst [vmem:[#allocation3 + $0x468] sm:$0xf0] %v2318
        %2335 = vst [vmem:[#allocation3 + $0x470] sm:$0xf0] %v2319
        %2336 = vst [vmem:[#allocation3 + $0x478] sm:$0xf0] %v2320
        %v2337 = vld [vmem:[#allocation2 + $0x8] sm:$0xff]
        %v2338 = vld [vmem:[#allocation2 + $0x10] sm:$0xff]
        %v2339 = vld [vmem:[#allocation2 + $0x18] sm:$0xff]
        %v2340 = vld [vmem:[#allocation2 + $0x20] sm:$0xff]
        %v2341 = vld [vmem:[#allocation2 + $0x28] sm:$0xf]
        %v2347 = vcombine.high %v2337, %v2337
        %v2348 = vcombine.high %v2338, %v2338
        %v2349 = vcombine.high %v2339, %v2339
        %v2350 = vcombine.high %v2340, %v2340
        %2351 = vrot.lane.b32.xlu0 %v2337, 95
        %v2352 = vpop.permute.xlu0 %2351
        %2353 = vrot.lane.b32.xlu0 %v2347, 95
        %v2354 = vpop.permute.xlu0 %2353
        %2355 = vrot.lane.b32.xlu0 %v2338, 95
        %v2356 = vpop.permute.xlu0 %2355
        %2357 = vrot.lane.b32.xlu0 %v2348, 95
        %v2358 = vpop.permute.xlu0 %2357
        %2359 = vrot.lane.b32.xlu0 %v2339, 95
        %v2360 = vpop.permute.xlu0 %2359
        %2361 = vrot.lane.b32.xlu0 %v2349, 95
        %v2362 = vpop.permute.xlu0 %2361
        %2363 = vrot.lane.b32.xlu0 %v2340, 95
        %v2364 = vpop.permute.xlu0 %2363
        %2365 = vrot.lane.b32.xlu0 %v2350, 95
        %v2366 = vpop.permute.xlu0 %2365
        %2367 = vrot.lane.b32.xlu0 %v2341, 95
        %v2368 = vpop.permute.xlu0 %2367
        %v2369 = vsel %vm976, %v2352, %v2354
        %v2370 = vsel %vm976, %v2354, %v2356
        %v2371 = vsel %vm976, %v2356, %v2358
        %v2372 = vsel %vm976, %v2358, %v2360
        %v2373 = vsel %vm976, %v2360, %v2362
        %v2374 = vsel %vm976, %v2362, %v2364
        %v2375 = vsel %vm976, %v2364, %v2366
        %v2376 = vsel %vm976, %v2366, %v2368
        %2385 = vst [vmem:[#allocation3 + $0x480] sm:$0xf] %v2369
        %2386 = vst [vmem:[#allocation3 + $0x488] sm:$0xf] %v2370
        %2387 = vst [vmem:[#allocation3 + $0x490] sm:$0xf] %v2371
        %2388 = vst [vmem:[#allocation3 + $0x498] sm:$0xf] %v2372
        %2389 = vst [vmem:[#allocation3 + $0x4a0] sm:$0xf] %v2373
        %2390 = vst [vmem:[#allocation3 + $0x4a8] sm:$0xf] %v2374
        %2391 = vst [vmem:[#allocation3 + $0x4b0] sm:$0xf] %v2375
        %2392 = vst [vmem:[#allocation3 + $0x4b8] sm:$0xf] %v2376
        %v2393 = vld [vmem:[#allocation2 + $0x8] sm:$0xff]
        %v2394 = vld [vmem:[#allocation2 + $0x10] sm:$0xff]
        %v2395 = vld [vmem:[#allocation2 + $0x18] sm:$0xff]
        %v2396 = vld [vmem:[#allocation2 + $0x20] sm:$0xff]
        %v2397 = vld [vmem:[#allocation2 + $0x28] sm:$0xf]
        %v2403 = vcombine.low %v2393, %v2393
        %v2404 = vcombine.low %v2394, %v2394
        %v2405 = vcombine.low %v2395, %v2395
        %v2406 = vcombine.low %v2396, %v2396
        %v2407 = vcombine.low %v2397, %v2397
        %2408 = vrot.lane.b32.xlu0 %v2403, 94
        %v2409 = vpop.permute.xlu0 %2408
        %2410 = vrot.lane.b32.xlu0 %v2393, 94
        %v2411 = vpop.permute.xlu0 %2410
        %2412 = vrot.lane.b32.xlu0 %v2404, 94
        %v2413 = vpop.permute.xlu0 %2412
        %2414 = vrot.lane.b32.xlu0 %v2394, 94
        %v2415 = vpop.permute.xlu0 %2414
        %2416 = vrot.lane.b32.xlu0 %v2405, 94
        %v2417 = vpop.permute.xlu0 %2416
        %2418 = vrot.lane.b32.xlu0 %v2395, 94
        %v2419 = vpop.permute.xlu0 %2418
        %2420 = vrot.lane.b32.xlu0 %v2406, 94
        %v2421 = vpop.permute.xlu0 %2420
        %2422 = vrot.lane.b32.xlu0 %v2396, 94
        %v2423 = vpop.permute.xlu0 %2422
        %2424 = vrot.lane.b32.xlu0 %v2407, 94
        %v2425 = vpop.permute.xlu0 %2424
        %v2426 = vsel %vm1033, %v2409, %v2411
        %v2427 = vsel %vm1033, %v2411, %v2413
        %v2428 = vsel %vm1033, %v2413, %v2415
        %v2429 = vsel %vm1033, %v2415, %v2417
        %v2430 = vsel %vm1033, %v2417, %v2419
        %v2431 = vsel %vm1033, %v2419, %v2421
        %v2432 = vsel %vm1033, %v2421, %v2423
        %v2433 = vsel %vm1033, %v2423, %v2425
        %2442 = vst [vmem:[#allocation3 + $0x480] sm:$0xf0] %v2426
        %2443 = vst [vmem:[#allocation3 + $0x488] sm:$0xf0] %v2427
        %2444 = vst [vmem:[#allocation3 + $0x490] sm:$0xf0] %v2428
        %2445 = vst [vmem:[#allocation3 + $0x498] sm:$0xf0] %v2429
        %2446 = vst [vmem:[#allocation3 + $0x4a0] sm:$0xf0] %v2430
        %2447 = vst [vmem:[#allocation3 + $0x4a8] sm:$0xf0] %v2431
        %2448 = vst [vmem:[#allocation3 + $0x4b0] sm:$0xf0] %v2432
        %2449 = vst [vmem:[#allocation3 + $0x4b8] sm:$0xf0] %v2433
        %v2450 = vld [vmem:[#allocation2 + $0x8] sm:$0xff]
        %v2451 = vld [vmem:[#allocation2 + $0x10] sm:$0xff]
        %v2452 = vld [vmem:[#allocation2 + $0x18] sm:$0xff]
        %v2453 = vld [vmem:[#allocation2 + $0x20] sm:$0xff]
        %v2454 = vld [vmem:[#allocation2 + $0x28] sm:$0xf]
        %v2460 = vcombine.high %v2450, %v2450
        %v2461 = vcombine.high %v2451, %v2451
        %v2462 = vcombine.high %v2452, %v2452
        %v2463 = vcombine.high %v2453, %v2453
        %2464 = vrot.lane.b32.xlu0 %v2450, 93
        %v2465 = vpop.permute.xlu0 %2464
        %2466 = vrot.lane.b32.xlu0 %v2460, 93
        %v2467 = vpop.permute.xlu0 %2466
        %2468 = vrot.lane.b32.xlu0 %v2451, 93
        %v2469 = vpop.permute.xlu0 %2468
        %2470 = vrot.lane.b32.xlu0 %v2461, 93
        %v2471 = vpop.permute.xlu0 %2470
        %2472 = vrot.lane.b32.xlu0 %v2452, 93
        %v2473 = vpop.permute.xlu0 %2472
        %2474 = vrot.lane.b32.xlu0 %v2462, 93
        %v2475 = vpop.permute.xlu0 %2474
        %2476 = vrot.lane.b32.xlu0 %v2453, 93
        %v2477 = vpop.permute.xlu0 %2476
        %2478 = vrot.lane.b32.xlu0 %v2463, 93
        %v2479 = vpop.permute.xlu0 %2478
        %2480 = vrot.lane.b32.xlu0 %v2454, 93
        %v2481 = vpop.permute.xlu0 %2480
        %v2482 = vsel %vm1091, %v2465, %v2467
        %v2483 = vsel %vm1091, %v2467, %v2469
        %v2484 = vsel %vm1091, %v2469, %v2471
        %v2485 = vsel %vm1091, %v2471, %v2473
        %v2486 = vsel %vm1091, %v2473, %v2475
        %v2487 = vsel %vm1091, %v2475, %v2477
        %v2488 = vsel %vm1091, %v2477, %v2479
        %v2489 = vsel %vm1091, %v2479, %v2481
        %2498 = vst [vmem:[#allocation3 + $0x4c0] sm:$0xf] %v2482
        %2499 = vst [vmem:[#allocation3 + $0x4c8] sm:$0xf] %v2483
        %2500 = vst [vmem:[#allocation3 + $0x4d0] sm:$0xf] %v2484
        %2501 = vst [vmem:[#allocation3 + $0x4d8] sm:$0xf] %v2485
        %2502 = vst [vmem:[#allocation3 + $0x4e0] sm:$0xf] %v2486
        %2503 = vst [vmem:[#allocation3 + $0x4e8] sm:$0xf] %v2487
        %2504 = vst [vmem:[#allocation3 + $0x4f0] sm:$0xf] %v2488
        %2505 = vst [vmem:[#allocation3 + $0x4f8] sm:$0xf] %v2489
        %v2506 = vld [vmem:[#allocation2 + $0x8] sm:$0xff]
        %v2507 = vld [vmem:[#allocation2 + $0x10] sm:$0xff]
        %v2508 = vld [vmem:[#allocation2 + $0x18] sm:$0xff]
        %v2509 = vld [vmem:[#allocation2 + $0x20] sm:$0xff]
        %v2510 = vld [vmem:[#allocation2 + $0x28] sm:$0xf]
        %v2516 = vcombine.low %v2506, %v2506
        %v2517 = vcombine.low %v2507, %v2507
        %v2518 = vcombine.low %v2508, %v2508
        %v2519 = vcombine.low %v2509, %v2509
        %v2520 = vcombine.low %v2510, %v2510
        %2521 = vrot.lane.b32.xlu0 %v2516, 92
        %v2522 = vpop.permute.xlu0 %2521
        %2523 = vrot.lane.b32.xlu0 %v2506, 92
        %v2524 = vpop.permute.xlu0 %2523
        %2525 = vrot.lane.b32.xlu0 %v2517, 92
        %v2526 = vpop.permute.xlu0 %2525
        %2527 = vrot.lane.b32.xlu0 %v2507, 92
        %v2528 = vpop.permute.xlu0 %2527
        %2529 = vrot.lane.b32.xlu0 %v2518, 92
        %v2530 = vpop.permute.xlu0 %2529
        %2531 = vrot.lane.b32.xlu0 %v2508, 92
        %v2532 = vpop.permute.xlu0 %2531
        %2533 = vrot.lane.b32.xlu0 %v2519, 92
        %v2534 = vpop.permute.xlu0 %2533
        %2535 = vrot.lane.b32.xlu0 %v2509, 92
        %v2536 = vpop.permute.xlu0 %2535
        %2537 = vrot.lane.b32.xlu0 %v2520, 92
        %v2538 = vpop.permute.xlu0 %2537
        %v2539 = vsel %vm1148, %v2522, %v2524
        %v2540 = vsel %vm1148, %v2524, %v2526
        %v2541 = vsel %vm1148, %v2526, %v2528
        %v2542 = vsel %vm1148, %v2528, %v2530
        %v2543 = vsel %vm1148, %v2530, %v2532
        %v2544 = vsel %vm1148, %v2532, %v2534
        %v2545 = vsel %vm1148, %v2534, %v2536
        %v2546 = vsel %vm1148, %v2536, %v2538
        %2555 = vst [vmem:[#allocation3 + $0x4c0] sm:$0xf0] %v2539
        %2556 = vst [vmem:[#allocation3 + $0x4c8] sm:$0xf0] %v2540
        %2557 = vst [vmem:[#allocation3 + $0x4d0] sm:$0xf0] %v2541
        %2558 = vst [vmem:[#allocation3 + $0x4d8] sm:$0xf0] %v2542
        %2559 = vst [vmem:[#allocation3 + $0x4e0] sm:$0xf0] %v2543
        %2560 = vst [vmem:[#allocation3 + $0x4e8] sm:$0xf0] %v2544
        %2561 = vst [vmem:[#allocation3 + $0x4f0] sm:$0xf0] %v2545
        %2562 = vst [vmem:[#allocation3 + $0x4f8] sm:$0xf0] %v2546
        %v2563 = vld [vmem:[#allocation2 + $0x8] sm:$0xff]
        %v2564 = vld [vmem:[#allocation2 + $0x10] sm:$0xff]
        %v2565 = vld [vmem:[#allocation2 + $0x18] sm:$0xff]
        %v2566 = vld [vmem:[#allocation2 + $0x20] sm:$0xff]
        %v2567 = vld [vmem:[#allocation2 + $0x28] sm:$0xf]
        %v2573 = vcombine.high %v2563, %v2563
        %v2574 = vcombine.high %v2564, %v2564
        %v2575 = vcombine.high %v2565, %v2565
        %v2576 = vcombine.high %v2566, %v2566
        %2577 = vrot.lane.b32.xlu0 %v2563, 80
        %v2578 = vpop.permute.xlu0 %2577
        %2579 = vrot.lane.b32.xlu0 %v2573, 80
        %v2580 = vpop.permute.xlu0 %2579
        %2581 = vrot.lane.b32.xlu0 %v2564, 80
        %v2582 = vpop.permute.xlu0 %2581
        %2583 = vrot.lane.b32.xlu0 %v2574, 80
        %v2584 = vpop.permute.xlu0 %2583
        %2585 = vrot.lane.b32.xlu0 %v2565, 80
        %v2586 = vpop.permute.xlu0 %2585
        %2587 = vrot.lane.b32.xlu0 %v2575, 80
        %v2588 = vpop.permute.xlu0 %2587
        %2589 = vrot.lane.b32.xlu0 %v2566, 80
        %v2590 = vpop.permute.xlu0 %2589
        %2591 = vrot.lane.b32.xlu0 %v2576, 80
        %v2592 = vpop.permute.xlu0 %2591
        %2593 = vrot.lane.b32.xlu0 %v2567, 80
        %v2594 = vpop.permute.xlu0 %2593
        %v2595 = vsel %vm1206, %v2578, %v2580
        %v2596 = vsel %vm1206, %v2580, %v2582
        %v2597 = vsel %vm1206, %v2582, %v2584
        %v2598 = vsel %vm1206, %v2584, %v2586
        %v2599 = vsel %vm1206, %v2586, %v2588
        %v2600 = vsel %vm1206, %v2588, %v2590
        %v2601 = vsel %vm1206, %v2590, %v2592
        %v2602 = vsel %vm1206, %v2592, %v2594
        %2611 = vst [vmem:[#allocation3 + $0x500] sm:$0xf] %v2595
        %2612 = vst [vmem:[#allocation3 + $0x508] sm:$0xf] %v2596
        %2613 = vst [vmem:[#allocation3 + $0x510] sm:$0xf] %v2597
        %2614 = vst [vmem:[#allocation3 + $0x518] sm:$0xf] %v2598
        %2615 = vst [vmem:[#allocation3 + $0x520] sm:$0xf] %v2599
        %2616 = vst [vmem:[#allocation3 + $0x528] sm:$0xf] %v2600
        %2617 = vst [vmem:[#allocation3 + $0x530] sm:$0xf] %v2601
        %2618 = vst [vmem:[#allocation3 + $0x538] sm:$0xf] %v2602
        %v2619 = vld [vmem:[#allocation2 + $0x8] sm:$0xff]
        %v2620 = vld [vmem:[#allocation2 + $0x10] sm:$0xff]
        %v2621 = vld [vmem:[#allocation2 + $0x18] sm:$0xff]
        %v2622 = vld [vmem:[#allocation2 + $0x20] sm:$0xff]
        %v2623 = vld [vmem:[#allocation2 + $0x28] sm:$0xf]
        %v2629 = vcombine.low %v2619, %v2619
        %v2630 = vcombine.low %v2620, %v2620
        %v2631 = vcombine.low %v2621, %v2621
        %v2632 = vcombine.low %v2622, %v2622
        %v2633 = vcombine.low %v2623, %v2623
        %2634 = vrot.lane.b32.xlu0 %v2629, 79
        %v2635 = vpop.permute.xlu0 %2634
        %2636 = vrot.lane.b32.xlu0 %v2619, 79
        %v2637 = vpop.permute.xlu0 %2636
        %2638 = vrot.lane.b32.xlu0 %v2630, 79
        %v2639 = vpop.permute.xlu0 %2638
        %2640 = vrot.lane.b32.xlu0 %v2620, 79
        %v2641 = vpop.permute.xlu0 %2640
        %2642 = vrot.lane.b32.xlu0 %v2631, 79
        %v2643 = vpop.permute.xlu0 %2642
        %2644 = vrot.lane.b32.xlu0 %v2621, 79
        %v2645 = vpop.permute.xlu0 %2644
        %2646 = vrot.lane.b32.xlu0 %v2632, 79
        %v2647 = vpop.permute.xlu0 %2646
        %2648 = vrot.lane.b32.xlu0 %v2622, 79
        %v2649 = vpop.permute.xlu0 %2648
        %2650 = vrot.lane.b32.xlu0 %v2633, 79
        %v2651 = vpop.permute.xlu0 %2650
        %v2652 = vsel %vm1263, %v2635, %v2637
        %v2653 = vsel %vm1263, %v2637, %v2639
        %v2654 = vsel %vm1263, %v2639, %v2641
        %v2655 = vsel %vm1263, %v2641, %v2643
        %v2656 = vsel %vm1263, %v2643, %v2645
        %v2657 = vsel %vm1263, %v2645, %v2647
        %v2658 = vsel %vm1263, %v2647, %v2649
        %v2659 = vsel %vm1263, %v2649, %v2651
        %2668 = vst [vmem:[#allocation3 + $0x500] sm:$0xf0] %v2652
        %2669 = vst [vmem:[#allocation3 + $0x508] sm:$0xf0] %v2653
        %2670 = vst [vmem:[#allocation3 + $0x510] sm:$0xf0] %v2654
        %2671 = vst [vmem:[#allocation3 + $0x518] sm:$0xf0] %v2655
        %2672 = vst [vmem:[#allocation3 + $0x520] sm:$0xf0] %v2656
        %2673 = vst [vmem:[#allocation3 + $0x528] sm:$0xf0] %v2657
        %2674 = vst [vmem:[#allocation3 + $0x530] sm:$0xf0] %v2658
        %2675 = vst [vmem:[#allocation3 + $0x538] sm:$0xf0] %v2659
        %v2676 = vld [vmem:[#allocation2 + $0x8] sm:$0xff]
        %v2677 = vld [vmem:[#allocation2 + $0x10] sm:$0xff]
        %v2678 = vld [vmem:[#allocation2 + $0x18] sm:$0xff]
        %v2679 = vld [vmem:[#allocation2 + $0x20] sm:$0xff]
        %v2680 = vld [vmem:[#allocation2 + $0x28] sm:$0xf]
        %v2686 = vcombine.high %v2676, %v2676
        %v2687 = vcombine.high %v2677, %v2677
        %v2688 = vcombine.high %v2678, %v2678
        %v2689 = vcombine.high %v2679, %v2679
        %2690 = vrot.lane.b32.xlu0 %v2676, 78
        %v2691 = vpop.permute.xlu0 %2690
        %2692 = vrot.lane.b32.xlu0 %v2686, 78
        %v2693 = vpop.permute.xlu0 %2692
        %2694 = vrot.lane.b32.xlu0 %v2677, 78
        %v2695 = vpop.permute.xlu0 %2694
        %2696 = vrot.lane.b32.xlu0 %v2687, 78
        %v2697 = vpop.permute.xlu0 %2696
        %2698 = vrot.lane.b32.xlu0 %v2678, 78
        %v2699 = vpop.permute.xlu0 %2698
        %2700 = vrot.lane.b32.xlu0 %v2688, 78
        %v2701 = vpop.permute.xlu0 %2700
        %2702 = vrot.lane.b32.xlu0 %v2679, 78
        %v2703 = vpop.permute.xlu0 %2702
        %2704 = vrot.lane.b32.xlu0 %v2689, 78
        %v2705 = vpop.permute.xlu0 %2704
        %2706 = vrot.lane.b32.xlu0 %v2680, 78
        %v2707 = vpop.permute.xlu0 %2706
        %v2708 = vsel %vm1321, %v2691, %v2693
        %v2709 = vsel %vm1321, %v2693, %v2695
        %v2710 = vsel %vm1321, %v2695, %v2697
        %v2711 = vsel %vm1321, %v2697, %v2699
        %v2712 = vsel %vm1321, %v2699, %v2701
        %v2713 = vsel %vm1321, %v2701, %v2703
        %v2714 = vsel %vm1321, %v2703, %v2705
        %v2715 = vsel %vm1321, %v2705, %v2707
        %2724 = vst [vmem:[#allocation3 + $0x540] sm:$0xf] %v2708
        %2725 = vst [vmem:[#allocation3 + $0x548] sm:$0xf] %v2709
        %2726 = vst [vmem:[#allocation3 + $0x550] sm:$0xf] %v2710
        %2727 = vst [vmem:[#allocation3 + $0x558] sm:$0xf] %v2711
        %2728 = vst [vmem:[#allocation3 + $0x560] sm:$0xf] %v2712
        %2729 = vst [vmem:[#allocation3 + $0x568] sm:$0xf] %v2713
        %2730 = vst [vmem:[#allocation3 + $0x570] sm:$0xf] %v2714
        %2731 = vst [vmem:[#allocation3 + $0x578] sm:$0xf] %v2715
        %v2732 = vld [vmem:[#allocation2 + $0x8] sm:$0xff]
        %v2733 = vld [vmem:[#allocation2 + $0x10] sm:$0xff]
        %v2734 = vld [vmem:[#allocation2 + $0x18] sm:$0xff]
        %v2735 = vld [vmem:[#allocation2 + $0x20] sm:$0xff]
        %v2736 = vld [vmem:[#allocation2 + $0x28] sm:$0xf]
        %v2742 = vcombine.low %v2732, %v2732
        %v2743 = vcombine.low %v2733, %v2733
        %v2744 = vcombine.low %v2734, %v2734
        %v2745 = vcombine.low %v2735, %v2735
        %v2746 = vcombine.low %v2736, %v2736
        %2747 = vrot.lane.b32.xlu0 %v2742, 77
        %v2748 = vpop.permute.xlu0 %2747
        %2749 = vrot.lane.b32.xlu0 %v2732, 77
        %v2750 = vpop.permute.xlu0 %2749
        %2751 = vrot.lane.b32.xlu0 %v2743, 77
        %v2752 = vpop.permute.xlu0 %2751
        %2753 = vrot.lane.b32.xlu0 %v2733, 77
        %v2754 = vpop.permute.xlu0 %2753
        %2755 = vrot.lane.b32.xlu0 %v2744, 77
        %v2756 = vpop.permute.xlu0 %2755
        %2757 = vrot.lane.b32.xlu0 %v2734, 77
        %v2758 = vpop.permute.xlu0 %2757
        %2759 = vrot.lane.b32.xlu0 %v2745, 77
        %v2760 = vpop.permute.xlu0 %2759
        %2761 = vrot.lane.b32.xlu0 %v2735, 77
        %v2762 = vpop.permute.xlu0 %2761
        %2763 = vrot.lane.b32.xlu0 %v2746, 77
        %v2764 = vpop.permute.xlu0 %2763
        %v2765 = vsel %vm1378, %v2748, %v2750
        %v2766 = vsel %vm1378, %v2750, %v2752
        %v2767 = vsel %vm1378, %v2752, %v2754
        %v2768 = vsel %vm1378, %v2754, %v2756
        %v2769 = vsel %vm1378, %v2756, %v2758
        %v2770 = vsel %vm1378, %v2758, %v2760
        %v2771 = vsel %vm1378, %v2760, %v2762
        %v2772 = vsel %vm1378, %v2762, %v2764
        %2781 = vst [vmem:[#allocation3 + $0x540] sm:$0xf0] %v2765
        %2782 = vst [vmem:[#allocation3 + $0x548] sm:$0xf0] %v2766
        %2783 = vst [vmem:[#allocation3 + $0x550] sm:$0xf0] %v2767
        %2784 = vst [vmem:[#allocation3 + $0x558] sm:$0xf0] %v2768
        %2785 = vst [vmem:[#allocation3 + $0x560] sm:$0xf0] %v2769
        %2786 = vst [vmem:[#allocation3 + $0x568] sm:$0xf0] %v2770
        %2787 = vst [vmem:[#allocation3 + $0x570] sm:$0xf0] %v2771
        %2788 = vst [vmem:[#allocation3 + $0x578] sm:$0xf0] %v2772
        %v2789 = vld [vmem:[#allocation2 + $0x8] sm:$0xff]
        %v2790 = vld [vmem:[#allocation2 + $0x10] sm:$0xff]
        %v2791 = vld [vmem:[#allocation2 + $0x18] sm:$0xff]
        %v2792 = vld [vmem:[#allocation2 + $0x20] sm:$0xff]
        %v2793 = vld [vmem:[#allocation2 + $0x28] sm:$0xf]
        %v2799 = vcombine.high %v2789, %v2789
        %v2800 = vcombine.high %v2790, %v2790
        %v2801 = vcombine.high %v2791, %v2791
        %v2802 = vcombine.high %v2792, %v2792
        %2803 = vrot.lane.b32.xlu0 %v2789, 76
        %v2804 = vpop.permute.xlu0 %2803
        %2805 = vrot.lane.b32.xlu0 %v2799, 76
        %v2806 = vpop.permute.xlu0 %2805
        %2807 = vrot.lane.b32.xlu0 %v2790, 76
        %v2808 = vpop.permute.xlu0 %2807
        %2809 = vrot.lane.b32.xlu0 %v2800, 76
        %v2810 = vpop.permute.xlu0 %2809
        %2811 = vrot.lane.b32.xlu0 %v2791, 76
        %v2812 = vpop.permute.xlu0 %2811
        %2813 = vrot.lane.b32.xlu0 %v2801, 76
        %v2814 = vpop.permute.xlu0 %2813
        %2815 = vrot.lane.b32.xlu0 %v2792, 76
        %v2816 = vpop.permute.xlu0 %2815
        %2817 = vrot.lane.b32.xlu0 %v2802, 76
        %v2818 = vpop.permute.xlu0 %2817
        %2819 = vrot.lane.b32.xlu0 %v2793, 76
        %v2820 = vpop.permute.xlu0 %2819
        %v2821 = vsel %vm1436, %v2804, %v2806
        %v2822 = vsel %vm1436, %v2806, %v2808
        %v2823 = vsel %vm1436, %v2808, %v2810
        %v2824 = vsel %vm1436, %v2810, %v2812
        %v2825 = vsel %vm1436, %v2812, %v2814
        %v2826 = vsel %vm1436, %v2814, %v2816
        %v2827 = vsel %vm1436, %v2816, %v2818
        %v2828 = vsel %vm1436, %v2818, %v2820
        %2837 = vst [vmem:[#allocation3 + $0x580] sm:$0xf] %v2821
        %2838 = vst [vmem:[#allocation3 + $0x588] sm:$0xf] %v2822
        %2839 = vst [vmem:[#allocation3 + $0x590] sm:$0xf] %v2823
        %2840 = vst [vmem:[#allocation3 + $0x598] sm:$0xf] %v2824
        %2841 = vst [vmem:[#allocation3 + $0x5a0] sm:$0xf] %v2825
        %2842 = vst [vmem:[#allocation3 + $0x5a8] sm:$0xf] %v2826
        %2843 = vst [vmem:[#allocation3 + $0x5b0] sm:$0xf] %v2827
        %2844 = vst [vmem:[#allocation3 + $0x5b8] sm:$0xf] %v2828
        %v2845 = vld [vmem:[#allocation2 + $0x8] sm:$0xff]
        %v2846 = vld [vmem:[#allocation2 + $0x10] sm:$0xff]
        %v2847 = vld [vmem:[#allocation2 + $0x18] sm:$0xff]
        %v2848 = vld [vmem:[#allocation2 + $0x20] sm:$0xff]
        %v2849 = vld [vmem:[#allocation2 + $0x28] sm:$0xf]
        %v2855 = vcombine.low %v2845, %v2845
        %v2856 = vcombine.low %v2846, %v2846
        %v2857 = vcombine.low %v2847, %v2847
        %v2858 = vcombine.low %v2848, %v2848
        %v2859 = vcombine.low %v2849, %v2849
        %2860 = vrot.lane.b32.xlu0 %v2855, 64
        %v2861 = vpop.permute.xlu0 %2860
        %2862 = vrot.lane.b32.xlu0 %v2845, 64
        %v2863 = vpop.permute.xlu0 %2862
        %2864 = vrot.lane.b32.xlu0 %v2856, 64
        %v2865 = vpop.permute.xlu0 %2864
        %2866 = vrot.lane.b32.xlu0 %v2846, 64
        %v2867 = vpop.permute.xlu0 %2866
        %2868 = vrot.lane.b32.xlu0 %v2857, 64
        %v2869 = vpop.permute.xlu0 %2868
        %2870 = vrot.lane.b32.xlu0 %v2847, 64
        %v2871 = vpop.permute.xlu0 %2870
        %2872 = vrot.lane.b32.xlu0 %v2858, 64
        %v2873 = vpop.permute.xlu0 %2872
        %2874 = vrot.lane.b32.xlu0 %v2848, 64
        %v2875 = vpop.permute.xlu0 %2874
        %2876 = vrot.lane.b32.xlu0 %v2859, 64
        %v2877 = vpop.permute.xlu0 %2876
        %v2878 = vsel %vm1493, %v2861, %v2863
        %v2879 = vsel %vm1493, %v2863, %v2865
        %v2880 = vsel %vm1493, %v2865, %v2867
        %v2881 = vsel %vm1493, %v2867, %v2869
        %v2882 = vsel %vm1493, %v2869, %v2871
        %v2883 = vsel %vm1493, %v2871, %v2873
        %v2884 = vsel %vm1493, %v2873, %v2875
        %v2885 = vsel %vm1493, %v2875, %v2877
        %2894 = vst [vmem:[#allocation3 + $0x580] sm:$0xf0] %v2878
        %2895 = vst [vmem:[#allocation3 + $0x588] sm:$0xf0] %v2879
        %2896 = vst [vmem:[#allocation3 + $0x590] sm:$0xf0] %v2880
        %2897 = vst [vmem:[#allocation3 + $0x598] sm:$0xf0] %v2881
        %2898 = vst [vmem:[#allocation3 + $0x5a0] sm:$0xf0] %v2882
        %2899 = vst [vmem:[#allocation3 + $0x5a8] sm:$0xf0] %v2883
        %2900 = vst [vmem:[#allocation3 + $0x5b0] sm:$0xf0] %v2884
        %2901 = vst [vmem:[#allocation3 + $0x5b8] sm:$0xf0] %v2885
        %v2902 = vld [vmem:[#allocation2 + $0x8] sm:$0xff]
        %v2903 = vld [vmem:[#allocation2 + $0x10] sm:$0xff]
        %v2904 = vld [vmem:[#allocation2 + $0x18] sm:$0xff]
        %v2905 = vld [vmem:[#allocation2 + $0x20] sm:$0xff]
        %v2906 = vld [vmem:[#allocation2 + $0x28] sm:$0xf]
        %v2912 = vcombine.high %v2902, %v2902
        %v2913 = vcombine.high %v2903, %v2903
        %v2914 = vcombine.high %v2904, %v2904
        %v2915 = vcombine.high %v2905, %v2905
        %2916 = vrot.lane.b32.xlu0 %v2902, 63
        %v2917 = vpop.permute.xlu0 %2916
        %2918 = vrot.lane.b32.xlu0 %v2912, 63
        %v2919 = vpop.permute.xlu0 %2918
        %2920 = vrot.lane.b32.xlu0 %v2903, 63
        %v2921 = vpop.permute.xlu0 %2920
        %2922 = vrot.lane.b32.xlu0 %v2913, 63
        %v2923 = vpop.permute.xlu0 %2922
        %2924 = vrot.lane.b32.xlu0 %v2904, 63
        %v2925 = vpop.permute.xlu0 %2924
        %2926 = vrot.lane.b32.xlu0 %v2914, 63
        %v2927 = vpop.permute.xlu0 %2926
        %2928 = vrot.lane.b32.xlu0 %v2905, 63
        %v2929 = vpop.permute.xlu0 %2928
        %2930 = vrot.lane.b32.xlu0 %v2915, 63
        %v2931 = vpop.permute.xlu0 %2930
        %2932 = vrot.lane.b32.xlu0 %v2906, 63
        %v2933 = vpop.permute.xlu0 %2932
        %v2934 = vsel %vm1551, %v2917, %v2919
        %v2935 = vsel %vm1551, %v2919, %v2921
        %v2936 = vsel %vm1551, %v2921, %v2923
        %v2937 = vsel %vm1551, %v2923, %v2925
        %v2938 = vsel %vm1551, %v2925, %v2927
        %v2939 = vsel %vm1551, %v2927, %v2929
        %v2940 = vsel %vm1551, %v2929, %v2931
        %v2941 = vsel %vm1551, %v2931, %v2933
        %2950 = vst [vmem:[#allocation3 + $0x5c0] sm:$0xf] %v2934
        %2951 = vst [vmem:[#allocation3 + $0x5c8] sm:$0xf] %v2935
        %2952 = vst [vmem:[#allocation3 + $0x5d0] sm:$0xf] %v2936
        %2953 = vst [vmem:[#allocation3 + $0x5d8] sm:$0xf] %v2937
        %2954 = vst [vmem:[#allocation3 + $0x5e0] sm:$0xf] %v2938
        %2955 = vst [vmem:[#allocation3 + $0x5e8] sm:$0xf] %v2939
        %2956 = vst [vmem:[#allocation3 + $0x5f0] sm:$0xf] %v2940
        %2957 = vst [vmem:[#allocation3 + $0x5f8] sm:$0xf] %v2941
        %v2958 = vld [vmem:[#allocation2 + $0x8] sm:$0xff]
        %v2959 = vld [vmem:[#allocation2 + $0x10] sm:$0xff]
        %v2960 = vld [vmem:[#allocation2 + $0x18] sm:$0xff]
        %v2961 = vld [vmem:[#allocation2 + $0x20] sm:$0xff]
        %v2962 = vld [vmem:[#allocation2 + $0x28] sm:$0xf]
        %v2968 = vcombine.low %v2958, %v2958
        %v2969 = vcombine.low %v2959, %v2959
        %v2970 = vcombine.low %v2960, %v2960
        %v2971 = vcombine.low %v2961, %v2961
        %v2972 = vcombine.low %v2962, %v2962
        %2973 = vrot.lane.b32.xlu0 %v2968, 62
        %v2974 = vpop.permute.xlu0 %2973
        %2975 = vrot.lane.b32.xlu0 %v2958, 62
        %v2976 = vpop.permute.xlu0 %2975
        %2977 = vrot.lane.b32.xlu0 %v2969, 62
        %v2978 = vpop.permute.xlu0 %2977
        %2979 = vrot.lane.b32.xlu0 %v2959, 62
        %v2980 = vpop.permute.xlu0 %2979
        %2981 = vrot.lane.b32.xlu0 %v2970, 62
        %v2982 = vpop.permute.xlu0 %2981
        %2983 = vrot.lane.b32.xlu0 %v2960, 62
        %v2984 = vpop.permute.xlu0 %2983
        %2985 = vrot.lane.b32.xlu0 %v2971, 62
        %v2986 = vpop.permute.xlu0 %2985
        %2987 = vrot.lane.b32.xlu0 %v2961, 62
        %v2988 = vpop.permute.xlu0 %2987
        %2989 = vrot.lane.b32.xlu0 %v2972, 62
        %v2990 = vpop.permute.xlu0 %2989
        %v2991 = vsel %vm1608, %v2974, %v2976
        %v2992 = vsel %vm1608, %v2976, %v2978
        %v2993 = vsel %vm1608, %v2978, %v2980
        %v2994 = vsel %vm1608, %v2980, %v2982
        %v2995 = vsel %vm1608, %v2982, %v2984
        %v2996 = vsel %vm1608, %v2984, %v2986
        %v2997 = vsel %vm1608, %v2986, %v2988
        %v2998 = vsel %vm1608, %v2988, %v2990
        %3007 = vst [vmem:[#allocation3 + $0x5c0] sm:$0xf0] %v2991
        %3008 = vst [vmem:[#allocation3 + $0x5c8] sm:$0xf0] %v2992
        %3009 = vst [vmem:[#allocation3 + $0x5d0] sm:$0xf0] %v2993
        %3010 = vst [vmem:[#allocation3 + $0x5d8] sm:$0xf0] %v2994
        %3011 = vst [vmem:[#allocation3 + $0x5e0] sm:$0xf0] %v2995
        %3012 = vst [vmem:[#allocation3 + $0x5e8] sm:$0xf0] %v2996
        %3013 = vst [vmem:[#allocation3 + $0x5f0] sm:$0xf0] %v2997
        %3014 = vst [vmem:[#allocation3 + $0x5f8] sm:$0xf0] %v2998
        %v3015 = vld [vmem:[#allocation2 + $0x8] sm:$0xff]
        %v3016 = vld [vmem:[#allocation2 + $0x10] sm:$0xff]
        %v3017 = vld [vmem:[#allocation2 + $0x18] sm:$0xff]
        %v3018 = vld [vmem:[#allocation2 + $0x20] sm:$0xff]
        %v3019 = vld [vmem:[#allocation2 + $0x28] sm:$0xf]
        %v3025 = vcombine.high %v3015, %v3015
        %v3026 = vcombine.high %v3016, %v3016
        %v3027 = vcombine.high %v3017, %v3017
        %v3028 = vcombine.high %v3018, %v3018
        %3029 = vrot.lane.b32.xlu0 %v3015, 61
        %v3030 = vpop.permute.xlu0 %3029
        %3031 = vrot.lane.b32.xlu0 %v3025, 61
        %v3032 = vpop.permute.xlu0 %3031
        %3033 = vrot.lane.b32.xlu0 %v3016, 61
        %v3034 = vpop.permute.xlu0 %3033
        %3035 = vrot.lane.b32.xlu0 %v3026, 61
        %v3036 = vpop.permute.xlu0 %3035
        %3037 = vrot.lane.b32.xlu0 %v3017, 61
        %v3038 = vpop.permute.xlu0 %3037
        %3039 = vrot.lane.b32.xlu0 %v3027, 61
        %v3040 = vpop.permute.xlu0 %3039
        %3041 = vrot.lane.b32.xlu0 %v3018, 61
        %v3042 = vpop.permute.xlu0 %3041
        %3043 = vrot.lane.b32.xlu0 %v3028, 61
        %v3044 = vpop.permute.xlu0 %3043
        %3045 = vrot.lane.b32.xlu0 %v3019, 61
        %v3046 = vpop.permute.xlu0 %3045
        %v3047 = vsel %vm1666, %v3030, %v3032
        %v3048 = vsel %vm1666, %v3032, %v3034
        %v3049 = vsel %vm1666, %v3034, %v3036
        %v3050 = vsel %vm1666, %v3036, %v3038
        %v3051 = vsel %vm1666, %v3038, %v3040
        %v3052 = vsel %vm1666, %v3040, %v3042
        %v3053 = vsel %vm1666, %v3042, %v3044
        %v3054 = vsel %vm1666, %v3044, %v3046
        %3063 = vst [vmem:[#allocation3 + $0x600] sm:$0xf] %v3047
        %3064 = vst [vmem:[#allocation3 + $0x608] sm:$0xf] %v3048
        %3065 = vst [vmem:[#allocation3 + $0x610] sm:$0xf] %v3049
        %3066 = vst [vmem:[#allocation3 + $0x618] sm:$0xf] %v3050
        %3067 = vst [vmem:[#allocation3 + $0x620] sm:$0xf] %v3051
        %3068 = vst [vmem:[#allocation3 + $0x628] sm:$0xf] %v3052
        %3069 = vst [vmem:[#allocation3 + $0x630] sm:$0xf] %v3053
        %3070 = vst [vmem:[#allocation3 + $0x638] sm:$0xf] %v3054
        %v3071 = vld [vmem:[#allocation2 + $0x8] sm:$0xff]
        %v3072 = vld [vmem:[#allocation2 + $0x10] sm:$0xff]
        %v3073 = vld [vmem:[#allocation2 + $0x18] sm:$0xff]
        %v3074 = vld [vmem:[#allocation2 + $0x20] sm:$0xff]
        %v3075 = vld [vmem:[#allocation2 + $0x28] sm:$0xf]
        %v3081 = vcombine.low %v3071, %v3071
        %v3082 = vcombine.low %v3072, %v3072
        %v3083 = vcombine.low %v3073, %v3073
        %v3084 = vcombine.low %v3074, %v3074
        %v3085 = vcombine.low %v3075, %v3075
        %3086 = vrot.lane.b32.xlu0 %v3081, 60
        %v3087 = vpop.permute.xlu0 %3086
        %3088 = vrot.lane.b32.xlu0 %v3071, 60
        %v3089 = vpop.permute.xlu0 %3088
        %3090 = vrot.lane.b32.xlu0 %v3082, 60
        %v3091 = vpop.permute.xlu0 %3090
        %3092 = vrot.lane.b32.xlu0 %v3072, 60
        %v3093 = vpop.permute.xlu0 %3092
        %3094 = vrot.lane.b32.xlu0 %v3083, 60
        %v3095 = vpop.permute.xlu0 %3094
        %3096 = vrot.lane.b32.xlu0 %v3073, 60
        %v3097 = vpop.permute.xlu0 %3096
        %3098 = vrot.lane.b32.xlu0 %v3084, 60
        %v3099 = vpop.permute.xlu0 %3098
        %3100 = vrot.lane.b32.xlu0 %v3074, 60
        %v3101 = vpop.permute.xlu0 %3100
        %3102 = vrot.lane.b32.xlu0 %v3085, 60
        %v3103 = vpop.permute.xlu0 %3102
        %v3104 = vsel %vm1723, %v3087, %v3089
        %v3105 = vsel %vm1723, %v3089, %v3091
        %v3106 = vsel %vm1723, %v3091, %v3093
        %v3107 = vsel %vm1723, %v3093, %v3095
        %v3108 = vsel %vm1723, %v3095, %v3097
        %v3109 = vsel %vm1723, %v3097, %v3099
        %v3110 = vsel %vm1723, %v3099, %v3101
        %v3111 = vsel %vm1723, %v3101, %v3103
        %3120 = vst [vmem:[#allocation3 + $0x600] sm:$0xf0] %v3104
        %3121 = vst [vmem:[#allocation3 + $0x608] sm:$0xf0] %v3105
        %3122 = vst [vmem:[#allocation3 + $0x610] sm:$0xf0] %v3106
        %3123 = vst [vmem:[#allocation3 + $0x618] sm:$0xf0] %v3107
        %3124 = vst [vmem:[#allocation3 + $0x620] sm:$0xf0] %v3108
        %3125 = vst [vmem:[#allocation3 + $0x628] sm:$0xf0] %v3109
        %3126 = vst [vmem:[#allocation3 + $0x630] sm:$0xf0] %v3110
        %3127 = vst [vmem:[#allocation3 + $0x638] sm:$0xf0] %v3111
        %v3128 = vld [vmem:[#allocation2 + $0x10] sm:$0xff]
        %v3129 = vld [vmem:[#allocation2 + $0x18] sm:$0xff]
        %v3130 = vld [vmem:[#allocation2 + $0x20] sm:$0xff]
        %v3131 = vld [vmem:[#allocation2 + $0x28] sm:$0xff]
        %v3136 = vcombine.high %v3128, %v3128
        %v3137 = vcombine.high %v3129, %v3129
        %v3138 = vcombine.high %v3130, %v3130
        %v3139 = vcombine.high %v3131, %v3131
        %3144 = vst [vmem:[#allocation3 + $0x640] sm:$0xf] %v3128
        %3145 = vst [vmem:[#allocation3 + $0x648] sm:$0xf] %v3136
        %3146 = vst [vmem:[#allocation3 + $0x650] sm:$0xf] %v3129
        %3147 = vst [vmem:[#allocation3 + $0x658] sm:$0xf] %v3137
        %3148 = vst [vmem:[#allocation3 + $0x660] sm:$0xf] %v3130
        %3149 = vst [vmem:[#allocation3 + $0x668] sm:$0xf] %v3138
        %3150 = vst [vmem:[#allocation3 + $0x670] sm:$0xf] %v3131
        %3151 = vst [vmem:[#allocation3 + $0x678] sm:$0xf] %v3139
        %v3152 = vld [vmem:[#allocation2 + $0x10] sm:$0xff]
        %v3153 = vld [vmem:[#allocation2 + $0x18] sm:$0xff]
        %v3154 = vld [vmem:[#allocation2 + $0x20] sm:$0xff]
        %v3155 = vld [vmem:[#allocation2 + $0x28] sm:$0xff]
        %v3156 = vld [vmem:[#allocation2 + $0x30] sm:$0xf]
        %v3162 = vcombine.low %v3152, %v3152
        %v3163 = vcombine.low %v3153, %v3153
        %v3164 = vcombine.low %v3154, %v3154
        %v3165 = vcombine.low %v3155, %v3155
        %v3166 = vcombine.low %v3156, %v3156
        %3167 = vrot.lane.b32.xlu0 %v3162, 127
        %v3168 = vpop.permute.xlu0 %3167
        %3169 = vrot.lane.b32.xlu0 %v3152, 127
        %v3170 = vpop.permute.xlu0 %3169
        %3171 = vrot.lane.b32.xlu0 %v3163, 127
        %v3172 = vpop.permute.xlu0 %3171
        %3173 = vrot.lane.b32.xlu0 %v3153, 127
        %v3174 = vpop.permute.xlu0 %3173
        %3175 = vrot.lane.b32.xlu0 %v3164, 127
        %v3176 = vpop.permute.xlu0 %3175
        %3177 = vrot.lane.b32.xlu0 %v3154, 127
        %v3178 = vpop.permute.xlu0 %3177
        %3179 = vrot.lane.b32.xlu0 %v3165, 127
        %v3180 = vpop.permute.xlu0 %3179
        %3181 = vrot.lane.b32.xlu0 %v3155, 127
        %v3182 = vpop.permute.xlu0 %3181
        %3183 = vrot.lane.b32.xlu0 %v3166, 127
        %v3184 = vpop.permute.xlu0 %3183
        %v3185 = vsel %vm401, %v3168, %v3170
        %v3186 = vsel %vm401, %v3170, %v3172
        %v3187 = vsel %vm401, %v3172, %v3174
        %v3188 = vsel %vm401, %v3174, %v3176
        %v3189 = vsel %vm401, %v3176, %v3178
        %v3190 = vsel %vm401, %v3178, %v3180
        %v3191 = vsel %vm401, %v3180, %v3182
        %v3192 = vsel %vm401, %v3182, %v3184
        %3201 = vst [vmem:[#allocation3 + $0x640] sm:$0xf0] %v3185
        %3202 = vst [vmem:[#allocation3 + $0x648] sm:$0xf0] %v3186
        %3203 = vst [vmem:[#allocation3 + $0x650] sm:$0xf0] %v3187
        %3204 = vst [vmem:[#allocation3 + $0x658] sm:$0xf0] %v3188
        %3205 = vst [vmem:[#allocation3 + $0x660] sm:$0xf0] %v3189
        %3206 = vst [vmem:[#allocation3 + $0x668] sm:$0xf0] %v3190
        %3207 = vst [vmem:[#allocation3 + $0x670] sm:$0xf0] %v3191
        %3208 = vst [vmem:[#allocation3 + $0x678] sm:$0xf0] %v3192
        %v3209 = vld [vmem:[#allocation2 + $0x10] sm:$0xff]
        %v3210 = vld [vmem:[#allocation2 + $0x18] sm:$0xff]
        %v3211 = vld [vmem:[#allocation2 + $0x20] sm:$0xff]
        %v3212 = vld [vmem:[#allocation2 + $0x28] sm:$0xff]
        %v3213 = vld [vmem:[#allocation2 + $0x30] sm:$0xf]
        %v3219 = vcombine.high %v3209, %v3209
        %v3220 = vcombine.high %v3210, %v3210
        %v3221 = vcombine.high %v3211, %v3211
        %v3222 = vcombine.high %v3212, %v3212
        %3223 = vrot.lane.b32.xlu0 %v3209, 126
        %v3224 = vpop.permute.xlu0 %3223
        %3225 = vrot.lane.b32.xlu0 %v3219, 126
        %v3226 = vpop.permute.xlu0 %3225
        %3227 = vrot.lane.b32.xlu0 %v3210, 126
        %v3228 = vpop.permute.xlu0 %3227
        %3229 = vrot.lane.b32.xlu0 %v3220, 126
        %v3230 = vpop.permute.xlu0 %3229
        %3231 = vrot.lane.b32.xlu0 %v3211, 126
        %v3232 = vpop.permute.xlu0 %3231
        %3233 = vrot.lane.b32.xlu0 %v3221, 126
        %v3234 = vpop.permute.xlu0 %3233
        %3235 = vrot.lane.b32.xlu0 %v3212, 126
        %v3236 = vpop.permute.xlu0 %3235
        %3237 = vrot.lane.b32.xlu0 %v3222, 126
        %v3238 = vpop.permute.xlu0 %3237
        %3239 = vrot.lane.b32.xlu0 %v3213, 126
        %v3240 = vpop.permute.xlu0 %3239
        %v3241 = vsel %vm458, %v3224, %v3226
        %v3242 = vsel %vm458, %v3226, %v3228
        %v3243 = vsel %vm458, %v3228, %v3230
        %v3244 = vsel %vm458, %v3230, %v3232
        %v3245 = vsel %vm458, %v3232, %v3234
        %v3246 = vsel %vm458, %v3234, %v3236
        %v3247 = vsel %vm458, %v3236, %v3238
        %v3248 = vsel %vm458, %v3238, %v3240
        %3257 = vst [vmem:[#allocation3 + $0x680] sm:$0xf] %v3241
        %3258 = vst [vmem:[#allocation3 + $0x688] sm:$0xf] %v3242
        %3259 = vst [vmem:[#allocation3 + $0x690] sm:$0xf] %v3243
        %3260 = vst [vmem:[#allocation3 + $0x698] sm:$0xf] %v3244
        %3261 = vst [vmem:[#allocation3 + $0x6a0] sm:$0xf] %v3245
        %3262 = vst [vmem:[#allocation3 + $0x6a8] sm:$0xf] %v3246
        %3263 = vst [vmem:[#allocation3 + $0x6b0] sm:$0xf] %v3247
        %3264 = vst [vmem:[#allocation3 + $0x6b8] sm:$0xf] %v3248
        %v3265 = vld [vmem:[#allocation2 + $0x10] sm:$0xff]
        %v3266 = vld [vmem:[#allocation2 + $0x18] sm:$0xff]
        %v3267 = vld [vmem:[#allocation2 + $0x20] sm:$0xff]
        %v3268 = vld [vmem:[#allocation2 + $0x28] sm:$0xff]
        %v3269 = vld [vmem:[#allocation2 + $0x30] sm:$0xf]
        %v3275 = vcombine.low %v3265, %v3265
        %v3276 = vcombine.low %v3266, %v3266
        %v3277 = vcombine.low %v3267, %v3267
        %v3278 = vcombine.low %v3268, %v3268
        %v3279 = vcombine.low %v3269, %v3269
        %3280 = vrot.lane.b32.xlu0 %v3275, 125
        %v3281 = vpop.permute.xlu0 %3280
        %3282 = vrot.lane.b32.xlu0 %v3265, 125
        %v3283 = vpop.permute.xlu0 %3282
        %3284 = vrot.lane.b32.xlu0 %v3276, 125
        %v3285 = vpop.permute.xlu0 %3284
        %3286 = vrot.lane.b32.xlu0 %v3266, 125
        %v3287 = vpop.permute.xlu0 %3286
        %3288 = vrot.lane.b32.xlu0 %v3277, 125
        %v3289 = vpop.permute.xlu0 %3288
        %3290 = vrot.lane.b32.xlu0 %v3267, 125
        %v3291 = vpop.permute.xlu0 %3290
        %3292 = vrot.lane.b32.xlu0 %v3278, 125
        %v3293 = vpop.permute.xlu0 %3292
        %3294 = vrot.lane.b32.xlu0 %v3268, 125
        %v3295 = vpop.permute.xlu0 %3294
        %3296 = vrot.lane.b32.xlu0 %v3279, 125
        %v3297 = vpop.permute.xlu0 %3296
        %v3298 = vsel %vm516, %v3281, %v3283
        %v3299 = vsel %vm516, %v3283, %v3285
        %v3300 = vsel %vm516, %v3285, %v3287
        %v3301 = vsel %vm516, %v3287, %v3289
        %v3302 = vsel %vm516, %v3289, %v3291
        %v3303 = vsel %vm516, %v3291, %v3293
        %v3304 = vsel %vm516, %v3293, %v3295
        %v3305 = vsel %vm516, %v3295, %v3297
        %3314 = vst [vmem:[#allocation3 + $0x680] sm:$0xf0] %v3298
        %3315 = vst [vmem:[#allocation3 + $0x688] sm:$0xf0] %v3299
        %3316 = vst [vmem:[#allocation3 + $0x690] sm:$0xf0] %v3300
        %3317 = vst [vmem:[#allocation3 + $0x698] sm:$0xf0] %v3301
        %3318 = vst [vmem:[#allocation3 + $0x6a0] sm:$0xf0] %v3302
        %3319 = vst [vmem:[#allocation3 + $0x6a8] sm:$0xf0] %v3303
        %3320 = vst [vmem:[#allocation3 + $0x6b0] sm:$0xf0] %v3304
        %3321 = vst [vmem:[#allocation3 + $0x6b8] sm:$0xf0] %v3305
        %v3322 = vld [vmem:[#allocation2 + $0x10] sm:$0xff]
        %v3323 = vld [vmem:[#allocation2 + $0x18] sm:$0xff]
        %v3324 = vld [vmem:[#allocation2 + $0x20] sm:$0xff]
        %v3325 = vld [vmem:[#allocation2 + $0x28] sm:$0xff]
        %v3326 = vld [vmem:[#allocation2 + $0x30] sm:$0xf]
        %v3332 = vcombine.high %v3322, %v3322
        %v3333 = vcombine.high %v3323, %v3323
        %v3334 = vcombine.high %v3324, %v3324
        %v3335 = vcombine.high %v3325, %v3325
        %3336 = vrot.lane.b32.xlu0 %v3322, 124
        %v3337 = vpop.permute.xlu0 %3336
        %3338 = vrot.lane.b32.xlu0 %v3332, 124
        %v3339 = vpop.permute.xlu0 %3338
        %3340 = vrot.lane.b32.xlu0 %v3323, 124
        %v3341 = vpop.permute.xlu0 %3340
        %3342 = vrot.lane.b32.xlu0 %v3333, 124
        %v3343 = vpop.permute.xlu0 %3342
        %3344 = vrot.lane.b32.xlu0 %v3324, 124
        %v3345 = vpop.permute.xlu0 %3344
        %3346 = vrot.lane.b32.xlu0 %v3334, 124
        %v3347 = vpop.permute.xlu0 %3346
        %3348 = vrot.lane.b32.xlu0 %v3325, 124
        %v3349 = vpop.permute.xlu0 %3348
        %3350 = vrot.lane.b32.xlu0 %v3335, 124
        %v3351 = vpop.permute.xlu0 %3350
        %3352 = vrot.lane.b32.xlu0 %v3326, 124
        %v3353 = vpop.permute.xlu0 %3352
        %v3354 = vsel %vm573, %v3337, %v3339
        %v3355 = vsel %vm573, %v3339, %v3341
        %v3356 = vsel %vm573, %v3341, %v3343
        %v3357 = vsel %vm573, %v3343, %v3345
        %v3358 = vsel %vm573, %v3345, %v3347
        %v3359 = vsel %vm573, %v3347, %v3349
        %v3360 = vsel %vm573, %v3349, %v3351
        %v3361 = vsel %vm573, %v3351, %v3353
        %3370 = vst [vmem:[#allocation3 + $0x6c0] sm:$0xf] %v3354
        %3371 = vst [vmem:[#allocation3 + $0x6c8] sm:$0xf] %v3355
        %3372 = vst [vmem:[#allocation3 + $0x6d0] sm:$0xf] %v3356
        %3373 = vst [vmem:[#allocation3 + $0x6d8] sm:$0xf] %v3357
        %3374 = vst [vmem:[#allocation3 + $0x6e0] sm:$0xf] %v3358
        %3375 = vst [vmem:[#allocation3 + $0x6e8] sm:$0xf] %v3359
        %3376 = vst [vmem:[#allocation3 + $0x6f0] sm:$0xf] %v3360
        %3377 = vst [vmem:[#allocation3 + $0x6f8] sm:$0xf] %v3361
        %v3378 = vld [vmem:[#allocation2 + $0x10] sm:$0xff]
        %v3379 = vld [vmem:[#allocation2 + $0x18] sm:$0xff]
        %v3380 = vld [vmem:[#allocation2 + $0x20] sm:$0xff]
        %v3381 = vld [vmem:[#allocation2 + $0x28] sm:$0xff]
        %v3382 = vld [vmem:[#allocation2 + $0x30] sm:$0xf]
        %v3388 = vcombine.low %v3378, %v3378
        %v3389 = vcombine.low %v3379, %v3379
        %v3390 = vcombine.low %v3380, %v3380
        %v3391 = vcombine.low %v3381, %v3381
        %v3392 = vcombine.low %v3382, %v3382
        %3393 = vrot.lane.b32.xlu0 %v3388, 112
        %v3394 = vpop.permute.xlu0 %3393
        %3395 = vrot.lane.b32.xlu0 %v3378, 112
        %v3396 = vpop.permute.xlu0 %3395
        %3397 = vrot.lane.b32.xlu0 %v3389, 112
        %v3398 = vpop.permute.xlu0 %3397
        %3399 = vrot.lane.b32.xlu0 %v3379, 112
        %v3400 = vpop.permute.xlu0 %3399
        %3401 = vrot.lane.b32.xlu0 %v3390, 112
        %v3402 = vpop.permute.xlu0 %3401
        %3403 = vrot.lane.b32.xlu0 %v3380, 112
        %v3404 = vpop.permute.xlu0 %3403
        %3405 = vrot.lane.b32.xlu0 %v3391, 112
        %v3406 = vpop.permute.xlu0 %3405
        %3407 = vrot.lane.b32.xlu0 %v3381, 112
        %v3408 = vpop.permute.xlu0 %3407
        %3409 = vrot.lane.b32.xlu0 %v3392, 112
        %v3410 = vpop.permute.xlu0 %3409
        %v3411 = vsel %vm631, %v3394, %v3396
        %v3412 = vsel %vm631, %v3396, %v3398
        %v3413 = vsel %vm631, %v3398, %v3400
        %v3414 = vsel %vm631, %v3400, %v3402
        %v3415 = vsel %vm631, %v3402, %v3404
        %v3416 = vsel %vm631, %v3404, %v3406
        %v3417 = vsel %vm631, %v3406, %v3408
        %v3418 = vsel %vm631, %v3408, %v3410
        %3427 = vst [vmem:[#allocation3 + $0x6c0] sm:$0xf0] %v3411
        %3428 = vst [vmem:[#allocation3 + $0x6c8] sm:$0xf0] %v3412
        %3429 = vst [vmem:[#allocation3 + $0x6d0] sm:$0xf0] %v3413
        %3430 = vst [vmem:[#allocation3 + $0x6d8] sm:$0xf0] %v3414
        %3431 = vst [vmem:[#allocation3 + $0x6e0] sm:$0xf0] %v3415
        %3432 = vst [vmem:[#allocation3 + $0x6e8] sm:$0xf0] %v3416
        %3433 = vst [vmem:[#allocation3 + $0x6f0] sm:$0xf0] %v3417
        %3434 = vst [vmem:[#allocation3 + $0x6f8] sm:$0xf0] %v3418
        %v3435 = vld [vmem:[#allocation2 + $0x10] sm:$0xff]
        %v3436 = vld [vmem:[#allocation2 + $0x18] sm:$0xff]
        %v3437 = vld [vmem:[#allocation2 + $0x20] sm:$0xff]
        %v3438 = vld [vmem:[#allocation2 + $0x28] sm:$0xff]
        %v3439 = vld [vmem:[#allocation2 + $0x30] sm:$0xf]
        %v3445 = vcombine.high %v3435, %v3435
        %v3446 = vcombine.high %v3436, %v3436
        %v3447 = vcombine.high %v3437, %v3437
        %v3448 = vcombine.high %v3438, %v3438
        %3449 = vrot.lane.b32.xlu0 %v3435, 111
        %v3450 = vpop.permute.xlu0 %3449
        %3451 = vrot.lane.b32.xlu0 %v3445, 111
        %v3452 = vpop.permute.xlu0 %3451
        %3453 = vrot.lane.b32.xlu0 %v3436, 111
        %v3454 = vpop.permute.xlu0 %3453
        %3455 = vrot.lane.b32.xlu0 %v3446, 111
        %v3456 = vpop.permute.xlu0 %3455
        %3457 = vrot.lane.b32.xlu0 %v3437, 111
        %v3458 = vpop.permute.xlu0 %3457
        %3459 = vrot.lane.b32.xlu0 %v3447, 111
        %v3460 = vpop.permute.xlu0 %3459
        %3461 = vrot.lane.b32.xlu0 %v3438, 111
        %v3462 = vpop.permute.xlu0 %3461
        %3463 = vrot.lane.b32.xlu0 %v3448, 111
        %v3464 = vpop.permute.xlu0 %3463
        %3465 = vrot.lane.b32.xlu0 %v3439, 111
        %v3466 = vpop.permute.xlu0 %3465
        %v3467 = vsel %vm688, %v3450, %v3452
        %v3468 = vsel %vm688, %v3452, %v3454
        %v3469 = vsel %vm688, %v3454, %v3456
        %v3470 = vsel %vm688, %v3456, %v3458
        %v3471 = vsel %vm688, %v3458, %v3460
        %v3472 = vsel %vm688, %v3460, %v3462
        %v3473 = vsel %vm688, %v3462, %v3464
        %v3474 = vsel %vm688, %v3464, %v3466
        %3483 = vst [vmem:[#allocation3 + $0x700] sm:$0xf] %v3467
        %3484 = vst [vmem:[#allocation3 + $0x708] sm:$0xf] %v3468
        %3485 = vst [vmem:[#allocation3 + $0x710] sm:$0xf] %v3469
        %3486 = vst [vmem:[#allocation3 + $0x718] sm:$0xf] %v3470
        %3487 = vst [vmem:[#allocation3 + $0x720] sm:$0xf] %v3471
        %3488 = vst [vmem:[#allocation3 + $0x728] sm:$0xf] %v3472
        %3489 = vst [vmem:[#allocation3 + $0x730] sm:$0xf] %v3473
        %3490 = vst [vmem:[#allocation3 + $0x738] sm:$0xf] %v3474
        %v3491 = vld [vmem:[#allocation2 + $0x10] sm:$0xff]
        %v3492 = vld [vmem:[#allocation2 + $0x18] sm:$0xff]
        %v3493 = vld [vmem:[#allocation2 + $0x20] sm:$0xff]
        %v3494 = vld [vmem:[#allocation2 + $0x28] sm:$0xff]
        %v3495 = vld [vmem:[#allocation2 + $0x30] sm:$0xf]
        %v3501 = vcombine.low %v3491, %v3491
        %v3502 = vcombine.low %v3492, %v3492
        %v3503 = vcombine.low %v3493, %v3493
        %v3504 = vcombine.low %v3494, %v3494
        %v3505 = vcombine.low %v3495, %v3495
        %3506 = vrot.lane.b32.xlu0 %v3501, 110
        %v3507 = vpop.permute.xlu0 %3506
        %3508 = vrot.lane.b32.xlu0 %v3491, 110
        %v3509 = vpop.permute.xlu0 %3508
        %3510 = vrot.lane.b32.xlu0 %v3502, 110
        %v3511 = vpop.permute.xlu0 %3510
        %3512 = vrot.lane.b32.xlu0 %v3492, 110
        %v3513 = vpop.permute.xlu0 %3512
        %3514 = vrot.lane.b32.xlu0 %v3503, 110
        %v3515 = vpop.permute.xlu0 %3514
        %3516 = vrot.lane.b32.xlu0 %v3493, 110
        %v3517 = vpop.permute.xlu0 %3516
        %3518 = vrot.lane.b32.xlu0 %v3504, 110
        %v3519 = vpop.permute.xlu0 %3518
        %3520 = vrot.lane.b32.xlu0 %v3494, 110
        %v3521 = vpop.permute.xlu0 %3520
        %3522 = vrot.lane.b32.xlu0 %v3505, 110
        %v3523 = vpop.permute.xlu0 %3522
        %v3524 = vsel %vm746, %v3507, %v3509
        %v3525 = vsel %vm746, %v3509, %v3511
        %v3526 = vsel %vm746, %v3511, %v3513
        %v3527 = vsel %vm746, %v3513, %v3515
        %v3528 = vsel %vm746, %v3515, %v3517
        %v3529 = vsel %vm746, %v3517, %v3519
        %v3530 = vsel %vm746, %v3519, %v3521
        %v3531 = vsel %vm746, %v3521, %v3523
        %3540 = vst [vmem:[#allocation3 + $0x700] sm:$0xf0] %v3524
        %3541 = vst [vmem:[#allocation3 + $0x708] sm:$0xf0] %v3525
        %3542 = vst [vmem:[#allocation3 + $0x710] sm:$0xf0] %v3526
        %3543 = vst [vmem:[#allocation3 + $0x718] sm:$0xf0] %v3527
        %3544 = vst [vmem:[#allocation3 + $0x720] sm:$0xf0] %v3528
        %3545 = vst [vmem:[#allocation3 + $0x728] sm:$0xf0] %v3529
        %3546 = vst [vmem:[#allocation3 + $0x730] sm:$0xf0] %v3530
        %3547 = vst [vmem:[#allocation3 + $0x738] sm:$0xf0] %v3531
        %v3548 = vld [vmem:[#allocation2 + $0x10] sm:$0xff]
        %v3549 = vld [vmem:[#allocation2 + $0x18] sm:$0xff]
        %v3550 = vld [vmem:[#allocation2 + $0x20] sm:$0xff]
        %v3551 = vld [vmem:[#allocation2 + $0x28] sm:$0xff]
        %v3552 = vld [vmem:[#allocation2 + $0x30] sm:$0xf]
        %v3558 = vcombine.high %v3548, %v3548
        %v3559 = vcombine.high %v3549, %v3549
        %v3560 = vcombine.high %v3550, %v3550
        %v3561 = vcombine.high %v3551, %v3551
        %3562 = vrot.lane.b32.xlu0 %v3548, 109
        %v3563 = vpop.permute.xlu0 %3562
        %3564 = vrot.lane.b32.xlu0 %v3558, 109
        %v3565 = vpop.permute.xlu0 %3564
        %3566 = vrot.lane.b32.xlu0 %v3549, 109
        %v3567 = vpop.permute.xlu0 %3566
        %3568 = vrot.lane.b32.xlu0 %v3559, 109
        %v3569 = vpop.permute.xlu0 %3568
        %3570 = vrot.lane.b32.xlu0 %v3550, 109
        %v3571 = vpop.permute.xlu0 %3570
        %3572 = vrot.lane.b32.xlu0 %v3560, 109
        %v3573 = vpop.permute.xlu0 %3572
        %3574 = vrot.lane.b32.xlu0 %v3551, 109
        %v3575 = vpop.permute.xlu0 %3574
        %3576 = vrot.lane.b32.xlu0 %v3561, 109
        %v3577 = vpop.permute.xlu0 %3576
        %3578 = vrot.lane.b32.xlu0 %v3552, 109
        %v3579 = vpop.permute.xlu0 %3578
        %v3580 = vsel %vm803, %v3563, %v3565
        %v3581 = vsel %vm803, %v3565, %v3567
        %v3582 = vsel %vm803, %v3567, %v3569
        %v3583 = vsel %vm803, %v3569, %v3571
        %v3584 = vsel %vm803, %v3571, %v3573
        %v3585 = vsel %vm803, %v3573, %v3575
        %v3586 = vsel %vm803, %v3575, %v3577
        %v3587 = vsel %vm803, %v3577, %v3579
        %3596 = vst [vmem:[#allocation3 + $0x740] sm:$0xf] %v3580
        %3597 = vst [vmem:[#allocation3 + $0x748] sm:$0xf] %v3581
        %3598 = vst [vmem:[#allocation3 + $0x750] sm:$0xf] %v3582
        %3599 = vst [vmem:[#allocation3 + $0x758] sm:$0xf] %v3583
        %3600 = vst [vmem:[#allocation3 + $0x760] sm:$0xf] %v3584
        %3601 = vst [vmem:[#allocation3 + $0x768] sm:$0xf] %v3585
        %3602 = vst [vmem:[#allocation3 + $0x770] sm:$0xf] %v3586
        %3603 = vst [vmem:[#allocation3 + $0x778] sm:$0xf] %v3587
        %v3604 = vld [vmem:[#allocation2 + $0x10] sm:$0xff]
        %v3605 = vld [vmem:[#allocation2 + $0x18] sm:$0xff]
        %v3606 = vld [vmem:[#allocation2 + $0x20] sm:$0xff]
        %v3607 = vld [vmem:[#allocation2 + $0x28] sm:$0xff]
        %v3608 = vld [vmem:[#allocation2 + $0x30] sm:$0xf]
        %v3614 = vcombine.low %v3604, %v3604
        %v3615 = vcombine.low %v3605, %v3605
        %v3616 = vcombine.low %v3606, %v3606
        %v3617 = vcombine.low %v3607, %v3607
        %v3618 = vcombine.low %v3608, %v3608
        %3619 = vrot.lane.b32.xlu0 %v3614, 108
        %v3620 = vpop.permute.xlu0 %3619
        %3621 = vrot.lane.b32.xlu0 %v3604, 108
        %v3622 = vpop.permute.xlu0 %3621
        %3623 = vrot.lane.b32.xlu0 %v3615, 108
        %v3624 = vpop.permute.xlu0 %3623
        %3625 = vrot.lane.b32.xlu0 %v3605, 108
        %v3626 = vpop.permute.xlu0 %3625
        %3627 = vrot.lane.b32.xlu0 %v3616, 108
        %v3628 = vpop.permute.xlu0 %3627
        %3629 = vrot.lane.b32.xlu0 %v3606, 108
        %v3630 = vpop.permute.xlu0 %3629
        %3631 = vrot.lane.b32.xlu0 %v3617, 108
        %v3632 = vpop.permute.xlu0 %3631
        %3633 = vrot.lane.b32.xlu0 %v3607, 108
        %v3634 = vpop.permute.xlu0 %3633
        %3635 = vrot.lane.b32.xlu0 %v3618, 108
        %v3636 = vpop.permute.xlu0 %3635
        %v3637 = vsel %vm861, %v3620, %v3622
        %v3638 = vsel %vm861, %v3622, %v3624
        %v3639 = vsel %vm861, %v3624, %v3626
        %v3640 = vsel %vm861, %v3626, %v3628
        %v3641 = vsel %vm861, %v3628, %v3630
        %v3642 = vsel %vm861, %v3630, %v3632
        %v3643 = vsel %vm861, %v3632, %v3634
        %v3644 = vsel %vm861, %v3634, %v3636
        %3653 = vst [vmem:[#allocation3 + $0x740] sm:$0xf0] %v3637
        %3654 = vst [vmem:[#allocation3 + $0x748] sm:$0xf0] %v3638
        %3655 = vst [vmem:[#allocation3 + $0x750] sm:$0xf0] %v3639
        %3656 = vst [vmem:[#allocation3 + $0x758] sm:$0xf0] %v3640
        %3657 = vst [vmem:[#allocation3 + $0x760] sm:$0xf0] %v3641
        %3658 = vst [vmem:[#allocation3 + $0x768] sm:$0xf0] %v3642
        %3659 = vst [vmem:[#allocation3 + $0x770] sm:$0xf0] %v3643
        %3660 = vst [vmem:[#allocation3 + $0x778] sm:$0xf0] %v3644
        %v3661 = vld [vmem:[#allocation2 + $0x10] sm:$0xff]
        %v3662 = vld [vmem:[#allocation2 + $0x18] sm:$0xff]
        %v3663 = vld [vmem:[#allocation2 + $0x20] sm:$0xff]
        %v3664 = vld [vmem:[#allocation2 + $0x28] sm:$0xff]
        %v3665 = vld [vmem:[#allocation2 + $0x30] sm:$0xf]
        %v3671 = vcombine.high %v3661, %v3661
        %v3672 = vcombine.high %v3662, %v3662
        %v3673 = vcombine.high %v3663, %v3663
        %v3674 = vcombine.high %v3664, %v3664
        %3675 = vrot.lane.b32.xlu0 %v3661, 96
        %v3676 = vpop.permute.xlu0 %3675
        %3677 = vrot.lane.b32.xlu0 %v3671, 96
        %v3678 = vpop.permute.xlu0 %3677
        %3679 = vrot.lane.b32.xlu0 %v3662, 96
        %v3680 = vpop.permute.xlu0 %3679
        %3681 = vrot.lane.b32.xlu0 %v3672, 96
        %v3682 = vpop.permute.xlu0 %3681
        %3683 = vrot.lane.b32.xlu0 %v3663, 96
        %v3684 = vpop.permute.xlu0 %3683
        %3685 = vrot.lane.b32.xlu0 %v3673, 96
        %v3686 = vpop.permute.xlu0 %3685
        %3687 = vrot.lane.b32.xlu0 %v3664, 96
        %v3688 = vpop.permute.xlu0 %3687
        %3689 = vrot.lane.b32.xlu0 %v3674, 96
        %v3690 = vpop.permute.xlu0 %3689
        %3691 = vrot.lane.b32.xlu0 %v3665, 96
        %v3692 = vpop.permute.xlu0 %3691
        %v3693 = vsel %vm918, %v3676, %v3678
        %v3694 = vsel %vm918, %v3678, %v3680
        %v3695 = vsel %vm918, %v3680, %v3682
        %v3696 = vsel %vm918, %v3682, %v3684
        %v3697 = vsel %vm918, %v3684, %v3686
        %v3698 = vsel %vm918, %v3686, %v3688
        %v3699 = vsel %vm918, %v3688, %v3690
        %v3700 = vsel %vm918, %v3690, %v3692
        %3709 = vst [vmem:[#allocation3 + $0x780] sm:$0xf] %v3693
        %3710 = vst [vmem:[#allocation3 + $0x788] sm:$0xf] %v3694
        %3711 = vst [vmem:[#allocation3 + $0x790] sm:$0xf] %v3695
        %3712 = vst [vmem:[#allocation3 + $0x798] sm:$0xf] %v3696
        %3713 = vst [vmem:[#allocation3 + $0x7a0] sm:$0xf] %v3697
        %3714 = vst [vmem:[#allocation3 + $0x7a8] sm:$0xf] %v3698
        %3715 = vst [vmem:[#allocation3 + $0x7b0] sm:$0xf] %v3699
        %3716 = vst [vmem:[#allocation3 + $0x7b8] sm:$0xf] %v3700
        %v3717 = vld [vmem:[#allocation2 + $0x10] sm:$0xff]
        %v3718 = vld [vmem:[#allocation2 + $0x18] sm:$0xff]
        %v3719 = vld [vmem:[#allocation2 + $0x20] sm:$0xff]
        %v3720 = vld [vmem:[#allocation2 + $0x28] sm:$0xff]
        %v3721 = vld [vmem:[#allocation2 + $0x30] sm:$0xf]
        %v3727 = vcombine.low %v3717, %v3717
        %v3728 = vcombine.low %v3718, %v3718
        %v3729 = vcombine.low %v3719, %v3719
        %v3730 = vcombine.low %v3720, %v3720
        %v3731 = vcombine.low %v3721, %v3721
        %3732 = vrot.lane.b32.xlu0 %v3727, 95
        %v3733 = vpop.permute.xlu0 %3732
        %3734 = vrot.lane.b32.xlu0 %v3717, 95
        %v3735 = vpop.permute.xlu0 %3734
        %3736 = vrot.lane.b32.xlu0 %v3728, 95
        %v3737 = vpop.permute.xlu0 %3736
        %3738 = vrot.lane.b32.xlu0 %v3718, 95
        %v3739 = vpop.permute.xlu0 %3738
        %3740 = vrot.lane.b32.xlu0 %v3729, 95
        %v3741 = vpop.permute.xlu0 %3740
        %3742 = vrot.lane.b32.xlu0 %v3719, 95
        %v3743 = vpop.permute.xlu0 %3742
        %3744 = vrot.lane.b32.xlu0 %v3730, 95
        %v3745 = vpop.permute.xlu0 %3744
        %3746 = vrot.lane.b32.xlu0 %v3720, 95
        %v3747 = vpop.permute.xlu0 %3746
        %3748 = vrot.lane.b32.xlu0 %v3731, 95
        %v3749 = vpop.permute.xlu0 %3748
        %v3750 = vsel %vm976, %v3733, %v3735
        %v3751 = vsel %vm976, %v3735, %v3737
        %v3752 = vsel %vm976, %v3737, %v3739
        %v3753 = vsel %vm976, %v3739, %v3741
        %v3754 = vsel %vm976, %v3741, %v3743
        %v3755 = vsel %vm976, %v3743, %v3745
        %v3756 = vsel %vm976, %v3745, %v3747
        %v3757 = vsel %vm976, %v3747, %v3749
        %3766 = vst [vmem:[#allocation3 + $0x780] sm:$0xf0] %v3750
        %3767 = vst [vmem:[#allocation3 + $0x788] sm:$0xf0] %v3751
        %3768 = vst [vmem:[#allocation3 + $0x790] sm:$0xf0] %v3752
        %3769 = vst [vmem:[#allocation3 + $0x798] sm:$0xf0] %v3753
        %3770 = vst [vmem:[#allocation3 + $0x7a0] sm:$0xf0] %v3754
        %3771 = vst [vmem:[#allocation3 + $0x7a8] sm:$0xf0] %v3755
        %3772 = vst [vmem:[#allocation3 + $0x7b0] sm:$0xf0] %v3756
        %3773 = vst [vmem:[#allocation3 + $0x7b8] sm:$0xf0] %v3757
        %v3774 = vld [vmem:[#allocation2 + $0x10] sm:$0xff]
        %v3775 = vld [vmem:[#allocation2 + $0x18] sm:$0xff]
        %v3776 = vld [vmem:[#allocation2 + $0x20] sm:$0xff]
        %v3777 = vld [vmem:[#allocation2 + $0x28] sm:$0xff]
        %v3778 = vld [vmem:[#allocation2 + $0x30] sm:$0xf]
        %v3784 = vcombine.high %v3774, %v3774
        %v3785 = vcombine.high %v3775, %v3775
        %v3786 = vcombine.high %v3776, %v3776
        %v3787 = vcombine.high %v3777, %v3777
        %3788 = vrot.lane.b32.xlu0 %v3774, 94
        %v3789 = vpop.permute.xlu0 %3788
        %3790 = vrot.lane.b32.xlu0 %v3784, 94
        %v3791 = vpop.permute.xlu0 %3790
        %3792 = vrot.lane.b32.xlu0 %v3775, 94
        %v3793 = vpop.permute.xlu0 %3792
        %3794 = vrot.lane.b32.xlu0 %v3785, 94
        %v3795 = vpop.permute.xlu0 %3794
        %3796 = vrot.lane.b32.xlu0 %v3776, 94
        %v3797 = vpop.permute.xlu0 %3796
        %3798 = vrot.lane.b32.xlu0 %v3786, 94
        %v3799 = vpop.permute.xlu0 %3798
        %3800 = vrot.lane.b32.xlu0 %v3777, 94
        %v3801 = vpop.permute.xlu0 %3800
        %3802 = vrot.lane.b32.xlu0 %v3787, 94
        %v3803 = vpop.permute.xlu0 %3802
        %3804 = vrot.lane.b32.xlu0 %v3778, 94
        %v3805 = vpop.permute.xlu0 %3804
        %v3806 = vsel %vm1033, %v3789, %v3791
        %v3807 = vsel %vm1033, %v3791, %v3793
        %v3808 = vsel %vm1033, %v3793, %v3795
        %v3809 = vsel %vm1033, %v3795, %v3797
        %v3810 = vsel %vm1033, %v3797, %v3799
        %v3811 = vsel %vm1033, %v3799, %v3801
        %v3812 = vsel %vm1033, %v3801, %v3803
        %v3813 = vsel %vm1033, %v3803, %v3805
        %3822 = vst [vmem:[#allocation3 + $0x7c0] sm:$0xf] %v3806
        %3823 = vst [vmem:[#allocation3 + $0x7c8] sm:$0xf] %v3807
        %3824 = vst [vmem:[#allocation3 + $0x7d0] sm:$0xf] %v3808
        %3825 = vst [vmem:[#allocation3 + $0x7d8] sm:$0xf] %v3809
        %3826 = vst [vmem:[#allocation3 + $0x7e0] sm:$0xf] %v3810
        %3827 = vst [vmem:[#allocation3 + $0x7e8] sm:$0xf] %v3811
        %3828 = vst [vmem:[#allocation3 + $0x7f0] sm:$0xf] %v3812
        %3829 = vst [vmem:[#allocation3 + $0x7f8] sm:$0xf] %v3813
        %v3830 = vld [vmem:[#allocation2 + $0x10] sm:$0xff]
        %v3831 = vld [vmem:[#allocation2 + $0x18] sm:$0xff]
        %v3832 = vld [vmem:[#allocation2 + $0x20] sm:$0xff]
        %v3833 = vld [vmem:[#allocation2 + $0x28] sm:$0xff]
        %v3834 = vld [vmem:[#allocation2 + $0x30] sm:$0xf]
        %v3840 = vcombine.low %v3830, %v3830
        %v3841 = vcombine.low %v3831, %v3831
        %v3842 = vcombine.low %v3832, %v3832
        %v3843 = vcombine.low %v3833, %v3833
        %v3844 = vcombine.low %v3834, %v3834
        %3845 = vrot.lane.b32.xlu0 %v3840, 93
        %v3846 = vpop.permute.xlu0 %3845
        %3847 = vrot.lane.b32.xlu0 %v3830, 93
        %v3848 = vpop.permute.xlu0 %3847
        %3849 = vrot.lane.b32.xlu0 %v3841, 93
        %v3850 = vpop.permute.xlu0 %3849
        %3851 = vrot.lane.b32.xlu0 %v3831, 93
        %v3852 = vpop.permute.xlu0 %3851
        %3853 = vrot.lane.b32.xlu0 %v3842, 93
        %v3854 = vpop.permute.xlu0 %3853
        %3855 = vrot.lane.b32.xlu0 %v3832, 93
        %v3856 = vpop.permute.xlu0 %3855
        %3857 = vrot.lane.b32.xlu0 %v3843, 93
        %v3858 = vpop.permute.xlu0 %3857
        %3859 = vrot.lane.b32.xlu0 %v3833, 93
        %v3860 = vpop.permute.xlu0 %3859
        %3861 = vrot.lane.b32.xlu0 %v3844, 93
        %v3862 = vpop.permute.xlu0 %3861
        %v3863 = vsel %vm1091, %v3846, %v3848
        %v3864 = vsel %vm1091, %v3848, %v3850
        %v3865 = vsel %vm1091, %v3850, %v3852
        %v3866 = vsel %vm1091, %v3852, %v3854
        %v3867 = vsel %vm1091, %v3854, %v3856
        %v3868 = vsel %vm1091, %v3856, %v3858
        %v3869 = vsel %vm1091, %v3858, %v3860
        %v3870 = vsel %vm1091, %v3860, %v3862
        %3879 = vst [vmem:[#allocation3 + $0x7c0] sm:$0xf0] %v3863
        %3880 = vst [vmem:[#allocation3 + $0x7c8] sm:$0xf0] %v3864
        %3881 = vst [vmem:[#allocation3 + $0x7d0] sm:$0xf0] %v3865
        %3882 = vst [vmem:[#allocation3 + $0x7d8] sm:$0xf0] %v3866
        %3883 = vst [vmem:[#allocation3 + $0x7e0] sm:$0xf0] %v3867
        %3884 = vst [vmem:[#allocation3 + $0x7e8] sm:$0xf0] %v3868
        %3885 = vst [vmem:[#allocation3 + $0x7f0] sm:$0xf0] %v3869
        %3886 = vst [vmem:[#allocation3 + $0x7f8] sm:$0xf0] %v3870
        %v3887 = vld [vmem:[#allocation2 + $0x10] sm:$0xff]
        %v3888 = vld [vmem:[#allocation2 + $0x18] sm:$0xff]
        %v3889 = vld [vmem:[#allocation2 + $0x20] sm:$0xff]
        %v3890 = vld [vmem:[#allocation2 + $0x28] sm:$0xff]
        %v3891 = vld [vmem:[#allocation2 + $0x30] sm:$0xf]
        %v3897 = vcombine.high %v3887, %v3887
        %v3898 = vcombine.high %v3888, %v3888
        %v3899 = vcombine.high %v3889, %v3889
        %v3900 = vcombine.high %v3890, %v3890
        %3901 = vrot.lane.b32.xlu0 %v3887, 92
        %v3902 = vpop.permute.xlu0 %3901
        %3903 = vrot.lane.b32.xlu0 %v3897, 92
        %v3904 = vpop.permute.xlu0 %3903
        %3905 = vrot.lane.b32.xlu0 %v3888, 92
        %v3906 = vpop.permute.xlu0 %3905
        %3907 = vrot.lane.b32.xlu0 %v3898, 92
        %v3908 = vpop.permute.xlu0 %3907
        %3909 = vrot.lane.b32.xlu0 %v3889, 92
        %v3910 = vpop.permute.xlu0 %3909
        %3911 = vrot.lane.b32.xlu0 %v3899, 92
        %v3912 = vpop.permute.xlu0 %3911
        %3913 = vrot.lane.b32.xlu0 %v3890, 92
        %v3914 = vpop.permute.xlu0 %3913
        %3915 = vrot.lane.b32.xlu0 %v3900, 92
        %v3916 = vpop.permute.xlu0 %3915
        %3917 = vrot.lane.b32.xlu0 %v3891, 92
        %v3918 = vpop.permute.xlu0 %3917
        %v3919 = vsel %vm1148, %v3902, %v3904
        %v3920 = vsel %vm1148, %v3904, %v3906
        %v3921 = vsel %vm1148, %v3906, %v3908
        %v3922 = vsel %vm1148, %v3908, %v3910
        %v3923 = vsel %vm1148, %v3910, %v3912
        %v3924 = vsel %vm1148, %v3912, %v3914
        %v3925 = vsel %vm1148, %v3914, %v3916
        %v3926 = vsel %vm1148, %v3916, %v3918
        %3935 = vst [vmem:[#allocation3 + $0x800] sm:$0xf] %v3919
        %3936 = vst [vmem:[#allocation3 + $0x808] sm:$0xf] %v3920
        %3937 = vst [vmem:[#allocation3 + $0x810] sm:$0xf] %v3921
        %3938 = vst [vmem:[#allocation3 + $0x818] sm:$0xf] %v3922
        %3939 = vst [vmem:[#allocation3 + $0x820] sm:$0xf] %v3923
        %3940 = vst [vmem:[#allocation3 + $0x828] sm:$0xf] %v3924
        %3941 = vst [vmem:[#allocation3 + $0x830] sm:$0xf] %v3925
        %3942 = vst [vmem:[#allocation3 + $0x838] sm:$0xf] %v3926
        %v3943 = vld [vmem:[#allocation2 + $0x10] sm:$0xff]
        %v3944 = vld [vmem:[#allocation2 + $0x18] sm:$0xff]
        %v3945 = vld [vmem:[#allocation2 + $0x20] sm:$0xff]
        %v3946 = vld [vmem:[#allocation2 + $0x28] sm:$0xff]
        %v3947 = vld [vmem:[#allocation2 + $0x30] sm:$0xf]
        %v3953 = vcombine.low %v3943, %v3943
        %v3954 = vcombine.low %v3944, %v3944
        %v3955 = vcombine.low %v3945, %v3945
        %v3956 = vcombine.low %v3946, %v3946
        %v3957 = vcombine.low %v3947, %v3947
        %3958 = vrot.lane.b32.xlu0 %v3953, 80
        %v3959 = vpop.permute.xlu0 %3958
        %3960 = vrot.lane.b32.xlu0 %v3943, 80
        %v3961 = vpop.permute.xlu0 %3960
        %3962 = vrot.lane.b32.xlu0 %v3954, 80
        %v3963 = vpop.permute.xlu0 %3962
        %3964 = vrot.lane.b32.xlu0 %v3944, 80
        %v3965 = vpop.permute.xlu0 %3964
        %3966 = vrot.lane.b32.xlu0 %v3955, 80
        %v3967 = vpop.permute.xlu0 %3966
        %3968 = vrot.lane.b32.xlu0 %v3945, 80
        %v3969 = vpop.permute.xlu0 %3968
        %3970 = vrot.lane.b32.xlu0 %v3956, 80
        %v3971 = vpop.permute.xlu0 %3970
        %3972 = vrot.lane.b32.xlu0 %v3946, 80
        %v3973 = vpop.permute.xlu0 %3972
        %3974 = vrot.lane.b32.xlu0 %v3957, 80
        %v3975 = vpop.permute.xlu0 %3974
        %v3976 = vsel %vm1206, %v3959, %v3961
        %v3977 = vsel %vm1206, %v3961, %v3963
        %v3978 = vsel %vm1206, %v3963, %v3965
        %v3979 = vsel %vm1206, %v3965, %v3967
        %v3980 = vsel %vm1206, %v3967, %v3969
        %v3981 = vsel %vm1206, %v3969, %v3971
        %v3982 = vsel %vm1206, %v3971, %v3973
        %v3983 = vsel %vm1206, %v3973, %v3975
        %3992 = vst [vmem:[#allocation3 + $0x800] sm:$0xf0] %v3976
        %3993 = vst [vmem:[#allocation3 + $0x808] sm:$0xf0] %v3977
        %3994 = vst [vmem:[#allocation3 + $0x810] sm:$0xf0] %v3978
        %3995 = vst [vmem:[#allocation3 + $0x818] sm:$0xf0] %v3979
        %3996 = vst [vmem:[#allocation3 + $0x820] sm:$0xf0] %v3980
        %3997 = vst [vmem:[#allocation3 + $0x828] sm:$0xf0] %v3981
        %3998 = vst [vmem:[#allocation3 + $0x830] sm:$0xf0] %v3982
        %3999 = vst [vmem:[#allocation3 + $0x838] sm:$0xf0] %v3983
        %v4000 = vld [vmem:[#allocation2 + $0x10] sm:$0xff]
        %v4001 = vld [vmem:[#allocation2 + $0x18] sm:$0xff]
        %v4002 = vld [vmem:[#allocation2 + $0x20] sm:$0xff]
        %v4003 = vld [vmem:[#allocation2 + $0x28] sm:$0xff]
        %v4004 = vld [vmem:[#allocation2 + $0x30] sm:$0xf]
        %v4010 = vcombine.high %v4000, %v4000
        %v4011 = vcombine.high %v4001, %v4001
        %v4012 = vcombine.high %v4002, %v4002
        %v4013 = vcombine.high %v4003, %v4003
        %4014 = vrot.lane.b32.xlu0 %v4000, 79
        %v4015 = vpop.permute.xlu0 %4014
        %4016 = vrot.lane.b32.xlu0 %v4010, 79
        %v4017 = vpop.permute.xlu0 %4016
        %4018 = vrot.lane.b32.xlu0 %v4001, 79
        %v4019 = vpop.permute.xlu0 %4018
        %4020 = vrot.lane.b32.xlu0 %v4011, 79
        %v4021 = vpop.permute.xlu0 %4020
        %4022 = vrot.lane.b32.xlu0 %v4002, 79
        %v4023 = vpop.permute.xlu0 %4022
        %4024 = vrot.lane.b32.xlu0 %v4012, 79
        %v4025 = vpop.permute.xlu0 %4024
        %4026 = vrot.lane.b32.xlu0 %v4003, 79
        %v4027 = vpop.permute.xlu0 %4026
        %4028 = vrot.lane.b32.xlu0 %v4013, 79
        %v4029 = vpop.permute.xlu0 %4028
        %4030 = vrot.lane.b32.xlu0 %v4004, 79
        %v4031 = vpop.permute.xlu0 %4030
        %v4032 = vsel %vm1263, %v4015, %v4017
        %v4033 = vsel %vm1263, %v4017, %v4019
        %v4034 = vsel %vm1263, %v4019, %v4021
        %v4035 = vsel %vm1263, %v4021, %v4023
        %v4036 = vsel %vm1263, %v4023, %v4025
        %v4037 = vsel %vm1263, %v4025, %v4027
        %v4038 = vsel %vm1263, %v4027, %v4029
        %v4039 = vsel %vm1263, %v4029, %v4031
        %4048 = vst [vmem:[#allocation3 + $0x840] sm:$0xf] %v4032
        %4049 = vst [vmem:[#allocation3 + $0x848] sm:$0xf] %v4033
        %4050 = vst [vmem:[#allocation3 + $0x850] sm:$0xf] %v4034
        %4051 = vst [vmem:[#allocation3 + $0x858] sm:$0xf] %v4035
        %4052 = vst [vmem:[#allocation3 + $0x860] sm:$0xf] %v4036
        %4053 = vst [vmem:[#allocation3 + $0x868] sm:$0xf] %v4037
        %4054 = vst [vmem:[#allocation3 + $0x870] sm:$0xf] %v4038
        %4055 = vst [vmem:[#allocation3 + $0x878] sm:$0xf] %v4039
        %v4056 = vld [vmem:[#allocation2 + $0x10] sm:$0xff]
        %v4057 = vld [vmem:[#allocation2 + $0x18] sm:$0xff]
        %v4058 = vld [vmem:[#allocation2 + $0x20] sm:$0xff]
        %v4059 = vld [vmem:[#allocation2 + $0x28] sm:$0xff]
        %v4060 = vld [vmem:[#allocation2 + $0x30] sm:$0xf]
        %v4066 = vcombine.low %v4056, %v4056
        %v4067 = vcombine.low %v4057, %v4057
        %v4068 = vcombine.low %v4058, %v4058
        %v4069 = vcombine.low %v4059, %v4059
        %v4070 = vcombine.low %v4060, %v4060
        %4071 = vrot.lane.b32.xlu0 %v4066, 78
        %v4072 = vpop.permute.xlu0 %4071
        %4073 = vrot.lane.b32.xlu0 %v4056, 78
        %v4074 = vpop.permute.xlu0 %4073
        %4075 = vrot.lane.b32.xlu0 %v4067, 78
        %v4076 = vpop.permute.xlu0 %4075
        %4077 = vrot.lane.b32.xlu0 %v4057, 78
        %v4078 = vpop.permute.xlu0 %4077
        %4079 = vrot.lane.b32.xlu0 %v4068, 78
        %v4080 = vpop.permute.xlu0 %4079
        %4081 = vrot.lane.b32.xlu0 %v4058, 78
        %v4082 = vpop.permute.xlu0 %4081
        %4083 = vrot.lane.b32.xlu0 %v4069, 78
        %v4084 = vpop.permute.xlu0 %4083
        %4085 = vrot.lane.b32.xlu0 %v4059, 78
        %v4086 = vpop.permute.xlu0 %4085
        %4087 = vrot.lane.b32.xlu0 %v4070, 78
        %v4088 = vpop.permute.xlu0 %4087
        %v4089 = vsel %vm1321, %v4072, %v4074
        %v4090 = vsel %vm1321, %v4074, %v4076
        %v4091 = vsel %vm1321, %v4076, %v4078
        %v4092 = vsel %vm1321, %v4078, %v4080
        %v4093 = vsel %vm1321, %v4080, %v4082
        %v4094 = vsel %vm1321, %v4082, %v4084
        %v4095 = vsel %vm1321, %v4084, %v4086
        %v4096 = vsel %vm1321, %v4086, %v4088
        %4105 = vst [vmem:[#allocation3 + $0x840] sm:$0xf0] %v4089
        %4106 = vst [vmem:[#allocation3 + $0x848] sm:$0xf0] %v4090
        %4107 = vst [vmem:[#allocation3 + $0x850] sm:$0xf0] %v4091
        %4108 = vst [vmem:[#allocation3 + $0x858] sm:$0xf0] %v4092
        %4109 = vst [vmem:[#allocation3 + $0x860] sm:$0xf0] %v4093
        %4110 = vst [vmem:[#allocation3 + $0x868] sm:$0xf0] %v4094
        %4111 = vst [vmem:[#allocation3 + $0x870] sm:$0xf0] %v4095
        %4112 = vst [vmem:[#allocation3 + $0x878] sm:$0xf0] %v4096
        %v4113 = vld [vmem:[#allocation2 + $0x10] sm:$0xff]
        %v4114 = vld [vmem:[#allocation2 + $0x18] sm:$0xff]
        %v4115 = vld [vmem:[#allocation2 + $0x20] sm:$0xff]
        %v4116 = vld [vmem:[#allocation2 + $0x28] sm:$0xff]
        %v4117 = vld [vmem:[#allocation2 + $0x30] sm:$0xf]
        %v4123 = vcombine.high %v4113, %v4113
        %v4124 = vcombine.high %v4114, %v4114
        %v4125 = vcombine.high %v4115, %v4115
        %v4126 = vcombine.high %v4116, %v4116
        %4127 = vrot.lane.b32.xlu0 %v4113, 77
        %v4128 = vpop.permute.xlu0 %4127
        %4129 = vrot.lane.b32.xlu0 %v4123, 77
        %v4130 = vpop.permute.xlu0 %4129
        %4131 = vrot.lane.b32.xlu0 %v4114, 77
        %v4132 = vpop.permute.xlu0 %4131
        %4133 = vrot.lane.b32.xlu0 %v4124, 77
        %v4134 = vpop.permute.xlu0 %4133
        %4135 = vrot.lane.b32.xlu0 %v4115, 77
        %v4136 = vpop.permute.xlu0 %4135
        %4137 = vrot.lane.b32.xlu0 %v4125, 77
        %v4138 = vpop.permute.xlu0 %4137
        %4139 = vrot.lane.b32.xlu0 %v4116, 77
        %v4140 = vpop.permute.xlu0 %4139
        %4141 = vrot.lane.b32.xlu0 %v4126, 77
        %v4142 = vpop.permute.xlu0 %4141
        %4143 = vrot.lane.b32.xlu0 %v4117, 77
        %v4144 = vpop.permute.xlu0 %4143
        %v4145 = vsel %vm1378, %v4128, %v4130
        %v4146 = vsel %vm1378, %v4130, %v4132
        %v4147 = vsel %vm1378, %v4132, %v4134
        %v4148 = vsel %vm1378, %v4134, %v4136
        %v4149 = vsel %vm1378, %v4136, %v4138
        %v4150 = vsel %vm1378, %v4138, %v4140
        %v4151 = vsel %vm1378, %v4140, %v4142
        %v4152 = vsel %vm1378, %v4142, %v4144
        %4161 = vst [vmem:[#allocation3 + $0x880] sm:$0xf] %v4145
        %4162 = vst [vmem:[#allocation3 + $0x888] sm:$0xf] %v4146
        %4163 = vst [vmem:[#allocation3 + $0x890] sm:$0xf] %v4147
        %4164 = vst [vmem:[#allocation3 + $0x898] sm:$0xf] %v4148
        %4165 = vst [vmem:[#allocation3 + $0x8a0] sm:$0xf] %v4149
        %4166 = vst [vmem:[#allocation3 + $0x8a8] sm:$0xf] %v4150
        %4167 = vst [vmem:[#allocation3 + $0x8b0] sm:$0xf] %v4151
        %4168 = vst [vmem:[#allocation3 + $0x8b8] sm:$0xf] %v4152
        %v4169 = vld [vmem:[#allocation2 + $0x10] sm:$0xff]
        %v4170 = vld [vmem:[#allocation2 + $0x18] sm:$0xff]
        %v4171 = vld [vmem:[#allocation2 + $0x20] sm:$0xff]
        %v4172 = vld [vmem:[#allocation2 + $0x28] sm:$0xff]
        %v4173 = vld [vmem:[#allocation2 + $0x30] sm:$0xf]
        %v4179 = vcombine.low %v4169, %v4169
        %v4180 = vcombine.low %v4170, %v4170
        %v4181 = vcombine.low %v4171, %v4171
        %v4182 = vcombine.low %v4172, %v4172
        %v4183 = vcombine.low %v4173, %v4173
        %4184 = vrot.lane.b32.xlu0 %v4179, 76
        %v4185 = vpop.permute.xlu0 %4184
        %4186 = vrot.lane.b32.xlu0 %v4169, 76
        %v4187 = vpop.permute.xlu0 %4186
        %4188 = vrot.lane.b32.xlu0 %v4180, 76
        %v4189 = vpop.permute.xlu0 %4188
        %4190 = vrot.lane.b32.xlu0 %v4170, 76
        %v4191 = vpop.permute.xlu0 %4190
        %4192 = vrot.lane.b32.xlu0 %v4181, 76
        %v4193 = vpop.permute.xlu0 %4192
        %4194 = vrot.lane.b32.xlu0 %v4171, 76
        %v4195 = vpop.permute.xlu0 %4194
        %4196 = vrot.lane.b32.xlu0 %v4182, 76
        %v4197 = vpop.permute.xlu0 %4196
        %4198 = vrot.lane.b32.xlu0 %v4172, 76
        %v4199 = vpop.permute.xlu0 %4198
        %4200 = vrot.lane.b32.xlu0 %v4183, 76
        %v4201 = vpop.permute.xlu0 %4200
        %v4202 = vsel %vm1436, %v4185, %v4187
        %v4203 = vsel %vm1436, %v4187, %v4189
        %v4204 = vsel %vm1436, %v4189, %v4191
        %v4205 = vsel %vm1436, %v4191, %v4193
        %v4206 = vsel %vm1436, %v4193, %v4195
        %v4207 = vsel %vm1436, %v4195, %v4197
        %v4208 = vsel %vm1436, %v4197, %v4199
        %v4209 = vsel %vm1436, %v4199, %v4201
        %4218 = vst [vmem:[#allocation3 + $0x880] sm:$0xf0] %v4202
        %4219 = vst [vmem:[#allocation3 + $0x888] sm:$0xf0] %v4203
        %4220 = vst [vmem:[#allocation3 + $0x890] sm:$0xf0] %v4204
        %4221 = vst [vmem:[#allocation3 + $0x898] sm:$0xf0] %v4205
        %4222 = vst [vmem:[#allocation3 + $0x8a0] sm:$0xf0] %v4206
        %4223 = vst [vmem:[#allocation3 + $0x8a8] sm:$0xf0] %v4207
        %4224 = vst [vmem:[#allocation3 + $0x8b0] sm:$0xf0] %v4208
        %4225 = vst [vmem:[#allocation3 + $0x8b8] sm:$0xf0] %v4209
        %v4226 = vld [vmem:[#allocation2 + $0x10] sm:$0xff]
        %v4227 = vld [vmem:[#allocation2 + $0x18] sm:$0xff]
        %v4228 = vld [vmem:[#allocation2 + $0x20] sm:$0xff]
        %v4229 = vld [vmem:[#allocation2 + $0x28] sm:$0xff]
        %v4230 = vld [vmem:[#allocation2 + $0x30] sm:$0xf]
        %v4236 = vcombine.high %v4226, %v4226
        %v4237 = vcombine.high %v4227, %v4227
        %v4238 = vcombine.high %v4228, %v4228
        %v4239 = vcombine.high %v4229, %v4229
        %4240 = vrot.lane.b32.xlu0 %v4226, 64
        %v4241 = vpop.permute.xlu0 %4240
        %4242 = vrot.lane.b32.xlu0 %v4236, 64
        %v4243 = vpop.permute.xlu0 %4242
        %4244 = vrot.lane.b32.xlu0 %v4227, 64
        %v4245 = vpop.permute.xlu0 %4244
        %4246 = vrot.lane.b32.xlu0 %v4237, 64
        %v4247 = vpop.permute.xlu0 %4246
        %4248 = vrot.lane.b32.xlu0 %v4228, 64
        %v4249 = vpop.permute.xlu0 %4248
        %4250 = vrot.lane.b32.xlu0 %v4238, 64
        %v4251 = vpop.permute.xlu0 %4250
        %4252 = vrot.lane.b32.xlu0 %v4229, 64
        %v4253 = vpop.permute.xlu0 %4252
        %4254 = vrot.lane.b32.xlu0 %v4239, 64
        %v4255 = vpop.permute.xlu0 %4254
        %4256 = vrot.lane.b32.xlu0 %v4230, 64
        %v4257 = vpop.permute.xlu0 %4256
        %v4258 = vsel %vm1493, %v4241, %v4243
        %v4259 = vsel %vm1493, %v4243, %v4245
        %v4260 = vsel %vm1493, %v4245, %v4247
        %v4261 = vsel %vm1493, %v4247, %v4249
        %v4262 = vsel %vm1493, %v4249, %v4251
        %v4263 = vsel %vm1493, %v4251, %v4253
        %v4264 = vsel %vm1493, %v4253, %v4255
        %v4265 = vsel %vm1493, %v4255, %v4257
        %4274 = vst [vmem:[#allocation3 + $0x8c0] sm:$0xf] %v4258
        %4275 = vst [vmem:[#allocation3 + $0x8c8] sm:$0xf] %v4259
        %4276 = vst [vmem:[#allocation3 + $0x8d0] sm:$0xf] %v4260
        %4277 = vst [vmem:[#allocation3 + $0x8d8] sm:$0xf] %v4261
        %4278 = vst [vmem:[#allocation3 + $0x8e0] sm:$0xf] %v4262
        %4279 = vst [vmem:[#allocation3 + $0x8e8] sm:$0xf] %v4263
        %4280 = vst [vmem:[#allocation3 + $0x8f0] sm:$0xf] %v4264
        %4281 = vst [vmem:[#allocation3 + $0x8f8] sm:$0xf] %v4265
        %v4282 = vld [vmem:[#allocation2 + $0x10] sm:$0xff]
        %v4283 = vld [vmem:[#allocation2 + $0x18] sm:$0xff]
        %v4284 = vld [vmem:[#allocation2 + $0x20] sm:$0xff]
        %v4285 = vld [vmem:[#allocation2 + $0x28] sm:$0xff]
        %v4286 = vld [vmem:[#allocation2 + $0x30] sm:$0xf]
        %v4292 = vcombine.low %v4282, %v4282
        %v4293 = vcombine.low %v4283, %v4283
        %v4294 = vcombine.low %v4284, %v4284
        %v4295 = vcombine.low %v4285, %v4285
        %v4296 = vcombine.low %v4286, %v4286
        %4297 = vrot.lane.b32.xlu0 %v4292, 63
        %v4298 = vpop.permute.xlu0 %4297
        %4299 = vrot.lane.b32.xlu0 %v4282, 63
        %v4300 = vpop.permute.xlu0 %4299
        %4301 = vrot.lane.b32.xlu0 %v4293, 63
        %v4302 = vpop.permute.xlu0 %4301
        %4303 = vrot.lane.b32.xlu0 %v4283, 63
        %v4304 = vpop.permute.xlu0 %4303
        %4305 = vrot.lane.b32.xlu0 %v4294, 63
        %v4306 = vpop.permute.xlu0 %4305
        %4307 = vrot.lane.b32.xlu0 %v4284, 63
        %v4308 = vpop.permute.xlu0 %4307
        %4309 = vrot.lane.b32.xlu0 %v4295, 63
        %v4310 = vpop.permute.xlu0 %4309
        %4311 = vrot.lane.b32.xlu0 %v4285, 63
        %v4312 = vpop.permute.xlu0 %4311
        %4313 = vrot.lane.b32.xlu0 %v4296, 63
        %v4314 = vpop.permute.xlu0 %4313
        %v4315 = vsel %vm1551, %v4298, %v4300
        %v4316 = vsel %vm1551, %v4300, %v4302
        %v4317 = vsel %vm1551, %v4302, %v4304
        %v4318 = vsel %vm1551, %v4304, %v4306
        %v4319 = vsel %vm1551, %v4306, %v4308
        %v4320 = vsel %vm1551, %v4308, %v4310
        %v4321 = vsel %vm1551, %v4310, %v4312
        %v4322 = vsel %vm1551, %v4312, %v4314
        %4331 = vst [vmem:[#allocation3 + $0x8c0] sm:$0xf0] %v4315
        %4332 = vst [vmem:[#allocation3 + $0x8c8] sm:$0xf0] %v4316
        %4333 = vst [vmem:[#allocation3 + $0x8d0] sm:$0xf0] %v4317
        %4334 = vst [vmem:[#allocation3 + $0x8d8] sm:$0xf0] %v4318
        %4335 = vst [vmem:[#allocation3 + $0x8e0] sm:$0xf0] %v4319
        %4336 = vst [vmem:[#allocation3 + $0x8e8] sm:$0xf0] %v4320
        %4337 = vst [vmem:[#allocation3 + $0x8f0] sm:$0xf0] %v4321
        %4338 = vst [vmem:[#allocation3 + $0x8f8] sm:$0xf0] %v4322
        %v4339 = vld [vmem:[#allocation2 + $0x10] sm:$0xff]
        %v4340 = vld [vmem:[#allocation2 + $0x18] sm:$0xff]
        %v4341 = vld [vmem:[#allocation2 + $0x20] sm:$0xff]
        %v4342 = vld [vmem:[#allocation2 + $0x28] sm:$0xff]
        %v4343 = vld [vmem:[#allocation2 + $0x30] sm:$0xf]
        %v4349 = vcombine.high %v4339, %v4339
        %v4350 = vcombine.high %v4340, %v4340
        %v4351 = vcombine.high %v4341, %v4341
        %v4352 = vcombine.high %v4342, %v4342
        %4353 = vrot.lane.b32.xlu0 %v4339, 62
        %v4354 = vpop.permute.xlu0 %4353
        %4355 = vrot.lane.b32.xlu0 %v4349, 62
        %v4356 = vpop.permute.xlu0 %4355
        %4357 = vrot.lane.b32.xlu0 %v4340, 62
        %v4358 = vpop.permute.xlu0 %4357
        %4359 = vrot.lane.b32.xlu0 %v4350, 62
        %v4360 = vpop.permute.xlu0 %4359
        %4361 = vrot.lane.b32.xlu0 %v4341, 62
        %v4362 = vpop.permute.xlu0 %4361
        %4363 = vrot.lane.b32.xlu0 %v4351, 62
        %v4364 = vpop.permute.xlu0 %4363
        %4365 = vrot.lane.b32.xlu0 %v4342, 62
        %v4366 = vpop.permute.xlu0 %4365
        %4367 = vrot.lane.b32.xlu0 %v4352, 62
        %v4368 = vpop.permute.xlu0 %4367
        %4369 = vrot.lane.b32.xlu0 %v4343, 62
        %v4370 = vpop.permute.xlu0 %4369
        %v4371 = vsel %vm1608, %v4354, %v4356
        %v4372 = vsel %vm1608, %v4356, %v4358
        %v4373 = vsel %vm1608, %v4358, %v4360
        %v4374 = vsel %vm1608, %v4360, %v4362
        %v4375 = vsel %vm1608, %v4362, %v4364
        %v4376 = vsel %vm1608, %v4364, %v4366
        %v4377 = vsel %vm1608, %v4366, %v4368
        %v4378 = vsel %vm1608, %v4368, %v4370
        %4387 = vst [vmem:[#allocation3 + $0x900] sm:$0xf] %v4371
        %4388 = vst [vmem:[#allocation3 + $0x908] sm:$0xf] %v4372
        %4389 = vst [vmem:[#allocation3 + $0x910] sm:$0xf] %v4373
        %4390 = vst [vmem:[#allocation3 + $0x918] sm:$0xf] %v4374
        %4391 = vst [vmem:[#allocation3 + $0x920] sm:$0xf] %v4375
        %4392 = vst [vmem:[#allocation3 + $0x928] sm:$0xf] %v4376
        %4393 = vst [vmem:[#allocation3 + $0x930] sm:$0xf] %v4377
        %4394 = vst [vmem:[#allocation3 + $0x938] sm:$0xf] %v4378
        %v4395 = vld [vmem:[#allocation2 + $0x10] sm:$0xff]
        %v4396 = vld [vmem:[#allocation2 + $0x18] sm:$0xff]
        %v4397 = vld [vmem:[#allocation2 + $0x20] sm:$0xff]
        %v4398 = vld [vmem:[#allocation2 + $0x28] sm:$0xff]
        %v4399 = vld [vmem:[#allocation2 + $0x30] sm:$0xf]
        %v4405 = vcombine.low %v4395, %v4395
        %v4406 = vcombine.low %v4396, %v4396
        %v4407 = vcombine.low %v4397, %v4397
        %v4408 = vcombine.low %v4398, %v4398
        %v4409 = vcombine.low %v4399, %v4399
        %4410 = vrot.lane.b32.xlu0 %v4405, 61
        %v4411 = vpop.permute.xlu0 %4410
        %4412 = vrot.lane.b32.xlu0 %v4395, 61
        %v4413 = vpop.permute.xlu0 %4412
        %4414 = vrot.lane.b32.xlu0 %v4406, 61
        %v4415 = vpop.permute.xlu0 %4414
        %4416 = vrot.lane.b32.xlu0 %v4396, 61
        %v4417 = vpop.permute.xlu0 %4416
        %4418 = vrot.lane.b32.xlu0 %v4407, 61
        %v4419 = vpop.permute.xlu0 %4418
        %4420 = vrot.lane.b32.xlu0 %v4397, 61
        %v4421 = vpop.permute.xlu0 %4420
        %4422 = vrot.lane.b32.xlu0 %v4408, 61
        %v4423 = vpop.permute.xlu0 %4422
        %4424 = vrot.lane.b32.xlu0 %v4398, 61
        %v4425 = vpop.permute.xlu0 %4424
        %4426 = vrot.lane.b32.xlu0 %v4409, 61
        %v4427 = vpop.permute.xlu0 %4426
        %v4428 = vsel %vm1666, %v4411, %v4413
        %v4429 = vsel %vm1666, %v4413, %v4415
        %v4430 = vsel %vm1666, %v4415, %v4417
        %v4431 = vsel %vm1666, %v4417, %v4419
        %v4432 = vsel %vm1666, %v4419, %v4421
        %v4433 = vsel %vm1666, %v4421, %v4423
        %v4434 = vsel %vm1666, %v4423, %v4425
        %v4435 = vsel %vm1666, %v4425, %v4427
        %4444 = vst [vmem:[#allocation3 + $0x900] sm:$0xf0] %v4428
        %4445 = vst [vmem:[#allocation3 + $0x908] sm:$0xf0] %v4429
        %4446 = vst [vmem:[#allocation3 + $0x910] sm:$0xf0] %v4430
        %4447 = vst [vmem:[#allocation3 + $0x918] sm:$0xf0] %v4431
        %4448 = vst [vmem:[#allocation3 + $0x920] sm:$0xf0] %v4432
        %4449 = vst [vmem:[#allocation3 + $0x928] sm:$0xf0] %v4433
        %4450 = vst [vmem:[#allocation3 + $0x930] sm:$0xf0] %v4434
        %4451 = vst [vmem:[#allocation3 + $0x938] sm:$0xf0] %v4435
        %v4452 = vld [vmem:[#allocation2 + $0x10] sm:$0xff]
        %v4453 = vld [vmem:[#allocation2 + $0x18] sm:$0xff]
        %v4454 = vld [vmem:[#allocation2 + $0x20] sm:$0xff]
        %v4455 = vld [vmem:[#allocation2 + $0x28] sm:$0xff]
        %v4456 = vld [vmem:[#allocation2 + $0x30] sm:$0xf]
        %v4462 = vcombine.high %v4452, %v4452
        %v4463 = vcombine.high %v4453, %v4453
        %v4464 = vcombine.high %v4454, %v4454
        %v4465 = vcombine.high %v4455, %v4455
        %4466 = vrot.lane.b32.xlu0 %v4452, 60
        %v4467 = vpop.permute.xlu0 %4466
        %4468 = vrot.lane.b32.xlu0 %v4462, 60
        %v4469 = vpop.permute.xlu0 %4468
        %4470 = vrot.lane.b32.xlu0 %v4453, 60
        %v4471 = vpop.permute.xlu0 %4470
        %4472 = vrot.lane.b32.xlu0 %v4463, 60
        %v4473 = vpop.permute.xlu0 %4472
        %4474 = vrot.lane.b32.xlu0 %v4454, 60
        %v4475 = vpop.permute.xlu0 %4474
        %4476 = vrot.lane.b32.xlu0 %v4464, 60
        %v4477 = vpop.permute.xlu0 %4476
        %4478 = vrot.lane.b32.xlu0 %v4455, 60
        %v4479 = vpop.permute.xlu0 %4478
        %4480 = vrot.lane.b32.xlu0 %v4465, 60
        %v4481 = vpop.permute.xlu0 %4480
        %4482 = vrot.lane.b32.xlu0 %v4456, 60
        %v4483 = vpop.permute.xlu0 %4482
        %v4484 = vsel %vm1723, %v4467, %v4469
        %v4485 = vsel %vm1723, %v4469, %v4471
        %v4486 = vsel %vm1723, %v4471, %v4473
        %v4487 = vsel %vm1723, %v4473, %v4475
        %v4488 = vsel %vm1723, %v4475, %v4477
        %v4489 = vsel %vm1723, %v4477, %v4479
        %v4490 = vsel %vm1723, %v4479, %v4481
        %v4491 = vsel %vm1723, %v4481, %v4483
        %4500 = vst [vmem:[#allocation3 + $0x940] sm:$0xf] %v4484
        %4501 = vst [vmem:[#allocation3 + $0x948] sm:$0xf] %v4485
        %4502 = vst [vmem:[#allocation3 + $0x950] sm:$0xf] %v4486
        %4503 = vst [vmem:[#allocation3 + $0x958] sm:$0xf] %v4487
        %4504 = vst [vmem:[#allocation3 + $0x960] sm:$0xf] %v4488
        %4505 = vst [vmem:[#allocation3 + $0x968] sm:$0xf] %v4489
        %4506 = vst [vmem:[#allocation3 + $0x970] sm:$0xf] %v4490
        %4507 = vst [vmem:[#allocation3 + $0x978] sm:$0xf] %v4491
        %v4508 = vld [vmem:[#allocation2 + $0x18] sm:$0xff]
        %v4509 = vld [vmem:[#allocation2 + $0x20] sm:$0xff]
        %v4510 = vld [vmem:[#allocation2 + $0x28] sm:$0xff]
        %v4511 = vld [vmem:[#allocation2 + $0x30] sm:$0xff]
        %v4516 = vcombine.low %v4508, %v4508
        %v4517 = vcombine.low %v4509, %v4509
        %v4518 = vcombine.low %v4510, %v4510
        %v4519 = vcombine.low %v4511, %v4511
        %4524 = vst [vmem:[#allocation3 + $0x940] sm:$0xf0] %v4516
        %4525 = vst [vmem:[#allocation3 + $0x948] sm:$0xf0] %v4508
        %4526 = vst [vmem:[#allocation3 + $0x950] sm:$0xf0] %v4517
        %4527 = vst [vmem:[#allocation3 + $0x958] sm:$0xf0] %v4509
        %4528 = vst [vmem:[#allocation3 + $0x960] sm:$0xf0] %v4518
        %4529 = vst [vmem:[#allocation3 + $0x968] sm:$0xf0] %v4510
        %4530 = vst [vmem:[#allocation3 + $0x970] sm:$0xf0] %v4519
        %4531 = vst [vmem:[#allocation3 + $0x978] sm:$0xf0] %v4511
        %v4532 = vld [vmem:[#allocation2 + $0x18] sm:$0xff]
        %v4533 = vld [vmem:[#allocation2 + $0x20] sm:$0xff]
        %v4534 = vld [vmem:[#allocation2 + $0x28] sm:$0xff]
        %v4535 = vld [vmem:[#allocation2 + $0x30] sm:$0xff]
        %v4536 = vld [vmem:[#allocation2 + $0x38] sm:$0xf]
        %v4542 = vcombine.high %v4532, %v4532
        %v4543 = vcombine.high %v4533, %v4533
        %v4544 = vcombine.high %v4534, %v4534
        %v4545 = vcombine.high %v4535, %v4535
        %4546 = vrot.lane.b32.xlu0 %v4532, 127
        %v4547 = vpop.permute.xlu0 %4546
        %4548 = vrot.lane.b32.xlu0 %v4542, 127
        %v4549 = vpop.permute.xlu0 %4548
        %4550 = vrot.lane.b32.xlu0 %v4533, 127
        %v4551 = vpop.permute.xlu0 %4550
        %4552 = vrot.lane.b32.xlu0 %v4543, 127
        %v4553 = vpop.permute.xlu0 %4552
        %4554 = vrot.lane.b32.xlu0 %v4534, 127
        %v4555 = vpop.permute.xlu0 %4554
        %4556 = vrot.lane.b32.xlu0 %v4544, 127
        %v4557 = vpop.permute.xlu0 %4556
        %4558 = vrot.lane.b32.xlu0 %v4535, 127
        %v4559 = vpop.permute.xlu0 %4558
        %4560 = vrot.lane.b32.xlu0 %v4545, 127
        %v4561 = vpop.permute.xlu0 %4560
        %4562 = vrot.lane.b32.xlu0 %v4536, 127
        %v4563 = vpop.permute.xlu0 %4562
        %v4564 = vsel %vm401, %v4547, %v4549
        %v4565 = vsel %vm401, %v4549, %v4551
        %v4566 = vsel %vm401, %v4551, %v4553
        %v4567 = vsel %vm401, %v4553, %v4555
        %v4568 = vsel %vm401, %v4555, %v4557
        %v4569 = vsel %vm401, %v4557, %v4559
        %v4570 = vsel %vm401, %v4559, %v4561
        %v4571 = vsel %vm401, %v4561, %v4563
        %4580 = vst [vmem:[#allocation3 + $0x980] sm:$0xf] %v4564
        %4581 = vst [vmem:[#allocation3 + $0x988] sm:$0xf] %v4565
        %4582 = vst [vmem:[#allocation3 + $0x990] sm:$0xf] %v4566
        %4583 = vst [vmem:[#allocation3 + $0x998] sm:$0xf] %v4567
        %4584 = vst [vmem:[#allocation3 + $0x9a0] sm:$0xf] %v4568
        %4585 = vst [vmem:[#allocation3 + $0x9a8] sm:$0xf] %v4569
        %4586 = vst [vmem:[#allocation3 + $0x9b0] sm:$0xf] %v4570
        %4587 = vst [vmem:[#allocation3 + $0x9b8] sm:$0xf] %v4571
        %v4588 = vld [vmem:[#allocation2 + $0x18] sm:$0xff]
        %v4589 = vld [vmem:[#allocation2 + $0x20] sm:$0xff]
        %v4590 = vld [vmem:[#allocation2 + $0x28] sm:$0xff]
        %v4591 = vld [vmem:[#allocation2 + $0x30] sm:$0xff]
        %v4592 = vld [vmem:[#allocation2 + $0x38] sm:$0xf]
        %v4598 = vcombine.low %v4588, %v4588
        %v4599 = vcombine.low %v4589, %v4589
        %v4600 = vcombine.low %v4590, %v4590
        %v4601 = vcombine.low %v4591, %v4591
        %v4602 = vcombine.low %v4592, %v4592
        %4603 = vrot.lane.b32.xlu0 %v4598, 126
        %v4604 = vpop.permute.xlu0 %4603
        %4605 = vrot.lane.b32.xlu0 %v4588, 126
        %v4606 = vpop.permute.xlu0 %4605
        %4607 = vrot.lane.b32.xlu0 %v4599, 126
        %v4608 = vpop.permute.xlu0 %4607
        %4609 = vrot.lane.b32.xlu0 %v4589, 126
        %v4610 = vpop.permute.xlu0 %4609
        %4611 = vrot.lane.b32.xlu0 %v4600, 126
        %v4612 = vpop.permute.xlu0 %4611
        %4613 = vrot.lane.b32.xlu0 %v4590, 126
        %v4614 = vpop.permute.xlu0 %4613
        %4615 = vrot.lane.b32.xlu0 %v4601, 126
        %v4616 = vpop.permute.xlu0 %4615
        %4617 = vrot.lane.b32.xlu0 %v4591, 126
        %v4618 = vpop.permute.xlu0 %4617
        %4619 = vrot.lane.b32.xlu0 %v4602, 126
        %v4620 = vpop.permute.xlu0 %4619
        %v4621 = vsel %vm458, %v4604, %v4606
        %v4622 = vsel %vm458, %v4606, %v4608
        %v4623 = vsel %vm458, %v4608, %v4610
        %v4624 = vsel %vm458, %v4610, %v4612
        %v4625 = vsel %vm458, %v4612, %v4614
        %v4626 = vsel %vm458, %v4614, %v4616
        %v4627 = vsel %vm458, %v4616, %v4618
        %v4628 = vsel %vm458, %v4618, %v4620
        %4637 = vst [vmem:[#allocation3 + $0x980] sm:$0xf0] %v4621
        %4638 = vst [vmem:[#allocation3 + $0x988] sm:$0xf0] %v4622
        %4639 = vst [vmem:[#allocation3 + $0x990] sm:$0xf0] %v4623
        %4640 = vst [vmem:[#allocation3 + $0x998] sm:$0xf0] %v4624
        %4641 = vst [vmem:[#allocation3 + $0x9a0] sm:$0xf0] %v4625
        %4642 = vst [vmem:[#allocation3 + $0x9a8] sm:$0xf0] %v4626
        %4643 = vst [vmem:[#allocation3 + $0x9b0] sm:$0xf0] %v4627
        %4644 = vst [vmem:[#allocation3 + $0x9b8] sm:$0xf0] %v4628
        %v4645 = vld [vmem:[#allocation2 + $0x18] sm:$0xff]
        %v4646 = vld [vmem:[#allocation2 + $0x20] sm:$0xff]
        %v4647 = vld [vmem:[#allocation2 + $0x28] sm:$0xff]
        %v4648 = vld [vmem:[#allocation2 + $0x30] sm:$0xff]
        %v4649 = vld [vmem:[#allocation2 + $0x38] sm:$0xf]
        %v4655 = vcombine.high %v4645, %v4645
        %v4656 = vcombine.high %v4646, %v4646
        %v4657 = vcombine.high %v4647, %v4647
        %v4658 = vcombine.high %v4648, %v4648
        %4659 = vrot.lane.b32.xlu0 %v4645, 125
        %v4660 = vpop.permute.xlu0 %4659
        %4661 = vrot.lane.b32.xlu0 %v4655, 125
        %v4662 = vpop.permute.xlu0 %4661
        %4663 = vrot.lane.b32.xlu0 %v4646, 125
        %v4664 = vpop.permute.xlu0 %4663
        %4665 = vrot.lane.b32.xlu0 %v4656, 125
        %v4666 = vpop.permute.xlu0 %4665
        %4667 = vrot.lane.b32.xlu0 %v4647, 125
        %v4668 = vpop.permute.xlu0 %4667
        %4669 = vrot.lane.b32.xlu0 %v4657, 125
        %v4670 = vpop.permute.xlu0 %4669
        %4671 = vrot.lane.b32.xlu0 %v4648, 125
        %v4672 = vpop.permute.xlu0 %4671
        %4673 = vrot.lane.b32.xlu0 %v4658, 125
        %v4674 = vpop.permute.xlu0 %4673
        %4675 = vrot.lane.b32.xlu0 %v4649, 125
        %v4676 = vpop.permute.xlu0 %4675
        %v4677 = vsel %vm516, %v4660, %v4662
        %v4678 = vsel %vm516, %v4662, %v4664
        %v4679 = vsel %vm516, %v4664, %v4666
        %v4680 = vsel %vm516, %v4666, %v4668
        %v4681 = vsel %vm516, %v4668, %v4670
        %v4682 = vsel %vm516, %v4670, %v4672
        %v4683 = vsel %vm516, %v4672, %v4674
        %v4684 = vsel %vm516, %v4674, %v4676
        %4693 = vst [vmem:[#allocation3 + $0x9c0] sm:$0xf] %v4677
        %4694 = vst [vmem:[#allocation3 + $0x9c8] sm:$0xf] %v4678
        %4695 = vst [vmem:[#allocation3 + $0x9d0] sm:$0xf] %v4679
        %4696 = vst [vmem:[#allocation3 + $0x9d8] sm:$0xf] %v4680
        %4697 = vst [vmem:[#allocation3 + $0x9e0] sm:$0xf] %v4681
        %4698 = vst [vmem:[#allocation3 + $0x9e8] sm:$0xf] %v4682
        %4699 = vst [vmem:[#allocation3 + $0x9f0] sm:$0xf] %v4683
        %4700 = vst [vmem:[#allocation3 + $0x9f8] sm:$0xf] %v4684
        %v4701 = vld [vmem:[#allocation2 + $0x18] sm:$0xff]
        %v4702 = vld [vmem:[#allocation2 + $0x20] sm:$0xff]
        %v4703 = vld [vmem:[#allocation2 + $0x28] sm:$0xff]
        %v4704 = vld [vmem:[#allocation2 + $0x30] sm:$0xff]
        %v4705 = vld [vmem:[#allocation2 + $0x38] sm:$0xf]
        %v4711 = vcombine.low %v4701, %v4701
        %v4712 = vcombine.low %v4702, %v4702
        %v4713 = vcombine.low %v4703, %v4703
        %v4714 = vcombine.low %v4704, %v4704
        %v4715 = vcombine.low %v4705, %v4705
        %4716 = vrot.lane.b32.xlu0 %v4711, 124
        %v4717 = vpop.permute.xlu0 %4716
        %4718 = vrot.lane.b32.xlu0 %v4701, 124
        %v4719 = vpop.permute.xlu0 %4718
        %4720 = vrot.lane.b32.xlu0 %v4712, 124
        %v4721 = vpop.permute.xlu0 %4720
        %4722 = vrot.lane.b32.xlu0 %v4702, 124
        %v4723 = vpop.permute.xlu0 %4722
        %4724 = vrot.lane.b32.xlu0 %v4713, 124
        %v4725 = vpop.permute.xlu0 %4724
        %4726 = vrot.lane.b32.xlu0 %v4703, 124
        %v4727 = vpop.permute.xlu0 %4726
        %4728 = vrot.lane.b32.xlu0 %v4714, 124
        %v4729 = vpop.permute.xlu0 %4728
        %4730 = vrot.lane.b32.xlu0 %v4704, 124
        %v4731 = vpop.permute.xlu0 %4730
        %4732 = vrot.lane.b32.xlu0 %v4715, 124
        %v4733 = vpop.permute.xlu0 %4732
        %v4734 = vsel %vm573, %v4717, %v4719
        %v4735 = vsel %vm573, %v4719, %v4721
        %v4736 = vsel %vm573, %v4721, %v4723
        %v4737 = vsel %vm573, %v4723, %v4725
        %v4738 = vsel %vm573, %v4725, %v4727
        %v4739 = vsel %vm573, %v4727, %v4729
        %v4740 = vsel %vm573, %v4729, %v4731
        %v4741 = vsel %vm573, %v4731, %v4733
        %4750 = vst [vmem:[#allocation3 + $0x9c0] sm:$0xf0] %v4734
        %4751 = vst [vmem:[#allocation3 + $0x9c8] sm:$0xf0] %v4735
        %4752 = vst [vmem:[#allocation3 + $0x9d0] sm:$0xf0] %v4736
        %4753 = vst [vmem:[#allocation3 + $0x9d8] sm:$0xf0] %v4737
        %4754 = vst [vmem:[#allocation3 + $0x9e0] sm:$0xf0] %v4738
        %4755 = vst [vmem:[#allocation3 + $0x9e8] sm:$0xf0] %v4739
        %4756 = vst [vmem:[#allocation3 + $0x9f0] sm:$0xf0] %v4740
        %4757 = vst [vmem:[#allocation3 + $0x9f8] sm:$0xf0] %v4741
        %v4758 = vld [vmem:[#allocation2 + $0x18] sm:$0xff]
        %v4759 = vld [vmem:[#allocation2 + $0x20] sm:$0xff]
        %v4760 = vld [vmem:[#allocation2 + $0x28] sm:$0xff]
        %v4761 = vld [vmem:[#allocation2 + $0x30] sm:$0xff]
        %v4762 = vld [vmem:[#allocation2 + $0x38] sm:$0xf]
        %v4768 = vcombine.high %v4758, %v4758
        %v4769 = vcombine.high %v4759, %v4759
        %v4770 = vcombine.high %v4760, %v4760
        %v4771 = vcombine.high %v4761, %v4761
        %4772 = vrot.lane.b32.xlu0 %v4758, 112
        %v4773 = vpop.permute.xlu0 %4772
        %4774 = vrot.lane.b32.xlu0 %v4768, 112
        %v4775 = vpop.permute.xlu0 %4774
        %4776 = vrot.lane.b32.xlu0 %v4759, 112
        %v4777 = vpop.permute.xlu0 %4776
        %4778 = vrot.lane.b32.xlu0 %v4769, 112
        %v4779 = vpop.permute.xlu0 %4778
        %4780 = vrot.lane.b32.xlu0 %v4760, 112
        %v4781 = vpop.permute.xlu0 %4780
        %4782 = vrot.lane.b32.xlu0 %v4770, 112
        %v4783 = vpop.permute.xlu0 %4782
        %4784 = vrot.lane.b32.xlu0 %v4761, 112
        %v4785 = vpop.permute.xlu0 %4784
        %4786 = vrot.lane.b32.xlu0 %v4771, 112
        %v4787 = vpop.permute.xlu0 %4786
        %4788 = vrot.lane.b32.xlu0 %v4762, 112
        %v4789 = vpop.permute.xlu0 %4788
        %v4790 = vsel %vm631, %v4773, %v4775
        %v4791 = vsel %vm631, %v4775, %v4777
        %v4792 = vsel %vm631, %v4777, %v4779
        %v4793 = vsel %vm631, %v4779, %v4781
        %v4794 = vsel %vm631, %v4781, %v4783
        %v4795 = vsel %vm631, %v4783, %v4785
        %v4796 = vsel %vm631, %v4785, %v4787
        %v4797 = vsel %vm631, %v4787, %v4789
        %4806 = vst [vmem:[#allocation3 + $0xa00] sm:$0xf] %v4790
        %4807 = vst [vmem:[#allocation3 + $0xa08] sm:$0xf] %v4791
        %4808 = vst [vmem:[#allocation3 + $0xa10] sm:$0xf] %v4792
        %4809 = vst [vmem:[#allocation3 + $0xa18] sm:$0xf] %v4793
        %4810 = vst [vmem:[#allocation3 + $0xa20] sm:$0xf] %v4794
        %4811 = vst [vmem:[#allocation3 + $0xa28] sm:$0xf] %v4795
        %4812 = vst [vmem:[#allocation3 + $0xa30] sm:$0xf] %v4796
        %4813 = vst [vmem:[#allocation3 + $0xa38] sm:$0xf] %v4797
        %v4814 = vld [vmem:[#allocation2 + $0x18] sm:$0xff]
        %v4815 = vld [vmem:[#allocation2 + $0x20] sm:$0xff]
        %v4816 = vld [vmem:[#allocation2 + $0x28] sm:$0xff]
        %v4817 = vld [vmem:[#allocation2 + $0x30] sm:$0xff]
        %v4818 = vld [vmem:[#allocation2 + $0x38] sm:$0xf]
        %v4824 = vcombine.low %v4814, %v4814
        %v4825 = vcombine.low %v4815, %v4815
        %v4826 = vcombine.low %v4816, %v4816
        %v4827 = vcombine.low %v4817, %v4817
        %v4828 = vcombine.low %v4818, %v4818
        %4829 = vrot.lane.b32.xlu0 %v4824, 111
        %v4830 = vpop.permute.xlu0 %4829
        %4831 = vrot.lane.b32.xlu0 %v4814, 111
        %v4832 = vpop.permute.xlu0 %4831
        %4833 = vrot.lane.b32.xlu0 %v4825, 111
        %v4834 = vpop.permute.xlu0 %4833
        %4835 = vrot.lane.b32.xlu0 %v4815, 111
        %v4836 = vpop.permute.xlu0 %4835
        %4837 = vrot.lane.b32.xlu0 %v4826, 111
        %v4838 = vpop.permute.xlu0 %4837
        %4839 = vrot.lane.b32.xlu0 %v4816, 111
        %v4840 = vpop.permute.xlu0 %4839
        %4841 = vrot.lane.b32.xlu0 %v4827, 111
        %v4842 = vpop.permute.xlu0 %4841
        %4843 = vrot.lane.b32.xlu0 %v4817, 111
        %v4844 = vpop.permute.xlu0 %4843
        %4845 = vrot.lane.b32.xlu0 %v4828, 111
        %v4846 = vpop.permute.xlu0 %4845
        %v4847 = vsel %vm688, %v4830, %v4832
        %v4848 = vsel %vm688, %v4832, %v4834
        %v4849 = vsel %vm688, %v4834, %v4836
        %v4850 = vsel %vm688, %v4836, %v4838
        %v4851 = vsel %vm688, %v4838, %v4840
        %v4852 = vsel %vm688, %v4840, %v4842
        %v4853 = vsel %vm688, %v4842, %v4844
        %v4854 = vsel %vm688, %v4844, %v4846
        %4863 = vst [vmem:[#allocation3 + $0xa00] sm:$0xf0] %v4847
        %4864 = vst [vmem:[#allocation3 + $0xa08] sm:$0xf0] %v4848
        %4865 = vst [vmem:[#allocation3 + $0xa10] sm:$0xf0] %v4849
        %4866 = vst [vmem:[#allocation3 + $0xa18] sm:$0xf0] %v4850
        %4867 = vst [vmem:[#allocation3 + $0xa20] sm:$0xf0] %v4851
        %4868 = vst [vmem:[#allocation3 + $0xa28] sm:$0xf0] %v4852
        %4869 = vst [vmem:[#allocation3 + $0xa30] sm:$0xf0] %v4853
        %4870 = vst [vmem:[#allocation3 + $0xa38] sm:$0xf0] %v4854
        %v4871 = vld [vmem:[#allocation2 + $0x18] sm:$0xff]
        %v4872 = vld [vmem:[#allocation2 + $0x20] sm:$0xff]
        %v4873 = vld [vmem:[#allocation2 + $0x28] sm:$0xff]
        %v4874 = vld [vmem:[#allocation2 + $0x30] sm:$0xff]
        %v4875 = vld [vmem:[#allocation2 + $0x38] sm:$0xf]
        %v4881 = vcombine.high %v4871, %v4871
        %v4882 = vcombine.high %v4872, %v4872
        %v4883 = vcombine.high %v4873, %v4873
        %v4884 = vcombine.high %v4874, %v4874
        %4885 = vrot.lane.b32.xlu0 %v4871, 110
        %v4886 = vpop.permute.xlu0 %4885
        %4887 = vrot.lane.b32.xlu0 %v4881, 110
        %v4888 = vpop.permute.xlu0 %4887
        %4889 = vrot.lane.b32.xlu0 %v4872, 110
        %v4890 = vpop.permute.xlu0 %4889
        %4891 = vrot.lane.b32.xlu0 %v4882, 110
        %v4892 = vpop.permute.xlu0 %4891
        %4893 = vrot.lane.b32.xlu0 %v4873, 110
        %v4894 = vpop.permute.xlu0 %4893
        %4895 = vrot.lane.b32.xlu0 %v4883, 110
        %v4896 = vpop.permute.xlu0 %4895
        %4897 = vrot.lane.b32.xlu0 %v4874, 110
        %v4898 = vpop.permute.xlu0 %4897
        %4899 = vrot.lane.b32.xlu0 %v4884, 110
        %v4900 = vpop.permute.xlu0 %4899
        %4901 = vrot.lane.b32.xlu0 %v4875, 110
        %v4902 = vpop.permute.xlu0 %4901
        %v4903 = vsel %vm746, %v4886, %v4888
        %v4904 = vsel %vm746, %v4888, %v4890
        %v4905 = vsel %vm746, %v4890, %v4892
        %v4906 = vsel %vm746, %v4892, %v4894
        %v4907 = vsel %vm746, %v4894, %v4896
        %v4908 = vsel %vm746, %v4896, %v4898
        %v4909 = vsel %vm746, %v4898, %v4900
        %v4910 = vsel %vm746, %v4900, %v4902
        %4919 = vst [vmem:[#allocation3 + $0xa40] sm:$0xf] %v4903
        %4920 = vst [vmem:[#allocation3 + $0xa48] sm:$0xf] %v4904
        %4921 = vst [vmem:[#allocation3 + $0xa50] sm:$0xf] %v4905
        %4922 = vst [vmem:[#allocation3 + $0xa58] sm:$0xf] %v4906
        %4923 = vst [vmem:[#allocation3 + $0xa60] sm:$0xf] %v4907
        %4924 = vst [vmem:[#allocation3 + $0xa68] sm:$0xf] %v4908
        %4925 = vst [vmem:[#allocation3 + $0xa70] sm:$0xf] %v4909
        %4926 = vst [vmem:[#allocation3 + $0xa78] sm:$0xf] %v4910
        %v4927 = vld [vmem:[#allocation2 + $0x18] sm:$0xff]
        %v4928 = vld [vmem:[#allocation2 + $0x20] sm:$0xff]
        %v4929 = vld [vmem:[#allocation2 + $0x28] sm:$0xff]
        %v4930 = vld [vmem:[#allocation2 + $0x30] sm:$0xff]
        %v4931 = vld [vmem:[#allocation2 + $0x38] sm:$0xf]
        %v4937 = vcombine.low %v4927, %v4927
        %v4938 = vcombine.low %v4928, %v4928
        %v4939 = vcombine.low %v4929, %v4929
        %v4940 = vcombine.low %v4930, %v4930
        %v4941 = vcombine.low %v4931, %v4931
        %4942 = vrot.lane.b32.xlu0 %v4937, 109
        %v4943 = vpop.permute.xlu0 %4942
        %4944 = vrot.lane.b32.xlu0 %v4927, 109
        %v4945 = vpop.permute.xlu0 %4944
        %4946 = vrot.lane.b32.xlu0 %v4938, 109
        %v4947 = vpop.permute.xlu0 %4946
        %4948 = vrot.lane.b32.xlu0 %v4928, 109
        %v4949 = vpop.permute.xlu0 %4948
        %4950 = vrot.lane.b32.xlu0 %v4939, 109
        %v4951 = vpop.permute.xlu0 %4950
        %4952 = vrot.lane.b32.xlu0 %v4929, 109
        %v4953 = vpop.permute.xlu0 %4952
        %4954 = vrot.lane.b32.xlu0 %v4940, 109
        %v4955 = vpop.permute.xlu0 %4954
        %4956 = vrot.lane.b32.xlu0 %v4930, 109
        %v4957 = vpop.permute.xlu0 %4956
        %4958 = vrot.lane.b32.xlu0 %v4941, 109
        %v4959 = vpop.permute.xlu0 %4958
        %v4960 = vsel %vm803, %v4943, %v4945
        %v4961 = vsel %vm803, %v4945, %v4947
        %v4962 = vsel %vm803, %v4947, %v4949
        %v4963 = vsel %vm803, %v4949, %v4951
        %v4964 = vsel %vm803, %v4951, %v4953
        %v4965 = vsel %vm803, %v4953, %v4955
        %v4966 = vsel %vm803, %v4955, %v4957
        %v4967 = vsel %vm803, %v4957, %v4959
        %4976 = vst [vmem:[#allocation3 + $0xa40] sm:$0xf0] %v4960
        %4977 = vst [vmem:[#allocation3 + $0xa48] sm:$0xf0] %v4961
        %4978 = vst [vmem:[#allocation3 + $0xa50] sm:$0xf0] %v4962
        %4979 = vst [vmem:[#allocation3 + $0xa58] sm:$0xf0] %v4963
        %4980 = vst [vmem:[#allocation3 + $0xa60] sm:$0xf0] %v4964
        %4981 = vst [vmem:[#allocation3 + $0xa68] sm:$0xf0] %v4965
        %4982 = vst [vmem:[#allocation3 + $0xa70] sm:$0xf0] %v4966
        %4983 = vst [vmem:[#allocation3 + $0xa78] sm:$0xf0] %v4967
        %v4984 = vld [vmem:[#allocation2 + $0x18] sm:$0xff]
        %v4985 = vld [vmem:[#allocation2 + $0x20] sm:$0xff]
        %v4986 = vld [vmem:[#allocation2 + $0x28] sm:$0xff]
        %v4987 = vld [vmem:[#allocation2 + $0x30] sm:$0xff]
        %v4988 = vld [vmem:[#allocation2 + $0x38] sm:$0xf]
        %v4994 = vcombine.high %v4984, %v4984
        %v4995 = vcombine.high %v4985, %v4985
        %v4996 = vcombine.high %v4986, %v4986
        %v4997 = vcombine.high %v4987, %v4987
        %4998 = vrot.lane.b32.xlu0 %v4984, 108
        %v4999 = vpop.permute.xlu0 %4998
        %5000 = vrot.lane.b32.xlu0 %v4994, 108
        %v5001 = vpop.permute.xlu0 %5000
        %5002 = vrot.lane.b32.xlu0 %v4985, 108
        %v5003 = vpop.permute.xlu0 %5002
        %5004 = vrot.lane.b32.xlu0 %v4995, 108
        %v5005 = vpop.permute.xlu0 %5004
        %5006 = vrot.lane.b32.xlu0 %v4986, 108
        %v5007 = vpop.permute.xlu0 %5006
        %5008 = vrot.lane.b32.xlu0 %v4996, 108
        %v5009 = vpop.permute.xlu0 %5008
        %5010 = vrot.lane.b32.xlu0 %v4987, 108
        %v5011 = vpop.permute.xlu0 %5010
        %5012 = vrot.lane.b32.xlu0 %v4997, 108
        %v5013 = vpop.permute.xlu0 %5012
        %5014 = vrot.lane.b32.xlu0 %v4988, 108
        %v5015 = vpop.permute.xlu0 %5014
        %v5016 = vsel %vm861, %v4999, %v5001
        %v5017 = vsel %vm861, %v5001, %v5003
        %v5018 = vsel %vm861, %v5003, %v5005
        %v5019 = vsel %vm861, %v5005, %v5007
        %v5020 = vsel %vm861, %v5007, %v5009
        %v5021 = vsel %vm861, %v5009, %v5011
        %v5022 = vsel %vm861, %v5011, %v5013
        %v5023 = vsel %vm861, %v5013, %v5015
        %5032 = vst [vmem:[#allocation3 + $0xa80] sm:$0xf] %v5016
        %5033 = vst [vmem:[#allocation3 + $0xa88] sm:$0xf] %v5017
        %5034 = vst [vmem:[#allocation3 + $0xa90] sm:$0xf] %v5018
        %5035 = vst [vmem:[#allocation3 + $0xa98] sm:$0xf] %v5019
        %5036 = vst [vmem:[#allocation3 + $0xaa0] sm:$0xf] %v5020
        %5037 = vst [vmem:[#allocation3 + $0xaa8] sm:$0xf] %v5021
        %5038 = vst [vmem:[#allocation3 + $0xab0] sm:$0xf] %v5022
        %5039 = vst [vmem:[#allocation3 + $0xab8] sm:$0xf] %v5023
        %v5040 = vld [vmem:[#allocation2 + $0x18] sm:$0xff]
        %v5041 = vld [vmem:[#allocation2 + $0x20] sm:$0xff]
        %v5042 = vld [vmem:[#allocation2 + $0x28] sm:$0xff]
        %v5043 = vld [vmem:[#allocation2 + $0x30] sm:$0xff]
        %v5044 = vld [vmem:[#allocation2 + $0x38] sm:$0xf]
        %v5050 = vcombine.low %v5040, %v5040
        %v5051 = vcombine.low %v5041, %v5041
        %v5052 = vcombine.low %v5042, %v5042
        %v5053 = vcombine.low %v5043, %v5043
        %v5054 = vcombine.low %v5044, %v5044
        %5055 = vrot.lane.b32.xlu0 %v5050, 96
        %v5056 = vpop.permute.xlu0 %5055
        %5057 = vrot.lane.b32.xlu0 %v5040, 96
        %v5058 = vpop.permute.xlu0 %5057
        %5059 = vrot.lane.b32.xlu0 %v5051, 96
        %v5060 = vpop.permute.xlu0 %5059
        %5061 = vrot.lane.b32.xlu0 %v5041, 96
        %v5062 = vpop.permute.xlu0 %5061
        %5063 = vrot.lane.b32.xlu0 %v5052, 96
        %v5064 = vpop.permute.xlu0 %5063
        %5065 = vrot.lane.b32.xlu0 %v5042, 96
        %v5066 = vpop.permute.xlu0 %5065
        %5067 = vrot.lane.b32.xlu0 %v5053, 96
        %v5068 = vpop.permute.xlu0 %5067
        %5069 = vrot.lane.b32.xlu0 %v5043, 96
        %v5070 = vpop.permute.xlu0 %5069
        %5071 = vrot.lane.b32.xlu0 %v5054, 96
        %v5072 = vpop.permute.xlu0 %5071
        %v5073 = vsel %vm918, %v5056, %v5058
        %v5074 = vsel %vm918, %v5058, %v5060
        %v5075 = vsel %vm918, %v5060, %v5062
        %v5076 = vsel %vm918, %v5062, %v5064
        %v5077 = vsel %vm918, %v5064, %v5066
        %v5078 = vsel %vm918, %v5066, %v5068
        %v5079 = vsel %vm918, %v5068, %v5070
        %v5080 = vsel %vm918, %v5070, %v5072
        %5089 = vst [vmem:[#allocation3 + $0xa80] sm:$0xf0] %v5073
        %5090 = vst [vmem:[#allocation3 + $0xa88] sm:$0xf0] %v5074
        %5091 = vst [vmem:[#allocation3 + $0xa90] sm:$0xf0] %v5075
        %5092 = vst [vmem:[#allocation3 + $0xa98] sm:$0xf0] %v5076
        %5093 = vst [vmem:[#allocation3 + $0xaa0] sm:$0xf0] %v5077
        %5094 = vst [vmem:[#allocation3 + $0xaa8] sm:$0xf0] %v5078
        %5095 = vst [vmem:[#allocation3 + $0xab0] sm:$0xf0] %v5079
        %5096 = vst [vmem:[#allocation3 + $0xab8] sm:$0xf0] %v5080
        %v5097 = vld [vmem:[#allocation2 + $0x18] sm:$0xff]
        %v5098 = vld [vmem:[#allocation2 + $0x20] sm:$0xff]
        %v5099 = vld [vmem:[#allocation2 + $0x28] sm:$0xff]
        %v5100 = vld [vmem:[#allocation2 + $0x30] sm:$0xff]
        %v5101 = vld [vmem:[#allocation2 + $0x38] sm:$0xf]
        %v5107 = vcombine.high %v5097, %v5097
        %v5108 = vcombine.high %v5098, %v5098
        %v5109 = vcombine.high %v5099, %v5099
        %v5110 = vcombine.high %v5100, %v5100
        %5111 = vrot.lane.b32.xlu0 %v5097, 95
        %v5112 = vpop.permute.xlu0 %5111
        %5113 = vrot.lane.b32.xlu0 %v5107, 95
        %v5114 = vpop.permute.xlu0 %5113
        %5115 = vrot.lane.b32.xlu0 %v5098, 95
        %v5116 = vpop.permute.xlu0 %5115
        %5117 = vrot.lane.b32.xlu0 %v5108, 95
        %v5118 = vpop.permute.xlu0 %5117
        %5119 = vrot.lane.b32.xlu0 %v5099, 95
        %v5120 = vpop.permute.xlu0 %5119
        %5121 = vrot.lane.b32.xlu0 %v5109, 95
        %v5122 = vpop.permute.xlu0 %5121
        %5123 = vrot.lane.b32.xlu0 %v5100, 95
        %v5124 = vpop.permute.xlu0 %5123
        %5125 = vrot.lane.b32.xlu0 %v5110, 95
        %v5126 = vpop.permute.xlu0 %5125
        %5127 = vrot.lane.b32.xlu0 %v5101, 95
        %v5128 = vpop.permute.xlu0 %5127
        %v5129 = vsel %vm976, %v5112, %v5114
        %v5130 = vsel %vm976, %v5114, %v5116
        %v5131 = vsel %vm976, %v5116, %v5118
        %v5132 = vsel %vm976, %v5118, %v5120
        %v5133 = vsel %vm976, %v5120, %v5122
        %v5134 = vsel %vm976, %v5122, %v5124
        %v5135 = vsel %vm976, %v5124, %v5126
        %v5136 = vsel %vm976, %v5126, %v5128
        %5145 = vst [vmem:[#allocation3 + $0xac0] sm:$0xf] %v5129
        %5146 = vst [vmem:[#allocation3 + $0xac8] sm:$0xf] %v5130
        %5147 = vst [vmem:[#allocation3 + $0xad0] sm:$0xf] %v5131
        %5148 = vst [vmem:[#allocation3 + $0xad8] sm:$0xf] %v5132
        %5149 = vst [vmem:[#allocation3 + $0xae0] sm:$0xf] %v5133
        %5150 = vst [vmem:[#allocation3 + $0xae8] sm:$0xf] %v5134
        %5151 = vst [vmem:[#allocation3 + $0xaf0] sm:$0xf] %v5135
        %5152 = vst [vmem:[#allocation3 + $0xaf8] sm:$0xf] %v5136
        %v5153 = vld [vmem:[#allocation2 + $0x18] sm:$0xff]
        %v5154 = vld [vmem:[#allocation2 + $0x20] sm:$0xff]
        %v5155 = vld [vmem:[#allocation2 + $0x28] sm:$0xff]
        %v5156 = vld [vmem:[#allocation2 + $0x30] sm:$0xff]
        %v5157 = vld [vmem:[#allocation2 + $0x38] sm:$0xf]
        %v5163 = vcombine.low %v5153, %v5153
        %v5164 = vcombine.low %v5154, %v5154
        %v5165 = vcombine.low %v5155, %v5155
        %v5166 = vcombine.low %v5156, %v5156
        %v5167 = vcombine.low %v5157, %v5157
        %5168 = vrot.lane.b32.xlu0 %v5163, 94
        %v5169 = vpop.permute.xlu0 %5168
        %5170 = vrot.lane.b32.xlu0 %v5153, 94
        %v5171 = vpop.permute.xlu0 %5170
        %5172 = vrot.lane.b32.xlu0 %v5164, 94
        %v5173 = vpop.permute.xlu0 %5172
        %5174 = vrot.lane.b32.xlu0 %v5154, 94
        %v5175 = vpop.permute.xlu0 %5174
        %5176 = vrot.lane.b32.xlu0 %v5165, 94
        %v5177 = vpop.permute.xlu0 %5176
        %5178 = vrot.lane.b32.xlu0 %v5155, 94
        %v5179 = vpop.permute.xlu0 %5178
        %5180 = vrot.lane.b32.xlu0 %v5166, 94
        %v5181 = vpop.permute.xlu0 %5180
        %5182 = vrot.lane.b32.xlu0 %v5156, 94
        %v5183 = vpop.permute.xlu0 %5182
        %5184 = vrot.lane.b32.xlu0 %v5167, 94
        %v5185 = vpop.permute.xlu0 %5184
        %v5186 = vsel %vm1033, %v5169, %v5171
        %v5187 = vsel %vm1033, %v5171, %v5173
        %v5188 = vsel %vm1033, %v5173, %v5175
        %v5189 = vsel %vm1033, %v5175, %v5177
        %v5190 = vsel %vm1033, %v5177, %v5179
        %v5191 = vsel %vm1033, %v5179, %v5181
        %v5192 = vsel %vm1033, %v5181, %v5183
        %v5193 = vsel %vm1033, %v5183, %v5185
        %5202 = vst [vmem:[#allocation3 + $0xac0] sm:$0xf0] %v5186
        %5203 = vst [vmem:[#allocation3 + $0xac8] sm:$0xf0] %v5187
        %5204 = vst [vmem:[#allocation3 + $0xad0] sm:$0xf0] %v5188
        %5205 = vst [vmem:[#allocation3 + $0xad8] sm:$0xf0] %v5189
        %5206 = vst [vmem:[#allocation3 + $0xae0] sm:$0xf0] %v5190
        %5207 = vst [vmem:[#allocation3 + $0xae8] sm:$0xf0] %v5191
        %5208 = vst [vmem:[#allocation3 + $0xaf0] sm:$0xf0] %v5192
        %5209 = vst [vmem:[#allocation3 + $0xaf8] sm:$0xf0] %v5193
        %v5210 = vld [vmem:[#allocation2 + $0x18] sm:$0xff]
        %v5211 = vld [vmem:[#allocation2 + $0x20] sm:$0xff]
        %v5212 = vld [vmem:[#allocation2 + $0x28] sm:$0xff]
        %v5213 = vld [vmem:[#allocation2 + $0x30] sm:$0xff]
        %v5214 = vld [vmem:[#allocation2 + $0x38] sm:$0xf]
        %v5220 = vcombine.high %v5210, %v5210
        %v5221 = vcombine.high %v5211, %v5211
        %v5222 = vcombine.high %v5212, %v5212
        %v5223 = vcombine.high %v5213, %v5213
        %5224 = vrot.lane.b32.xlu0 %v5210, 93
        %v5225 = vpop.permute.xlu0 %5224
        %5226 = vrot.lane.b32.xlu0 %v5220, 93
        %v5227 = vpop.permute.xlu0 %5226
        %5228 = vrot.lane.b32.xlu0 %v5211, 93
        %v5229 = vpop.permute.xlu0 %5228
        %5230 = vrot.lane.b32.xlu0 %v5221, 93
        %v5231 = vpop.permute.xlu0 %5230
        %5232 = vrot.lane.b32.xlu0 %v5212, 93
        %v5233 = vpop.permute.xlu0 %5232
        %5234 = vrot.lane.b32.xlu0 %v5222, 93
        %v5235 = vpop.permute.xlu0 %5234
        %5236 = vrot.lane.b32.xlu0 %v5213, 93
        %v5237 = vpop.permute.xlu0 %5236
        %5238 = vrot.lane.b32.xlu0 %v5223, 93
        %v5239 = vpop.permute.xlu0 %5238
        %5240 = vrot.lane.b32.xlu0 %v5214, 93
        %v5241 = vpop.permute.xlu0 %5240
        %v5242 = vsel %vm1091, %v5225, %v5227
        %v5243 = vsel %vm1091, %v5227, %v5229
        %v5244 = vsel %vm1091, %v5229, %v5231
        %v5245 = vsel %vm1091, %v5231, %v5233
        %v5246 = vsel %vm1091, %v5233, %v5235
        %v5247 = vsel %vm1091, %v5235, %v5237
        %v5248 = vsel %vm1091, %v5237, %v5239
        %v5249 = vsel %vm1091, %v5239, %v5241
        %5258 = vst [vmem:[#allocation3 + $0xb00] sm:$0xf] %v5242
        %5259 = vst [vmem:[#allocation3 + $0xb08] sm:$0xf] %v5243
        %5260 = vst [vmem:[#allocation3 + $0xb10] sm:$0xf] %v5244
        %5261 = vst [vmem:[#allocation3 + $0xb18] sm:$0xf] %v5245
        %5262 = vst [vmem:[#allocation3 + $0xb20] sm:$0xf] %v5246
        %5263 = vst [vmem:[#allocation3 + $0xb28] sm:$0xf] %v5247
        %5264 = vst [vmem:[#allocation3 + $0xb30] sm:$0xf] %v5248
        %5265 = vst [vmem:[#allocation3 + $0xb38] sm:$0xf] %v5249
        %v5266 = vld [vmem:[#allocation2 + $0x18] sm:$0xff]
        %v5267 = vld [vmem:[#allocation2 + $0x20] sm:$0xff]
        %v5268 = vld [vmem:[#allocation2 + $0x28] sm:$0xff]
        %v5269 = vld [vmem:[#allocation2 + $0x30] sm:$0xff]
        %v5270 = vld [vmem:[#allocation2 + $0x38] sm:$0xf]
        %v5276 = vcombine.low %v5266, %v5266
        %v5277 = vcombine.low %v5267, %v5267
        %v5278 = vcombine.low %v5268, %v5268
        %v5279 = vcombine.low %v5269, %v5269
        %v5280 = vcombine.low %v5270, %v5270
        %5281 = vrot.lane.b32.xlu0 %v5276, 92
        %v5282 = vpop.permute.xlu0 %5281
        %5283 = vrot.lane.b32.xlu0 %v5266, 92
        %v5284 = vpop.permute.xlu0 %5283
        %5285 = vrot.lane.b32.xlu0 %v5277, 92
        %v5286 = vpop.permute.xlu0 %5285
        %5287 = vrot.lane.b32.xlu0 %v5267, 92
        %v5288 = vpop.permute.xlu0 %5287
        %5289 = vrot.lane.b32.xlu0 %v5278, 92
        %v5290 = vpop.permute.xlu0 %5289
        %5291 = vrot.lane.b32.xlu0 %v5268, 92
        %v5292 = vpop.permute.xlu0 %5291
        %5293 = vrot.lane.b32.xlu0 %v5279, 92
        %v5294 = vpop.permute.xlu0 %5293
        %5295 = vrot.lane.b32.xlu0 %v5269, 92
        %v5296 = vpop.permute.xlu0 %5295
        %5297 = vrot.lane.b32.xlu0 %v5280, 92
        %v5298 = vpop.permute.xlu0 %5297
        %v5299 = vsel %vm1148, %v5282, %v5284
        %v5300 = vsel %vm1148, %v5284, %v5286
        %v5301 = vsel %vm1148, %v5286, %v5288
        %v5302 = vsel %vm1148, %v5288, %v5290
        %v5303 = vsel %vm1148, %v5290, %v5292
        %v5304 = vsel %vm1148, %v5292, %v5294
        %v5305 = vsel %vm1148, %v5294, %v5296
        %v5306 = vsel %vm1148, %v5296, %v5298
        %5315 = vst [vmem:[#allocation3 + $0xb00] sm:$0xf0] %v5299
        %5316 = vst [vmem:[#allocation3 + $0xb08] sm:$0xf0] %v5300
        %5317 = vst [vmem:[#allocation3 + $0xb10] sm:$0xf0] %v5301
        %5318 = vst [vmem:[#allocation3 + $0xb18] sm:$0xf0] %v5302
        %5319 = vst [vmem:[#allocation3 + $0xb20] sm:$0xf0] %v5303
        %5320 = vst [vmem:[#allocation3 + $0xb28] sm:$0xf0] %v5304
        %5321 = vst [vmem:[#allocation3 + $0xb30] sm:$0xf0] %v5305
        %5322 = vst [vmem:[#allocation3 + $0xb38] sm:$0xf0] %v5306
        %v5323 = vld [vmem:[#allocation2 + $0x18] sm:$0xff]
        %v5324 = vld [vmem:[#allocation2 + $0x20] sm:$0xff]
        %v5325 = vld [vmem:[#allocation2 + $0x28] sm:$0xff]
        %v5326 = vld [vmem:[#allocation2 + $0x30] sm:$0xff]
        %v5327 = vld [vmem:[#allocation2 + $0x38] sm:$0xf]
        %v5333 = vcombine.high %v5323, %v5323
        %v5334 = vcombine.high %v5324, %v5324
        %v5335 = vcombine.high %v5325, %v5325
        %v5336 = vcombine.high %v5326, %v5326
        %5337 = vrot.lane.b32.xlu0 %v5323, 80
        %v5338 = vpop.permute.xlu0 %5337
        %5339 = vrot.lane.b32.xlu0 %v5333, 80
        %v5340 = vpop.permute.xlu0 %5339
        %5341 = vrot.lane.b32.xlu0 %v5324, 80
        %v5342 = vpop.permute.xlu0 %5341
        %5343 = vrot.lane.b32.xlu0 %v5334, 80
        %v5344 = vpop.permute.xlu0 %5343
        %5345 = vrot.lane.b32.xlu0 %v5325, 80
        %v5346 = vpop.permute.xlu0 %5345
        %5347 = vrot.lane.b32.xlu0 %v5335, 80
        %v5348 = vpop.permute.xlu0 %5347
        %5349 = vrot.lane.b32.xlu0 %v5326, 80
        %v5350 = vpop.permute.xlu0 %5349
        %5351 = vrot.lane.b32.xlu0 %v5336, 80
        %v5352 = vpop.permute.xlu0 %5351
        %5353 = vrot.lane.b32.xlu0 %v5327, 80
        %v5354 = vpop.permute.xlu0 %5353
        %v5355 = vsel %vm1206, %v5338, %v5340
        %v5356 = vsel %vm1206, %v5340, %v5342
        %v5357 = vsel %vm1206, %v5342, %v5344
        %v5358 = vsel %vm1206, %v5344, %v5346
        %v5359 = vsel %vm1206, %v5346, %v5348
        %v5360 = vsel %vm1206, %v5348, %v5350
        %v5361 = vsel %vm1206, %v5350, %v5352
        %v5362 = vsel %vm1206, %v5352, %v5354
        %5371 = vst [vmem:[#allocation3 + $0xb40] sm:$0xf] %v5355
        %5372 = vst [vmem:[#allocation3 + $0xb48] sm:$0xf] %v5356
        %5373 = vst [vmem:[#allocation3 + $0xb50] sm:$0xf] %v5357
        %5374 = vst [vmem:[#allocation3 + $0xb58] sm:$0xf] %v5358
        %5375 = vst [vmem:[#allocation3 + $0xb60] sm:$0xf] %v5359
        %5376 = vst [vmem:[#allocation3 + $0xb68] sm:$0xf] %v5360
        %5377 = vst [vmem:[#allocation3 + $0xb70] sm:$0xf] %v5361
        %5378 = vst [vmem:[#allocation3 + $0xb78] sm:$0xf] %v5362
        %v5379 = vld [vmem:[#allocation2 + $0x18] sm:$0xff]
        %v5380 = vld [vmem:[#allocation2 + $0x20] sm:$0xff]
        %v5381 = vld [vmem:[#allocation2 + $0x28] sm:$0xff]
        %v5382 = vld [vmem:[#allocation2 + $0x30] sm:$0xff]
        %v5383 = vld [vmem:[#allocation2 + $0x38] sm:$0xf]
        %v5389 = vcombine.low %v5379, %v5379
        %v5390 = vcombine.low %v5380, %v5380
        %v5391 = vcombine.low %v5381, %v5381
        %v5392 = vcombine.low %v5382, %v5382
        %v5393 = vcombine.low %v5383, %v5383
        %5394 = vrot.lane.b32.xlu0 %v5389, 79
        %v5395 = vpop.permute.xlu0 %5394
        %5396 = vrot.lane.b32.xlu0 %v5379, 79
        %v5397 = vpop.permute.xlu0 %5396
        %5398 = vrot.lane.b32.xlu0 %v5390, 79
        %v5399 = vpop.permute.xlu0 %5398
        %5400 = vrot.lane.b32.xlu0 %v5380, 79
        %v5401 = vpop.permute.xlu0 %5400
        %5402 = vrot.lane.b32.xlu0 %v5391, 79
        %v5403 = vpop.permute.xlu0 %5402
        %5404 = vrot.lane.b32.xlu0 %v5381, 79
        %v5405 = vpop.permute.xlu0 %5404
        %5406 = vrot.lane.b32.xlu0 %v5392, 79
        %v5407 = vpop.permute.xlu0 %5406
        %5408 = vrot.lane.b32.xlu0 %v5382, 79
        %v5409 = vpop.permute.xlu0 %5408
        %5410 = vrot.lane.b32.xlu0 %v5393, 79
        %v5411 = vpop.permute.xlu0 %5410
        %v5412 = vsel %vm1263, %v5395, %v5397
        %v5413 = vsel %vm1263, %v5397, %v5399
        %v5414 = vsel %vm1263, %v5399, %v5401
        %v5415 = vsel %vm1263, %v5401, %v5403
        %v5416 = vsel %vm1263, %v5403, %v5405
        %v5417 = vsel %vm1263, %v5405, %v5407
        %v5418 = vsel %vm1263, %v5407, %v5409
        %v5419 = vsel %vm1263, %v5409, %v5411
        %5428 = vst [vmem:[#allocation3 + $0xb40] sm:$0xf0] %v5412
        %5429 = vst [vmem:[#allocation3 + $0xb48] sm:$0xf0] %v5413
        %5430 = vst [vmem:[#allocation3 + $0xb50] sm:$0xf0] %v5414
        %5431 = vst [vmem:[#allocation3 + $0xb58] sm:$0xf0] %v5415
        %5432 = vst [vmem:[#allocation3 + $0xb60] sm:$0xf0] %v5416
        %5433 = vst [vmem:[#allocation3 + $0xb68] sm:$0xf0] %v5417
        %5434 = vst [vmem:[#allocation3 + $0xb70] sm:$0xf0] %v5418
        %5435 = vst [vmem:[#allocation3 + $0xb78] sm:$0xf0] %v5419
        %v5436 = vld [vmem:[#allocation2 + $0x18] sm:$0xff]
        %v5437 = vld [vmem:[#allocation2 + $0x20] sm:$0xff]
        %v5438 = vld [vmem:[#allocation2 + $0x28] sm:$0xff]
        %v5439 = vld [vmem:[#allocation2 + $0x30] sm:$0xff]
        %v5440 = vld [vmem:[#allocation2 + $0x38] sm:$0xf]
        %v5446 = vcombine.high %v5436, %v5436
        %v5447 = vcombine.high %v5437, %v5437
        %v5448 = vcombine.high %v5438, %v5438
        %v5449 = vcombine.high %v5439, %v5439
        %5450 = vrot.lane.b32.xlu0 %v5436, 78
        %v5451 = vpop.permute.xlu0 %5450
        %5452 = vrot.lane.b32.xlu0 %v5446, 78
        %v5453 = vpop.permute.xlu0 %5452
        %5454 = vrot.lane.b32.xlu0 %v5437, 78
        %v5455 = vpop.permute.xlu0 %5454
        %5456 = vrot.lane.b32.xlu0 %v5447, 78
        %v5457 = vpop.permute.xlu0 %5456
        %5458 = vrot.lane.b32.xlu0 %v5438, 78
        %v5459 = vpop.permute.xlu0 %5458
        %5460 = vrot.lane.b32.xlu0 %v5448, 78
        %v5461 = vpop.permute.xlu0 %5460
        %5462 = vrot.lane.b32.xlu0 %v5439, 78
        %v5463 = vpop.permute.xlu0 %5462
        %5464 = vrot.lane.b32.xlu0 %v5449, 78
        %v5465 = vpop.permute.xlu0 %5464
        %5466 = vrot.lane.b32.xlu0 %v5440, 78
        %v5467 = vpop.permute.xlu0 %5466
        %v5468 = vsel %vm1321, %v5451, %v5453
        %v5469 = vsel %vm1321, %v5453, %v5455
        %v5470 = vsel %vm1321, %v5455, %v5457
        %v5471 = vsel %vm1321, %v5457, %v5459
        %v5472 = vsel %vm1321, %v5459, %v5461
        %v5473 = vsel %vm1321, %v5461, %v5463
        %v5474 = vsel %vm1321, %v5463, %v5465
        %v5475 = vsel %vm1321, %v5465, %v5467
        %5484 = vst [vmem:[#allocation3 + $0xb80] sm:$0xf] %v5468
        %5485 = vst [vmem:[#allocation3 + $0xb88] sm:$0xf] %v5469
        %5486 = vst [vmem:[#allocation3 + $0xb90] sm:$0xf] %v5470
        %5487 = vst [vmem:[#allocation3 + $0xb98] sm:$0xf] %v5471
        %5488 = vst [vmem:[#allocation3 + $0xba0] sm:$0xf] %v5472
        %5489 = vst [vmem:[#allocation3 + $0xba8] sm:$0xf] %v5473
        %5490 = vst [vmem:[#allocation3 + $0xbb0] sm:$0xf] %v5474
        %5491 = vst [vmem:[#allocation3 + $0xbb8] sm:$0xf] %v5475
        %v5492 = vld [vmem:[#allocation2 + $0x18] sm:$0xff]
        %v5493 = vld [vmem:[#allocation2 + $0x20] sm:$0xff]
        %v5494 = vld [vmem:[#allocation2 + $0x28] sm:$0xff]
        %v5495 = vld [vmem:[#allocation2 + $0x30] sm:$0xff]
        %v5496 = vld [vmem:[#allocation2 + $0x38] sm:$0xf]
        %v5502 = vcombine.low %v5492, %v5492
        %v5503 = vcombine.low %v5493, %v5493
        %v5504 = vcombine.low %v5494, %v5494
        %v5505 = vcombine.low %v5495, %v5495
        %v5506 = vcombine.low %v5496, %v5496
        %5507 = vrot.lane.b32.xlu0 %v5502, 77
        %v5508 = vpop.permute.xlu0 %5507
        %5509 = vrot.lane.b32.xlu0 %v5492, 77
        %v5510 = vpop.permute.xlu0 %5509
        %5511 = vrot.lane.b32.xlu0 %v5503, 77
        %v5512 = vpop.permute.xlu0 %5511
        %5513 = vrot.lane.b32.xlu0 %v5493, 77
        %v5514 = vpop.permute.xlu0 %5513
        %5515 = vrot.lane.b32.xlu0 %v5504, 77
        %v5516 = vpop.permute.xlu0 %5515
        %5517 = vrot.lane.b32.xlu0 %v5494, 77
        %v5518 = vpop.permute.xlu0 %5517
        %5519 = vrot.lane.b32.xlu0 %v5505, 77
        %v5520 = vpop.permute.xlu0 %5519
        %5521 = vrot.lane.b32.xlu0 %v5495, 77
        %v5522 = vpop.permute.xlu0 %5521
        %5523 = vrot.lane.b32.xlu0 %v5506, 77
        %v5524 = vpop.permute.xlu0 %5523
        %v5525 = vsel %vm1378, %v5508, %v5510
        %v5526 = vsel %vm1378, %v5510, %v5512
        %v5527 = vsel %vm1378, %v5512, %v5514
        %v5528 = vsel %vm1378, %v5514, %v5516
        %v5529 = vsel %vm1378, %v5516, %v5518
        %v5530 = vsel %vm1378, %v5518, %v5520
        %v5531 = vsel %vm1378, %v5520, %v5522
        %v5532 = vsel %vm1378, %v5522, %v5524
        %5541 = vst [vmem:[#allocation3 + $0xb80] sm:$0xf0] %v5525
        %5542 = vst [vmem:[#allocation3 + $0xb88] sm:$0xf0] %v5526
        %5543 = vst [vmem:[#allocation3 + $0xb90] sm:$0xf0] %v5527
        %5544 = vst [vmem:[#allocation3 + $0xb98] sm:$0xf0] %v5528
        %5545 = vst [vmem:[#allocation3 + $0xba0] sm:$0xf0] %v5529
        %5546 = vst [vmem:[#allocation3 + $0xba8] sm:$0xf0] %v5530
        %5547 = vst [vmem:[#allocation3 + $0xbb0] sm:$0xf0] %v5531
        %5548 = vst [vmem:[#allocation3 + $0xbb8] sm:$0xf0] %v5532
        %v5549 = vld [vmem:[#allocation2 + $0x18] sm:$0xff]
        %v5550 = vld [vmem:[#allocation2 + $0x20] sm:$0xff]
        %v5551 = vld [vmem:[#allocation2 + $0x28] sm:$0xff]
        %v5552 = vld [vmem:[#allocation2 + $0x30] sm:$0xff]
        %v5553 = vld [vmem:[#allocation2 + $0x38] sm:$0xf]
        %v5559 = vcombine.high %v5549, %v5549
        %v5560 = vcombine.high %v5550, %v5550
        %v5561 = vcombine.high %v5551, %v5551
        %v5562 = vcombine.high %v5552, %v5552
        %5563 = vrot.lane.b32.xlu0 %v5549, 76
        %v5564 = vpop.permute.xlu0 %5563
        %5565 = vrot.lane.b32.xlu0 %v5559, 76
        %v5566 = vpop.permute.xlu0 %5565
        %5567 = vrot.lane.b32.xlu0 %v5550, 76
        %v5568 = vpop.permute.xlu0 %5567
        %5569 = vrot.lane.b32.xlu0 %v5560, 76
        %v5570 = vpop.permute.xlu0 %5569
        %5571 = vrot.lane.b32.xlu0 %v5551, 76
        %v5572 = vpop.permute.xlu0 %5571
        %5573 = vrot.lane.b32.xlu0 %v5561, 76
        %v5574 = vpop.permute.xlu0 %5573
        %5575 = vrot.lane.b32.xlu0 %v5552, 76
        %v5576 = vpop.permute.xlu0 %5575
        %5577 = vrot.lane.b32.xlu0 %v5562, 76
        %v5578 = vpop.permute.xlu0 %5577
        %5579 = vrot.lane.b32.xlu0 %v5553, 76
        %v5580 = vpop.permute.xlu0 %5579
        %v5581 = vsel %vm1436, %v5564, %v5566
        %v5582 = vsel %vm1436, %v5566, %v5568
        %v5583 = vsel %vm1436, %v5568, %v5570
        %v5584 = vsel %vm1436, %v5570, %v5572
        %v5585 = vsel %vm1436, %v5572, %v5574
        %v5586 = vsel %vm1436, %v5574, %v5576
        %v5587 = vsel %vm1436, %v5576, %v5578
        %v5588 = vsel %vm1436, %v5578, %v5580
        %5597 = vst [vmem:[#allocation3 + $0xbc0] sm:$0xf] %v5581
        %5598 = vst [vmem:[#allocation3 + $0xbc8] sm:$0xf] %v5582
        %5599 = vst [vmem:[#allocation3 + $0xbd0] sm:$0xf] %v5583
        %5600 = vst [vmem:[#allocation3 + $0xbd8] sm:$0xf] %v5584
        %5601 = vst [vmem:[#allocation3 + $0xbe0] sm:$0xf] %v5585
        %5602 = vst [vmem:[#allocation3 + $0xbe8] sm:$0xf] %v5586
        %5603 = vst [vmem:[#allocation3 + $0xbf0] sm:$0xf] %v5587
        %5604 = vst [vmem:[#allocation3 + $0xbf8] sm:$0xf] %v5588
        %v5605 = vld [vmem:[#allocation2 + $0x18] sm:$0xff]
        %v5606 = vld [vmem:[#allocation2 + $0x20] sm:$0xff]
        %v5607 = vld [vmem:[#allocation2 + $0x28] sm:$0xff]
        %v5608 = vld [vmem:[#allocation2 + $0x30] sm:$0xff]
        %v5609 = vld [vmem:[#allocation2 + $0x38] sm:$0xf]
        %v5615 = vcombine.low %v5605, %v5605
        %v5616 = vcombine.low %v5606, %v5606
        %v5617 = vcombine.low %v5607, %v5607
        %v5618 = vcombine.low %v5608, %v5608
        %v5619 = vcombine.low %v5609, %v5609
        %5620 = vrot.lane.b32.xlu0 %v5615, 64
        %v5621 = vpop.permute.xlu0 %5620
        %5622 = vrot.lane.b32.xlu0 %v5605, 64
        %v5623 = vpop.permute.xlu0 %5622
        %5624 = vrot.lane.b32.xlu0 %v5616, 64
        %v5625 = vpop.permute.xlu0 %5624
        %5626 = vrot.lane.b32.xlu0 %v5606, 64
        %v5627 = vpop.permute.xlu0 %5626
        %5628 = vrot.lane.b32.xlu0 %v5617, 64
        %v5629 = vpop.permute.xlu0 %5628
        %5630 = vrot.lane.b32.xlu0 %v5607, 64
        %v5631 = vpop.permute.xlu0 %5630
        %5632 = vrot.lane.b32.xlu0 %v5618, 64
        %v5633 = vpop.permute.xlu0 %5632
        %5634 = vrot.lane.b32.xlu0 %v5608, 64
        %v5635 = vpop.permute.xlu0 %5634
        %5636 = vrot.lane.b32.xlu0 %v5619, 64
        %v5637 = vpop.permute.xlu0 %5636
        %v5638 = vsel %vm1493, %v5621, %v5623
        %v5639 = vsel %vm1493, %v5623, %v5625
        %v5640 = vsel %vm1493, %v5625, %v5627
        %v5641 = vsel %vm1493, %v5627, %v5629
        %v5642 = vsel %vm1493, %v5629, %v5631
        %v5643 = vsel %vm1493, %v5631, %v5633
        %v5644 = vsel %vm1493, %v5633, %v5635
        %v5645 = vsel %vm1493, %v5635, %v5637
        %5654 = vst [vmem:[#allocation3 + $0xbc0] sm:$0xf0] %v5638
        %5655 = vst [vmem:[#allocation3 + $0xbc8] sm:$0xf0] %v5639
        %5656 = vst [vmem:[#allocation3 + $0xbd0] sm:$0xf0] %v5640
        %5657 = vst [vmem:[#allocation3 + $0xbd8] sm:$0xf0] %v5641
        %5658 = vst [vmem:[#allocation3 + $0xbe0] sm:$0xf0] %v5642
        %5659 = vst [vmem:[#allocation3 + $0xbe8] sm:$0xf0] %v5643
        %5660 = vst [vmem:[#allocation3 + $0xbf0] sm:$0xf0] %v5644
        %5661 = vst [vmem:[#allocation3 + $0xbf8] sm:$0xf0] %v5645
        %v5662 = vld [vmem:[#allocation2 + $0x18] sm:$0xff]
        %v5663 = vld [vmem:[#allocation2 + $0x20] sm:$0xff]
        %v5664 = vld [vmem:[#allocation2 + $0x28] sm:$0xff]
        %v5665 = vld [vmem:[#allocation2 + $0x30] sm:$0xff]
        %v5666 = vld [vmem:[#allocation2 + $0x38] sm:$0xf]
        %v5672 = vcombine.high %v5662, %v5662
        %v5673 = vcombine.high %v5663, %v5663
        %v5674 = vcombine.high %v5664, %v5664
        %v5675 = vcombine.high %v5665, %v5665
        %5676 = vrot.lane.b32.xlu0 %v5662, 63
        %v5677 = vpop.permute.xlu0 %5676
        %5678 = vrot.lane.b32.xlu0 %v5672, 63
        %v5679 = vpop.permute.xlu0 %5678
        %5680 = vrot.lane.b32.xlu0 %v5663, 63
        %v5681 = vpop.permute.xlu0 %5680
        %5682 = vrot.lane.b32.xlu0 %v5673, 63
        %v5683 = vpop.permute.xlu0 %5682
        %5684 = vrot.lane.b32.xlu0 %v5664, 63
        %v5685 = vpop.permute.xlu0 %5684
        %5686 = vrot.lane.b32.xlu0 %v5674, 63
        %v5687 = vpop.permute.xlu0 %5686
        %5688 = vrot.lane.b32.xlu0 %v5665, 63
        %v5689 = vpop.permute.xlu0 %5688
        %5690 = vrot.lane.b32.xlu0 %v5675, 63
        %v5691 = vpop.permute.xlu0 %5690
        %5692 = vrot.lane.b32.xlu0 %v5666, 63
        %v5693 = vpop.permute.xlu0 %5692
        %v5694 = vsel %vm1551, %v5677, %v5679
        %v5695 = vsel %vm1551, %v5679, %v5681
        %v5696 = vsel %vm1551, %v5681, %v5683
        %v5697 = vsel %vm1551, %v5683, %v5685
        %v5698 = vsel %vm1551, %v5685, %v5687
        %v5699 = vsel %vm1551, %v5687, %v5689
        %v5700 = vsel %vm1551, %v5689, %v5691
        %v5701 = vsel %vm1551, %v5691, %v5693
        %5710 = vst [vmem:[#allocation3 + $0xc00] sm:$0xf] %v5694
        %5711 = vst [vmem:[#allocation3 + $0xc08] sm:$0xf] %v5695
        %5712 = vst [vmem:[#allocation3 + $0xc10] sm:$0xf] %v5696
        %5713 = vst [vmem:[#allocation3 + $0xc18] sm:$0xf] %v5697
        %5714 = vst [vmem:[#allocation3 + $0xc20] sm:$0xf] %v5698
        %5715 = vst [vmem:[#allocation3 + $0xc28] sm:$0xf] %v5699
        %5716 = vst [vmem:[#allocation3 + $0xc30] sm:$0xf] %v5700
        %5717 = vst [vmem:[#allocation3 + $0xc38] sm:$0xf] %v5701
        %v5718 = vld [vmem:[#allocation2 + $0x18] sm:$0xff]
        %v5719 = vld [vmem:[#allocation2 + $0x20] sm:$0xff]
        %v5720 = vld [vmem:[#allocation2 + $0x28] sm:$0xff]
        %v5721 = vld [vmem:[#allocation2 + $0x30] sm:$0xff]
        %v5722 = vld [vmem:[#allocation2 + $0x38] sm:$0xf]
        %v5728 = vcombine.low %v5718, %v5718
        %v5729 = vcombine.low %v5719, %v5719
        %v5730 = vcombine.low %v5720, %v5720
        %v5731 = vcombine.low %v5721, %v5721
        %v5732 = vcombine.low %v5722, %v5722
        %5733 = vrot.lane.b32.xlu0 %v5728, 62
        %v5734 = vpop.permute.xlu0 %5733
        %5735 = vrot.lane.b32.xlu0 %v5718, 62
        %v5736 = vpop.permute.xlu0 %5735
        %5737 = vrot.lane.b32.xlu0 %v5729, 62
        %v5738 = vpop.permute.xlu0 %5737
        %5739 = vrot.lane.b32.xlu0 %v5719, 62
        %v5740 = vpop.permute.xlu0 %5739
        %5741 = vrot.lane.b32.xlu0 %v5730, 62
        %v5742 = vpop.permute.xlu0 %5741
        %5743 = vrot.lane.b32.xlu0 %v5720, 62
        %v5744 = vpop.permute.xlu0 %5743
        %5745 = vrot.lane.b32.xlu0 %v5731, 62
        %v5746 = vpop.permute.xlu0 %5745
        %5747 = vrot.lane.b32.xlu0 %v5721, 62
        %v5748 = vpop.permute.xlu0 %5747
        %5749 = vrot.lane.b32.xlu0 %v5732, 62
        %v5750 = vpop.permute.xlu0 %5749
        %v5751 = vsel %vm1608, %v5734, %v5736
        %v5752 = vsel %vm1608, %v5736, %v5738
        %v5753 = vsel %vm1608, %v5738, %v5740
        %v5754 = vsel %vm1608, %v5740, %v5742
        %v5755 = vsel %vm1608, %v5742, %v5744
        %v5756 = vsel %vm1608, %v5744, %v5746
        %v5757 = vsel %vm1608, %v5746, %v5748
        %v5758 = vsel %vm1608, %v5748, %v5750
        %5767 = vst [vmem:[#allocation3 + $0xc00] sm:$0xf0] %v5751
        %5768 = vst [vmem:[#allocation3 + $0xc08] sm:$0xf0] %v5752
        %5769 = vst [vmem:[#allocation3 + $0xc10] sm:$0xf0] %v5753
        %5770 = vst [vmem:[#allocation3 + $0xc18] sm:$0xf0] %v5754
        %5771 = vst [vmem:[#allocation3 + $0xc20] sm:$0xf0] %v5755
        %5772 = vst [vmem:[#allocation3 + $0xc28] sm:$0xf0] %v5756
        %5773 = vst [vmem:[#allocation3 + $0xc30] sm:$0xf0] %v5757
        %5774 = vst [vmem:[#allocation3 + $0xc38] sm:$0xf0] %v5758
        %v5775 = vld [vmem:[#allocation2 + $0x18] sm:$0xff]
        %v5776 = vld [vmem:[#allocation2 + $0x20] sm:$0xff]
        %v5777 = vld [vmem:[#allocation2 + $0x28] sm:$0xff]
        %v5778 = vld [vmem:[#allocation2 + $0x30] sm:$0xff]
        %v5779 = vld [vmem:[#allocation2 + $0x38] sm:$0xf]
        %v5785 = vcombine.high %v5775, %v5775
        %v5786 = vcombine.high %v5776, %v5776
        %v5787 = vcombine.high %v5777, %v5777
        %v5788 = vcombine.high %v5778, %v5778
        %5789 = vrot.lane.b32.xlu0 %v5775, 61
        %v5790 = vpop.permute.xlu0 %5789
        %5791 = vrot.lane.b32.xlu0 %v5785, 61
        %v5792 = vpop.permute.xlu0 %5791
        %5793 = vrot.lane.b32.xlu0 %v5776, 61
        %v5794 = vpop.permute.xlu0 %5793
        %5795 = vrot.lane.b32.xlu0 %v5786, 61
        %v5796 = vpop.permute.xlu0 %5795
        %5797 = vrot.lane.b32.xlu0 %v5777, 61
        %v5798 = vpop.permute.xlu0 %5797
        %5799 = vrot.lane.b32.xlu0 %v5787, 61
        %v5800 = vpop.permute.xlu0 %5799
        %5801 = vrot.lane.b32.xlu0 %v5778, 61
        %v5802 = vpop.permute.xlu0 %5801
        %5803 = vrot.lane.b32.xlu0 %v5788, 61
        %v5804 = vpop.permute.xlu0 %5803
        %5805 = vrot.lane.b32.xlu0 %v5779, 61
        %v5806 = vpop.permute.xlu0 %5805
        %v5807 = vsel %vm1666, %v5790, %v5792
        %v5808 = vsel %vm1666, %v5792, %v5794
        %v5809 = vsel %vm1666, %v5794, %v5796
        %v5810 = vsel %vm1666, %v5796, %v5798
        %v5811 = vsel %vm1666, %v5798, %v5800
        %v5812 = vsel %vm1666, %v5800, %v5802
        %v5813 = vsel %vm1666, %v5802, %v5804
        %v5814 = vsel %vm1666, %v5804, %v5806
        %5823 = vst [vmem:[#allocation3 + $0xc40] sm:$0xf] %v5807
        %5824 = vst [vmem:[#allocation3 + $0xc48] sm:$0xf] %v5808
        %5825 = vst [vmem:[#allocation3 + $0xc50] sm:$0xf] %v5809
        %5826 = vst [vmem:[#allocation3 + $0xc58] sm:$0xf] %v5810
        %5827 = vst [vmem:[#allocation3 + $0xc60] sm:$0xf] %v5811
        %5828 = vst [vmem:[#allocation3 + $0xc68] sm:$0xf] %v5812
        %5829 = vst [vmem:[#allocation3 + $0xc70] sm:$0xf] %v5813
        %5830 = vst [vmem:[#allocation3 + $0xc78] sm:$0xf] %v5814
        %v5831 = vld [vmem:[#allocation2 + $0x18] sm:$0xff]
        %v5832 = vld [vmem:[#allocation2 + $0x20] sm:$0xff]
        %v5833 = vld [vmem:[#allocation2 + $0x28] sm:$0xff]
        %v5834 = vld [vmem:[#allocation2 + $0x30] sm:$0xff]
        %v5835 = vld [vmem:[#allocation2 + $0x38] sm:$0xf]
        %v5841 = vcombine.low %v5831, %v5831
        %v5842 = vcombine.low %v5832, %v5832
        %v5843 = vcombine.low %v5833, %v5833
        %v5844 = vcombine.low %v5834, %v5834
        %v5845 = vcombine.low %v5835, %v5835
        %5846 = vrot.lane.b32.xlu0 %v5841, 60
        %v5847 = vpop.permute.xlu0 %5846
        %5848 = vrot.lane.b32.xlu0 %v5831, 60
        %v5849 = vpop.permute.xlu0 %5848
        %5850 = vrot.lane.b32.xlu0 %v5842, 60
        %v5851 = vpop.permute.xlu0 %5850
        %5852 = vrot.lane.b32.xlu0 %v5832, 60
        %v5853 = vpop.permute.xlu0 %5852
        %5854 = vrot.lane.b32.xlu0 %v5843, 60
        %v5855 = vpop.permute.xlu0 %5854
        %5856 = vrot.lane.b32.xlu0 %v5833, 60
        %v5857 = vpop.permute.xlu0 %5856
        %5858 = vrot.lane.b32.xlu0 %v5844, 60
        %v5859 = vpop.permute.xlu0 %5858
        %5860 = vrot.lane.b32.xlu0 %v5834, 60
        %v5861 = vpop.permute.xlu0 %5860
        %5862 = vrot.lane.b32.xlu0 %v5845, 60
        %v5863 = vpop.permute.xlu0 %5862
        %v5864 = vsel %vm1723, %v5847, %v5849
        %v5865 = vsel %vm1723, %v5849, %v5851
        %v5866 = vsel %vm1723, %v5851, %v5853
        %v5867 = vsel %vm1723, %v5853, %v5855
        %v5868 = vsel %vm1723, %v5855, %v5857
        %v5869 = vsel %vm1723, %v5857, %v5859
        %v5870 = vsel %vm1723, %v5859, %v5861
        %v5871 = vsel %vm1723, %v5861, %v5863
        %5880 = vst [vmem:[#allocation3 + $0xc40] sm:$0xf0] %v5864
        %5881 = vst [vmem:[#allocation3 + $0xc48] sm:$0xf0] %v5865
        %5882 = vst [vmem:[#allocation3 + $0xc50] sm:$0xf0] %v5866
        %5883 = vst [vmem:[#allocation3 + $0xc58] sm:$0xf0] %v5867
        %5884 = vst [vmem:[#allocation3 + $0xc60] sm:$0xf0] %v5868
        %5885 = vst [vmem:[#allocation3 + $0xc68] sm:$0xf0] %v5869
        %5886 = vst [vmem:[#allocation3 + $0xc70] sm:$0xf0] %v5870
        %5887 = vst [vmem:[#allocation3 + $0xc78] sm:$0xf0] %v5871
        %v5888 = vld [vmem:[#allocation2 + $0x20] sm:$0xff]
        %v5889 = vld [vmem:[#allocation2 + $0x28] sm:$0xff]
        %v5890 = vld [vmem:[#allocation2 + $0x30] sm:$0xff]
        %v5891 = vld [vmem:[#allocation2 + $0x38] sm:$0xff]
        %v5896 = vcombine.high %v5888, %v5888
        %v5897 = vcombine.high %v5889, %v5889
        %v5898 = vcombine.high %v5890, %v5890
        %v5899 = vcombine.high %v5891, %v5891
        %5904 = vst [vmem:[#allocation3 + $0xc80] sm:$0xf] %v5888
        %5905 = vst [vmem:[#allocation3 + $0xc88] sm:$0xf] %v5896
        %5906 = vst [vmem:[#allocation3 + $0xc90] sm:$0xf] %v5889
        %5907 = vst [vmem:[#allocation3 + $0xc98] sm:$0xf] %v5897
        %5908 = vst [vmem:[#allocation3 + $0xca0] sm:$0xf] %v5890
        %5909 = vst [vmem:[#allocation3 + $0xca8] sm:$0xf] %v5898
        %5910 = vst [vmem:[#allocation3 + $0xcb0] sm:$0xf] %v5891
        %5911 = vst [vmem:[#allocation3 + $0xcb8] sm:$0xf] %v5899
        %v5912 = vld [vmem:[#allocation2 + $0x20] sm:$0xff]
        %v5913 = vld [vmem:[#allocation2 + $0x28] sm:$0xff]
        %v5914 = vld [vmem:[#allocation2 + $0x30] sm:$0xff]
        %v5915 = vld [vmem:[#allocation2 + $0x38] sm:$0xff]
        %v5916 = vld [vmem:[#allocation2 + $0x40] sm:$0xf]
        %v5922 = vcombine.low %v5912, %v5912
        %v5923 = vcombine.low %v5913, %v5913
        %v5924 = vcombine.low %v5914, %v5914
        %v5925 = vcombine.low %v5915, %v5915
        %v5926 = vcombine.low %v5916, %v5916
        %5927 = vrot.lane.b32.xlu0 %v5922, 127
        %v5928 = vpop.permute.xlu0 %5927
        %5929 = vrot.lane.b32.xlu0 %v5912, 127
        %v5930 = vpop.permute.xlu0 %5929
        %5931 = vrot.lane.b32.xlu0 %v5923, 127
        %v5932 = vpop.permute.xlu0 %5931
        %5933 = vrot.lane.b32.xlu0 %v5913, 127
        %v5934 = vpop.permute.xlu0 %5933
        %5935 = vrot.lane.b32.xlu0 %v5924, 127
        %v5936 = vpop.permute.xlu0 %5935
        %5937 = vrot.lane.b32.xlu0 %v5914, 127
        %v5938 = vpop.permute.xlu0 %5937
        %5939 = vrot.lane.b32.xlu0 %v5925, 127
        %v5940 = vpop.permute.xlu0 %5939
        %5941 = vrot.lane.b32.xlu0 %v5915, 127
        %v5942 = vpop.permute.xlu0 %5941
        %5943 = vrot.lane.b32.xlu0 %v5926, 127
        %v5944 = vpop.permute.xlu0 %5943
        %v5945 = vsel %vm401, %v5928, %v5930
        %v5946 = vsel %vm401, %v5930, %v5932
        %v5947 = vsel %vm401, %v5932, %v5934
        %v5948 = vsel %vm401, %v5934, %v5936
        %v5949 = vsel %vm401, %v5936, %v5938
        %v5950 = vsel %vm401, %v5938, %v5940
        %v5951 = vsel %vm401, %v5940, %v5942
        %v5952 = vsel %vm401, %v5942, %v5944
        %5961 = vst [vmem:[#allocation3 + $0xc80] sm:$0xf0] %v5945
        %5962 = vst [vmem:[#allocation3 + $0xc88] sm:$0xf0] %v5946
        %5963 = vst [vmem:[#allocation3 + $0xc90] sm:$0xf0] %v5947
        %5964 = vst [vmem:[#allocation3 + $0xc98] sm:$0xf0] %v5948
        %5965 = vst [vmem:[#allocation3 + $0xca0] sm:$0xf0] %v5949
        %5966 = vst [vmem:[#allocation3 + $0xca8] sm:$0xf0] %v5950
        %5967 = vst [vmem:[#allocation3 + $0xcb0] sm:$0xf0] %v5951
        %5968 = vst [vmem:[#allocation3 + $0xcb8] sm:$0xf0] %v5952
        %v5969 = vld [vmem:[#allocation2 + $0x20] sm:$0xff]
        %v5970 = vld [vmem:[#allocation2 + $0x28] sm:$0xff]
        %v5971 = vld [vmem:[#allocation2 + $0x30] sm:$0xff]
        %v5972 = vld [vmem:[#allocation2 + $0x38] sm:$0xff]
        %v5973 = vld [vmem:[#allocation2 + $0x40] sm:$0xf]
        %v5979 = vcombine.high %v5969, %v5969
        %v5980 = vcombine.high %v5970, %v5970
        %v5981 = vcombine.high %v5971, %v5971
        %v5982 = vcombine.high %v5972, %v5972
        %5983 = vrot.lane.b32.xlu0 %v5969, 126
        %v5984 = vpop.permute.xlu0 %5983
        %5985 = vrot.lane.b32.xlu0 %v5979, 126
        %v5986 = vpop.permute.xlu0 %5985
        %5987 = vrot.lane.b32.xlu0 %v5970, 126
        %v5988 = vpop.permute.xlu0 %5987
        %5989 = vrot.lane.b32.xlu0 %v5980, 126
        %v5990 = vpop.permute.xlu0 %5989
        %5991 = vrot.lane.b32.xlu0 %v5971, 126
        %v5992 = vpop.permute.xlu0 %5991
        %5993 = vrot.lane.b32.xlu0 %v5981, 126
        %v5994 = vpop.permute.xlu0 %5993
        %5995 = vrot.lane.b32.xlu0 %v5972, 126
        %v5996 = vpop.permute.xlu0 %5995
        %5997 = vrot.lane.b32.xlu0 %v5982, 126
        %v5998 = vpop.permute.xlu0 %5997
        %5999 = vrot.lane.b32.xlu0 %v5973, 126
        %v6000 = vpop.permute.xlu0 %5999
        %v6001 = vsel %vm458, %v5984, %v5986
        %v6002 = vsel %vm458, %v5986, %v5988
        %v6003 = vsel %vm458, %v5988, %v5990
        %v6004 = vsel %vm458, %v5990, %v5992
        %v6005 = vsel %vm458, %v5992, %v5994
        %v6006 = vsel %vm458, %v5994, %v5996
        %v6007 = vsel %vm458, %v5996, %v5998
        %v6008 = vsel %vm458, %v5998, %v6000
        %6017 = vst [vmem:[#allocation3 + $0xcc0] sm:$0xf] %v6001
        %6018 = vst [vmem:[#allocation3 + $0xcc8] sm:$0xf] %v6002
        %6019 = vst [vmem:[#allocation3 + $0xcd0] sm:$0xf] %v6003
        %6020 = vst [vmem:[#allocation3 + $0xcd8] sm:$0xf] %v6004
        %6021 = vst [vmem:[#allocation3 + $0xce0] sm:$0xf] %v6005
        %6022 = vst [vmem:[#allocation3 + $0xce8] sm:$0xf] %v6006
        %6023 = vst [vmem:[#allocation3 + $0xcf0] sm:$0xf] %v6007
        %6024 = vst [vmem:[#allocation3 + $0xcf8] sm:$0xf] %v6008
        %v6025 = vld [vmem:[#allocation2 + $0x20] sm:$0xff]
        %v6026 = vld [vmem:[#allocation2 + $0x28] sm:$0xff]
        %v6027 = vld [vmem:[#allocation2 + $0x30] sm:$0xff]
        %v6028 = vld [vmem:[#allocation2 + $0x38] sm:$0xff]
        %v6029 = vld [vmem:[#allocation2 + $0x40] sm:$0xf]
        %v6035 = vcombine.low %v6025, %v6025
        %v6036 = vcombine.low %v6026, %v6026
        %v6037 = vcombine.low %v6027, %v6027
        %v6038 = vcombine.low %v6028, %v6028
        %v6039 = vcombine.low %v6029, %v6029
        %6040 = vrot.lane.b32.xlu0 %v6035, 125
        %v6041 = vpop.permute.xlu0 %6040
        %6042 = vrot.lane.b32.xlu0 %v6025, 125
        %v6043 = vpop.permute.xlu0 %6042
        %6044 = vrot.lane.b32.xlu0 %v6036, 125
        %v6045 = vpop.permute.xlu0 %6044
        %6046 = vrot.lane.b32.xlu0 %v6026, 125
        %v6047 = vpop.permute.xlu0 %6046
        %6048 = vrot.lane.b32.xlu0 %v6037, 125
        %v6049 = vpop.permute.xlu0 %6048
        %6050 = vrot.lane.b32.xlu0 %v6027, 125
        %v6051 = vpop.permute.xlu0 %6050
        %6052 = vrot.lane.b32.xlu0 %v6038, 125
        %v6053 = vpop.permute.xlu0 %6052
        %6054 = vrot.lane.b32.xlu0 %v6028, 125
        %v6055 = vpop.permute.xlu0 %6054
        %6056 = vrot.lane.b32.xlu0 %v6039, 125
        %v6057 = vpop.permute.xlu0 %6056
        %v6058 = vsel %vm516, %v6041, %v6043
        %v6059 = vsel %vm516, %v6043, %v6045
        %v6060 = vsel %vm516, %v6045, %v6047
        %v6061 = vsel %vm516, %v6047, %v6049
        %v6062 = vsel %vm516, %v6049, %v6051
        %v6063 = vsel %vm516, %v6051, %v6053
        %v6064 = vsel %vm516, %v6053, %v6055
        %v6065 = vsel %vm516, %v6055, %v6057
        %6074 = vst [vmem:[#allocation3 + $0xcc0] sm:$0xf0] %v6058
        %6075 = vst [vmem:[#allocation3 + $0xcc8] sm:$0xf0] %v6059
        %6076 = vst [vmem:[#allocation3 + $0xcd0] sm:$0xf0] %v6060
        %6077 = vst [vmem:[#allocation3 + $0xcd8] sm:$0xf0] %v6061
        %6078 = vst [vmem:[#allocation3 + $0xce0] sm:$0xf0] %v6062
        %6079 = vst [vmem:[#allocation3 + $0xce8] sm:$0xf0] %v6063
        %6080 = vst [vmem:[#allocation3 + $0xcf0] sm:$0xf0] %v6064
        %6081 = vst [vmem:[#allocation3 + $0xcf8] sm:$0xf0] %v6065
        %v6082 = vld [vmem:[#allocation2 + $0x20] sm:$0xff]
        %v6083 = vld [vmem:[#allocation2 + $0x28] sm:$0xff]
        %v6084 = vld [vmem:[#allocation2 + $0x30] sm:$0xff]
        %v6085 = vld [vmem:[#allocation2 + $0x38] sm:$0xff]
        %v6086 = vld [vmem:[#allocation2 + $0x40] sm:$0xf]
        %v6092 = vcombine.high %v6082, %v6082
        %v6093 = vcombine.high %v6083, %v6083
        %v6094 = vcombine.high %v6084, %v6084
        %v6095 = vcombine.high %v6085, %v6085
        %6096 = vrot.lane.b32.xlu0 %v6082, 124
        %v6097 = vpop.permute.xlu0 %6096
        %6098 = vrot.lane.b32.xlu0 %v6092, 124
        %v6099 = vpop.permute.xlu0 %6098
        %6100 = vrot.lane.b32.xlu0 %v6083, 124
        %v6101 = vpop.permute.xlu0 %6100
        %6102 = vrot.lane.b32.xlu0 %v6093, 124
        %v6103 = vpop.permute.xlu0 %6102
        %6104 = vrot.lane.b32.xlu0 %v6084, 124
        %v6105 = vpop.permute.xlu0 %6104
        %6106 = vrot.lane.b32.xlu0 %v6094, 124
        %v6107 = vpop.permute.xlu0 %6106
        %6108 = vrot.lane.b32.xlu0 %v6085, 124
        %v6109 = vpop.permute.xlu0 %6108
        %6110 = vrot.lane.b32.xlu0 %v6095, 124
        %v6111 = vpop.permute.xlu0 %6110
        %6112 = vrot.lane.b32.xlu0 %v6086, 124
        %v6113 = vpop.permute.xlu0 %6112
        %v6114 = vsel %vm573, %v6097, %v6099
        %v6115 = vsel %vm573, %v6099, %v6101
        %v6116 = vsel %vm573, %v6101, %v6103
        %v6117 = vsel %vm573, %v6103, %v6105
        %v6118 = vsel %vm573, %v6105, %v6107
        %v6119 = vsel %vm573, %v6107, %v6109
        %v6120 = vsel %vm573, %v6109, %v6111
        %v6121 = vsel %vm573, %v6111, %v6113
        %6130 = vst [vmem:[#allocation3 + $0xd00] sm:$0xf] %v6114
        %6131 = vst [vmem:[#allocation3 + $0xd08] sm:$0xf] %v6115
        %6132 = vst [vmem:[#allocation3 + $0xd10] sm:$0xf] %v6116
        %6133 = vst [vmem:[#allocation3 + $0xd18] sm:$0xf] %v6117
        %6134 = vst [vmem:[#allocation3 + $0xd20] sm:$0xf] %v6118
        %6135 = vst [vmem:[#allocation3 + $0xd28] sm:$0xf] %v6119
        %6136 = vst [vmem:[#allocation3 + $0xd30] sm:$0xf] %v6120
        %6137 = vst [vmem:[#allocation3 + $0xd38] sm:$0xf] %v6121
        %v6138 = vld [vmem:[#allocation2 + $0x20] sm:$0xff]
        %v6139 = vld [vmem:[#allocation2 + $0x28] sm:$0xff]
        %v6140 = vld [vmem:[#allocation2 + $0x30] sm:$0xff]
        %v6141 = vld [vmem:[#allocation2 + $0x38] sm:$0xff]
        %v6142 = vld [vmem:[#allocation2 + $0x40] sm:$0xf]
        %v6148 = vcombine.low %v6138, %v6138
        %v6149 = vcombine.low %v6139, %v6139
        %v6150 = vcombine.low %v6140, %v6140
        %v6151 = vcombine.low %v6141, %v6141
        %v6152 = vcombine.low %v6142, %v6142
        %6153 = vrot.lane.b32.xlu0 %v6148, 112
        %v6154 = vpop.permute.xlu0 %6153
        %6155 = vrot.lane.b32.xlu0 %v6138, 112
        %v6156 = vpop.permute.xlu0 %6155
        %6157 = vrot.lane.b32.xlu0 %v6149, 112
        %v6158 = vpop.permute.xlu0 %6157
        %6159 = vrot.lane.b32.xlu0 %v6139, 112
        %v6160 = vpop.permute.xlu0 %6159
        %6161 = vrot.lane.b32.xlu0 %v6150, 112
        %v6162 = vpop.permute.xlu0 %6161
        %6163 = vrot.lane.b32.xlu0 %v6140, 112
        %v6164 = vpop.permute.xlu0 %6163
        %6165 = vrot.lane.b32.xlu0 %v6151, 112
        %v6166 = vpop.permute.xlu0 %6165
        %6167 = vrot.lane.b32.xlu0 %v6141, 112
        %v6168 = vpop.permute.xlu0 %6167
        %6169 = vrot.lane.b32.xlu0 %v6152, 112
        %v6170 = vpop.permute.xlu0 %6169
        %v6171 = vsel %vm631, %v6154, %v6156
        %v6172 = vsel %vm631, %v6156, %v6158
        %v6173 = vsel %vm631, %v6158, %v6160
        %v6174 = vsel %vm631, %v6160, %v6162
        %v6175 = vsel %vm631, %v6162, %v6164
        %v6176 = vsel %vm631, %v6164, %v6166
        %v6177 = vsel %vm631, %v6166, %v6168
        %v6178 = vsel %vm631, %v6168, %v6170
        %6187 = vst [vmem:[#allocation3 + $0xd00] sm:$0xf0] %v6171
        %6188 = vst [vmem:[#allocation3 + $0xd08] sm:$0xf0] %v6172
        %6189 = vst [vmem:[#allocation3 + $0xd10] sm:$0xf0] %v6173
        %6190 = vst [vmem:[#allocation3 + $0xd18] sm:$0xf0] %v6174
        %6191 = vst [vmem:[#allocation3 + $0xd20] sm:$0xf0] %v6175
        %6192 = vst [vmem:[#allocation3 + $0xd28] sm:$0xf0] %v6176
        %6193 = vst [vmem:[#allocation3 + $0xd30] sm:$0xf0] %v6177
        %6194 = vst [vmem:[#allocation3 + $0xd38] sm:$0xf0] %v6178
        %v6195 = vld [vmem:[#allocation2 + $0x20] sm:$0xff]
        %v6196 = vld [vmem:[#allocation2 + $0x28] sm:$0xff]
        %v6197 = vld [vmem:[#allocation2 + $0x30] sm:$0xff]
        %v6198 = vld [vmem:[#allocation2 + $0x38] sm:$0xff]
        %v6199 = vld [vmem:[#allocation2 + $0x40] sm:$0xf]
        %v6205 = vcombine.high %v6195, %v6195
        %v6206 = vcombine.high %v6196, %v6196
        %v6207 = vcombine.high %v6197, %v6197
        %v6208 = vcombine.high %v6198, %v6198
        %6209 = vrot.lane.b32.xlu0 %v6195, 111
        %v6210 = vpop.permute.xlu0 %6209
        %6211 = vrot.lane.b32.xlu0 %v6205, 111
        %v6212 = vpop.permute.xlu0 %6211
        %6213 = vrot.lane.b32.xlu0 %v6196, 111
        %v6214 = vpop.permute.xlu0 %6213
        %6215 = vrot.lane.b32.xlu0 %v6206, 111
        %v6216 = vpop.permute.xlu0 %6215
        %6217 = vrot.lane.b32.xlu0 %v6197, 111
        %v6218 = vpop.permute.xlu0 %6217
        %6219 = vrot.lane.b32.xlu0 %v6207, 111
        %v6220 = vpop.permute.xlu0 %6219
        %6221 = vrot.lane.b32.xlu0 %v6198, 111
        %v6222 = vpop.permute.xlu0 %6221
        %6223 = vrot.lane.b32.xlu0 %v6208, 111
        %v6224 = vpop.permute.xlu0 %6223
        %6225 = vrot.lane.b32.xlu0 %v6199, 111
        %v6226 = vpop.permute.xlu0 %6225
        %v6227 = vsel %vm688, %v6210, %v6212
        %v6228 = vsel %vm688, %v6212, %v6214
        %v6229 = vsel %vm688, %v6214, %v6216
        %v6230 = vsel %vm688, %v6216, %v6218
        %v6231 = vsel %vm688, %v6218, %v6220
        %v6232 = vsel %vm688, %v6220, %v6222
        %v6233 = vsel %vm688, %v6222, %v6224
        %v6234 = vsel %vm688, %v6224, %v6226
        %6243 = vst [vmem:[#allocation3 + $0xd40] sm:$0xf] %v6227
        %6244 = vst [vmem:[#allocation3 + $0xd48] sm:$0xf] %v6228
        %6245 = vst [vmem:[#allocation3 + $0xd50] sm:$0xf] %v6229
        %6246 = vst [vmem:[#allocation3 + $0xd58] sm:$0xf] %v6230
        %6247 = vst [vmem:[#allocation3 + $0xd60] sm:$0xf] %v6231
        %6248 = vst [vmem:[#allocation3 + $0xd68] sm:$0xf] %v6232
        %6249 = vst [vmem:[#allocation3 + $0xd70] sm:$0xf] %v6233
        %6250 = vst [vmem:[#allocation3 + $0xd78] sm:$0xf] %v6234
        %v6251 = vld [vmem:[#allocation2 + $0x20] sm:$0xff]
        %v6252 = vld [vmem:[#allocation2 + $0x28] sm:$0xff]
        %v6253 = vld [vmem:[#allocation2 + $0x30] sm:$0xff]
        %v6254 = vld [vmem:[#allocation2 + $0x38] sm:$0xff]
        %v6255 = vld [vmem:[#allocation2 + $0x40] sm:$0xf]
        %v6261 = vcombine.low %v6251, %v6251
        %v6262 = vcombine.low %v6252, %v6252
        %v6263 = vcombine.low %v6253, %v6253
        %v6264 = vcombine.low %v6254, %v6254
        %v6265 = vcombine.low %v6255, %v6255
        %6266 = vrot.lane.b32.xlu0 %v6261, 110
        %v6267 = vpop.permute.xlu0 %6266
        %6268 = vrot.lane.b32.xlu0 %v6251, 110
        %v6269 = vpop.permute.xlu0 %6268
        %6270 = vrot.lane.b32.xlu0 %v6262, 110
        %v6271 = vpop.permute.xlu0 %6270
        %6272 = vrot.lane.b32.xlu0 %v6252, 110
        %v6273 = vpop.permute.xlu0 %6272
        %6274 = vrot.lane.b32.xlu0 %v6263, 110
        %v6275 = vpop.permute.xlu0 %6274
        %6276 = vrot.lane.b32.xlu0 %v6253, 110
        %v6277 = vpop.permute.xlu0 %6276
        %6278 = vrot.lane.b32.xlu0 %v6264, 110
        %v6279 = vpop.permute.xlu0 %6278
        %6280 = vrot.lane.b32.xlu0 %v6254, 110
        %v6281 = vpop.permute.xlu0 %6280
        %6282 = vrot.lane.b32.xlu0 %v6265, 110
        %v6283 = vpop.permute.xlu0 %6282
        %v6284 = vsel %vm746, %v6267, %v6269
        %v6285 = vsel %vm746, %v6269, %v6271
        %v6286 = vsel %vm746, %v6271, %v6273
        %v6287 = vsel %vm746, %v6273, %v6275
        %v6288 = vsel %vm746, %v6275, %v6277
        %v6289 = vsel %vm746, %v6277, %v6279
        %v6290 = vsel %vm746, %v6279, %v6281
        %v6291 = vsel %vm746, %v6281, %v6283
        %6300 = vst [vmem:[#allocation3 + $0xd40] sm:$0xf0] %v6284
        %6301 = vst [vmem:[#allocation3 + $0xd48] sm:$0xf0] %v6285
        %6302 = vst [vmem:[#allocation3 + $0xd50] sm:$0xf0] %v6286
        %6303 = vst [vmem:[#allocation3 + $0xd58] sm:$0xf0] %v6287
        %6304 = vst [vmem:[#allocation3 + $0xd60] sm:$0xf0] %v6288
        %6305 = vst [vmem:[#allocation3 + $0xd68] sm:$0xf0] %v6289
        %6306 = vst [vmem:[#allocation3 + $0xd70] sm:$0xf0] %v6290
        %6307 = vst [vmem:[#allocation3 + $0xd78] sm:$0xf0] %v6291
        %v6308 = vld [vmem:[#allocation2 + $0x20] sm:$0xff]
        %v6309 = vld [vmem:[#allocation2 + $0x28] sm:$0xff]
        %v6310 = vld [vmem:[#allocation2 + $0x30] sm:$0xff]
        %v6311 = vld [vmem:[#allocation2 + $0x38] sm:$0xff]
        %v6312 = vld [vmem:[#allocation2 + $0x40] sm:$0xf]
        %v6318 = vcombine.high %v6308, %v6308
        %v6319 = vcombine.high %v6309, %v6309
        %v6320 = vcombine.high %v6310, %v6310
        %v6321 = vcombine.high %v6311, %v6311
        %6322 = vrot.lane.b32.xlu0 %v6308, 109
        %v6323 = vpop.permute.xlu0 %6322
        %6324 = vrot.lane.b32.xlu0 %v6318, 109
        %v6325 = vpop.permute.xlu0 %6324
        %6326 = vrot.lane.b32.xlu0 %v6309, 109
        %v6327 = vpop.permute.xlu0 %6326
        %6328 = vrot.lane.b32.xlu0 %v6319, 109
        %v6329 = vpop.permute.xlu0 %6328
        %6330 = vrot.lane.b32.xlu0 %v6310, 109
        %v6331 = vpop.permute.xlu0 %6330
        %6332 = vrot.lane.b32.xlu0 %v6320, 109
        %v6333 = vpop.permute.xlu0 %6332
        %6334 = vrot.lane.b32.xlu0 %v6311, 109
        %v6335 = vpop.permute.xlu0 %6334
        %6336 = vrot.lane.b32.xlu0 %v6321, 109
        %v6337 = vpop.permute.xlu0 %6336
        %6338 = vrot.lane.b32.xlu0 %v6312, 109
        %v6339 = vpop.permute.xlu0 %6338
        %v6340 = vsel %vm803, %v6323, %v6325
        %v6341 = vsel %vm803, %v6325, %v6327
        %v6342 = vsel %vm803, %v6327, %v6329
        %v6343 = vsel %vm803, %v6329, %v6331
        %v6344 = vsel %vm803, %v6331, %v6333
        %v6345 = vsel %vm803, %v6333, %v6335
        %v6346 = vsel %vm803, %v6335, %v6337
        %v6347 = vsel %vm803, %v6337, %v6339
        %6356 = vst [vmem:[#allocation3 + $0xd80] sm:$0xf] %v6340
        %6357 = vst [vmem:[#allocation3 + $0xd88] sm:$0xf] %v6341
        %6358 = vst [vmem:[#allocation3 + $0xd90] sm:$0xf] %v6342
        %6359 = vst [vmem:[#allocation3 + $0xd98] sm:$0xf] %v6343
        %6360 = vst [vmem:[#allocation3 + $0xda0] sm:$0xf] %v6344
        %6361 = vst [vmem:[#allocation3 + $0xda8] sm:$0xf] %v6345
        %6362 = vst [vmem:[#allocation3 + $0xdb0] sm:$0xf] %v6346
        %6363 = vst [vmem:[#allocation3 + $0xdb8] sm:$0xf] %v6347
        %v6364 = vld [vmem:[#allocation2 + $0x20] sm:$0xff]
        %v6365 = vld [vmem:[#allocation2 + $0x28] sm:$0xff]
        %v6366 = vld [vmem:[#allocation2 + $0x30] sm:$0xff]
        %v6367 = vld [vmem:[#allocation2 + $0x38] sm:$0xff]
        %v6368 = vld [vmem:[#allocation2 + $0x40] sm:$0xf]
        %v6374 = vcombine.low %v6364, %v6364
        %v6375 = vcombine.low %v6365, %v6365
        %v6376 = vcombine.low %v6366, %v6366
        %v6377 = vcombine.low %v6367, %v6367
        %v6378 = vcombine.low %v6368, %v6368
        %6379 = vrot.lane.b32.xlu0 %v6374, 108
        %v6380 = vpop.permute.xlu0 %6379
        %6381 = vrot.lane.b32.xlu0 %v6364, 108
        %v6382 = vpop.permute.xlu0 %6381
        %6383 = vrot.lane.b32.xlu0 %v6375, 108
        %v6384 = vpop.permute.xlu0 %6383
        %6385 = vrot.lane.b32.xlu0 %v6365, 108
        %v6386 = vpop.permute.xlu0 %6385
        %6387 = vrot.lane.b32.xlu0 %v6376, 108
        %v6388 = vpop.permute.xlu0 %6387
        %6389 = vrot.lane.b32.xlu0 %v6366, 108
        %v6390 = vpop.permute.xlu0 %6389
        %6391 = vrot.lane.b32.xlu0 %v6377, 108
        %v6392 = vpop.permute.xlu0 %6391
        %6393 = vrot.lane.b32.xlu0 %v6367, 108
        %v6394 = vpop.permute.xlu0 %6393
        %6395 = vrot.lane.b32.xlu0 %v6378, 108
        %v6396 = vpop.permute.xlu0 %6395
        %v6397 = vsel %vm861, %v6380, %v6382
        %v6398 = vsel %vm861, %v6382, %v6384
        %v6399 = vsel %vm861, %v6384, %v6386
        %v6400 = vsel %vm861, %v6386, %v6388
        %v6401 = vsel %vm861, %v6388, %v6390
        %v6402 = vsel %vm861, %v6390, %v6392
        %v6403 = vsel %vm861, %v6392, %v6394
        %v6404 = vsel %vm861, %v6394, %v6396
        %6413 = vst [vmem:[#allocation3 + $0xd80] sm:$0xf0] %v6397
        %6414 = vst [vmem:[#allocation3 + $0xd88] sm:$0xf0] %v6398
        %6415 = vst [vmem:[#allocation3 + $0xd90] sm:$0xf0] %v6399
        %6416 = vst [vmem:[#allocation3 + $0xd98] sm:$0xf0] %v6400
        %6417 = vst [vmem:[#allocation3 + $0xda0] sm:$0xf0] %v6401
        %6418 = vst [vmem:[#allocation3 + $0xda8] sm:$0xf0] %v6402
        %6419 = vst [vmem:[#allocation3 + $0xdb0] sm:$0xf0] %v6403
        %6420 = vst [vmem:[#allocation3 + $0xdb8] sm:$0xf0] %v6404
        %v6421 = vld [vmem:[#allocation2 + $0x20] sm:$0xff]
        %v6422 = vld [vmem:[#allocation2 + $0x28] sm:$0xff]
        %v6423 = vld [vmem:[#allocation2 + $0x30] sm:$0xff]
        %v6424 = vld [vmem:[#allocation2 + $0x38] sm:$0xff]
        %v6425 = vld [vmem:[#allocation2 + $0x40] sm:$0xf]
        %v6431 = vcombine.high %v6421, %v6421
        %v6432 = vcombine.high %v6422, %v6422
        %v6433 = vcombine.high %v6423, %v6423
        %v6434 = vcombine.high %v6424, %v6424
        %6435 = vrot.lane.b32.xlu0 %v6421, 96
        %v6436 = vpop.permute.xlu0 %6435
        %6437 = vrot.lane.b32.xlu0 %v6431, 96
        %v6438 = vpop.permute.xlu0 %6437
        %6439 = vrot.lane.b32.xlu0 %v6422, 96
        %v6440 = vpop.permute.xlu0 %6439
        %6441 = vrot.lane.b32.xlu0 %v6432, 96
        %v6442 = vpop.permute.xlu0 %6441
        %6443 = vrot.lane.b32.xlu0 %v6423, 96
        %v6444 = vpop.permute.xlu0 %6443
        %6445 = vrot.lane.b32.xlu0 %v6433, 96
        %v6446 = vpop.permute.xlu0 %6445
        %6447 = vrot.lane.b32.xlu0 %v6424, 96
        %v6448 = vpop.permute.xlu0 %6447
        %6449 = vrot.lane.b32.xlu0 %v6434, 96
        %v6450 = vpop.permute.xlu0 %6449
        %6451 = vrot.lane.b32.xlu0 %v6425, 96
        %v6452 = vpop.permute.xlu0 %6451
        %v6453 = vsel %vm918, %v6436, %v6438
        %v6454 = vsel %vm918, %v6438, %v6440
        %v6455 = vsel %vm918, %v6440, %v6442
        %v6456 = vsel %vm918, %v6442, %v6444
        %v6457 = vsel %vm918, %v6444, %v6446
        %v6458 = vsel %vm918, %v6446, %v6448
        %v6459 = vsel %vm918, %v6448, %v6450
        %v6460 = vsel %vm918, %v6450, %v6452
        %6469 = vst [vmem:[#allocation3 + $0xdc0] sm:$0xf] %v6453
        %6470 = vst [vmem:[#allocation3 + $0xdc8] sm:$0xf] %v6454
        %6471 = vst [vmem:[#allocation3 + $0xdd0] sm:$0xf] %v6455
        %6472 = vst [vmem:[#allocation3 + $0xdd8] sm:$0xf] %v6456
        %6473 = vst [vmem:[#allocation3 + $0xde0] sm:$0xf] %v6457
        %6474 = vst [vmem:[#allocation3 + $0xde8] sm:$0xf] %v6458
        %6475 = vst [vmem:[#allocation3 + $0xdf0] sm:$0xf] %v6459
        %6476 = vst [vmem:[#allocation3 + $0xdf8] sm:$0xf] %v6460
        %v6477 = vld [vmem:[#allocation2 + $0x20] sm:$0xff]
        %v6478 = vld [vmem:[#allocation2 + $0x28] sm:$0xff]
        %v6479 = vld [vmem:[#allocation2 + $0x30] sm:$0xff]
        %v6480 = vld [vmem:[#allocation2 + $0x38] sm:$0xff]
        %v6481 = vld [vmem:[#allocation2 + $0x40] sm:$0xf]
        %v6487 = vcombine.low %v6477, %v6477
        %v6488 = vcombine.low %v6478, %v6478
        %v6489 = vcombine.low %v6479, %v6479
        %v6490 = vcombine.low %v6480, %v6480
        %v6491 = vcombine.low %v6481, %v6481
        %6492 = vrot.lane.b32.xlu0 %v6487, 95
        %v6493 = vpop.permute.xlu0 %6492
        %6494 = vrot.lane.b32.xlu0 %v6477, 95
        %v6495 = vpop.permute.xlu0 %6494
        %6496 = vrot.lane.b32.xlu0 %v6488, 95
        %v6497 = vpop.permute.xlu0 %6496
        %6498 = vrot.lane.b32.xlu0 %v6478, 95
        %v6499 = vpop.permute.xlu0 %6498
        %6500 = vrot.lane.b32.xlu0 %v6489, 95
        %v6501 = vpop.permute.xlu0 %6500
        %6502 = vrot.lane.b32.xlu0 %v6479, 95
        %v6503 = vpop.permute.xlu0 %6502
        %6504 = vrot.lane.b32.xlu0 %v6490, 95
        %v6505 = vpop.permute.xlu0 %6504
        %6506 = vrot.lane.b32.xlu0 %v6480, 95
        %v6507 = vpop.permute.xlu0 %6506
        %6508 = vrot.lane.b32.xlu0 %v6491, 95
        %v6509 = vpop.permute.xlu0 %6508
        %v6510 = vsel %vm976, %v6493, %v6495
        %v6511 = vsel %vm976, %v6495, %v6497
        %v6512 = vsel %vm976, %v6497, %v6499
        %v6513 = vsel %vm976, %v6499, %v6501
        %v6514 = vsel %vm976, %v6501, %v6503
        %v6515 = vsel %vm976, %v6503, %v6505
        %v6516 = vsel %vm976, %v6505, %v6507
        %v6517 = vsel %vm976, %v6507, %v6509
        %6526 = vst [vmem:[#allocation3 + $0xdc0] sm:$0xf0] %v6510
        %6527 = vst [vmem:[#allocation3 + $0xdc8] sm:$0xf0] %v6511
        %6528 = vst [vmem:[#allocation3 + $0xdd0] sm:$0xf0] %v6512
        %6529 = vst [vmem:[#allocation3 + $0xdd8] sm:$0xf0] %v6513
        %6530 = vst [vmem:[#allocation3 + $0xde0] sm:$0xf0] %v6514
        %6531 = vst [vmem:[#allocation3 + $0xde8] sm:$0xf0] %v6515
        %6532 = vst [vmem:[#allocation3 + $0xdf0] sm:$0xf0] %v6516
        %6533 = vst [vmem:[#allocation3 + $0xdf8] sm:$0xf0] %v6517
        %v6534 = vld [vmem:[#allocation2 + $0x20] sm:$0xff]
        %v6535 = vld [vmem:[#allocation2 + $0x28] sm:$0xff]
        %v6536 = vld [vmem:[#allocation2 + $0x30] sm:$0xff]
        %v6537 = vld [vmem:[#allocation2 + $0x38] sm:$0xff]
        %v6538 = vld [vmem:[#allocation2 + $0x40] sm:$0xf]
        %v6544 = vcombine.high %v6534, %v6534
        %v6545 = vcombine.high %v6535, %v6535
        %v6546 = vcombine.high %v6536, %v6536
        %v6547 = vcombine.high %v6537, %v6537
        %6548 = vrot.lane.b32.xlu0 %v6534, 94
        %v6549 = vpop.permute.xlu0 %6548
        %6550 = vrot.lane.b32.xlu0 %v6544, 94
        %v6551 = vpop.permute.xlu0 %6550
        %6552 = vrot.lane.b32.xlu0 %v6535, 94
        %v6553 = vpop.permute.xlu0 %6552
        %6554 = vrot.lane.b32.xlu0 %v6545, 94
        %v6555 = vpop.permute.xlu0 %6554
        %6556 = vrot.lane.b32.xlu0 %v6536, 94
        %v6557 = vpop.permute.xlu0 %6556
        %6558 = vrot.lane.b32.xlu0 %v6546, 94
        %v6559 = vpop.permute.xlu0 %6558
        %6560 = vrot.lane.b32.xlu0 %v6537, 94
        %v6561 = vpop.permute.xlu0 %6560
        %6562 = vrot.lane.b32.xlu0 %v6547, 94
        %v6563 = vpop.permute.xlu0 %6562
        %6564 = vrot.lane.b32.xlu0 %v6538, 94
        %v6565 = vpop.permute.xlu0 %6564
        %v6566 = vsel %vm1033, %v6549, %v6551
        %v6567 = vsel %vm1033, %v6551, %v6553
        %v6568 = vsel %vm1033, %v6553, %v6555
        %v6569 = vsel %vm1033, %v6555, %v6557
        %v6570 = vsel %vm1033, %v6557, %v6559
        %v6571 = vsel %vm1033, %v6559, %v6561
        %v6572 = vsel %vm1033, %v6561, %v6563
        %v6573 = vsel %vm1033, %v6563, %v6565
        %6582 = vst [vmem:[#allocation3 + $0xe00] sm:$0xf] %v6566
        %6583 = vst [vmem:[#allocation3 + $0xe08] sm:$0xf] %v6567
        %6584 = vst [vmem:[#allocation3 + $0xe10] sm:$0xf] %v6568
        %6585 = vst [vmem:[#allocation3 + $0xe18] sm:$0xf] %v6569
        %6586 = vst [vmem:[#allocation3 + $0xe20] sm:$0xf] %v6570
        %6587 = vst [vmem:[#allocation3 + $0xe28] sm:$0xf] %v6571
        %6588 = vst [vmem:[#allocation3 + $0xe30] sm:$0xf] %v6572
        %6589 = vst [vmem:[#allocation3 + $0xe38] sm:$0xf] %v6573
        %v6590 = vld [vmem:[#allocation2 + $0x20] sm:$0xff]
        %v6591 = vld [vmem:[#allocation2 + $0x28] sm:$0xff]
        %v6592 = vld [vmem:[#allocation2 + $0x30] sm:$0xff]
        %v6593 = vld [vmem:[#allocation2 + $0x38] sm:$0xff]
        %v6594 = vld [vmem:[#allocation2 + $0x40] sm:$0xf]
        %v6600 = vcombine.low %v6590, %v6590
        %v6601 = vcombine.low %v6591, %v6591
        %v6602 = vcombine.low %v6592, %v6592
        %v6603 = vcombine.low %v6593, %v6593
        %v6604 = vcombine.low %v6594, %v6594
        %6605 = vrot.lane.b32.xlu0 %v6600, 93
        %v6606 = vpop.permute.xlu0 %6605
        %6607 = vrot.lane.b32.xlu0 %v6590, 93
        %v6608 = vpop.permute.xlu0 %6607
        %6609 = vrot.lane.b32.xlu0 %v6601, 93
        %v6610 = vpop.permute.xlu0 %6609
        %6611 = vrot.lane.b32.xlu0 %v6591, 93
        %v6612 = vpop.permute.xlu0 %6611
        %6613 = vrot.lane.b32.xlu0 %v6602, 93
        %v6614 = vpop.permute.xlu0 %6613
        %6615 = vrot.lane.b32.xlu0 %v6592, 93
        %v6616 = vpop.permute.xlu0 %6615
        %6617 = vrot.lane.b32.xlu0 %v6603, 93
        %v6618 = vpop.permute.xlu0 %6617
        %6619 = vrot.lane.b32.xlu0 %v6593, 93
        %v6620 = vpop.permute.xlu0 %6619
        %6621 = vrot.lane.b32.xlu0 %v6604, 93
        %v6622 = vpop.permute.xlu0 %6621
        %v6623 = vsel %vm1091, %v6606, %v6608
        %v6624 = vsel %vm1091, %v6608, %v6610
        %v6625 = vsel %vm1091, %v6610, %v6612
        %v6626 = vsel %vm1091, %v6612, %v6614
        %v6627 = vsel %vm1091, %v6614, %v6616
        %v6628 = vsel %vm1091, %v6616, %v6618
        %v6629 = vsel %vm1091, %v6618, %v6620
        %v6630 = vsel %vm1091, %v6620, %v6622
        %6639 = vst [vmem:[#allocation3 + $0xe00] sm:$0xf0] %v6623
        %6640 = vst [vmem:[#allocation3 + $0xe08] sm:$0xf0] %v6624
        %6641 = vst [vmem:[#allocation3 + $0xe10] sm:$0xf0] %v6625
        %6642 = vst [vmem:[#allocation3 + $0xe18] sm:$0xf0] %v6626
        %6643 = vst [vmem:[#allocation3 + $0xe20] sm:$0xf0] %v6627
        %6644 = vst [vmem:[#allocation3 + $0xe28] sm:$0xf0] %v6628
        %6645 = vst [vmem:[#allocation3 + $0xe30] sm:$0xf0] %v6629
        %6646 = vst [vmem:[#allocation3 + $0xe38] sm:$0xf0] %v6630
        %v6647 = vld [vmem:[#allocation2 + $0x20] sm:$0xff]
        %v6648 = vld [vmem:[#allocation2 + $0x28] sm:$0xff]
        %v6649 = vld [vmem:[#allocation2 + $0x30] sm:$0xff]
        %v6650 = vld [vmem:[#allocation2 + $0x38] sm:$0xff]
        %v6651 = vld [vmem:[#allocation2 + $0x40] sm:$0xf]
        %v6657 = vcombine.high %v6647, %v6647
        %v6658 = vcombine.high %v6648, %v6648
        %v6659 = vcombine.high %v6649, %v6649
        %v6660 = vcombine.high %v6650, %v6650
        %6661 = vrot.lane.b32.xlu0 %v6647, 92
        %v6662 = vpop.permute.xlu0 %6661
        %6663 = vrot.lane.b32.xlu0 %v6657, 92
        %v6664 = vpop.permute.xlu0 %6663
        %6665 = vrot.lane.b32.xlu0 %v6648, 92
        %v6666 = vpop.permute.xlu0 %6665
        %6667 = vrot.lane.b32.xlu0 %v6658, 92
        %v6668 = vpop.permute.xlu0 %6667
        %6669 = vrot.lane.b32.xlu0 %v6649, 92
        %v6670 = vpop.permute.xlu0 %6669
        %6671 = vrot.lane.b32.xlu0 %v6659, 92
        %v6672 = vpop.permute.xlu0 %6671
        %6673 = vrot.lane.b32.xlu0 %v6650, 92
        %v6674 = vpop.permute.xlu0 %6673
        %6675 = vrot.lane.b32.xlu0 %v6660, 92
        %v6676 = vpop.permute.xlu0 %6675
        %6677 = vrot.lane.b32.xlu0 %v6651, 92
        %v6678 = vpop.permute.xlu0 %6677
        %v6679 = vsel %vm1148, %v6662, %v6664
        %v6680 = vsel %vm1148, %v6664, %v6666
        %v6681 = vsel %vm1148, %v6666, %v6668
        %v6682 = vsel %vm1148, %v6668, %v6670
        %v6683 = vsel %vm1148, %v6670, %v6672
        %v6684 = vsel %vm1148, %v6672, %v6674
        %v6685 = vsel %vm1148, %v6674, %v6676
        %v6686 = vsel %vm1148, %v6676, %v6678
        %6695 = vst [vmem:[#allocation3 + $0xe40] sm:$0xf] %v6679
        %6696 = vst [vmem:[#allocation3 + $0xe48] sm:$0xf] %v6680
        %6697 = vst [vmem:[#allocation3 + $0xe50] sm:$0xf] %v6681
        %6698 = vst [vmem:[#allocation3 + $0xe58] sm:$0xf] %v6682
        %6699 = vst [vmem:[#allocation3 + $0xe60] sm:$0xf] %v6683
        %6700 = vst [vmem:[#allocation3 + $0xe68] sm:$0xf] %v6684
        %6701 = vst [vmem:[#allocation3 + $0xe70] sm:$0xf] %v6685
        %6702 = vst [vmem:[#allocation3 + $0xe78] sm:$0xf] %v6686
        %v6703 = vld [vmem:[#allocation2 + $0x20] sm:$0xff]
        %v6704 = vld [vmem:[#allocation2 + $0x28] sm:$0xff]
        %v6705 = vld [vmem:[#allocation2 + $0x30] sm:$0xff]
        %v6706 = vld [vmem:[#allocation2 + $0x38] sm:$0xff]
        %v6707 = vld [vmem:[#allocation2 + $0x40] sm:$0xf]
        %v6713 = vcombine.low %v6703, %v6703
        %v6714 = vcombine.low %v6704, %v6704
        %v6715 = vcombine.low %v6705, %v6705
        %v6716 = vcombine.low %v6706, %v6706
        %v6717 = vcombine.low %v6707, %v6707
        %6718 = vrot.lane.b32.xlu0 %v6713, 80
        %v6719 = vpop.permute.xlu0 %6718
        %6720 = vrot.lane.b32.xlu0 %v6703, 80
        %v6721 = vpop.permute.xlu0 %6720
        %6722 = vrot.lane.b32.xlu0 %v6714, 80
        %v6723 = vpop.permute.xlu0 %6722
        %6724 = vrot.lane.b32.xlu0 %v6704, 80
        %v6725 = vpop.permute.xlu0 %6724
        %6726 = vrot.lane.b32.xlu0 %v6715, 80
        %v6727 = vpop.permute.xlu0 %6726
        %6728 = vrot.lane.b32.xlu0 %v6705, 80
        %v6729 = vpop.permute.xlu0 %6728
        %6730 = vrot.lane.b32.xlu0 %v6716, 80
        %v6731 = vpop.permute.xlu0 %6730
        %6732 = vrot.lane.b32.xlu0 %v6706, 80
        %v6733 = vpop.permute.xlu0 %6732
        %6734 = vrot.lane.b32.xlu0 %v6717, 80
        %v6735 = vpop.permute.xlu0 %6734
        %v6736 = vsel %vm1206, %v6719, %v6721
        %v6737 = vsel %vm1206, %v6721, %v6723
        %v6738 = vsel %vm1206, %v6723, %v6725
        %v6739 = vsel %vm1206, %v6725, %v6727
        %v6740 = vsel %vm1206, %v6727, %v6729
        %v6741 = vsel %vm1206, %v6729, %v6731
        %v6742 = vsel %vm1206, %v6731, %v6733
        %v6743 = vsel %vm1206, %v6733, %v6735
        %6752 = vst [vmem:[#allocation3 + $0xe40] sm:$0xf0] %v6736
        %6753 = vst [vmem:[#allocation3 + $0xe48] sm:$0xf0] %v6737
        %6754 = vst [vmem:[#allocation3 + $0xe50] sm:$0xf0] %v6738
        %6755 = vst [vmem:[#allocation3 + $0xe58] sm:$0xf0] %v6739
        %6756 = vst [vmem:[#allocation3 + $0xe60] sm:$0xf0] %v6740
        %6757 = vst [vmem:[#allocation3 + $0xe68] sm:$0xf0] %v6741
        %6758 = vst [vmem:[#allocation3 + $0xe70] sm:$0xf0] %v6742
        %6759 = vst [vmem:[#allocation3 + $0xe78] sm:$0xf0] %v6743
        %v6760 = vld [vmem:[#allocation2 + $0x20] sm:$0xff]
        %v6761 = vld [vmem:[#allocation2 + $0x28] sm:$0xff]
        %v6762 = vld [vmem:[#allocation2 + $0x30] sm:$0xff]
        %v6763 = vld [vmem:[#allocation2 + $0x38] sm:$0xff]
        %v6764 = vld [vmem:[#allocation2 + $0x40] sm:$0xf]
        %v6770 = vcombine.high %v6760, %v6760
        %v6771 = vcombine.high %v6761, %v6761
        %v6772 = vcombine.high %v6762, %v6762
        %v6773 = vcombine.high %v6763, %v6763
        %6774 = vrot.lane.b32.xlu0 %v6760, 79
        %v6775 = vpop.permute.xlu0 %6774
        %6776 = vrot.lane.b32.xlu0 %v6770, 79
        %v6777 = vpop.permute.xlu0 %6776
        %6778 = vrot.lane.b32.xlu0 %v6761, 79
        %v6779 = vpop.permute.xlu0 %6778
        %6780 = vrot.lane.b32.xlu0 %v6771, 79
        %v6781 = vpop.permute.xlu0 %6780
        %6782 = vrot.lane.b32.xlu0 %v6762, 79
        %v6783 = vpop.permute.xlu0 %6782
        %6784 = vrot.lane.b32.xlu0 %v6772, 79
        %v6785 = vpop.permute.xlu0 %6784
        %6786 = vrot.lane.b32.xlu0 %v6763, 79
        %v6787 = vpop.permute.xlu0 %6786
        %6788 = vrot.lane.b32.xlu0 %v6773, 79
        %v6789 = vpop.permute.xlu0 %6788
        %6790 = vrot.lane.b32.xlu0 %v6764, 79
        %v6791 = vpop.permute.xlu0 %6790
        %v6792 = vsel %vm1263, %v6775, %v6777
        %v6793 = vsel %vm1263, %v6777, %v6779
        %v6794 = vsel %vm1263, %v6779, %v6781
        %v6795 = vsel %vm1263, %v6781, %v6783
        %v6796 = vsel %vm1263, %v6783, %v6785
        %v6797 = vsel %vm1263, %v6785, %v6787
        %v6798 = vsel %vm1263, %v6787, %v6789
        %v6799 = vsel %vm1263, %v6789, %v6791
        %6808 = vst [vmem:[#allocation3 + $0xe80] sm:$0xf] %v6792
        %6809 = vst [vmem:[#allocation3 + $0xe88] sm:$0xf] %v6793
        %6810 = vst [vmem:[#allocation3 + $0xe90] sm:$0xf] %v6794
        %6811 = vst [vmem:[#allocation3 + $0xe98] sm:$0xf] %v6795
        %6812 = vst [vmem:[#allocation3 + $0xea0] sm:$0xf] %v6796
        %6813 = vst [vmem:[#allocation3 + $0xea8] sm:$0xf] %v6797
        %6814 = vst [vmem:[#allocation3 + $0xeb0] sm:$0xf] %v6798
        %6815 = vst [vmem:[#allocation3 + $0xeb8] sm:$0xf] %v6799
        %v6816 = vld [vmem:[#allocation2 + $0x20] sm:$0xff]
        %v6817 = vld [vmem:[#allocation2 + $0x28] sm:$0xff]
        %v6818 = vld [vmem:[#allocation2 + $0x30] sm:$0xff]
        %v6819 = vld [vmem:[#allocation2 + $0x38] sm:$0xff]
        %v6820 = vld [vmem:[#allocation2 + $0x40] sm:$0xf]
        %v6826 = vcombine.low %v6816, %v6816
        %v6827 = vcombine.low %v6817, %v6817
        %v6828 = vcombine.low %v6818, %v6818
        %v6829 = vcombine.low %v6819, %v6819
        %v6830 = vcombine.low %v6820, %v6820
        %6831 = vrot.lane.b32.xlu0 %v6826, 78
        %v6832 = vpop.permute.xlu0 %6831
        %6833 = vrot.lane.b32.xlu0 %v6816, 78
        %v6834 = vpop.permute.xlu0 %6833
        %6835 = vrot.lane.b32.xlu0 %v6827, 78
        %v6836 = vpop.permute.xlu0 %6835
        %6837 = vrot.lane.b32.xlu0 %v6817, 78
        %v6838 = vpop.permute.xlu0 %6837
        %6839 = vrot.lane.b32.xlu0 %v6828, 78
        %v6840 = vpop.permute.xlu0 %6839
        %6841 = vrot.lane.b32.xlu0 %v6818, 78
        %v6842 = vpop.permute.xlu0 %6841
        %6843 = vrot.lane.b32.xlu0 %v6829, 78
        %v6844 = vpop.permute.xlu0 %6843
        %6845 = vrot.lane.b32.xlu0 %v6819, 78
        %v6846 = vpop.permute.xlu0 %6845
        %6847 = vrot.lane.b32.xlu0 %v6830, 78
        %v6848 = vpop.permute.xlu0 %6847
        %v6849 = vsel %vm1321, %v6832, %v6834
        %v6850 = vsel %vm1321, %v6834, %v6836
        %v6851 = vsel %vm1321, %v6836, %v6838
        %v6852 = vsel %vm1321, %v6838, %v6840
        %v6853 = vsel %vm1321, %v6840, %v6842
        %v6854 = vsel %vm1321, %v6842, %v6844
        %v6855 = vsel %vm1321, %v6844, %v6846
        %v6856 = vsel %vm1321, %v6846, %v6848
        %6865 = vst [vmem:[#allocation3 + $0xe80] sm:$0xf0] %v6849
        %6866 = vst [vmem:[#allocation3 + $0xe88] sm:$0xf0] %v6850
        %6867 = vst [vmem:[#allocation3 + $0xe90] sm:$0xf0] %v6851
        %6868 = vst [vmem:[#allocation3 + $0xe98] sm:$0xf0] %v6852
        %6869 = vst [vmem:[#allocation3 + $0xea0] sm:$0xf0] %v6853
        %6870 = vst [vmem:[#allocation3 + $0xea8] sm:$0xf0] %v6854
        %6871 = vst [vmem:[#allocation3 + $0xeb0] sm:$0xf0] %v6855
        %6872 = vst [vmem:[#allocation3 + $0xeb8] sm:$0xf0] %v6856
        %v6873 = vld [vmem:[#allocation2 + $0x20] sm:$0xff]
        %v6874 = vld [vmem:[#allocation2 + $0x28] sm:$0xff]
        %v6875 = vld [vmem:[#allocation2 + $0x30] sm:$0xff]
        %v6876 = vld [vmem:[#allocation2 + $0x38] sm:$0xff]
        %v6877 = vld [vmem:[#allocation2 + $0x40] sm:$0xf]
        %v6883 = vcombine.high %v6873, %v6873
        %v6884 = vcombine.high %v6874, %v6874
        %v6885 = vcombine.high %v6875, %v6875
        %v6886 = vcombine.high %v6876, %v6876
        %6887 = vrot.lane.b32.xlu0 %v6873, 77
        %v6888 = vpop.permute.xlu0 %6887
        %6889 = vrot.lane.b32.xlu0 %v6883, 77
        %v6890 = vpop.permute.xlu0 %6889
        %6891 = vrot.lane.b32.xlu0 %v6874, 77
        %v6892 = vpop.permute.xlu0 %6891
        %6893 = vrot.lane.b32.xlu0 %v6884, 77
        %v6894 = vpop.permute.xlu0 %6893
        %6895 = vrot.lane.b32.xlu0 %v6875, 77
        %v6896 = vpop.permute.xlu0 %6895
        %6897 = vrot.lane.b32.xlu0 %v6885, 77
        %v6898 = vpop.permute.xlu0 %6897
        %6899 = vrot.lane.b32.xlu0 %v6876, 77
        %v6900 = vpop.permute.xlu0 %6899
        %6901 = vrot.lane.b32.xlu0 %v6886, 77
        %v6902 = vpop.permute.xlu0 %6901
        %6903 = vrot.lane.b32.xlu0 %v6877, 77
        %v6904 = vpop.permute.xlu0 %6903
        %v6905 = vsel %vm1378, %v6888, %v6890
        %v6906 = vsel %vm1378, %v6890, %v6892
        %v6907 = vsel %vm1378, %v6892, %v6894
        %v6908 = vsel %vm1378, %v6894, %v6896
        %v6909 = vsel %vm1378, %v6896, %v6898
        %v6910 = vsel %vm1378, %v6898, %v6900
        %v6911 = vsel %vm1378, %v6900, %v6902
        %v6912 = vsel %vm1378, %v6902, %v6904
        %6921 = vst [vmem:[#allocation3 + $0xec0] sm:$0xf] %v6905
        %6922 = vst [vmem:[#allocation3 + $0xec8] sm:$0xf] %v6906
        %6923 = vst [vmem:[#allocation3 + $0xed0] sm:$0xf] %v6907
        %6924 = vst [vmem:[#allocation3 + $0xed8] sm:$0xf] %v6908
        %6925 = vst [vmem:[#allocation3 + $0xee0] sm:$0xf] %v6909
        %6926 = vst [vmem:[#allocation3 + $0xee8] sm:$0xf] %v6910
        %6927 = vst [vmem:[#allocation3 + $0xef0] sm:$0xf] %v6911
        %6928 = vst [vmem:[#allocation3 + $0xef8] sm:$0xf] %v6912
        %v6929 = vld [vmem:[#allocation2 + $0x20] sm:$0xff]
        %v6930 = vld [vmem:[#allocation2 + $0x28] sm:$0xff]
        %v6931 = vld [vmem:[#allocation2 + $0x30] sm:$0xff]
        %v6932 = vld [vmem:[#allocation2 + $0x38] sm:$0xff]
        %v6933 = vld [vmem:[#allocation2 + $0x40] sm:$0xf]
        %v6939 = vcombine.low %v6929, %v6929
        %v6940 = vcombine.low %v6930, %v6930
        %v6941 = vcombine.low %v6931, %v6931
        %v6942 = vcombine.low %v6932, %v6932
        %v6943 = vcombine.low %v6933, %v6933
        %6944 = vrot.lane.b32.xlu0 %v6939, 76
        %v6945 = vpop.permute.xlu0 %6944
        %6946 = vrot.lane.b32.xlu0 %v6929, 76
        %v6947 = vpop.permute.xlu0 %6946
        %6948 = vrot.lane.b32.xlu0 %v6940, 76
        %v6949 = vpop.permute.xlu0 %6948
        %6950 = vrot.lane.b32.xlu0 %v6930, 76
        %v6951 = vpop.permute.xlu0 %6950
        %6952 = vrot.lane.b32.xlu0 %v6941, 76
        %v6953 = vpop.permute.xlu0 %6952
        %6954 = vrot.lane.b32.xlu0 %v6931, 76
        %v6955 = vpop.permute.xlu0 %6954
        %6956 = vrot.lane.b32.xlu0 %v6942, 76
        %v6957 = vpop.permute.xlu0 %6956
        %6958 = vrot.lane.b32.xlu0 %v6932, 76
        %v6959 = vpop.permute.xlu0 %6958
        %6960 = vrot.lane.b32.xlu0 %v6943, 76
        %v6961 = vpop.permute.xlu0 %6960
        %v6962 = vsel %vm1436, %v6945, %v6947
        %v6963 = vsel %vm1436, %v6947, %v6949
        %v6964 = vsel %vm1436, %v6949, %v6951
        %v6965 = vsel %vm1436, %v6951, %v6953
        %v6966 = vsel %vm1436, %v6953, %v6955
        %v6967 = vsel %vm1436, %v6955, %v6957
        %v6968 = vsel %vm1436, %v6957, %v6959
        %v6969 = vsel %vm1436, %v6959, %v6961
        %6978 = vst [vmem:[#allocation3 + $0xec0] sm:$0xf0] %v6962
        %6979 = vst [vmem:[#allocation3 + $0xec8] sm:$0xf0] %v6963
        %6980 = vst [vmem:[#allocation3 + $0xed0] sm:$0xf0] %v6964
        %6981 = vst [vmem:[#allocation3 + $0xed8] sm:$0xf0] %v6965
        %6982 = vst [vmem:[#allocation3 + $0xee0] sm:$0xf0] %v6966
        %6983 = vst [vmem:[#allocation3 + $0xee8] sm:$0xf0] %v6967
        %6984 = vst [vmem:[#allocation3 + $0xef0] sm:$0xf0] %v6968
        %6985 = vst [vmem:[#allocation3 + $0xef8] sm:$0xf0] %v6969
        %v6986 = vld [vmem:[#allocation2 + $0x20] sm:$0xff]
        %v6987 = vld [vmem:[#allocation2 + $0x28] sm:$0xff]
        %v6988 = vld [vmem:[#allocation2 + $0x30] sm:$0xff]
        %v6989 = vld [vmem:[#allocation2 + $0x38] sm:$0xff]
        %v6990 = vld [vmem:[#allocation2 + $0x40] sm:$0xf]
        %v6996 = vcombine.high %v6986, %v6986
        %v6997 = vcombine.high %v6987, %v6987
        %v6998 = vcombine.high %v6988, %v6988
        %v6999 = vcombine.high %v6989, %v6989
        %7000 = vrot.lane.b32.xlu0 %v6986, 64
        %v7001 = vpop.permute.xlu0 %7000
        %7002 = vrot.lane.b32.xlu0 %v6996, 64
        %v7003 = vpop.permute.xlu0 %7002
        %7004 = vrot.lane.b32.xlu0 %v6987, 64
        %v7005 = vpop.permute.xlu0 %7004
        %7006 = vrot.lane.b32.xlu0 %v6997, 64
        %v7007 = vpop.permute.xlu0 %7006
        %7008 = vrot.lane.b32.xlu0 %v6988, 64
        %v7009 = vpop.permute.xlu0 %7008
        %7010 = vrot.lane.b32.xlu0 %v6998, 64
        %v7011 = vpop.permute.xlu0 %7010
        %7012 = vrot.lane.b32.xlu0 %v6989, 64
        %v7013 = vpop.permute.xlu0 %7012
        %7014 = vrot.lane.b32.xlu0 %v6999, 64
        %v7015 = vpop.permute.xlu0 %7014
        %7016 = vrot.lane.b32.xlu0 %v6990, 64
        %v7017 = vpop.permute.xlu0 %7016
        %v7018 = vsel %vm1493, %v7001, %v7003
        %v7019 = vsel %vm1493, %v7003, %v7005
        %v7020 = vsel %vm1493, %v7005, %v7007
        %v7021 = vsel %vm1493, %v7007, %v7009
        %v7022 = vsel %vm1493, %v7009, %v7011
        %v7023 = vsel %vm1493, %v7011, %v7013
        %v7024 = vsel %vm1493, %v7013, %v7015
        %v7025 = vsel %vm1493, %v7015, %v7017
        %7034 = vst [vmem:[#allocation3 + $0xf00] sm:$0xf] %v7018
        %7035 = vst [vmem:[#allocation3 + $0xf08] sm:$0xf] %v7019
        %7036 = vst [vmem:[#allocation3 + $0xf10] sm:$0xf] %v7020
        %7037 = vst [vmem:[#allocation3 + $0xf18] sm:$0xf] %v7021
        %7038 = vst [vmem:[#allocation3 + $0xf20] sm:$0xf] %v7022
        %7039 = vst [vmem:[#allocation3 + $0xf28] sm:$0xf] %v7023
        %7040 = vst [vmem:[#allocation3 + $0xf30] sm:$0xf] %v7024
        %7041 = vst [vmem:[#allocation3 + $0xf38] sm:$0xf] %v7025
        %v7042 = vld [vmem:[#allocation2 + $0x20] sm:$0xff]
        %v7043 = vld [vmem:[#allocation2 + $0x28] sm:$0xff]
        %v7044 = vld [vmem:[#allocation2 + $0x30] sm:$0xff]
        %v7045 = vld [vmem:[#allocation2 + $0x38] sm:$0xff]
        %v7046 = vld [vmem:[#allocation2 + $0x40] sm:$0xf]
        %v7052 = vcombine.low %v7042, %v7042
        %v7053 = vcombine.low %v7043, %v7043
        %v7054 = vcombine.low %v7044, %v7044
        %v7055 = vcombine.low %v7045, %v7045
        %v7056 = vcombine.low %v7046, %v7046
        %7057 = vrot.lane.b32.xlu0 %v7052, 63
        %v7058 = vpop.permute.xlu0 %7057
        %7059 = vrot.lane.b32.xlu0 %v7042, 63
        %v7060 = vpop.permute.xlu0 %7059
        %7061 = vrot.lane.b32.xlu0 %v7053, 63
        %v7062 = vpop.permute.xlu0 %7061
        %7063 = vrot.lane.b32.xlu0 %v7043, 63
        %v7064 = vpop.permute.xlu0 %7063
        %7065 = vrot.lane.b32.xlu0 %v7054, 63
        %v7066 = vpop.permute.xlu0 %7065
        %7067 = vrot.lane.b32.xlu0 %v7044, 63
        %v7068 = vpop.permute.xlu0 %7067
        %7069 = vrot.lane.b32.xlu0 %v7055, 63
        %v7070 = vpop.permute.xlu0 %7069
        %7071 = vrot.lane.b32.xlu0 %v7045, 63
        %v7072 = vpop.permute.xlu0 %7071
        %7073 = vrot.lane.b32.xlu0 %v7056, 63
        %v7074 = vpop.permute.xlu0 %7073
        %v7075 = vsel %vm1551, %v7058, %v7060
        %v7076 = vsel %vm1551, %v7060, %v7062
        %v7077 = vsel %vm1551, %v7062, %v7064
        %v7078 = vsel %vm1551, %v7064, %v7066
        %v7079 = vsel %vm1551, %v7066, %v7068
        %v7080 = vsel %vm1551, %v7068, %v7070
        %v7081 = vsel %vm1551, %v7070, %v7072
        %v7082 = vsel %vm1551, %v7072, %v7074
        %7091 = vst [vmem:[#allocation3 + $0xf00] sm:$0xf0] %v7075
        %7092 = vst [vmem:[#allocation3 + $0xf08] sm:$0xf0] %v7076
        %7093 = vst [vmem:[#allocation3 + $0xf10] sm:$0xf0] %v7077
        %7094 = vst [vmem:[#allocation3 + $0xf18] sm:$0xf0] %v7078
        %7095 = vst [vmem:[#allocation3 + $0xf20] sm:$0xf0] %v7079
        %7096 = vst [vmem:[#allocation3 + $0xf28] sm:$0xf0] %v7080
        %7097 = vst [vmem:[#allocation3 + $0xf30] sm:$0xf0] %v7081
        %7098 = vst [vmem:[#allocation3 + $0xf38] sm:$0xf0] %v7082
        %v7099 = vld [vmem:[#allocation2 + $0x20] sm:$0xff]
        %v7100 = vld [vmem:[#allocation2 + $0x28] sm:$0xff]
        %v7101 = vld [vmem:[#allocation2 + $0x30] sm:$0xff]
        %v7102 = vld [vmem:[#allocation2 + $0x38] sm:$0xff]
        %v7103 = vld [vmem:[#allocation2 + $0x40] sm:$0xf]
        %v7109 = vcombine.high %v7099, %v7099
        %v7110 = vcombine.high %v7100, %v7100
        %v7111 = vcombine.high %v7101, %v7101
        %v7112 = vcombine.high %v7102, %v7102
        %7113 = vrot.lane.b32.xlu0 %v7099, 62
        %v7114 = vpop.permute.xlu0 %7113
        %7115 = vrot.lane.b32.xlu0 %v7109, 62
        %v7116 = vpop.permute.xlu0 %7115
        %7117 = vrot.lane.b32.xlu0 %v7100, 62
        %v7118 = vpop.permute.xlu0 %7117
        %7119 = vrot.lane.b32.xlu0 %v7110, 62
        %v7120 = vpop.permute.xlu0 %7119
        %7121 = vrot.lane.b32.xlu0 %v7101, 62
        %v7122 = vpop.permute.xlu0 %7121
        %7123 = vrot.lane.b32.xlu0 %v7111, 62
        %v7124 = vpop.permute.xlu0 %7123
        %7125 = vrot.lane.b32.xlu0 %v7102, 62
        %v7126 = vpop.permute.xlu0 %7125
        %7127 = vrot.lane.b32.xlu0 %v7112, 62
        %v7128 = vpop.permute.xlu0 %7127
        %7129 = vrot.lane.b32.xlu0 %v7103, 62
        %v7130 = vpop.permute.xlu0 %7129
        %v7131 = vsel %vm1608, %v7114, %v7116
        %v7132 = vsel %vm1608, %v7116, %v7118
        %v7133 = vsel %vm1608, %v7118, %v7120
        %v7134 = vsel %vm1608, %v7120, %v7122
        %v7135 = vsel %vm1608, %v7122, %v7124
        %v7136 = vsel %vm1608, %v7124, %v7126
        %v7137 = vsel %vm1608, %v7126, %v7128
        %v7138 = vsel %vm1608, %v7128, %v7130
        %7147 = vst [vmem:[#allocation3 + $0xf40] sm:$0xf] %v7131
        %7148 = vst [vmem:[#allocation3 + $0xf48] sm:$0xf] %v7132
        %7149 = vst [vmem:[#allocation3 + $0xf50] sm:$0xf] %v7133
        %7150 = vst [vmem:[#allocation3 + $0xf58] sm:$0xf] %v7134
        %7151 = vst [vmem:[#allocation3 + $0xf60] sm:$0xf] %v7135
        %7152 = vst [vmem:[#allocation3 + $0xf68] sm:$0xf] %v7136
        %7153 = vst [vmem:[#allocation3 + $0xf70] sm:$0xf] %v7137
        %7154 = vst [vmem:[#allocation3 + $0xf78] sm:$0xf] %v7138
        %v7155 = vld [vmem:[#allocation2 + $0x20] sm:$0xff]
        %v7156 = vld [vmem:[#allocation2 + $0x28] sm:$0xff]
        %v7157 = vld [vmem:[#allocation2 + $0x30] sm:$0xff]
        %v7158 = vld [vmem:[#allocation2 + $0x38] sm:$0xff]
        %v7159 = vld [vmem:[#allocation2 + $0x40] sm:$0xf]
        %v7165 = vcombine.low %v7155, %v7155
        %v7166 = vcombine.low %v7156, %v7156
        %v7167 = vcombine.low %v7157, %v7157
        %v7168 = vcombine.low %v7158, %v7158
        %v7169 = vcombine.low %v7159, %v7159
        %7170 = vrot.lane.b32.xlu0 %v7165, 61
        %v7171 = vpop.permute.xlu0 %7170
        %7172 = vrot.lane.b32.xlu0 %v7155, 61
        %v7173 = vpop.permute.xlu0 %7172
        %7174 = vrot.lane.b32.xlu0 %v7166, 61
        %v7175 = vpop.permute.xlu0 %7174
        %7176 = vrot.lane.b32.xlu0 %v7156, 61
        %v7177 = vpop.permute.xlu0 %7176
        %7178 = vrot.lane.b32.xlu0 %v7167, 61
        %v7179 = vpop.permute.xlu0 %7178
        %7180 = vrot.lane.b32.xlu0 %v7157, 61
        %v7181 = vpop.permute.xlu0 %7180
        %7182 = vrot.lane.b32.xlu0 %v7168, 61
        %v7183 = vpop.permute.xlu0 %7182
        %7184 = vrot.lane.b32.xlu0 %v7158, 61
        %v7185 = vpop.permute.xlu0 %7184
        %7186 = vrot.lane.b32.xlu0 %v7169, 61
        %v7187 = vpop.permute.xlu0 %7186
        %v7188 = vsel %vm1666, %v7171, %v7173
        %v7189 = vsel %vm1666, %v7173, %v7175
        %v7190 = vsel %vm1666, %v7175, %v7177
        %v7191 = vsel %vm1666, %v7177, %v7179
        %v7192 = vsel %vm1666, %v7179, %v7181
        %v7193 = vsel %vm1666, %v7181, %v7183
        %v7194 = vsel %vm1666, %v7183, %v7185
        %v7195 = vsel %vm1666, %v7185, %v7187
        %7204 = vst [vmem:[#allocation3 + $0xf40] sm:$0xf0] %v7188
        %7205 = vst [vmem:[#allocation3 + $0xf48] sm:$0xf0] %v7189
        %7206 = vst [vmem:[#allocation3 + $0xf50] sm:$0xf0] %v7190
        %7207 = vst [vmem:[#allocation3 + $0xf58] sm:$0xf0] %v7191
        %7208 = vst [vmem:[#allocation3 + $0xf60] sm:$0xf0] %v7192
        %7209 = vst [vmem:[#allocation3 + $0xf68] sm:$0xf0] %v7193
        %7210 = vst [vmem:[#allocation3 + $0xf70] sm:$0xf0] %v7194
        %7211 = vst [vmem:[#allocation3 + $0xf78] sm:$0xf0] %v7195
        %v7212 = vld [vmem:[#allocation2 + $0x20] sm:$0xff]
        %v7213 = vld [vmem:[#allocation2 + $0x28] sm:$0xff]
        %v7214 = vld [vmem:[#allocation2 + $0x30] sm:$0xff]
        %v7215 = vld [vmem:[#allocation2 + $0x38] sm:$0xff]
        %v7216 = vld [vmem:[#allocation2 + $0x40] sm:$0xf]
        %v7222 = vcombine.high %v7212, %v7212
        %v7223 = vcombine.high %v7213, %v7213
        %v7224 = vcombine.high %v7214, %v7214
        %v7225 = vcombine.high %v7215, %v7215
        %7226 = vrot.lane.b32.xlu0 %v7212, 60
        %v7227 = vpop.permute.xlu0 %7226
        %7228 = vrot.lane.b32.xlu0 %v7222, 60
        %v7229 = vpop.permute.xlu0 %7228
        %7230 = vrot.lane.b32.xlu0 %v7213, 60
        %v7231 = vpop.permute.xlu0 %7230
        %7232 = vrot.lane.b32.xlu0 %v7223, 60
        %v7233 = vpop.permute.xlu0 %7232
        %7234 = vrot.lane.b32.xlu0 %v7214, 60
        %v7235 = vpop.permute.xlu0 %7234
        %7236 = vrot.lane.b32.xlu0 %v7224, 60
        %v7237 = vpop.permute.xlu0 %7236
        %7238 = vrot.lane.b32.xlu0 %v7215, 60
        %v7239 = vpop.permute.xlu0 %7238
        %7240 = vrot.lane.b32.xlu0 %v7225, 60
        %v7241 = vpop.permute.xlu0 %7240
        %7242 = vrot.lane.b32.xlu0 %v7216, 60
        %v7243 = vpop.permute.xlu0 %7242
        %v7244 = vsel %vm1723, %v7227, %v7229
        %v7245 = vsel %vm1723, %v7229, %v7231
        %v7246 = vsel %vm1723, %v7231, %v7233
        %v7247 = vsel %vm1723, %v7233, %v7235
        %v7248 = vsel %vm1723, %v7235, %v7237
        %v7249 = vsel %vm1723, %v7237, %v7239
        %v7250 = vsel %vm1723, %v7239, %v7241
        %v7251 = vsel %vm1723, %v7241, %v7243
        %7260 = vst [vmem:[#allocation3 + $0xf80] sm:$0xf] %v7244
        %7261 = vst [vmem:[#allocation3 + $0xf88] sm:$0xf] %v7245
        %7262 = vst [vmem:[#allocation3 + $0xf90] sm:$0xf] %v7246
        %7263 = vst [vmem:[#allocation3 + $0xf98] sm:$0xf] %v7247
        %7264 = vst [vmem:[#allocation3 + $0xfa0] sm:$0xf] %v7248
        %7265 = vst [vmem:[#allocation3 + $0xfa8] sm:$0xf] %v7249
        %7266 = vst [vmem:[#allocation3 + $0xfb0] sm:$0xf] %v7250
        %7267 = vst [vmem:[#allocation3 + $0xfb8] sm:$0xf] %v7251
        %7268 = vst [vmem:[#allocation3 + $0xf80] sm:$0xf0] 0.0
        %7269 = vst [vmem:[#allocation3 + $0xf88] sm:$0xf0] 0.0
        %7270 = vst [vmem:[#allocation3 + $0xf90] sm:$0xf0] 0.0
        %7271 = vst [vmem:[#allocation3 + $0xf98] sm:$0xf0] 0.0
        %7272 = vst [vmem:[#allocation3 + $0xfa0] sm:$0xf0] 0.0
        %7273 = vst [vmem:[#allocation3 + $0xfa8] sm:$0xf0] 0.0
        %7274 = vst [vmem:[#allocation3 + $0xfb0] sm:$0xf0] 0.0
        %7275 = vst [vmem:[#allocation3 + $0xfb8] sm:$0xf0] 0.0
        %7276 = vst [vmem:[#allocation3 + $0xfc0] sm:$0xff] 0.0
        %7277 = vst [vmem:[#allocation3 + $0xfc8] sm:$0xff] 0.0
        %7278 = vst [vmem:[#allocation3 + $0xfd0] sm:$0xff] 0.0
        %7279 = vst [vmem:[#allocation3 + $0xfd8] sm:$0xff] 0.0
        %7280 = vst [vmem:[#allocation3 + $0xfe0] sm:$0xff] 0.0
        %7281 = vst [vmem:[#allocation3 + $0xfe8] sm:$0xff] 0.0
        %7282 = vst [vmem:[#allocation3 + $0xff0] sm:$0xff] 0.0
        %7283 = vst [vmem:[#allocation3 + $0xff8] sm:$0xff] 0.0
        %s7284 = scalar_lea.vmem [#allocation3], 3972
        %7285 = vst [vmem:[%s7284] ss:$8 sm:$0xf] 1.0
        %7286 = vst [vmem:[%s7284] ss:$8 sm:$0xf0] 1.0
        %v7287 = vld [vmem:[#allocation10] sm:$0xff]
        %v7288 = vld [vmem:[#allocation10 + $0x8] sm:$0xff]
        %v7289 = vld [vmem:[#allocation10 + $0x10] sm:$0xff]
        %v7290 = vld [vmem:[#allocation10 + $0x18] sm:$0xff]
        %v7291 = vld [vmem:[#allocation3] sm:$0xff]
        %v7292 = vld [vmem:[#allocation3 + $0x8] sm:$0xff]
        %v7293 = vld [vmem:[#allocation3 + $0x10] sm:$0xff]
        %v7294 = vld [vmem:[#allocation3 + $0x18] sm:$0xff]
        %v7295 = vld [vmem:[#allocation3 + $0x20] sm:$0xff]
        %v7296 = vld [vmem:[#allocation3 + $0x28] sm:$0xff]
        %v7297 = vld [vmem:[#allocation3 + $0x30] sm:$0xff]
        %v7298 = vld [vmem:[#allocation3 + $0x38] sm:$0xff]
        %v7299 = vld [vmem:[#allocation3 + $0x40] sm:$0xff]
        %v7300 = vld [vmem:[#allocation3 + $0x48] sm:$0xff]
        %v7301 = vld [vmem:[#allocation3 + $0x50] sm:$0xff]
        %v7302 = vld [vmem:[#allocation3 + $0x58] sm:$0xff]
        %v7303 = vld [vmem:[#allocation3 + $0x60] sm:$0xff]
        %v7304 = vld [vmem:[#allocation3 + $0x68] sm:$0xff]
        %v7305 = vld [vmem:[#allocation3 + $0x70] sm:$0xff]
        %v7306 = vld [vmem:[#allocation3 + $0x78] sm:$0xff]
        %v7307 = vld [vmem:[#allocation3 + $0x80] sm:$0xff]
        %v7308 = vld [vmem:[#allocation3 + $0x88] sm:$0xff]
        %v7309 = vld [vmem:[#allocation3 + $0x90] sm:$0xff]
        %v7310 = vld [vmem:[#allocation3 + $0x98] sm:$0xff]
        %v7311 = vld [vmem:[#allocation3 + $0xa0] sm:$0xff]
        %v7312 = vld [vmem:[#allocation3 + $0xa8] sm:$0xff]
        %v7313 = vld [vmem:[#allocation3 + $0xb0] sm:$0xff]
        %v7314 = vld [vmem:[#allocation3 + $0xb8] sm:$0xff]
        %v7315 = vld [vmem:[#allocation3 + $0xc0] sm:$0xff]
        %v7316 = vld [vmem:[#allocation3 + $0xc8] sm:$0xff]
        %v7317 = vld [vmem:[#allocation3 + $0xd0] sm:$0xff]
        %v7318 = vld [vmem:[#allocation3 + $0xd8] sm:$0xff]
        %v7319 = vld [vmem:[#allocation3 + $0xe0] sm:$0xff]
        %v7320 = vld [vmem:[#allocation3 + $0xe8] sm:$0xff]
        %v7321 = vld [vmem:[#allocation3 + $0xf0] sm:$0xff]
        %v7322 = vld [vmem:[#allocation3 + $0xf8] sm:$0xff]
        %v7323 = vld [vmem:[#allocation3 + $0x100] sm:$0xff]
        %v7324 = vld [vmem:[#allocation3 + $0x108] sm:$0xff]
        %v7325 = vld [vmem:[#allocation3 + $0x110] sm:$0xff]
        %v7326 = vld [vmem:[#allocation3 + $0x118] sm:$0xff]
        %v7327 = vld [vmem:[#allocation3 + $0x120] sm:$0xff]
        %v7328 = vld [vmem:[#allocation3 + $0x128] sm:$0xff]
        %v7329 = vld [vmem:[#allocation3 + $0x130] sm:$0xff]
        %v7330 = vld [vmem:[#allocation3 + $0x138] sm:$0xff]
        %v7331 = vld [vmem:[#allocation3 + $0x140] sm:$0xff]
        %v7332 = vld [vmem:[#allocation3 + $0x148] sm:$0xff]
        %v7333 = vld [vmem:[#allocation3 + $0x150] sm:$0xff]
        %v7334 = vld [vmem:[#allocation3 + $0x158] sm:$0xff]
        %v7335 = vld [vmem:[#allocation3 + $0x160] sm:$0xff]
        %v7336 = vld [vmem:[#allocation3 + $0x168] sm:$0xff]
        %v7337 = vld [vmem:[#allocation3 + $0x170] sm:$0xff]
        %v7338 = vld [vmem:[#allocation3 + $0x178] sm:$0xff]
        %v7339 = vld [vmem:[#allocation3 + $0x180] sm:$0xff]
        %v7340 = vld [vmem:[#allocation3 + $0x188] sm:$0xff]
        %v7341 = vld [vmem:[#allocation3 + $0x190] sm:$0xff]
        %v7342 = vld [vmem:[#allocation3 + $0x198] sm:$0xff]
        %v7343 = vld [vmem:[#allocation3 + $0x1a0] sm:$0xff]
        %v7344 = vld [vmem:[#allocation3 + $0x1a8] sm:$0xff]
        %v7345 = vld [vmem:[#allocation3 + $0x1b0] sm:$0xff]
        %v7346 = vld [vmem:[#allocation3 + $0x1b8] sm:$0xff]
        %v7347 = vld [vmem:[#allocation3 + $0x1c0] sm:$0xff]
        %v7348 = vld [vmem:[#allocation3 + $0x1c8] sm:$0xff]
        %v7349 = vld [vmem:[#allocation3 + $0x1d0] sm:$0xff]
        %v7350 = vld [vmem:[#allocation3 + $0x1d8] sm:$0xff]
        %v7351 = vld [vmem:[#allocation3 + $0x1e0] sm:$0xff]
        %v7352 = vld [vmem:[#allocation3 + $0x1e8] sm:$0xff]
        %v7353 = vld [vmem:[#allocation3 + $0x1f0] sm:$0xff]
        %v7354 = vld [vmem:[#allocation3 + $0x1f8] sm:$0xff]
        %v7355 = vld [vmem:[#allocation3 + $0x200] sm:$0xff]
        %v7356 = vld [vmem:[#allocation3 + $0x208] sm:$0xff]
        %v7357 = vld [vmem:[#allocation3 + $0x210] sm:$0xff]
        %v7358 = vld [vmem:[#allocation3 + $0x218] sm:$0xff]
        %v7359 = vld [vmem:[#allocation3 + $0x220] sm:$0xff]
        %v7360 = vld [vmem:[#allocation3 + $0x228] sm:$0xff]
        %v7361 = vld [vmem:[#allocation3 + $0x230] sm:$0xff]
        %v7362 = vld [vmem:[#allocation3 + $0x238] sm:$0xff]
        %v7363 = vld [vmem:[#allocation3 + $0x240] sm:$0xff]
        %v7364 = vld [vmem:[#allocation3 + $0x248] sm:$0xff]
        %v7365 = vld [vmem:[#allocation3 + $0x250] sm:$0xff]
        %v7366 = vld [vmem:[#allocation3 + $0x258] sm:$0xff]
        %v7367 = vld [vmem:[#allocation3 + $0x260] sm:$0xff]
        %v7368 = vld [vmem:[#allocation3 + $0x268] sm:$0xff]
        %v7369 = vld [vmem:[#allocation3 + $0x270] sm:$0xff]
        %v7370 = vld [vmem:[#allocation3 + $0x278] sm:$0xff]
        %v7371 = vld [vmem:[#allocation3 + $0x280] sm:$0xff]
        %v7372 = vld [vmem:[#allocation3 + $0x288] sm:$0xff]
        %v7373 = vld [vmem:[#allocation3 + $0x290] sm:$0xff]
        %v7374 = vld [vmem:[#allocation3 + $0x298] sm:$0xff]
        %v7375 = vld [vmem:[#allocation3 + $0x2a0] sm:$0xff]
        %v7376 = vld [vmem:[#allocation3 + $0x2a8] sm:$0xff]
        %v7377 = vld [vmem:[#allocation3 + $0x2b0] sm:$0xff]
        %v7378 = vld [vmem:[#allocation3 + $0x2b8] sm:$0xff]
        %v7379 = vld [vmem:[#allocation3 + $0x2c0] sm:$0xff]
        %v7380 = vld [vmem:[#allocation3 + $0x2c8] sm:$0xff]
        %v7381 = vld [vmem:[#allocation3 + $0x2d0] sm:$0xff]
        %v7382 = vld [vmem:[#allocation3 + $0x2d8] sm:$0xff]
        %v7383 = vld [vmem:[#allocation3 + $0x2e0] sm:$0xff]
        %v7384 = vld [vmem:[#allocation3 + $0x2e8] sm:$0xff]
        %v7385 = vld [vmem:[#allocation3 + $0x2f0] sm:$0xff]
        %v7386 = vld [vmem:[#allocation3 + $0x2f8] sm:$0xff]
        %v7387 = vld [vmem:[#allocation3 + $0x300] sm:$0xff]
        %v7388 = vld [vmem:[#allocation3 + $0x308] sm:$0xff]
        %v7389 = vld [vmem:[#allocation3 + $0x310] sm:$0xff]
        %v7390 = vld [vmem:[#allocation3 + $0x318] sm:$0xff]
        %v7391 = vld [vmem:[#allocation3 + $0x320] sm:$0xff]
        %v7392 = vld [vmem:[#allocation3 + $0x328] sm:$0xff]
        %v7393 = vld [vmem:[#allocation3 + $0x330] sm:$0xff]
        %v7394 = vld [vmem:[#allocation3 + $0x338] sm:$0xff]
        %v7395 = vld [vmem:[#allocation3 + $0x340] sm:$0xff]
        %v7396 = vld [vmem:[#allocation3 + $0x348] sm:$0xff]
        %v7397 = vld [vmem:[#allocation3 + $0x350] sm:$0xff]
        %v7398 = vld [vmem:[#allocation3 + $0x358] sm:$0xff]
        %v7399 = vld [vmem:[#allocation3 + $0x360] sm:$0xff]
        %v7400 = vld [vmem:[#allocation3 + $0x368] sm:$0xff]
        %v7401 = vld [vmem:[#allocation3 + $0x370] sm:$0xff]
        %v7402 = vld [vmem:[#allocation3 + $0x378] sm:$0xff]
        %v7403 = vld [vmem:[#allocation3 + $0x380] sm:$0xff]
        %v7404 = vld [vmem:[#allocation3 + $0x388] sm:$0xff]
        %v7405 = vld [vmem:[#allocation3 + $0x390] sm:$0xff]
        %v7406 = vld [vmem:[#allocation3 + $0x398] sm:$0xff]
        %v7407 = vld [vmem:[#allocation3 + $0x3a0] sm:$0xff]
        %v7408 = vld [vmem:[#allocation3 + $0x3a8] sm:$0xff]
        %v7409 = vld [vmem:[#allocation3 + $0x3b0] sm:$0xff]
        %v7410 = vld [vmem:[#allocation3 + $0x3b8] sm:$0xff]
        %v7411 = vld [vmem:[#allocation3 + $0x3c0] sm:$0xff]
        %v7412 = vld [vmem:[#allocation3 + $0x3c8] sm:$0xff]
        %v7413 = vld [vmem:[#allocation3 + $0x3d0] sm:$0xff]
        %v7414 = vld [vmem:[#allocation3 + $0x3d8] sm:$0xff]
        %v7415 = vld [vmem:[#allocation3 + $0x3e0] sm:$0xff]
        %v7416 = vld [vmem:[#allocation3 + $0x3e8] sm:$0xff]
        %v7417 = vld [vmem:[#allocation3 + $0x3f0] sm:$0xff]
        %v7418 = vld [vmem:[#allocation3 + $0x3f8] sm:$0xff]
        %v7419 = vld [vmem:[#allocation3 + $0x400] sm:$0xff]
        %v7420 = vld [vmem:[#allocation3 + $0x408] sm:$0xff]
        %v7421 = vld [vmem:[#allocation3 + $0x410] sm:$0xff]
        %v7422 = vld [vmem:[#allocation3 + $0x418] sm:$0xff]
        %v7423 = vld [vmem:[#allocation3 + $0x420] sm:$0xff]
        %v7424 = vld [vmem:[#allocation3 + $0x428] sm:$0xff]
        %v7425 = vld [vmem:[#allocation3 + $0x430] sm:$0xff]
        %v7426 = vld [vmem:[#allocation3 + $0x438] sm:$0xff]
        %v7427 = vld [vmem:[#allocation3 + $0x440] sm:$0xff]
        %v7428 = vld [vmem:[#allocation3 + $0x448] sm:$0xff]
        %v7429 = vld [vmem:[#allocation3 + $0x450] sm:$0xff]
        %v7430 = vld [vmem:[#allocation3 + $0x458] sm:$0xff]
        %v7431 = vld [vmem:[#allocation3 + $0x460] sm:$0xff]
        %v7432 = vld [vmem:[#allocation3 + $0x468] sm:$0xff]
        %v7433 = vld [vmem:[#allocation3 + $0x470] sm:$0xff]
        %v7434 = vld [vmem:[#allocation3 + $0x478] sm:$0xff]
        %v7435 = vld [vmem:[#allocation3 + $0x480] sm:$0xff]
        %v7436 = vld [vmem:[#allocation3 + $0x488] sm:$0xff]
        %v7437 = vld [vmem:[#allocation3 + $0x490] sm:$0xff]
        %v7438 = vld [vmem:[#allocation3 + $0x498] sm:$0xff]
        %v7439 = vld [vmem:[#allocation3 + $0x4a0] sm:$0xff]
        %v7440 = vld [vmem:[#allocation3 + $0x4a8] sm:$0xff]
        %v7441 = vld [vmem:[#allocation3 + $0x4b0] sm:$0xff]
        %v7442 = vld [vmem:[#allocation3 + $0x4b8] sm:$0xff]
        %v7443 = vld [vmem:[#allocation3 + $0x4c0] sm:$0xff]
        %v7444 = vld [vmem:[#allocation3 + $0x4c8] sm:$0xff]
        %v7445 = vld [vmem:[#allocation3 + $0x4d0] sm:$0xff]
        %v7446 = vld [vmem:[#allocation3 + $0x4d8] sm:$0xff]
        %v7447 = vld [vmem:[#allocation3 + $0x4e0] sm:$0xff]
        %v7448 = vld [vmem:[#allocation3 + $0x4e8] sm:$0xff]
        %v7449 = vld [vmem:[#allocation3 + $0x4f0] sm:$0xff]
        %v7450 = vld [vmem:[#allocation3 + $0x4f8] sm:$0xff]
        %v7451 = vld [vmem:[#allocation3 + $0x500] sm:$0xff]
        %v7452 = vld [vmem:[#allocation3 + $0x508] sm:$0xff]
        %v7453 = vld [vmem:[#allocation3 + $0x510] sm:$0xff]
        %v7454 = vld [vmem:[#allocation3 + $0x518] sm:$0xff]
        %v7455 = vld [vmem:[#allocation3 + $0x520] sm:$0xff]
        %v7456 = vld [vmem:[#allocation3 + $0x528] sm:$0xff]
        %v7457 = vld [vmem:[#allocation3 + $0x530] sm:$0xff]
        %v7458 = vld [vmem:[#allocation3 + $0x538] sm:$0xff]
        %v7459 = vld [vmem:[#allocation3 + $0x540] sm:$0xff]
        %v7460 = vld [vmem:[#allocation3 + $0x548] sm:$0xff]
        %v7461 = vld [vmem:[#allocation3 + $0x550] sm:$0xff]
        %v7462 = vld [vmem:[#allocation3 + $0x558] sm:$0xff]
        %v7463 = vld [vmem:[#allocation3 + $0x560] sm:$0xff]
        %v7464 = vld [vmem:[#allocation3 + $0x568] sm:$0xff]
        %v7465 = vld [vmem:[#allocation3 + $0x570] sm:$0xff]
        %v7466 = vld [vmem:[#allocation3 + $0x578] sm:$0xff]
        %v7467 = vld [vmem:[#allocation3 + $0x580] sm:$0xff]
        %v7468 = vld [vmem:[#allocation3 + $0x588] sm:$0xff]
        %v7469 = vld [vmem:[#allocation3 + $0x590] sm:$0xff]
        %v7470 = vld [vmem:[#allocation3 + $0x598] sm:$0xff]
        %v7471 = vld [vmem:[#allocation3 + $0x5a0] sm:$0xff]
        %v7472 = vld [vmem:[#allocation3 + $0x5a8] sm:$0xff]
        %v7473 = vld [vmem:[#allocation3 + $0x5b0] sm:$0xff]
        %v7474 = vld [vmem:[#allocation3 + $0x5b8] sm:$0xff]
        %v7475 = vld [vmem:[#allocation3 + $0x5c0] sm:$0xff]
        %v7476 = vld [vmem:[#allocation3 + $0x5c8] sm:$0xff]
        %v7477 = vld [vmem:[#allocation3 + $0x5d0] sm:$0xff]
        %v7478 = vld [vmem:[#allocation3 + $0x5d8] sm:$0xff]
        %v7479 = vld [vmem:[#allocation3 + $0x5e0] sm:$0xff]
        %v7480 = vld [vmem:[#allocation3 + $0x5e8] sm:$0xff]
        %v7481 = vld [vmem:[#allocation3 + $0x5f0] sm:$0xff]
        %v7482 = vld [vmem:[#allocation3 + $0x5f8] sm:$0xff]
        %v7483 = vld [vmem:[#allocation3 + $0x600] sm:$0xff]
        %v7484 = vld [vmem:[#allocation3 + $0x608] sm:$0xff]
        %v7485 = vld [vmem:[#allocation3 + $0x610] sm:$0xff]
        %v7486 = vld [vmem:[#allocation3 + $0x618] sm:$0xff]
        %v7487 = vld [vmem:[#allocation3 + $0x620] sm:$0xff]
        %v7488 = vld [vmem:[#allocation3 + $0x628] sm:$0xff]
        %v7489 = vld [vmem:[#allocation3 + $0x630] sm:$0xff]
        %v7490 = vld [vmem:[#allocation3 + $0x638] sm:$0xff]
        %v7491 = vld [vmem:[#allocation3 + $0x640] sm:$0xff]
        %v7492 = vld [vmem:[#allocation3 + $0x648] sm:$0xff]
        %v7493 = vld [vmem:[#allocation3 + $0x650] sm:$0xff]
        %v7494 = vld [vmem:[#allocation3 + $0x658] sm:$0xff]
        %v7495 = vld [vmem:[#allocation3 + $0x660] sm:$0xff]
        %v7496 = vld [vmem:[#allocation3 + $0x668] sm:$0xff]
        %v7497 = vld [vmem:[#allocation3 + $0x670] sm:$0xff]
        %v7498 = vld [vmem:[#allocation3 + $0x678] sm:$0xff]
        %v7499 = vld [vmem:[#allocation3 + $0x680] sm:$0xff]
        %v7500 = vld [vmem:[#allocation3 + $0x688] sm:$0xff]
        %v7501 = vld [vmem:[#allocation3 + $0x690] sm:$0xff]
        %v7502 = vld [vmem:[#allocation3 + $0x698] sm:$0xff]
        %v7503 = vld [vmem:[#allocation3 + $0x6a0] sm:$0xff]
        %v7504 = vld [vmem:[#allocation3 + $0x6a8] sm:$0xff]
        %v7505 = vld [vmem:[#allocation3 + $0x6b0] sm:$0xff]
        %v7506 = vld [vmem:[#allocation3 + $0x6b8] sm:$0xff]
        %v7507 = vld [vmem:[#allocation3 + $0x6c0] sm:$0xff]
        %v7508 = vld [vmem:[#allocation3 + $0x6c8] sm:$0xff]
        %v7509 = vld [vmem:[#allocation3 + $0x6d0] sm:$0xff]
        %v7510 = vld [vmem:[#allocation3 + $0x6d8] sm:$0xff]
        %v7511 = vld [vmem:[#allocation3 + $0x6e0] sm:$0xff]
        %v7512 = vld [vmem:[#allocation3 + $0x6e8] sm:$0xff]
        %v7513 = vld [vmem:[#allocation3 + $0x6f0] sm:$0xff]
        %v7514 = vld [vmem:[#allocation3 + $0x6f8] sm:$0xff]
        %v7515 = vld [vmem:[#allocation3 + $0x700] sm:$0xff]
        %v7516 = vld [vmem:[#allocation3 + $0x708] sm:$0xff]
        %v7517 = vld [vmem:[#allocation3 + $0x710] sm:$0xff]
        %v7518 = vld [vmem:[#allocation3 + $0x718] sm:$0xff]
        %v7519 = vld [vmem:[#allocation3 + $0x720] sm:$0xff]
        %v7520 = vld [vmem:[#allocation3 + $0x728] sm:$0xff]
        %v7521 = vld [vmem:[#allocation3 + $0x730] sm:$0xff]
        %v7522 = vld [vmem:[#allocation3 + $0x738] sm:$0xff]
        %v7523 = vld [vmem:[#allocation3 + $0x740] sm:$0xff]
        %v7524 = vld [vmem:[#allocation3 + $0x748] sm:$0xff]
        %v7525 = vld [vmem:[#allocation3 + $0x750] sm:$0xff]
        %v7526 = vld [vmem:[#allocation3 + $0x758] sm:$0xff]
        %v7527 = vld [vmem:[#allocation3 + $0x760] sm:$0xff]
        %v7528 = vld [vmem:[#allocation3 + $0x768] sm:$0xff]
        %v7529 = vld [vmem:[#allocation3 + $0x770] sm:$0xff]
        %v7530 = vld [vmem:[#allocation3 + $0x778] sm:$0xff]
        %v7531 = vld [vmem:[#allocation3 + $0x780] sm:$0xff]
        %v7532 = vld [vmem:[#allocation3 + $0x788] sm:$0xff]
        %v7533 = vld [vmem:[#allocation3 + $0x790] sm:$0xff]
        %v7534 = vld [vmem:[#allocation3 + $0x798] sm:$0xff]
        %v7535 = vld [vmem:[#allocation3 + $0x7a0] sm:$0xff]
        %v7536 = vld [vmem:[#allocation3 + $0x7a8] sm:$0xff]
        %v7537 = vld [vmem:[#allocation3 + $0x7b0] sm:$0xff]
        %v7538 = vld [vmem:[#allocation3 + $0x7b8] sm:$0xff]
        %v7539 = vld [vmem:[#allocation3 + $0x7c0] sm:$0xff]
        %v7540 = vld [vmem:[#allocation3 + $0x7c8] sm:$0xff]
        %v7541 = vld [vmem:[#allocation3 + $0x7d0] sm:$0xff]
        %v7542 = vld [vmem:[#allocation3 + $0x7d8] sm:$0xff]
        %v7543 = vld [vmem:[#allocation3 + $0x7e0] sm:$0xff]
        %v7544 = vld [vmem:[#allocation3 + $0x7e8] sm:$0xff]
        %v7545 = vld [vmem:[#allocation3 + $0x7f0] sm:$0xff]
        %v7546 = vld [vmem:[#allocation3 + $0x7f8] sm:$0xff]
        %v7547 = vld [vmem:[#allocation3 + $0x800] sm:$0xff]
        %v7548 = vld [vmem:[#allocation3 + $0x808] sm:$0xff]
        %v7549 = vld [vmem:[#allocation3 + $0x810] sm:$0xff]
        %v7550 = vld [vmem:[#allocation3 + $0x818] sm:$0xff]
        %v7551 = vld [vmem:[#allocation3 + $0x820] sm:$0xff]
        %v7552 = vld [vmem:[#allocation3 + $0x828] sm:$0xff]
        %v7553 = vld [vmem:[#allocation3 + $0x830] sm:$0xff]
        %v7554 = vld [vmem:[#allocation3 + $0x838] sm:$0xff]
        %v7555 = vld [vmem:[#allocation3 + $0x840] sm:$0xff]
        %v7556 = vld [vmem:[#allocation3 + $0x848] sm:$0xff]
        %v7557 = vld [vmem:[#allocation3 + $0x850] sm:$0xff]
        %v7558 = vld [vmem:[#allocation3 + $0x858] sm:$0xff]
        %v7559 = vld [vmem:[#allocation3 + $0x860] sm:$0xff]
        %v7560 = vld [vmem:[#allocation3 + $0x868] sm:$0xff]
        %v7561 = vld [vmem:[#allocation3 + $0x870] sm:$0xff]
        %v7562 = vld [vmem:[#allocation3 + $0x878] sm:$0xff]
        %v7563 = vld [vmem:[#allocation3 + $0x880] sm:$0xff]
        %v7564 = vld [vmem:[#allocation3 + $0x888] sm:$0xff]
        %v7565 = vld [vmem:[#allocation3 + $0x890] sm:$0xff]
        %v7566 = vld [vmem:[#allocation3 + $0x898] sm:$0xff]
        %v7567 = vld [vmem:[#allocation3 + $0x8a0] sm:$0xff]
        %v7568 = vld [vmem:[#allocation3 + $0x8a8] sm:$0xff]
        %v7569 = vld [vmem:[#allocation3 + $0x8b0] sm:$0xff]
        %v7570 = vld [vmem:[#allocation3 + $0x8b8] sm:$0xff]
        %v7571 = vld [vmem:[#allocation3 + $0x8c0] sm:$0xff]
        %v7572 = vld [vmem:[#allocation3 + $0x8c8] sm:$0xff]
        %v7573 = vld [vmem:[#allocation3 + $0x8d0] sm:$0xff]
        %v7574 = vld [vmem:[#allocation3 + $0x8d8] sm:$0xff]
        %v7575 = vld [vmem:[#allocation3 + $0x8e0] sm:$0xff]
        %v7576 = vld [vmem:[#allocation3 + $0x8e8] sm:$0xff]
        %v7577 = vld [vmem:[#allocation3 + $0x8f0] sm:$0xff]
        %v7578 = vld [vmem:[#allocation3 + $0x8f8] sm:$0xff]
        %v7579 = vld [vmem:[#allocation3 + $0x900] sm:$0xff]
        %v7580 = vld [vmem:[#allocation3 + $0x908] sm:$0xff]
        %v7581 = vld [vmem:[#allocation3 + $0x910] sm:$0xff]
        %v7582 = vld [vmem:[#allocation3 + $0x918] sm:$0xff]
        %v7583 = vld [vmem:[#allocation3 + $0x920] sm:$0xff]
        %v7584 = vld [vmem:[#allocation3 + $0x928] sm:$0xff]
        %v7585 = vld [vmem:[#allocation3 + $0x930] sm:$0xff]
        %v7586 = vld [vmem:[#allocation3 + $0x938] sm:$0xff]
        %v7587 = vld [vmem:[#allocation3 + $0x940] sm:$0xff]
        %v7588 = vld [vmem:[#allocation3 + $0x948] sm:$0xff]
        %v7589 = vld [vmem:[#allocation3 + $0x950] sm:$0xff]
        %v7590 = vld [vmem:[#allocation3 + $0x958] sm:$0xff]
        %v7591 = vld [vmem:[#allocation3 + $0x960] sm:$0xff]
        %v7592 = vld [vmem:[#allocation3 + $0x968] sm:$0xff]
        %v7593 = vld [vmem:[#allocation3 + $0x970] sm:$0xff]
        %v7594 = vld [vmem:[#allocation3 + $0x978] sm:$0xff]
        %v7595 = vld [vmem:[#allocation3 + $0x980] sm:$0xff]
        %v7596 = vld [vmem:[#allocation3 + $0x988] sm:$0xff]
        %v7597 = vld [vmem:[#allocation3 + $0x990] sm:$0xff]
        %v7598 = vld [vmem:[#allocation3 + $0x998] sm:$0xff]
        %v7599 = vld [vmem:[#allocation3 + $0x9a0] sm:$0xff]
        %v7600 = vld [vmem:[#allocation3 + $0x9a8] sm:$0xff]
        %v7601 = vld [vmem:[#allocation3 + $0x9b0] sm:$0xff]
        %v7602 = vld [vmem:[#allocation3 + $0x9b8] sm:$0xff]
        %v7603 = vld [vmem:[#allocation3 + $0x9c0] sm:$0xff]
        %v7604 = vld [vmem:[#allocation3 + $0x9c8] sm:$0xff]
        %v7605 = vld [vmem:[#allocation3 + $0x9d0] sm:$0xff]
        %v7606 = vld [vmem:[#allocation3 + $0x9d8] sm:$0xff]
        %v7607 = vld [vmem:[#allocation3 + $0x9e0] sm:$0xff]
        %v7608 = vld [vmem:[#allocation3 + $0x9e8] sm:$0xff]
        %v7609 = vld [vmem:[#allocation3 + $0x9f0] sm:$0xff]
        %v7610 = vld [vmem:[#allocation3 + $0x9f8] sm:$0xff]
        %v7611 = vld [vmem:[#allocation3 + $0xa00] sm:$0xff]
        %v7612 = vld [vmem:[#allocation3 + $0xa08] sm:$0xff]
        %v7613 = vld [vmem:[#allocation3 + $0xa10] sm:$0xff]
        %v7614 = vld [vmem:[#allocation3 + $0xa18] sm:$0xff]
        %v7615 = vld [vmem:[#allocation3 + $0xa20] sm:$0xff]
        %v7616 = vld [vmem:[#allocation3 + $0xa28] sm:$0xff]
        %v7617 = vld [vmem:[#allocation3 + $0xa30] sm:$0xff]
        %v7618 = vld [vmem:[#allocation3 + $0xa38] sm:$0xff]
        %v7619 = vld [vmem:[#allocation3 + $0xa40] sm:$0xff]
        %v7620 = vld [vmem:[#allocation3 + $0xa48] sm:$0xff]
        %v7621 = vld [vmem:[#allocation3 + $0xa50] sm:$0xff]
        %v7622 = vld [vmem:[#allocation3 + $0xa58] sm:$0xff]
        %v7623 = vld [vmem:[#allocation3 + $0xa60] sm:$0xff]
        %v7624 = vld [vmem:[#allocation3 + $0xa68] sm:$0xff]
        %v7625 = vld [vmem:[#allocation3 + $0xa70] sm:$0xff]
        %v7626 = vld [vmem:[#allocation3 + $0xa78] sm:$0xff]
        %v7627 = vld [vmem:[#allocation3 + $0xa80] sm:$0xff]
        %v7628 = vld [vmem:[#allocation3 + $0xa88] sm:$0xff]
        %v7629 = vld [vmem:[#allocation3 + $0xa90] sm:$0xff]
        %v7630 = vld [vmem:[#allocation3 + $0xa98] sm:$0xff]
        %v7631 = vld [vmem:[#allocation3 + $0xaa0] sm:$0xff]
        %v7632 = vld [vmem:[#allocation3 + $0xaa8] sm:$0xff]
        %v7633 = vld [vmem:[#allocation3 + $0xab0] sm:$0xff]
        %v7634 = vld [vmem:[#allocation3 + $0xab8] sm:$0xff]
        %v7635 = vld [vmem:[#allocation3 + $0xac0] sm:$0xff]
        %v7636 = vld [vmem:[#allocation3 + $0xac8] sm:$0xff]
        %v7637 = vld [vmem:[#allocation3 + $0xad0] sm:$0xff]
        %v7638 = vld [vmem:[#allocation3 + $0xad8] sm:$0xff]
        %v7639 = vld [vmem:[#allocation3 + $0xae0] sm:$0xff]
        %v7640 = vld [vmem:[#allocation3 + $0xae8] sm:$0xff]
        %v7641 = vld [vmem:[#allocation3 + $0xaf0] sm:$0xff]
        %v7642 = vld [vmem:[#allocation3 + $0xaf8] sm:$0xff]
        %v7643 = vld [vmem:[#allocation3 + $0xb00] sm:$0xff]
        %v7644 = vld [vmem:[#allocation3 + $0xb08] sm:$0xff]
        %v7645 = vld [vmem:[#allocation3 + $0xb10] sm:$0xff]
        %v7646 = vld [vmem:[#allocation3 + $0xb18] sm:$0xff]
        %v7647 = vld [vmem:[#allocation3 + $0xb20] sm:$0xff]
        %v7648 = vld [vmem:[#allocation3 + $0xb28] sm:$0xff]
        %v7649 = vld [vmem:[#allocation3 + $0xb30] sm:$0xff]
        %v7650 = vld [vmem:[#allocation3 + $0xb38] sm:$0xff]
        %v7651 = vld [vmem:[#allocation3 + $0xb40] sm:$0xff]
        %v7652 = vld [vmem:[#allocation3 + $0xb48] sm:$0xff]
        %v7653 = vld [vmem:[#allocation3 + $0xb50] sm:$0xff]
        %v7654 = vld [vmem:[#allocation3 + $0xb58] sm:$0xff]
        %v7655 = vld [vmem:[#allocation3 + $0xb60] sm:$0xff]
        %v7656 = vld [vmem:[#allocation3 + $0xb68] sm:$0xff]
        %v7657 = vld [vmem:[#allocation3 + $0xb70] sm:$0xff]
        %v7658 = vld [vmem:[#allocation3 + $0xb78] sm:$0xff]
        %v7659 = vld [vmem:[#allocation3 + $0xb80] sm:$0xff]
        %v7660 = vld [vmem:[#allocation3 + $0xb88] sm:$0xff]
        %v7661 = vld [vmem:[#allocation3 + $0xb90] sm:$0xff]
        %v7662 = vld [vmem:[#allocation3 + $0xb98] sm:$0xff]
        %v7663 = vld [vmem:[#allocation3 + $0xba0] sm:$0xff]
        %v7664 = vld [vmem:[#allocation3 + $0xba8] sm:$0xff]
        %v7665 = vld [vmem:[#allocation3 + $0xbb0] sm:$0xff]
        %v7666 = vld [vmem:[#allocation3 + $0xbb8] sm:$0xff]
        %v7667 = vld [vmem:[#allocation3 + $0xbc0] sm:$0xff]
        %v7668 = vld [vmem:[#allocation3 + $0xbc8] sm:$0xff]
        %v7669 = vld [vmem:[#allocation3 + $0xbd0] sm:$0xff]
        %v7670 = vld [vmem:[#allocation3 + $0xbd8] sm:$0xff]
        %v7671 = vld [vmem:[#allocation3 + $0xbe0] sm:$0xff]
        %v7672 = vld [vmem:[#allocation3 + $0xbe8] sm:$0xff]
        %v7673 = vld [vmem:[#allocation3 + $0xbf0] sm:$0xff]
        %v7674 = vld [vmem:[#allocation3 + $0xbf8] sm:$0xff]
        %v7675 = vld [vmem:[#allocation3 + $0xc00] sm:$0xff]
        %v7676 = vld [vmem:[#allocation3 + $0xc08] sm:$0xff]
        %v7677 = vld [vmem:[#allocation3 + $0xc10] sm:$0xff]
        %v7678 = vld [vmem:[#allocation3 + $0xc18] sm:$0xff]
        %v7679 = vld [vmem:[#allocation3 + $0xc20] sm:$0xff]
        %v7680 = vld [vmem:[#allocation3 + $0xc28] sm:$0xff]
        %v7681 = vld [vmem:[#allocation3 + $0xc30] sm:$0xff]
        %v7682 = vld [vmem:[#allocation3 + $0xc38] sm:$0xff]
        %v7683 = vld [vmem:[#allocation3 + $0xc40] sm:$0xff]
        %v7684 = vld [vmem:[#allocation3 + $0xc48] sm:$0xff]
        %v7685 = vld [vmem:[#allocation3 + $0xc50] sm:$0xff]
        %v7686 = vld [vmem:[#allocation3 + $0xc58] sm:$0xff]
        %v7687 = vld [vmem:[#allocation3 + $0xc60] sm:$0xff]
        %v7688 = vld [vmem:[#allocation3 + $0xc68] sm:$0xff]
        %v7689 = vld [vmem:[#allocation3 + $0xc70] sm:$0xff]
        %v7690 = vld [vmem:[#allocation3 + $0xc78] sm:$0xff]
        %v7691 = vld [vmem:[#allocation3 + $0xc80] sm:$0xff]
        %v7692 = vld [vmem:[#allocation3 + $0xc88] sm:$0xff]
        %v7693 = vld [vmem:[#allocation3 + $0xc90] sm:$0xff]
        %v7694 = vld [vmem:[#allocation3 + $0xc98] sm:$0xff]
        %v7695 = vld [vmem:[#allocation3 + $0xca0] sm:$0xff]
        %v7696 = vld [vmem:[#allocation3 + $0xca8] sm:$0xff]
        %v7697 = vld [vmem:[#allocation3 + $0xcb0] sm:$0xff]
        %v7698 = vld [vmem:[#allocation3 + $0xcb8] sm:$0xff]
        %v7699 = vld [vmem:[#allocation3 + $0xcc0] sm:$0xff]
        %v7700 = vld [vmem:[#allocation3 + $0xcc8] sm:$0xff]
        %v7701 = vld [vmem:[#allocation3 + $0xcd0] sm:$0xff]
        %v7702 = vld [vmem:[#allocation3 + $0xcd8] sm:$0xff]
        %v7703 = vld [vmem:[#allocation3 + $0xce0] sm:$0xff]
        %v7704 = vld [vmem:[#allocation3 + $0xce8] sm:$0xff]
        %v7705 = vld [vmem:[#allocation3 + $0xcf0] sm:$0xff]
        %v7706 = vld [vmem:[#allocation3 + $0xcf8] sm:$0xff]
        %v7707 = vld [vmem:[#allocation3 + $0xd00] sm:$0xff]
        %v7708 = vld [vmem:[#allocation3 + $0xd08] sm:$0xff]
        %v7709 = vld [vmem:[#allocation3 + $0xd10] sm:$0xff]
        %v7710 = vld [vmem:[#allocation3 + $0xd18] sm:$0xff]
        %v7711 = vld [vmem:[#allocation3 + $0xd20] sm:$0xff]
        %v7712 = vld [vmem:[#allocation3 + $0xd28] sm:$0xff]
        %v7713 = vld [vmem:[#allocation3 + $0xd30] sm:$0xff]
        %v7714 = vld [vmem:[#allocation3 + $0xd38] sm:$0xff]
        %v7715 = vld [vmem:[#allocation3 + $0xd40] sm:$0xff]
        %v7716 = vld [vmem:[#allocation3 + $0xd48] sm:$0xff]
        %v7717 = vld [vmem:[#allocation3 + $0xd50] sm:$0xff]
        %v7718 = vld [vmem:[#allocation3 + $0xd58] sm:$0xff]
        %v7719 = vld [vmem:[#allocation3 + $0xd60] sm:$0xff]
        %v7720 = vld [vmem:[#allocation3 + $0xd68] sm:$0xff]
        %v7721 = vld [vmem:[#allocation3 + $0xd70] sm:$0xff]
        %v7722 = vld [vmem:[#allocation3 + $0xd78] sm:$0xff]
        %v7723 = vld [vmem:[#allocation3 + $0xd80] sm:$0xff]
        %v7724 = vld [vmem:[#allocation3 + $0xd88] sm:$0xff]
        %v7725 = vld [vmem:[#allocation3 + $0xd90] sm:$0xff]
        %v7726 = vld [vmem:[#allocation3 + $0xd98] sm:$0xff]
        %v7727 = vld [vmem:[#allocation3 + $0xda0] sm:$0xff]
        %v7728 = vld [vmem:[#allocation3 + $0xda8] sm:$0xff]
        %v7729 = vld [vmem:[#allocation3 + $0xdb0] sm:$0xff]
        %v7730 = vld [vmem:[#allocation3 + $0xdb8] sm:$0xff]
        %v7731 = vld [vmem:[#allocation3 + $0xdc0] sm:$0xff]
        %v7732 = vld [vmem:[#allocation3 + $0xdc8] sm:$0xff]
        %v7733 = vld [vmem:[#allocation3 + $0xdd0] sm:$0xff]
        %v7734 = vld [vmem:[#allocation3 + $0xdd8] sm:$0xff]
        %v7735 = vld [vmem:[#allocation3 + $0xde0] sm:$0xff]
        %v7736 = vld [vmem:[#allocation3 + $0xde8] sm:$0xff]
        %v7737 = vld [vmem:[#allocation3 + $0xdf0] sm:$0xff]
        %v7738 = vld [vmem:[#allocation3 + $0xdf8] sm:$0xff]
        %v7739 = vld [vmem:[#allocation3 + $0xe00] sm:$0xff]
        %v7740 = vld [vmem:[#allocation3 + $0xe08] sm:$0xff]
        %v7741 = vld [vmem:[#allocation3 + $0xe10] sm:$0xff]
        %v7742 = vld [vmem:[#allocation3 + $0xe18] sm:$0xff]
        %v7743 = vld [vmem:[#allocation3 + $0xe20] sm:$0xff]
        %v7744 = vld [vmem:[#allocation3 + $0xe28] sm:$0xff]
        %v7745 = vld [vmem:[#allocation3 + $0xe30] sm:$0xff]
        %v7746 = vld [vmem:[#allocation3 + $0xe38] sm:$0xff]
        %v7747 = vld [vmem:[#allocation3 + $0xe40] sm:$0xff]
        %v7748 = vld [vmem:[#allocation3 + $0xe48] sm:$0xff]
        %v7749 = vld [vmem:[#allocation3 + $0xe50] sm:$0xff]
        %v7750 = vld [vmem:[#allocation3 + $0xe58] sm:$0xff]
        %v7751 = vld [vmem:[#allocation3 + $0xe60] sm:$0xff]
        %v7752 = vld [vmem:[#allocation3 + $0xe68] sm:$0xff]
        %v7753 = vld [vmem:[#allocation3 + $0xe70] sm:$0xff]
        %v7754 = vld [vmem:[#allocation3 + $0xe78] sm:$0xff]
        %v7755 = vld [vmem:[#allocation3 + $0xe80] sm:$0xff]
        %v7756 = vld [vmem:[#allocation3 + $0xe88] sm:$0xff]
        %v7757 = vld [vmem:[#allocation3 + $0xe90] sm:$0xff]
        %v7758 = vld [vmem:[#allocation3 + $0xe98] sm:$0xff]
        %v7759 = vld [vmem:[#allocation3 + $0xea0] sm:$0xff]
        %v7760 = vld [vmem:[#allocation3 + $0xea8] sm:$0xff]
        %v7761 = vld [vmem:[#allocation3 + $0xeb0] sm:$0xff]
        %v7762 = vld [vmem:[#allocation3 + $0xeb8] sm:$0xff]
        %v7763 = vld [vmem:[#allocation3 + $0xec0] sm:$0xff]
        %v7764 = vld [vmem:[#allocation3 + $0xec8] sm:$0xff]
        %v7765 = vld [vmem:[#allocation3 + $0xed0] sm:$0xff]
        %v7766 = vld [vmem:[#allocation3 + $0xed8] sm:$0xff]
        %v7767 = vld [vmem:[#allocation3 + $0xee0] sm:$0xff]
        %v7768 = vld [vmem:[#allocation3 + $0xee8] sm:$0xff]
        %v7769 = vld [vmem:[#allocation3 + $0xef0] sm:$0xff]
        %v7770 = vld [vmem:[#allocation3 + $0xef8] sm:$0xff]
        %v7771 = vld [vmem:[#allocation3 + $0xf00] sm:$0xff]
        %v7772 = vld [vmem:[#allocation3 + $0xf08] sm:$0xff]
        %v7773 = vld [vmem:[#allocation3 + $0xf10] sm:$0xff]
        %v7774 = vld [vmem:[#allocation3 + $0xf18] sm:$0xff]
        %v7775 = vld [vmem:[#allocation3 + $0xf20] sm:$0xff]
        %v7776 = vld [vmem:[#allocation3 + $0xf28] sm:$0xff]
        %v7777 = vld [vmem:[#allocation3 + $0xf30] sm:$0xff]
        %v7778 = vld [vmem:[#allocation3 + $0xf38] sm:$0xff]
        %v7779 = vld [vmem:[#allocation3 + $0xf40] sm:$0xff]
        %v7780 = vld [vmem:[#allocation3 + $0xf48] sm:$0xff]
        %v7781 = vld [vmem:[#allocation3 + $0xf50] sm:$0xff]
        %v7782 = vld [vmem:[#allocation3 + $0xf58] sm:$0xff]
        %v7783 = vld [vmem:[#allocation3 + $0xf60] sm:$0xff]
        %v7784 = vld [vmem:[#allocation3 + $0xf68] sm:$0xff]
        %v7785 = vld [vmem:[#allocation3 + $0xf70] sm:$0xff]
        %v7786 = vld [vmem:[#allocation3 + $0xf78] sm:$0xff]
        %v7787 = vld [vmem:[#allocation3 + $0xf80] sm:$0xff]
        %v7788 = vld [vmem:[#allocation3 + $0xf88] sm:$0xff]
        %v7789 = vld [vmem:[#allocation3 + $0xf90] sm:$0xff]
        %v7790 = vld [vmem:[#allocation3 + $0xf98] sm:$0xff]
        %v7791 = vld [vmem:[#allocation3 + $0xfa0] sm:$0xff]
        %v7792 = vld [vmem:[#allocation3 + $0xfa8] sm:$0xff]
        %v7793 = vld [vmem:[#allocation3 + $0xfb0] sm:$0xff]
        %v7794 = vld [vmem:[#allocation3 + $0xfb8] sm:$0xff]
        %v7795 = vld [vmem:[#allocation3 + $0xfc0] sm:$0xff]
        %v7796 = vld [vmem:[#allocation3 + $0xfc8] sm:$0xff]
        %v7797 = vld [vmem:[#allocation3 + $0xfd0] sm:$0xff]
        %v7798 = vld [vmem:[#allocation3 + $0xfd8] sm:$0xff]
        %v7799 = vld [vmem:[#allocation3 + $0xfe0] sm:$0xff]
        %v7800 = vld [vmem:[#allocation3 + $0xfe8] sm:$0xff]
        %v7801 = vld [vmem:[#allocation3 + $0xff0] sm:$0xff]
        %v7802 = vld [vmem:[#allocation3 + $0xff8] sm:$0xff]
        %7803 = vmatprep.subr.mxu0 %v7292
        %7804 = vmatpush1.msra.mxu0 %v7291
        %7805 = vmatprep.subr.mxu0 %v7300
        %7806 = vmatpush1.msra.mxu0 %v7299
        %7807 = vmatprep.subr.mxu0 %v7308
        %7808 = vmatpush1.msra.mxu0 %v7307
        %7809 = vmatprep.subr.mxu0 %v7316
        %7810 = vmatpush1.msra.mxu0 %v7315
        %7811 = vmatprep.subr.mxu0 %v7324
        %7812 = vmatpush1.msra.mxu0 %v7323
        %7813 = vmatprep.subr.mxu0 %v7332
        %7814 = vmatpush1.msra.mxu0 %v7331
        %7815 = vmatprep.subr.mxu0 %v7340
        %7816 = vmatpush1.msra.mxu0 %v7339
        %7817 = vmatprep.subr.mxu0 %v7348
        %7818 = vmatpush1.msra.mxu0 %v7347
        %7819 = vmatprep.subr.mxu0 %v7356
        %7820 = vmatpush1.msra.mxu0 %v7355
        %7821 = vmatprep.subr.mxu0 %v7364
        %7822 = vmatpush1.msra.mxu0 %v7363
        %7823 = vmatprep.subr.mxu0 %v7372
        %7824 = vmatpush1.msra.mxu0 %v7371
        %7825 = vmatprep.subr.mxu0 %v7380
        %7826 = vmatpush1.msra.mxu0 %v7379
        %7827 = vmatprep.subr.mxu0 %v7388
        %7828 = vmatpush1.msra.mxu0 %v7387
        %7829 = vmatprep.subr.mxu0 %v7396
        %7830 = vmatpush1.msra.mxu0 %v7395
        %7831 = vmatprep.subr.mxu0 %v7404
        %7832 = vmatpush1.msra.mxu0 %v7403
        %7833 = vmatprep.subr.mxu0 %v7412
        %7834 = vmatpush1.msra.mxu0 %v7411
        %7835 = vmatprep.subr.mxu0 %v7420
        %7836 = vmatpush1.msra.mxu0 %v7419
        %7837 = vmatprep.subr.mxu0 %v7428
        %7838 = vmatpush1.msra.mxu0 %v7427
        %7839 = vmatprep.subr.mxu0 %v7436
        %7840 = vmatpush1.msra.mxu0 %v7435
        %7841 = vmatprep.subr.mxu0 %v7444
        %7842 = vmatpush1.msra.mxu0 %v7443
        %7843 = vmatprep.subr.mxu0 %v7452
        %7844 = vmatpush1.msra.mxu0 %v7451
        %7845 = vmatprep.subr.mxu0 %v7460
        %7846 = vmatpush1.msra.mxu0 %v7459
        %7847 = vmatprep.subr.mxu0 %v7468
        %7848 = vmatpush1.msra.mxu0 %v7467
        %7849 = vmatprep.subr.mxu0 %v7476
        %7850 = vmatpush1.msra.mxu0 %v7475
        %7851 = vmatprep.subr.mxu0 %v7484
        %7852 = vmatpush1.msra.mxu0 %v7483
        %7853 = vmatprep.subr.mxu0 %v7492
        %7854 = vmatpush1.msra.mxu0 %v7491
        %7855 = vmatprep.subr.mxu0 %v7500
        %7856 = vmatpush1.msra.mxu0 %v7499
        %7857 = vmatprep.subr.mxu0 %v7508
        %7858 = vmatpush1.msra.mxu0 %v7507
        %7859 = vmatprep.subr.mxu0 %v7516
        %7860 = vmatpush1.msra.mxu0 %v7515
        %7861 = vmatprep.subr.mxu0 %v7524
        %7862 = vmatpush1.msra.mxu0 %v7523
        %7863 = vmatprep.subr.mxu0 %v7532
        %7864 = vmatpush1.msra.mxu0 %v7531
        %7865 = vmatprep.subr.mxu0 %v7540
        %7866 = vmatpush1.msra.mxu0 %v7539
        %7867 = vmatprep.mubr.f32.mxu0 %v7288
        %7868 = vmatmul.mubr.f32.gmra.mrb[0].mxu0 %v7287
        %v7869 = vpop.f32.mrb[0].mxu0
        %v7870 = vadd.f32 0.0, %v7869
        %v7871 = vpop.f32.mrb[0].mxu0
        %v7872 = vadd.f32 0.0, %v7871
        %7873 = vdwg.mxu0
        %7874 = vmatprep.subr.mxu0 %v7548
        %7875 = vmatpush1.msra.mxu0 %v7547
        %7876 = vmatprep.subr.mxu0 %v7556
        %7877 = vmatpush1.msra.mxu0 %v7555
        %7878 = vmatprep.subr.mxu0 %v7564
        %7879 = vmatpush1.msra.mxu0 %v7563
        %7880 = vmatprep.subr.mxu0 %v7572
        %7881 = vmatpush1.msra.mxu0 %v7571
        %7882 = vmatprep.subr.mxu0 %v7580
        %7883 = vmatpush1.msra.mxu0 %v7579
        %7884 = vmatprep.subr.mxu0 %v7588
        %7885 = vmatpush1.msra.mxu0 %v7587
        %7886 = vmatprep.subr.mxu0 %v7596
        %7887 = vmatpush1.msra.mxu0 %v7595
        %7888 = vmatprep.subr.mxu0 %v7604
        %7889 = vmatpush1.msra.mxu0 %v7603
        %7890 = vmatprep.subr.mxu0 %v7612
        %7891 = vmatpush1.msra.mxu0 %v7611
        %7892 = vmatprep.subr.mxu0 %v7620
        %7893 = vmatpush1.msra.mxu0 %v7619
        %7894 = vmatprep.subr.mxu0 %v7628
        %7895 = vmatpush1.msra.mxu0 %v7627
        %7896 = vmatprep.subr.mxu0 %v7636
        %7897 = vmatpush1.msra.mxu0 %v7635
        %7898 = vmatprep.subr.mxu0 %v7644
        %7899 = vmatpush1.msra.mxu0 %v7643
        %7900 = vmatprep.subr.mxu0 %v7652
        %7901 = vmatpush1.msra.mxu0 %v7651
        %7902 = vmatprep.subr.mxu0 %v7660
        %7903 = vmatpush1.msra.mxu0 %v7659
        %7904 = vmatprep.subr.mxu0 %v7668
        %7905 = vmatpush1.msra.mxu0 %v7667
        %7906 = vmatprep.subr.mxu0 %v7676
        %7907 = vmatpush1.msra.mxu0 %v7675
        %7908 = vmatprep.subr.mxu0 %v7684
        %7909 = vmatpush1.msra.mxu0 %v7683
        %7910 = vmatprep.subr.mxu0 %v7692
        %7911 = vmatpush1.msra.mxu0 %v7691
        %7912 = vmatprep.subr.mxu0 %v7700
        %7913 = vmatpush1.msra.mxu0 %v7699
        %7914 = vmatprep.subr.mxu0 %v7708
        %7915 = vmatpush1.msra.mxu0 %v7707
        %7916 = vmatprep.subr.mxu0 %v7716
        %7917 = vmatpush1.msra.mxu0 %v7715
        %7918 = vmatprep.subr.mxu0 %v7724
        %7919 = vmatpush1.msra.mxu0 %v7723
        %7920 = vmatprep.subr.mxu0 %v7732
        %7921 = vmatpush1.msra.mxu0 %v7731
        %7922 = vmatprep.subr.mxu0 %v7740
        %7923 = vmatpush1.msra.mxu0 %v7739
        %7924 = vmatprep.subr.mxu0 %v7748
        %7925 = vmatpush1.msra.mxu0 %v7747
        %7926 = vmatprep.subr.mxu0 %v7756
        %7927 = vmatpush1.msra.mxu0 %v7755
        %7928 = vmatprep.subr.mxu0 %v7764
        %7929 = vmatpush1.msra.mxu0 %v7763
        %7930 = vmatprep.subr.mxu0 %v7772
        %7931 = vmatpush1.msra.mxu0 %v7771
        %7932 = vmatprep.subr.mxu0 %v7780
        %7933 = vmatpush1.msra.mxu0 %v7779
        %7934 = vmatprep.subr.mxu0 %v7788
        %7935 = vmatpush1.msra.mxu0 %v7787
        %7936 = vmatprep.subr.mxu0 %v7796
        %7937 = vmatpush1.msra.mxu0 %v7795
        %7938 = vmatprep.mubr.f32.mxu0 %v7290
        %7939 = vmatmul.mubr.f32.gmra.mrb[0].mxu0 %v7289
        %v7940 = vpop.f32.mrb[0].mxu0
        %v7941 = vadd.f32 %v7870, %v7940
        %v7942 = vpop.f32.mrb[0].mxu0
        %v7943 = vadd.f32 %v7872, %v7942
        %7944 = vdwg.mxu0
        %7945 = vmatprep.subr.mxu0 %v7294
        %7946 = vmatpush1.msra.mxu0 %v7293
        %7947 = vmatprep.subr.mxu0 %v7302
        %7948 = vmatpush1.msra.mxu0 %v7301
        %7949 = vmatprep.subr.mxu0 %v7310
        %7950 = vmatpush1.msra.mxu0 %v7309
        %7951 = vmatprep.subr.mxu0 %v7318
        %7952 = vmatpush1.msra.mxu0 %v7317
        %7953 = vmatprep.subr.mxu0 %v7326
        %7954 = vmatpush1.msra.mxu0 %v7325
        %7955 = vmatprep.subr.mxu0 %v7334
        %7956 = vmatpush1.msra.mxu0 %v7333
        %7957 = vmatprep.subr.mxu0 %v7342
        %7958 = vmatpush1.msra.mxu0 %v7341
        %7959 = vmatprep.subr.mxu0 %v7350
        %7960 = vmatpush1.msra.mxu0 %v7349
        %7961 = vmatprep.subr.mxu0 %v7358
        %7962 = vmatpush1.msra.mxu0 %v7357
        %7963 = vmatprep.subr.mxu0 %v7366
        %7964 = vmatpush1.msra.mxu0 %v7365
        %7965 = vmatprep.subr.mxu0 %v7374
        %7966 = vmatpush1.msra.mxu0 %v7373
        %7967 = vmatprep.subr.mxu0 %v7382
        %7968 = vmatpush1.msra.mxu0 %v7381
        %7969 = vmatprep.subr.mxu0 %v7390
        %7970 = vmatpush1.msra.mxu0 %v7389
        %7971 = vmatprep.subr.mxu0 %v7398
        %7972 = vmatpush1.msra.mxu0 %v7397
        %7973 = vmatprep.subr.mxu0 %v7406
        %7974 = vmatpush1.msra.mxu0 %v7405
        %7975 = vmatprep.subr.mxu0 %v7414
        %7976 = vmatpush1.msra.mxu0 %v7413
        %7977 = vmatprep.subr.mxu0 %v7422
        %7978 = vmatpush1.msra.mxu0 %v7421
        %7979 = vmatprep.subr.mxu0 %v7430
        %7980 = vmatpush1.msra.mxu0 %v7429
        %7981 = vmatprep.subr.mxu0 %v7438
        %7982 = vmatpush1.msra.mxu0 %v7437
        %7983 = vmatprep.subr.mxu0 %v7446
        %7984 = vmatpush1.msra.mxu0 %v7445
        %7985 = vmatprep.subr.mxu0 %v7454
        %7986 = vmatpush1.msra.mxu0 %v7453
        %7987 = vmatprep.subr.mxu0 %v7462
        %7988 = vmatpush1.msra.mxu0 %v7461
        %7989 = vmatprep.subr.mxu0 %v7470
        %7990 = vmatpush1.msra.mxu0 %v7469
        %7991 = vmatprep.subr.mxu0 %v7478
        %7992 = vmatpush1.msra.mxu0 %v7477
        %7993 = vmatprep.subr.mxu0 %v7486
        %7994 = vmatpush1.msra.mxu0 %v7485
        %7995 = vmatprep.subr.mxu0 %v7494
        %7996 = vmatpush1.msra.mxu0 %v7493
        %7997 = vmatprep.subr.mxu0 %v7502
        %7998 = vmatpush1.msra.mxu0 %v7501
        %7999 = vmatprep.subr.mxu0 %v7510
        %8000 = vmatpush1.msra.mxu0 %v7509
        %8001 = vmatprep.subr.mxu0 %v7518
        %8002 = vmatpush1.msra.mxu0 %v7517
        %8003 = vmatprep.subr.mxu0 %v7526
        %8004 = vmatpush1.msra.mxu0 %v7525
        %8005 = vmatprep.subr.mxu0 %v7534
        %8006 = vmatpush1.msra.mxu0 %v7533
        %8007 = vmatprep.subr.mxu0 %v7542
        %8008 = vmatpush1.msra.mxu0 %v7541
        %8009 = vmatprep.mubr.f32.mxu0 %v7288
        %8010 = vmatmul.mubr.f32.gmra.mrb[0].mxu0 %v7287
        %v8011 = vpop.f32.mrb[0].mxu0
        %v8012 = vadd.f32 0.0, %v8011
        %v8013 = vpop.f32.mrb[0].mxu0
        %v8014 = vadd.f32 0.0, %v8013
        %8015 = vdwg.mxu0
        %8016 = vmatprep.subr.mxu0 %v7550
        %8017 = vmatpush1.msra.mxu0 %v7549
        %8018 = vmatprep.subr.mxu0 %v7558
        %8019 = vmatpush1.msra.mxu0 %v7557
        %8020 = vmatprep.subr.mxu0 %v7566
        %8021 = vmatpush1.msra.mxu0 %v7565
        %8022 = vmatprep.subr.mxu0 %v7574
        %8023 = vmatpush1.msra.mxu0 %v7573
        %8024 = vmatprep.subr.mxu0 %v7582
        %8025 = vmatpush1.msra.mxu0 %v7581
        %8026 = vmatprep.subr.mxu0 %v7590
        %8027 = vmatpush1.msra.mxu0 %v7589
        %8028 = vmatprep.subr.mxu0 %v7598
        %8029 = vmatpush1.msra.mxu0 %v7597
        %8030 = vmatprep.subr.mxu0 %v7606
        %8031 = vmatpush1.msra.mxu0 %v7605
        %8032 = vmatprep.subr.mxu0 %v7614
        %8033 = vmatpush1.msra.mxu0 %v7613
        %8034 = vmatprep.subr.mxu0 %v7622
        %8035 = vmatpush1.msra.mxu0 %v7621
        %8036 = vmatprep.subr.mxu0 %v7630
        %8037 = vmatpush1.msra.mxu0 %v7629
        %8038 = vmatprep.subr.mxu0 %v7638
        %8039 = vmatpush1.msra.mxu0 %v7637
        %8040 = vmatprep.subr.mxu0 %v7646
        %8041 = vmatpush1.msra.mxu0 %v7645
        %8042 = vmatprep.subr.mxu0 %v7654
        %8043 = vmatpush1.msra.mxu0 %v7653
        %8044 = vmatprep.subr.mxu0 %v7662
        %8045 = vmatpush1.msra.mxu0 %v7661
        %8046 = vmatprep.subr.mxu0 %v7670
        %8047 = vmatpush1.msra.mxu0 %v7669
        %8048 = vmatprep.subr.mxu0 %v7678
        %8049 = vmatpush1.msra.mxu0 %v7677
        %8050 = vmatprep.subr.mxu0 %v7686
        %8051 = vmatpush1.msra.mxu0 %v7685
        %8052 = vmatprep.subr.mxu0 %v7694
        %8053 = vmatpush1.msra.mxu0 %v7693
        %8054 = vmatprep.subr.mxu0 %v7702
        %8055 = vmatpush1.msra.mxu0 %v7701
        %8056 = vmatprep.subr.mxu0 %v7710
        %8057 = vmatpush1.msra.mxu0 %v7709
        %8058 = vmatprep.subr.mxu0 %v7718
        %8059 = vmatpush1.msra.mxu0 %v7717
        %8060 = vmatprep.subr.mxu0 %v7726
        %8061 = vmatpush1.msra.mxu0 %v7725
        %8062 = vmatprep.subr.mxu0 %v7734
        %8063 = vmatpush1.msra.mxu0 %v7733
        %8064 = vmatprep.subr.mxu0 %v7742
        %8065 = vmatpush1.msra.mxu0 %v7741
        %8066 = vmatprep.subr.mxu0 %v7750
        %8067 = vmatpush1.msra.mxu0 %v7749
        %8068 = vmatprep.subr.mxu0 %v7758
        %8069 = vmatpush1.msra.mxu0 %v7757
        %8070 = vmatprep.subr.mxu0 %v7766
        %8071 = vmatpush1.msra.mxu0 %v7765
        %8072 = vmatprep.subr.mxu0 %v7774
        %8073 = vmatpush1.msra.mxu0 %v7773
        %8074 = vmatprep.subr.mxu0 %v7782
        %8075 = vmatpush1.msra.mxu0 %v7781
        %8076 = vmatprep.subr.mxu0 %v7790
        %8077 = vmatpush1.msra.mxu0 %v7789
        %8078 = vmatprep.subr.mxu0 %v7798
        %8079 = vmatpush1.msra.mxu0 %v7797
        %8080 = vmatprep.mubr.f32.mxu0 %v7290
        %8081 = vmatmul.mubr.f32.gmra.mrb[0].mxu0 %v7289
        %v8082 = vpop.f32.mrb[0].mxu0
        %v8083 = vadd.f32 %v8012, %v8082
        %v8084 = vpop.f32.mrb[0].mxu0
        %v8085 = vadd.f32 %v8014, %v8084
        %8086 = vdwg.mxu0
        %8087 = vmatprep.subr.mxu0 %v7296
        %8088 = vmatpush1.msra.mxu0 %v7295
        %8089 = vmatprep.subr.mxu0 %v7304
        %8090 = vmatpush1.msra.mxu0 %v7303
        %8091 = vmatprep.subr.mxu0 %v7312
        %8092 = vmatpush1.msra.mxu0 %v7311
        %8093 = vmatprep.subr.mxu0 %v7320
        %8094 = vmatpush1.msra.mxu0 %v7319
        %8095 = vmatprep.subr.mxu0 %v7328
        %8096 = vmatpush1.msra.mxu0 %v7327
        %8097 = vmatprep.subr.mxu0 %v7336
        %8098 = vmatpush1.msra.mxu0 %v7335
        %8099 = vmatprep.subr.mxu0 %v7344
        %8100 = vmatpush1.msra.mxu0 %v7343
        %8101 = vmatprep.subr.mxu0 %v7352
        %8102 = vmatpush1.msra.mxu0 %v7351
        %8103 = vmatprep.subr.mxu0 %v7360
        %8104 = vmatpush1.msra.mxu0 %v7359
        %8105 = vmatprep.subr.mxu0 %v7368
        %8106 = vmatpush1.msra.mxu0 %v7367
        %8107 = vmatprep.subr.mxu0 %v7376
        %8108 = vmatpush1.msra.mxu0 %v7375
        %8109 = vmatprep.subr.mxu0 %v7384
        %8110 = vmatpush1.msra.mxu0 %v7383
        %8111 = vmatprep.subr.mxu0 %v7392
        %8112 = vmatpush1.msra.mxu0 %v7391
        %8113 = vmatprep.subr.mxu0 %v7400
        %8114 = vmatpush1.msra.mxu0 %v7399
        %8115 = vmatprep.subr.mxu0 %v7408
        %8116 = vmatpush1.msra.mxu0 %v7407
        %8117 = vmatprep.subr.mxu0 %v7416
        %8118 = vmatpush1.msra.mxu0 %v7415
        %8119 = vmatprep.subr.mxu0 %v7424
        %8120 = vmatpush1.msra.mxu0 %v7423
        %8121 = vmatprep.subr.mxu0 %v7432
        %8122 = vmatpush1.msra.mxu0 %v7431
        %8123 = vmatprep.subr.mxu0 %v7440
        %8124 = vmatpush1.msra.mxu0 %v7439
        %8125 = vmatprep.subr.mxu0 %v7448
        %8126 = vmatpush1.msra.mxu0 %v7447
        %8127 = vmatprep.subr.mxu0 %v7456
        %8128 = vmatpush1.msra.mxu0 %v7455
        %8129 = vmatprep.subr.mxu0 %v7464
        %8130 = vmatpush1.msra.mxu0 %v7463
        %8131 = vmatprep.subr.mxu0 %v7472
        %8132 = vmatpush1.msra.mxu0 %v7471
        %8133 = vmatprep.subr.mxu0 %v7480
        %8134 = vmatpush1.msra.mxu0 %v7479
        %8135 = vmatprep.subr.mxu0 %v7488
        %8136 = vmatpush1.msra.mxu0 %v7487
        %8137 = vmatprep.subr.mxu0 %v7496
        %8138 = vmatpush1.msra.mxu0 %v7495
        %8139 = vmatprep.subr.mxu0 %v7504
        %8140 = vmatpush1.msra.mxu0 %v7503
        %8141 = vmatprep.subr.mxu0 %v7512
        %8142 = vmatpush1.msra.mxu0 %v7511
        %8143 = vmatprep.subr.mxu0 %v7520
        %8144 = vmatpush1.msra.mxu0 %v7519
        %8145 = vmatprep.subr.mxu0 %v7528
        %8146 = vmatpush1.msra.mxu0 %v7527
        %8147 = vmatprep.subr.mxu0 %v7536
        %8148 = vmatpush1.msra.mxu0 %v7535
        %8149 = vmatprep.subr.mxu0 %v7544
        %8150 = vmatpush1.msra.mxu0 %v7543
        %8151 = vmatprep.mubr.f32.mxu0 %v7288
        %8152 = vmatmul.mubr.f32.gmra.mrb[0].mxu0 %v7287
        %v8153 = vpop.f32.mrb[0].mxu0
        %v8154 = vadd.f32 0.0, %v8153
        %v8155 = vpop.f32.mrb[0].mxu0
        %v8156 = vadd.f32 0.0, %v8155
        %8157 = vdwg.mxu0
        %8158 = vmatprep.subr.mxu0 %v7552
        %8159 = vmatpush1.msra.mxu0 %v7551
        %8160 = vmatprep.subr.mxu0 %v7560
        %8161 = vmatpush1.msra.mxu0 %v7559
        %8162 = vmatprep.subr.mxu0 %v7568
        %8163 = vmatpush1.msra.mxu0 %v7567
        %8164 = vmatprep.subr.mxu0 %v7576
        %8165 = vmatpush1.msra.mxu0 %v7575
        %8166 = vmatprep.subr.mxu0 %v7584
        %8167 = vmatpush1.msra.mxu0 %v7583
        %8168 = vmatprep.subr.mxu0 %v7592
        %8169 = vmatpush1.msra.mxu0 %v7591
        %8170 = vmatprep.subr.mxu0 %v7600
        %8171 = vmatpush1.msra.mxu0 %v7599
        %8172 = vmatprep.subr.mxu0 %v7608
        %8173 = vmatpush1.msra.mxu0 %v7607
        %8174 = vmatprep.subr.mxu0 %v7616
        %8175 = vmatpush1.msra.mxu0 %v7615
        %8176 = vmatprep.subr.mxu0 %v7624
        %8177 = vmatpush1.msra.mxu0 %v7623
        %8178 = vmatprep.subr.mxu0 %v7632
        %8179 = vmatpush1.msra.mxu0 %v7631
        %8180 = vmatprep.subr.mxu0 %v7640
        %8181 = vmatpush1.msra.mxu0 %v7639
        %8182 = vmatprep.subr.mxu0 %v7648
        %8183 = vmatpush1.msra.mxu0 %v7647
        %8184 = vmatprep.subr.mxu0 %v7656
        %8185 = vmatpush1.msra.mxu0 %v7655
        %8186 = vmatprep.subr.mxu0 %v7664
        %8187 = vmatpush1.msra.mxu0 %v7663
        %8188 = vmatprep.subr.mxu0 %v7672
        %8189 = vmatpush1.msra.mxu0 %v7671
        %8190 = vmatprep.subr.mxu0 %v7680
        %8191 = vmatpush1.msra.mxu0 %v7679
        %8192 = vmatprep.subr.mxu0 %v7688
        %8193 = vmatpush1.msra.mxu0 %v7687
        %8194 = vmatprep.subr.mxu0 %v7696
        %8195 = vmatpush1.msra.mxu0 %v7695
        %8196 = vmatprep.subr.mxu0 %v7704
        %8197 = vmatpush1.msra.mxu0 %v7703
        %8198 = vmatprep.subr.mxu0 %v7712
        %8199 = vmatpush1.msra.mxu0 %v7711
        %8200 = vmatprep.subr.mxu0 %v7720
        %8201 = vmatpush1.msra.mxu0 %v7719
        %8202 = vmatprep.subr.mxu0 %v7728
        %8203 = vmatpush1.msra.mxu0 %v7727
        %8204 = vmatprep.subr.mxu0 %v7736
        %8205 = vmatpush1.msra.mxu0 %v7735
        %8206 = vmatprep.subr.mxu0 %v7744
        %8207 = vmatpush1.msra.mxu0 %v7743
        %8208 = vmatprep.subr.mxu0 %v7752
        %8209 = vmatpush1.msra.mxu0 %v7751
        %8210 = vmatprep.subr.mxu0 %v7760
        %8211 = vmatpush1.msra.mxu0 %v7759
        %8212 = vmatprep.subr.mxu0 %v7768
        %8213 = vmatpush1.msra.mxu0 %v7767
        %8214 = vmatprep.subr.mxu0 %v7776
        %8215 = vmatpush1.msra.mxu0 %v7775
        %8216 = vmatprep.subr.mxu0 %v7784
        %8217 = vmatpush1.msra.mxu0 %v7783
        %8218 = vmatprep.subr.mxu0 %v7792
        %8219 = vmatpush1.msra.mxu0 %v7791
        %8220 = vmatprep.subr.mxu0 %v7800
        %8221 = vmatpush1.msra.mxu0 %v7799
        %8222 = vmatprep.mubr.f32.mxu0 %v7290
        %8223 = vmatmul.mubr.f32.gmra.mrb[0].mxu0 %v7289
        %v8224 = vpop.f32.mrb[0].mxu0
        %v8225 = vadd.f32 %v8154, %v8224
        %v8226 = vpop.f32.mrb[0].mxu0
        %v8227 = vadd.f32 %v8156, %v8226
        %8228 = vdwg.mxu0
        %8229 = vmatprep.subr.mxu0 %v7298
        %8230 = vmatpush1.msra.mxu0 %v7297
        %8231 = vmatprep.subr.mxu0 %v7306
        %8232 = vmatpush1.msra.mxu0 %v7305
        %8233 = vmatprep.subr.mxu0 %v7314
        %8234 = vmatpush1.msra.mxu0 %v7313
        %8235 = vmatprep.subr.mxu0 %v7322
        %8236 = vmatpush1.msra.mxu0 %v7321
        %8237 = vmatprep.subr.mxu0 %v7330
        %8238 = vmatpush1.msra.mxu0 %v7329
        %8239 = vmatprep.subr.mxu0 %v7338
        %8240 = vmatpush1.msra.mxu0 %v7337
        %8241 = vmatprep.subr.mxu0 %v7346
        %8242 = vmatpush1.msra.mxu0 %v7345
        %8243 = vmatprep.subr.mxu0 %v7354
        %8244 = vmatpush1.msra.mxu0 %v7353
        %8245 = vmatprep.subr.mxu0 %v7362
        %8246 = vmatpush1.msra.mxu0 %v7361
        %8247 = vmatprep.subr.mxu0 %v7370
        %8248 = vmatpush1.msra.mxu0 %v7369
        %8249 = vmatprep.subr.mxu0 %v7378
        %8250 = vmatpush1.msra.mxu0 %v7377
        %8251 = vmatprep.subr.mxu0 %v7386
        %8252 = vmatpush1.msra.mxu0 %v7385
        %8253 = vmatprep.subr.mxu0 %v7394
        %8254 = vmatpush1.msra.mxu0 %v7393
        %8255 = vmatprep.subr.mxu0 %v7402
        %8256 = vmatpush1.msra.mxu0 %v7401
        %8257 = vmatprep.subr.mxu0 %v7410
        %8258 = vmatpush1.msra.mxu0 %v7409
        %8259 = vmatprep.subr.mxu0 %v7418
        %8260 = vmatpush1.msra.mxu0 %v7417
        %8261 = vmatprep.subr.mxu0 %v7426
        %8262 = vmatpush1.msra.mxu0 %v7425
        %8263 = vmatprep.subr.mxu0 %v7434
        %8264 = vmatpush1.msra.mxu0 %v7433
        %8265 = vmatprep.subr.mxu0 %v7442
        %8266 = vmatpush1.msra.mxu0 %v7441
        %8267 = vmatprep.subr.mxu0 %v7450
        %8268 = vmatpush1.msra.mxu0 %v7449
        %8269 = vmatprep.subr.mxu0 %v7458
        %8270 = vmatpush1.msra.mxu0 %v7457
        %8271 = vmatprep.subr.mxu0 %v7466
        %8272 = vmatpush1.msra.mxu0 %v7465
        %8273 = vmatprep.subr.mxu0 %v7474
        %8274 = vmatpush1.msra.mxu0 %v7473
        %8275 = vmatprep.subr.mxu0 %v7482
        %8276 = vmatpush1.msra.mxu0 %v7481
        %8277 = vmatprep.subr.mxu0 %v7490
        %8278 = vmatpush1.msra.mxu0 %v7489
        %8279 = vmatprep.subr.mxu0 %v7498
        %8280 = vmatpush1.msra.mxu0 %v7497
        %8281 = vmatprep.subr.mxu0 %v7506
        %8282 = vmatpush1.msra.mxu0 %v7505
        %8283 = vmatprep.subr.mxu0 %v7514
        %8284 = vmatpush1.msra.mxu0 %v7513
        %8285 = vmatprep.subr.mxu0 %v7522
        %8286 = vmatpush1.msra.mxu0 %v7521
        %8287 = vmatprep.subr.mxu0 %v7530
        %8288 = vmatpush1.msra.mxu0 %v7529
        %8289 = vmatprep.subr.mxu0 %v7538
        %8290 = vmatpush1.msra.mxu0 %v7537
        %8291 = vmatprep.subr.mxu0 %v7546
        %8292 = vmatpush1.msra.mxu0 %v7545
        %8293 = vmatprep.mubr.f32.mxu0 %v7288
        %8294 = vmatmul.mubr.f32.gmra.mrb[0].mxu0 %v7287
        %v8295 = vpop.f32.mrb[0].mxu0
        %v8296 = vadd.f32 0.0, %v8295
        %v8297 = vpop.f32.mrb[0].mxu0
        %v8298 = vadd.f32 0.0, %v8297
        %8299 = vdwg.mxu0
        %8300 = vmatprep.subr.mxu0 %v7554
        %8301 = vmatpush1.msra.mxu0 %v7553
        %8302 = vmatprep.subr.mxu0 %v7562
        %8303 = vmatpush1.msra.mxu0 %v7561
        %8304 = vmatprep.subr.mxu0 %v7570
        %8305 = vmatpush1.msra.mxu0 %v7569
        %8306 = vmatprep.subr.mxu0 %v7578
        %8307 = vmatpush1.msra.mxu0 %v7577
        %8308 = vmatprep.subr.mxu0 %v7586
        %8309 = vmatpush1.msra.mxu0 %v7585
        %8310 = vmatprep.subr.mxu0 %v7594
        %8311 = vmatpush1.msra.mxu0 %v7593
        %8312 = vmatprep.subr.mxu0 %v7602
        %8313 = vmatpush1.msra.mxu0 %v7601
        %8314 = vmatprep.subr.mxu0 %v7610
        %8315 = vmatpush1.msra.mxu0 %v7609
        %8316 = vmatprep.subr.mxu0 %v7618
        %8317 = vmatpush1.msra.mxu0 %v7617
        %8318 = vmatprep.subr.mxu0 %v7626
        %8319 = vmatpush1.msra.mxu0 %v7625
        %8320 = vmatprep.subr.mxu0 %v7634
        %8321 = vmatpush1.msra.mxu0 %v7633
        %8322 = vmatprep.subr.mxu0 %v7642
        %8323 = vmatpush1.msra.mxu0 %v7641
        %8324 = vmatprep.subr.mxu0 %v7650
        %8325 = vmatpush1.msra.mxu0 %v7649
        %8326 = vmatprep.subr.mxu0 %v7658
        %8327 = vmatpush1.msra.mxu0 %v7657
        %8328 = vmatprep.subr.mxu0 %v7666
        %8329 = vmatpush1.msra.mxu0 %v7665
        %8330 = vmatprep.subr.mxu0 %v7674
        %8331 = vmatpush1.msra.mxu0 %v7673
        %8332 = vmatprep.subr.mxu0 %v7682
        %8333 = vmatpush1.msra.mxu0 %v7681
        %8334 = vmatprep.subr.mxu0 %v7690
        %8335 = vmatpush1.msra.mxu0 %v7689
        %8336 = vmatprep.subr.mxu0 %v7698
        %8337 = vmatpush1.msra.mxu0 %v7697
        %8338 = vmatprep.subr.mxu0 %v7706
        %8339 = vmatpush1.msra.mxu0 %v7705
        %8340 = vmatprep.subr.mxu0 %v7714
        %8341 = vmatpush1.msra.mxu0 %v7713
        %8342 = vmatprep.subr.mxu0 %v7722
        %8343 = vmatpush1.msra.mxu0 %v7721
        %8344 = vmatprep.subr.mxu0 %v7730
        %8345 = vmatpush1.msra.mxu0 %v7729
        %8346 = vmatprep.subr.mxu0 %v7738
        %8347 = vmatpush1.msra.mxu0 %v7737
        %8348 = vmatprep.subr.mxu0 %v7746
        %8349 = vmatpush1.msra.mxu0 %v7745
        %8350 = vmatprep.subr.mxu0 %v7754
        %8351 = vmatpush1.msra.mxu0 %v7753
        %8352 = vmatprep.subr.mxu0 %v7762
        %8353 = vmatpush1.msra.mxu0 %v7761
        %8354 = vmatprep.subr.mxu0 %v7770
        %8355 = vmatpush1.msra.mxu0 %v7769
        %8356 = vmatprep.subr.mxu0 %v7778
        %8357 = vmatpush1.msra.mxu0 %v7777
        %8358 = vmatprep.subr.mxu0 %v7786
        %8359 = vmatpush1.msra.mxu0 %v7785
        %8360 = vmatprep.subr.mxu0 %v7794
        %8361 = vmatpush1.msra.mxu0 %v7793
        %8362 = vmatprep.subr.mxu0 %v7802
        %8363 = vmatpush1.msra.mxu0 %v7801
        %8364 = vmatprep.mubr.f32.mxu0 %v7290
        %8365 = vmatmul.mubr.f32.gmra.mrb[0].mxu0 %v7289
        %v8366 = vpop.f32.mrb[0].mxu0
        %v8367 = vadd.f32 %v8296, %v8366
        %v8368 = vpop.f32.mrb[0].mxu0
        %v8369 = vadd.f32 %v8298, %v8368
        %8370 = vdwg.mxu0
        %8371 = vst [vmem:[%s265] sm:$0xff] %v7941
        %8372 = vst [vmem:[%s265 + $0x8] sm:$0xff] %v7943
        %8373 = vst [vmem:[%s265 + $0x10] sm:$0xff] %v8083
        %8374 = vst [vmem:[%s265 + $0x18] sm:$0xff] %v8085
        %8375 = vst [vmem:[%s265 + $0x20] sm:$0xff] %v8225
        %8376 = vst [vmem:[%s265 + $0x28] sm:$0xff] %v8227
        %8377 = vst [vmem:[%s265 + $0x30] sm:$0xff] %v8367
        %8378 = vst [vmem:[%s265 + $0x38] sm:$0xff] %v8369
        %s8379 = sand.u32 %s135, 1
        %s8380 = scalar_lea.sflag [#allocation6], %s8379
        %s8381 = sand.u32 %s135, 1
        %s8382 = smul.addr %s8381, 64
        %s8383 = scalar_lea.vmem [#allocation13], %s8382
        // Predicated region
        $region53: #{tpu_custom_call.1} parent=35 // pred_check
          %p8384 = pneg %p145
        $region54: #{tpu_custom_call.1} parent=35 // pred_check_branch
          %8386 = sbr.rel (%p8384) target = $region56
        $region55: #{tpu_custom_call.1} parent=35 // pred_region
          %s8387 = smul.u32 8, %s29
          %s8389 = ssub.s32 1024, 1024
          %8390 = vsyncadd %s8380, %s8389
          %s8391 = smul.addr %s28, 24
          %s8392 = sadd.s32 %s8387, %s8391
          %s8393 = smul.addr %s8392, 128
          %s8394 = scalar_lea.hbm %s4, %s8393
          %s8396 = sshll.u32 %s8383, 4
          %s8397 = int_to_ptr.vmem [resolvable:$true] %s8396
          %8399 = dma.vmem_to_hbm [thread:$0]  %s8397, 1024, %s8394, %s8380
        $region56: #{tpu_custom_call.1} parent=35 // pred_fallthru
          _
      $region36: #{tpu_custom_call.1} parent=5 // pred_fallthru
        _
      %p8400 = scmp.le.s32.totalorder 2, %s19
      // Predicated region
      $region57: #{tpu_custom_call.1} parent=5 // pred_check
        %p8401 = pneg %p8400
      $region58: #{tpu_custom_call.1} parent=5 // pred_check_branch
        %8403 = sbr.rel (%p8401) target = $region60
      $region59: #{tpu_custom_call.1} parent=5 // pred_region
        %s8404 = ssub.s32 %s19, 2
        // Predicated region
        $region61: #{tpu_custom_call.1} parent=59 // pred_check
          %p8405 = pneg %p151
        $region62: #{tpu_custom_call.1} parent=59 // pred_check_branch
          %8407 = sbr.rel (%p8405) target = $region64
        $region63: #{tpu_custom_call.1} parent=59 // pred_region
          %s8408 = sand.u32 %s136, 1
          %s8409 = scalar_lea.sflag [#allocation6], %s8408
          %s8410 = sand.u32 %s136, 1
          %s8411 = smul.addr %s8410, 64
          %s8412 = scalar_lea.vmem [#allocation13], %s8411
          %8413 = dma.done %s8409, 1024
        $region64: #{tpu_custom_call.1} parent=59 // pred_fallthru
          _
      $region60: #{tpu_custom_call.1} parent=5 // pred_fallthru
        _
    $region6: #{tpu_custom_call.1} parent=1 // loop_footer
      %s23 = sadd.s32 1, %s19
    $region7: #{tpu_custom_call.1} parent=1 // loop_footer_branch
      %18 = sbr.rel target = $region3
    $region8: #{tpu_custom_call.1} parent=1 // loop_exit
      _
    %8414 = vsyncpa [#allocation5], 1
    %s8415 = scalar_lea.sflag [#allocation5], 1
    %8416 = vsyncpa %s8415, 1
    %8417 = vsyncpa [#allocation12], 1
    %s8418 = scalar_lea.sflag [#allocation12], 1
    %8419 = vsyncpa %s8418, 1
    %8420 = vsyncpa [#allocation6], 1
    %s8421 = scalar_lea.sflag [#allocation6], 1
    %8422 = vsyncpa %s8421, 1
    %8423 = vsyncpa [#allocation7], 1
    %s8424 = scalar_lea.sflag [#allocation7], 1
    %8425 = vsyncpa %s8424, 1
    %8426 = vsyncpa [#allocation8], 1
    %s8427 = scalar_lea.sflag [#allocation8], 1
    %8428 = vsyncpa %s8427, 1

</llo_original>
